<compile_context>
chip_gen: v5e
topology: v5e:2x2
jax: 0.10.0
libtpu: 0.0.40
codegen_flags: <defaults>
</compile_context>

<pallas_src>
import functools

import numpy as np
import jax
import jax.numpy as jnp
from jax import lax
from jax.experimental import pallas as pl
from jax.experimental.pallas import tpu as pltpu


# ---------------------------------------------------------------------------
# Host-side table construction (numpy, depends only on H, W) -- cached
# ---------------------------------------------------------------------------

def _bilinear_matrix(n_in: int) -> np.ndarray:
    """1-D interp matrix for nn.Upsample(scale_factor=2, mode='bilinear',
    align_corners=False) along one axis: out = A @ in, A is (2*n_in, n_in)."""
    n_out = 2 * n_in
    A = np.zeros((n_out, n_in), np.float32)
    for o in range(n_out):
        src = (o + 0.5) / 2.0 - 0.5
        src = max(src, 0.0)                     # PyTorch clamps negative src to 0
        i0 = min(int(np.floor(src)), n_in - 1)
        frac = src - i0
        i1 = min(i0 + 1, n_in - 1)
        A[o, i0] += 1.0 - frac
        A[o, i1] += frac
    return A


def _upsample_conv_tables(H: int, W: int) -> np.ndarray:
    """For each 3x3 tap (ky, kx) build G_tap of shape (H*W, 2H*2W) such that,
    for one input plane x (H, W),

        flat(x) @ G_tap == flat( shift_{ky-1, kx-1}( zero_pad( upsample2x(x) )))

    i.e. exactly the operand the 3x3 / pad=1 convolution multiplies by
    w[:, :, ky, kx].  G_tap = kron(P_ky^T, Q_kx)."""
    Ho, Wo = 2 * H, 2 * W
    A = _bilinear_matrix(H)        # (Ho, H)
    Bm = _bilinear_matrix(W)       # (Wo, W)
    G = np.zeros((9, H * W, Ho * Wo), np.float32)
    for ky in range(3):
        P = np.zeros((Ho, H), np.float32)          # P[oh, :] = A[oh + ky - 1, :]
        for oh in range(Ho):
            src = oh + ky - 1
            if 0 <= src < Ho:
                P[oh] = A[src]
        for kx in range(3):
            Q = np.zeros((W, Wo), np.float32)      # Q[:, ow] = Bm[ow + kx - 1, :]
            for ow in range(Wo):
                src = ow + kx - 1
                if 0 <= src < Wo:
                    Q[:, ow] = Bm[src]
            G[ky * 3 + kx] = np.kron(P.T, Q)       # (H*W, Ho*Wo)
    return G


@functools.lru_cache(maxsize=8)
def _g_big_bf16(H: int, W: int):
    """Cached (9*HW, 4*HW) bf16 table; entries are exact dyadic fractions
    ({0, .0625, .1875, .25, .5625, .75, 1}) so the bf16 cast is lossless."""
    G = _upsample_conv_tables(H, W)                       # (9, HW, HoWo) f32
    return jnp.asarray(G.reshape(9 * H * W, 4 * H * W), dtype=jnp.bfloat16)


# ---------------------------------------------------------------------------
# Fused Pallas kernel: upsample -> conv3x3(pad=1) -> BN(eval) -> ReLU
# ---------------------------------------------------------------------------

def _fused_up_conv_bn_relu_kernel(x_ref, g_ref, w_ref, scale_ref, shift_ref,
                                  o_ref, z_ref):
    # x_ref:     (B, Cin, H*W)       f32   pixels flattened
    # g_ref:     (9*H*W, Ho*Wo)      bf16  exact dyadic interpolation table
    # w_ref:     (9*Cout, Cin)       f32   conv weight, row = tap*Cout + cout
    # scale_ref: (B*Cout, 1)         f32   folded BN scale (replicated over B)
    # shift_ref: (B*Cout, 1)         f32   folded conv-bias + BN shift
    # o_ref:     (B*Cout, Ho*Wo)     f32   lane-dense output slab
    # z_ref:     (B*Cout, 9*H*W)     f32   scratch: per-tap channel-mixed planes
    B, _, HW = x_ref.shape
    Cout = w_ref.shape[0] // 9

    # --- per-tap channel mixing: Z[(b,c), (tap,p)] = sum_ci w[c,tap,ci] x[b,ci,p]
    for b in range(B):                                    # B static, fully unrolled
        zb = jnp.dot(w_ref[...], x_ref[b],
                     preferred_element_type=jnp.float32)  # (9*Cout, HW), rows (tap,c)
        for tap in range(9):                              # static, contiguous blocks
            z_ref[b * Cout:(b + 1) * Cout, tap * HW:(tap + 1) * HW] = (
                zb[tap * Cout:(tap + 1) * Cout, :])

    # --- one fat matmul against the bf16 table (fed straight to the MXU).
    #     hi/lo bf16 split of Z keeps ~f32 accuracy with bf16 MXU passes.
    z = z_ref[...]                                        # (B*Cout, 9*HW) f32
    z_hi = z.astype(jnp.bfloat16)
    z_lo = (z - z_hi.astype(jnp.float32)).astype(jnp.bfloat16)
    g = g_ref[...]                                        # bf16, no upcast
    acc = jnp.dot(z_hi, g, preferred_element_type=jnp.float32)
    acc = acc + jnp.dot(z_lo, g, preferred_element_type=jnp.float32)

    # --- fused conv-bias + eval-mode BatchNorm affine + ReLU
    y = acc * scale_ref[...] + shift_ref[...]
    o_ref[...] = jnp.maximum(y, 0.0)


# ---------------------------------------------------------------------------
# Wrapper
# ---------------------------------------------------------------------------

def upsample_module_forward(x, params, use_dropout=False, eps=1e-5):
    """x: (B, Cin, H, W) f32 (NCHW).  Returns (B, Cout, 2H, 2W) f32 (NCHW)."""
    B, Cin, H, W = x.shape
    Cout = params["w"].shape[0]
    Ho, Wo = 2 * H, 2 * W
    HW, HoWo = H * W, Ho * Wo

    # Dense-G footprint guard (v7x has only 64 MiB VMEM per core).
    g_bytes = 9 * HW * HoWo * 2
    assert g_bytes <= 40 * 1024 * 1024, (
        "dense interpolation table too large for VMEM at this resolution; "
        "use the separable formulation instead")

    g_big = _g_big_bf16(H, W)                              # (9*HW, HoWo) bf16, cached

    # Free (row-major) reshape: NCHW -> pixels flattened.
    x_flat = x.reshape(B, Cin, HW)

    # Conv weight rows ordered (tap, cout): (Cout, Cin, 3, 3) -> (9*Cout, Cin).
    w_r = jnp.transpose(params["w"], (2, 3, 0, 1)).reshape(9 * Cout, Cin)

    # Fold conv bias + eval-mode BatchNorm into one per-channel affine,
    # replicated per batch row of the (B*Cout, HoWo) output slab.
    scale = params["gamma"] / jnp.sqrt(params["var"] + eps)
    shift = params["beta"] + (params["b"] - params["mean"]) * scale
    scale_rows = jnp.tile(scale.reshape(1, Cout), (B, 1)).reshape(B * Cout, 1)
    shift_rows = jnp.tile(shift.reshape(1, Cout), (B, 1)).reshape(B * Cout, 1)

    flops = (2 * B * (9 * Cout) * Cin * HW           # channel-mix matmuls
             + 2 * 2 * (B * Cout) * (9 * HW) * HoWo  # hi/lo big matmuls
             + 3 * B * Cout * HoWo)                  # affine + relu
    bytes_accessed = (g_big.size * 2 + x_flat.size * 4 + w_r.size * 4
                      + (B * Cout) * (HoWo + 2) * 4)

    vmem_spec = pl.BlockSpec(memory_space=pltpu.MemorySpace.VMEM)
    out_flat = pl.pallas_call(
        _fused_up_conv_bn_relu_kernel,
        out_shape=jax.ShapeDtypeStruct((B * Cout, HoWo), jnp.float32),
        # Single invocation (no grid): every operand is DMA'd exactly once and
        # single-buffered; batch is folded into the matmul M dimension.
        in_specs=[vmem_spec] * 5,
        out_specs=vmem_spec,
        scratch_shapes=[pltpu.VMEM((B * Cout, 9 * HW), jnp.float32)],
        cost_estimate=pl.CostEstimate(flops=int(flops), transcendentals=0,
                                      bytes_accessed=int(bytes_accessed)),
    )(x_flat, g_big, w_r, scale_rows, shift_rows)

    # Free metadata reshape back to NCHW -- no transpose pass over HBM.
    out = out_flat.reshape(B, Cout, Ho, Wo)
    # TODO(synk): train-mode BatchNorm batch statistics and Dropout RNG masking are
    # not implemented; eval-mode (inference) semantics are used, Dropout is identity.
    return out


# ---------------------------------------------------------------------------
# Pure-JAX reference (independent formulation)
# ---------------------------------------------------------------------------

def _reference(x, params, eps=1e-5):
    B, C, H, W = x.shape
    A = jnp.asarray(_bilinear_matrix(H))
    Bw = jnp.asarray(_bilinear_matrix(W))
    up = jnp.einsum('ih,bchw,jw->bcij', A, x, Bw, precision=lax.Precision.HIGHEST)
    xn = jnp.transpose(up, (0, 2, 3, 1))
    w_hwio = jnp.transpose(params["w"], (2, 3, 1, 0))
    y = lax.conv_general_dilated(xn, w_hwio, (1, 1), 'SAME',
                                 dimension_numbers=('NHWC', 'HWIO', 'NHWC'),
                                 precision=lax.Precision.HIGHEST)
    y = y + params["b"]
    scale = params["gamma"] / jnp.sqrt(params["var"] + eps)
    y = (y - params["mean"]) * scale + params["beta"]
    y = jnp.maximum(y, 0.0)
    return jnp.transpose(y, (0, 3, 1, 2))


# ---------------------------------------------------------------------------
# Main
# ---------------------------------------------------------------------------

if __name__ == "__main__":
    B, Cin, H, W = 2, 4, 16, 16
    Cout = 8

    key = jax.random.PRNGKey(0)
    k_x, k_w, k_b, k_g, k_be, k_m, k_v = jax.random.split(key, 7)

    x = jax.random.normal(k_x, (B, Cin, H, W), dtype=jnp.float32)

    fan_in = Cin * 3 * 3
    bound = 1.0 / np.sqrt(fan_in)
    params = {
        "w": jax.random.uniform(k_w, (Cout, Cin, 3, 3), jnp.float32, -bound, bound),
        "b": jax.random.uniform(k_b, (Cout,), jnp.float32, -bound, bound),
        "gamma": jax.random.uniform(k_g, (Cout,), jnp.float32, 0.5, 1.5),
        "beta": 0.1 * jax.random.normal(k_be, (Cout,), jnp.float32),
        "mean": 0.1 * jax.random.normal(k_m, (Cout,), jnp.float32),
        "var": jax.random.uniform(k_v, (Cout,), jnp.float32, 0.5, 1.5),
    }

    out = upsample_module_forward(x, params, use_dropout=False)
    out = jax.block_until_ready(out)

    ref = jax.block_until_ready(_reference(x, params))
    assert out.shape == (B, Cout, 2 * H, 2 * W), out.shape
    err = float(np.max(np.abs(np.asarray(out) - np.asarray(ref))))
    assert np.allclose(np.asarray(out), np.asarray(ref), atol=1e-3, rtol=1e-3), err

    print("KERNEL_OK")
</pallas_src>

<mosaic_0001>
module attributes {stable_mosaic.version = 11 : i64} {
  func.func @_fused_up_conv_bn_relu_kernel(%arg0: memref<2x4x256xf32, #tpu.memory_space<vmem>>, %arg1: memref<2304x1024xbf16, #tpu.memory_space<vmem>>, %arg2: memref<72x4xf32, #tpu.memory_space<vmem>>, %arg3: memref<16x1xf32, #tpu.memory_space<vmem>>, %arg4: memref<16x1xf32, #tpu.memory_space<vmem>>, %arg5: memref<16x1024xf32, #tpu.memory_space<vmem>>, %arg6: memref<16x2304xf32, #tpu.memory_space<vmem>>) attributes {dimension_semantics = [], scalar_prefetch = 0 : i64, scratch_operands = 1 : i64, tpu.core_type = #tpu.core_type<tc>} {
    %c0 = arith.constant 0 : index
    %c0_0 = arith.constant 0 : index
    %0 = vector.load %arg2[%c0, %c0_0] : memref<72x4xf32, #tpu.memory_space<vmem>>, vector<72x4xf32>
    %c0_1 = arith.constant 0 : index
    %c0_2 = arith.constant 0 : index
    %c0_3 = arith.constant 0 : index
    %1 = vector.load %arg0[%c0_1, %c0_2, %c0_3] : memref<2x4x256xf32, #tpu.memory_space<vmem>>, vector<1x4x256xf32>
    %2 = vector.shape_cast %1 : vector<1x4x256xf32> to vector<4x256xf32>
    %cst = arith.constant dense<0.000000e+00> : vector<72x256xf32>
    %3 = tpu.matmul %0, %2, %cst {dimension_numbers = #tpu.dot_dimension_numbers<[1], [0], [0], [1], [0, 0, 1, 1], [], []>} : vector<72x4xf32>, vector<4x256xf32>, vector<72x256xf32> -> vector<72x256xf32>
    %4 = vector.extract_strided_slice %3 {offsets = [0, 0], sizes = [8, 256], strides = [1, 1]} : vector<72x256xf32> to vector<8x256xf32>
    %c0_4 = arith.constant 0 : index
    %c0_5 = arith.constant 0 : index
    %5 = vector.load %arg6[%c0_4, %c0_5] : memref<16x2304xf32, #tpu.memory_space<vmem>>, vector<8x256xf32>
    tpu.vector_store %arg6[%c0_4, %c0_5], %4 {strides = array<i32>} : memref<16x2304xf32, #tpu.memory_space<vmem>>, vector<8x256xf32>,
    %6 = vector.extract_strided_slice %3 {offsets = [8, 0], sizes = [8, 256], strides = [1, 1]} : vector<72x256xf32> to vector<8x256xf32>
    %c0_6 = arith.constant 0 : index
    %c256 = arith.constant 256 : index
    %7 = vector.load %arg6[%c0_6, %c256] : memref<16x2304xf32, #tpu.memory_space<vmem>>, vector<8x256xf32>
    tpu.vector_store %arg6[%c0_6, %c256], %6 {strides = array<i32>} : memref<16x2304xf32, #tpu.memory_space<vmem>>, vector<8x256xf32>,
    %8 = vector.extract_strided_slice %3 {offsets = [16, 0], sizes = [8, 256], strides = [1, 1]} : vector<72x256xf32> to vector<8x256xf32>
    %c0_7 = arith.constant 0 : index
    %c512 = arith.constant 512 : index
    %9 = vector.load %arg6[%c0_7, %c512] : memref<16x2304xf32, #tpu.memory_space<vmem>>, vector<8x256xf32>
    tpu.vector_store %arg6[%c0_7, %c512], %8 {strides = array<i32>} : memref<16x2304xf32, #tpu.memory_space<vmem>>, vector<8x256xf32>,
    %10 = vector.extract_strided_slice %3 {offsets = [24, 0], sizes = [8, 256], strides = [1, 1]} : vector<72x256xf32> to vector<8x256xf32>
    %c0_8 = arith.constant 0 : index
    %c768 = arith.constant 768 : index
    %11 = vector.load %arg6[%c0_8, %c768] : memref<16x2304xf32, #tpu.memory_space<vmem>>, vector<8x256xf32>
    tpu.vector_store %arg6[%c0_8, %c768], %10 {strides = array<i32>} : memref<16x2304xf32, #tpu.memory_space<vmem>>, vector<8x256xf32>,
    %12 = vector.extract_strided_slice %3 {offsets = [32, 0], sizes = [8, 256], strides = [1, 1]} : vector<72x256xf32> to vector<8x256xf32>
    %c0_9 = arith.constant 0 : index
    %c1024 = arith.constant 1024 : index
    %13 = vector.load %arg6[%c0_9, %c1024] : memref<16x2304xf32, #tpu.memory_space<vmem>>, vector<8x256xf32>
    tpu.vector_store %arg6[%c0_9, %c1024], %12 {strides = array<i32>} : memref<16x2304xf32, #tpu.memory_space<vmem>>, vector<8x256xf32>,
    %14 = vector.extract_strided_slice %3 {offsets = [40, 0], sizes = [8, 256], strides = [1, 1]} : vector<72x256xf32> to vector<8x256xf32>
    %c0_10 = arith.constant 0 : index
    %c1280 = arith.constant 1280 : index
    %15 = vector.load %arg6[%c0_10, %c1280] : memref<16x2304xf32, #tpu.memory_space<vmem>>, vector<8x256xf32>
    tpu.vector_store %arg6[%c0_10, %c1280], %14 {strides = array<i32>} : memref<16x2304xf32, #tpu.memory_space<vmem>>, vector<8x256xf32>,
    %16 = vector.extract_strided_slice %3 {offsets = [48, 0], sizes = [8, 256], strides = [1, 1]} : vector<72x256xf32> to vector<8x256xf32>
    %c0_11 = arith.constant 0 : index
    %c1536 = arith.constant 1536 : index
    %17 = vector.load %arg6[%c0_11, %c1536] : memref<16x2304xf32, #tpu.memory_space<vmem>>, vector<8x256xf32>
    tpu.vector_store %arg6[%c0_11, %c1536], %16 {strides = array<i32>} : memref<16x2304xf32, #tpu.memory_space<vmem>>, vector<8x256xf32>,
    %18 = vector.extract_strided_slice %3 {offsets = [56, 0], sizes = [8, 256], strides = [1, 1]} : vector<72x256xf32> to vector<8x256xf32>
    %c0_12 = arith.constant 0 : index
    %c1792 = arith.constant 1792 : index
    %19 = vector.load %arg6[%c0_12, %c1792] : memref<16x2304xf32, #tpu.memory_space<vmem>>, vector<8x256xf32>
    tpu.vector_store %arg6[%c0_12, %c1792], %18 {strides = array<i32>} : memref<16x2304xf32, #tpu.memory_space<vmem>>, vector<8x256xf32>,
    %20 = vector.extract_strided_slice %3 {offsets = [64, 0], sizes = [8, 256], strides = [1, 1]} : vector<72x256xf32> to vector<8x256xf32>
    %c0_13 = arith.constant 0 : index
    %c2048 = arith.constant 2048 : index
    %21 = vector.load %arg6[%c0_13, %c2048] : memref<16x2304xf32, #tpu.memory_space<vmem>>, vector<8x256xf32>
    tpu.vector_store %arg6[%c0_13, %c2048], %20 {strides = array<i32>} : memref<16x2304xf32, #tpu.memory_space<vmem>>, vector<8x256xf32>,
    %c0_14 = arith.constant 0 : index
    %c0_15 = arith.constant 0 : index
    %22 = vector.load %arg2[%c0_14, %c0_15] : memref<72x4xf32, #tpu.memory_space<vmem>>, vector<72x4xf32>
    %c1 = arith.constant 1 : index
    %c0_16 = arith.constant 0 : index
    %c0_17 = arith.constant 0 : index
    %23 = vector.load %arg0[%c1, %c0_16, %c0_17] : memref<2x4x256xf32, #tpu.memory_space<vmem>>, vector<1x4x256xf32>
    %24 = vector.shape_cast %23 : vector<1x4x256xf32> to vector<4x256xf32>
    %cst_18 = arith.constant dense<0.000000e+00> : vector<72x256xf32>
    %25 = tpu.matmul %22, %24, %cst_18 {dimension_numbers = #tpu.dot_dimension_numbers<[1], [0], [0], [1], [0, 0, 1, 1], [], []>} : vector<72x4xf32>, vector<4x256xf32>, vector<72x256xf32> -> vector<72x256xf32>
    %26 = vector.extract_strided_slice %25 {offsets = [0, 0], sizes = [8, 256], strides = [1, 1]} : vector<72x256xf32> to vector<8x256xf32>
    %c8 = arith.constant 8 : index
    %c0_19 = arith.constant 0 : index
    %27 = vector.load %arg6[%c8, %c0_19] : memref<16x2304xf32, #tpu.memory_space<vmem>>, vector<8x256xf32>
    tpu.vector_store %arg6[%c8, %c0_19], %26 {strides = array<i32>} : memref<16x2304xf32, #tpu.memory_space<vmem>>, vector<8x256xf32>,
    %28 = vector.extract_strided_slice %25 {offsets = [8, 0], sizes = [8, 256], strides = [1, 1]} : vector<72x256xf32> to vector<8x256xf32>
    %c8_20 = arith.constant 8 : index
    %c256_21 = arith.constant 256 : index
    %29 = vector.load %arg6[%c8_20, %c256_21] : memref<16x2304xf32, #tpu.memory_space<vmem>>, vector<8x256xf32>
    tpu.vector_store %arg6[%c8_20, %c256_21], %28 {strides = array<i32>} : memref<16x2304xf32, #tpu.memory_space<vmem>>, vector<8x256xf32>,
    %30 = vector.extract_strided_slice %25 {offsets = [16, 0], sizes = [8, 256], strides = [1, 1]} : vector<72x256xf32> to vector<8x256xf32>
    %c8_22 = arith.constant 8 : index
    %c512_23 = arith.constant 512 : index
    %31 = vector.load %arg6[%c8_22, %c512_23] : memref<16x2304xf32, #tpu.memory_space<vmem>>, vector<8x256xf32>
    tpu.vector_store %arg6[%c8_22, %c512_23], %30 {strides = array<i32>} : memref<16x2304xf32, #tpu.memory_space<vmem>>, vector<8x256xf32>,
    %32 = vector.extract_strided_slice %25 {offsets = [24, 0], sizes = [8, 256], strides = [1, 1]} : vector<72x256xf32> to vector<8x256xf32>
    %c8_24 = arith.constant 8 : index
    %c768_25 = arith.constant 768 : index
    %33 = vector.load %arg6[%c8_24, %c768_25] : memref<16x2304xf32, #tpu.memory_space<vmem>>, vector<8x256xf32>
    tpu.vector_store %arg6[%c8_24, %c768_25], %32 {strides = array<i32>} : memref<16x2304xf32, #tpu.memory_space<vmem>>, vector<8x256xf32>,
    %34 = vector.extract_strided_slice %25 {offsets = [32, 0], sizes = [8, 256], strides = [1, 1]} : vector<72x256xf32> to vector<8x256xf32>
    %c8_26 = arith.constant 8 : index
    %c1024_27 = arith.constant 1024 : index
    %35 = vector.load %arg6[%c8_26, %c1024_27] : memref<16x2304xf32, #tpu.memory_space<vmem>>, vector<8x256xf32>
    tpu.vector_store %arg6[%c8_26, %c1024_27], %34 {strides = array<i32>} : memref<16x2304xf32, #tpu.memory_space<vmem>>, vector<8x256xf32>,
    %36 = vector.extract_strided_slice %25 {offsets = [40, 0], sizes = [8, 256], strides = [1, 1]} : vector<72x256xf32> to vector<8x256xf32>
    %c8_28 = arith.constant 8 : index
    %c1280_29 = arith.constant 1280 : index
    %37 = vector.load %arg6[%c8_28, %c1280_29] : memref<16x2304xf32, #tpu.memory_space<vmem>>, vector<8x256xf32>
    tpu.vector_store %arg6[%c8_28, %c1280_29], %36 {strides = array<i32>} : memref<16x2304xf32, #tpu.memory_space<vmem>>, vector<8x256xf32>,
    %38 = vector.extract_strided_slice %25 {offsets = [48, 0], sizes = [8, 256], strides = [1, 1]} : vector<72x256xf32> to vector<8x256xf32>
    %c8_30 = arith.constant 8 : index
    %c1536_31 = arith.constant 1536 : index
    %39 = vector.load %arg6[%c8_30, %c1536_31] : memref<16x2304xf32, #tpu.memory_space<vmem>>, vector<8x256xf32>
    tpu.vector_store %arg6[%c8_30, %c1536_31], %38 {strides = array<i32>} : memref<16x2304xf32, #tpu.memory_space<vmem>>, vector<8x256xf32>,
    %40 = vector.extract_strided_slice %25 {offsets = [56, 0], sizes = [8, 256], strides = [1, 1]} : vector<72x256xf32> to vector<8x256xf32>
    %c8_32 = arith.constant 8 : index
    %c1792_33 = arith.constant 1792 : index
    %41 = vector.load %arg6[%c8_32, %c1792_33] : memref<16x2304xf32, #tpu.memory_space<vmem>>, vector<8x256xf32>
    tpu.vector_store %arg6[%c8_32, %c1792_33], %40 {strides = array<i32>} : memref<16x2304xf32, #tpu.memory_space<vmem>>, vector<8x256xf32>,
    %42 = vector.extract_strided_slice %25 {offsets = [64, 0], sizes = [8, 256], strides = [1, 1]} : vector<72x256xf32> to vector<8x256xf32>
    %c8_34 = arith.constant 8 : index
    %c2048_35 = arith.constant 2048 : index
    %43 = vector.load %arg6[%c8_34, %c2048_35] : memref<16x2304xf32, #tpu.memory_space<vmem>>, vector<8x256xf32>
    tpu.vector_store %arg6[%c8_34, %c2048_35], %42 {strides = array<i32>} : memref<16x2304xf32, #tpu.memory_space<vmem>>, vector<8x256xf32>,
    %c0_36 = arith.constant 0 : index
    %c0_37 = arith.constant 0 : index
    %44 = vector.load %arg6[%c0_36, %c0_37] : memref<16x2304xf32, #tpu.memory_space<vmem>>, vector<16x2304xf32>
    %45 = arith.truncf %44 : vector<16x2304xf32> to vector<16x2304xbf16>
    %46 = arith.extf %45 : vector<16x2304xbf16> to vector<16x2304xf32>
    %47 = arith.subf %44, %46 : vector<16x2304xf32>
    %48 = arith.truncf %47 : vector<16x2304xf32> to vector<16x2304xbf16>
    %c0_38 = arith.constant 0 : index
    %c0_39 = arith.constant 0 : index
    %49 = vector.load %arg1[%c0_38, %c0_39] : memref<2304x1024xbf16, #tpu.memory_space<vmem>>, vector<2304x1024xbf16>
    %cst_40 = arith.constant dense<0.000000e+00> : vector<16x1024xf32>
    %50 = tpu.matmul %45, %49, %cst_40 {dimension_numbers = #tpu.dot_dimension_numbers<[1], [0], [0], [1], [0, 0, 1, 1], [], []>} : vector<16x2304xbf16>, vector<2304x1024xbf16>, vector<16x1024xf32> -> vector<16x1024xf32>
    %cst_41 = arith.constant dense<0.000000e+00> : vector<16x1024xf32>
    %51 = tpu.matmul %48, %49, %cst_41 {dimension_numbers = #tpu.dot_dimension_numbers<[1], [0], [0], [1], [0, 0, 1, 1], [], []>} : vector<16x2304xbf16>, vector<2304x1024xbf16>, vector<16x1024xf32> -> vector<16x1024xf32>
    %52 = arith.addf %50, %51 : vector<16x1024xf32>
    %c0_42 = arith.constant 0 : index
    %c0_43 = arith.constant 0 : index
    %53 = vector.load %arg3[%c0_42, %c0_43] : memref<16x1xf32, #tpu.memory_space<vmem>>, vector<16x1xf32>
    %54 = vector.broadcast %53 : vector<16x1xf32> to vector<16x1024xf32>
    %55 = arith.mulf %52, %54 : vector<16x1024xf32>
    %c0_44 = arith.constant 0 : index
    %c0_45 = arith.constant 0 : index
    %56 = vector.load %arg4[%c0_44, %c0_45] : memref<16x1xf32, #tpu.memory_space<vmem>>, vector<16x1xf32>
    %57 = vector.broadcast %56 : vector<16x1xf32> to vector<16x1024xf32>
    %58 = arith.addf %55, %57 : vector<16x1024xf32>
    %cst_46 = arith.constant 0.000000e+00 : f32
    %59 = vector.broadcast %cst_46 : f32 to vector<16x1024xf32>
    %60 = arith.maximumf %58, %59 : vector<16x1024xf32>
    %c0_47 = arith.constant 0 : index
    %c0_48 = arith.constant 0 : index
    %61 = vector.load %arg5[%c0_47, %c0_48] : memref<16x1024xf32, #tpu.memory_space<vmem>>, vector<16x1024xf32>
    tpu.vector_store %arg5[%c0_47, %c0_48], %60 {strides = array<i32>} : memref<16x1024xf32, #tpu.memory_space<vmem>>, vector<16x1024xf32>,
    return
  }
}

</mosaic_0001>

<llo_original>
// kernel: tpu_custom_call.1
$region0: #{tpu_custom_call.1}
  #allocation0 [shape = 'u32[]', space=smem, size = 0x4, offset = 0x4, fixed_abs, tag = 'smem constant byte address 0x4 - core index']
  #allocation1 [shape = 'u32[72,128]{1,0:T(1,128)}', space=vmem, size = 0x9000, scoped, tag = 'internal scratch']
  #allocation2 [shape = 'f32[16,2304]{1,0:T(8,128)}', space=vmem, size = 0x24000, scoped, tag = 'scratch operand']
  %s0 = inlined_call_operand.hbm [shape: f32[2,4,256], index: 0, kind: input, shape index: {}]
  %s1 = inlined_call_operand.hbm [shape: bf16[2304,1024], index: 1, kind: input, shape index: {}]
  %s2 = inlined_call_operand.vmem [shape: f32[72,4], index: 2, kind: input, shape index: {}]
  %s3 = inlined_call_operand.vmem [shape: f32[16,1], index: 3, kind: input, shape index: {}]
  %s4 = inlined_call_operand.vmem [shape: f32[16,1], index: 4, kind: input, shape index: {}]
  %s5 = inlined_call_operand.hbm [shape: f32[16,1024], index: 5, kind: output, shape index: {}]
  %s6 = sld [smem:[#allocation0]]
  $region38: #{tpu_custom_call.1} parent=0
    _
  %s8 = ssub.s32 1, %s6
  %s9 = scalar_select 0, %s8, %s6
  $region1: #{tpu_custom_call.1} parent=0
    #allocation3 [shape = 'u8[8192]{0}', space=vmem, size = 0x2000, scoped, tag = 'input window, operand 0, single buffered']
    #allocation4 [shape = 's32[1]{0}', space=sflag, size = 0x4, scoped, tag = 'scoped memory for tpu_custom_call.1']
    #allocation5 [shape = 's32[1]{0}', space=sflag, size = 0x4, scoped, tag = 'scoped memory for tpu_custom_call.1']
    #allocation6 [shape = 'u8[4718592]{0}', space=vmem, size = 0x480000, scoped, tag = 'input window, operand 1, single buffered']
    #allocation7 [shape = 's32[1]{0}', space=sflag, size = 0x4, scoped, tag = 'scoped memory for tpu_custom_call.1']
    #allocation8 [shape = 'u8[65536]{0}', space=vmem, size = 0x10000, scoped, tag = 'output window, operand 0, single buffered']
    %10 = vsyncpa [#allocation4], 0
    %11 = vsyncpa [#allocation7], 0
    %12 = vsyncpa [#allocation5], 0
    // Predicated region
    $region2: #{tpu_custom_call.1} parent=1 // pred_check
      _
    $region3: #{tpu_custom_call.1} parent=1 // pred_check_branch
      %14 = sbr.rel (0) target = $region5
    $region4: #{tpu_custom_call.1} parent=1 // pred_region
      %16 = vsyncadd [#allocation4], 0
      %s17 = sshll.u32 %s0, 4
      %s18 = int_to_ptr.hbm [resolvable:$true] %s17
      %s19 = sshll.u32 [#allocation3], 4
      %s20 = int_to_ptr.vmem [resolvable:$true] %s19
      %25 = dma.hbm_to_vmem [thread:$0]  %s18, 256, %s20, [#allocation4], 128, 128, 8
    $region5: #{tpu_custom_call.1} parent=1 // pred_fallthru
      _
    // Predicated region
    $region6: #{tpu_custom_call.1} parent=1 // pred_check
      _
    $region7: #{tpu_custom_call.1} parent=1 // pred_check_branch
      %27 = sbr.rel (0) target = $region9
    $region8: #{tpu_custom_call.1} parent=1 // pred_region
      %29 = vsyncadd [#allocation7], 0
      %s30 = sshll.u32 %s1, 4
      %s31 = int_to_ptr.hbm [resolvable:$true] %s30
      %s32 = sshll.u32 [#allocation6], 4
      %s33 = int_to_ptr.vmem [resolvable:$true] %s32
      %38 = dma.hbm_to_vmem [thread:$0]  %s31, 147456, %s33, [#allocation7], 512, 512, 32
    $region9: #{tpu_custom_call.1} parent=1 // pred_fallthru
      _
    // Predicated region
    $region10: #{tpu_custom_call.1} parent=1 // pred_check
      _
    $region11: #{tpu_custom_call.1} parent=1 // pred_check_branch
      %40 = sbr.rel (0) target = $region13
    $region12: #{tpu_custom_call.1} parent=1 // pred_region
      _
    $region13: #{tpu_custom_call.1} parent=1 // pred_fallthru
      _
    // Predicated region
    $region14: #{tpu_custom_call.1} parent=1 // pred_check
      _
    $region15: #{tpu_custom_call.1} parent=1 // pred_check_branch
      %42 = sbr.rel (0) target = $region17
    $region16: #{tpu_custom_call.1} parent=1 // pred_region
      _
    $region17: #{tpu_custom_call.1} parent=1 // pred_fallthru
      _
    // Predicated region
    $region18: #{tpu_custom_call.1} parent=1 // pred_check
      _
    $region19: #{tpu_custom_call.1} parent=1 // pred_check_branch
      %44 = sbr.rel (0) target = $region21
    $region20: #{tpu_custom_call.1} parent=1 // pred_region
      _
    $region21: #{tpu_custom_call.1} parent=1 // pred_fallthru
      _
    // Predicated region
    $region22: #{tpu_custom_call.1} parent=1 // pred_check
      _
    $region23: #{tpu_custom_call.1} parent=1 // pred_check_branch
      %46 = sbr.rel (0) target = $region25
    $region24: #{tpu_custom_call.1} parent=1 // pred_region
      %48 = dma.done [#allocation4], 256
    $region25: #{tpu_custom_call.1} parent=1 // pred_fallthru
      _
    // Predicated region
    $region26: #{tpu_custom_call.1} parent=1 // pred_check
      _
    $region27: #{tpu_custom_call.1} parent=1 // pred_check_branch
      %50 = sbr.rel (0) target = $region29
    $region28: #{tpu_custom_call.1} parent=1 // pred_region
      %52 = dma.done [#allocation7], 147456
    $region29: #{tpu_custom_call.1} parent=1 // pred_fallthru
      _
    %v53 = vld [vmem:[%s2] sm:$0xff]
    %v54 = vld [vmem:[%s2 + $0x8] sm:$0xff]
    %v55 = vld [vmem:[%s2 + $0x10] sm:$0xff]
    %v56 = vld [vmem:[%s2 + $0x18] sm:$0xff]
    %v57 = vld [vmem:[%s2 + $0x20] sm:$0xff]
    %v58 = vld [vmem:[%s2 + $0x28] sm:$0xff]
    %v59 = vld [vmem:[%s2 + $0x30] sm:$0xff]
    %v60 = vld [vmem:[%s2 + $0x38] sm:$0xff]
    %v61 = vld [vmem:[%s2 + $0x40] sm:$0xff]
    %v62 = vld [vmem:[#allocation3] sm:$0xff]
    %64 = vst [vmem:[#allocation1] ss:$2 sm:$0xff] %v62
    %v65 = vld.sshfl [vmem:[#allocation1] sm:$0xff pattern:$0x75316420]
    %v66 = vld.sshfl [vmem:[#allocation1 + $0x8] sm:$0xff pattern:$0x75316420]
    %vm67 = vcmask 31744
    %v69 = vsel %vm67, %v53, 0
    %v72 = vsel %vm67, %v54, 0
    %v75 = vsel %vm67, %v55, 0
    %v78 = vsel %vm67, %v56, 0
    %v81 = vsel %vm67, %v57, 0
    %v84 = vsel %vm67, %v58, 0
    %v87 = vsel %vm67, %v59, 0
    %v90 = vsel %vm67, %v60, 0
    %v93 = vsel %vm67, %v61, 0
    %vm95 = vcmask 1043456
    %v96 = vsel %vm95, %v65, 0
    %v98 = vsel %vm95, %v66, 0
    %100 = vmatpush.msra.mxu0 0.0
    %101 = vmatpush.msra.mxu0 0.0
    %102 = vmatpush.msra.mxu0 0.0
    %103 = vmatpush.msra.mxu0 0.0
    %104 = vmatpush.msra.mxu0 0.0
    %105 = vmatpush.msra.mxu0 0.0
    %106 = vmatpush.msra.mxu0 0.0
    %107 = vmatpush.msra.mxu0 0.0
    %108 = vmatpush.msra.mxu0 0.0
    %109 = vmatpush.msra.mxu0 0.0
    %110 = vmatpush.msra.mxu0 0.0
    %111 = vmatpush.msra.mxu0 0.0
    %112 = vmatpush.msra.mxu0 0.0
    %113 = vmatpush.msra.mxu0 0.0
    %114 = vmatpush.msra.mxu0 0.0
    %115 = vmatpush.msra.mxu0 %v96
    %116 = vmatmul.f32.gmra.mxu0 %v69
    %v117 = vpop.f32.mrf.mxu0
    %v118 = vadd.f32 0.0, %v117
    %119 = vmatmul.f32.gmra.mxu0 %v72
    %v120 = vpop.f32.mrf.mxu0
    %v121 = vadd.f32 0.0, %v120
    %122 = vmatmul.f32.gmra.mxu0 %v75
    %v123 = vpop.f32.mrf.mxu0
    %v124 = vadd.f32 0.0, %v123
    %125 = vmatmul.f32.gmra.mxu0 %v78
    %v126 = vpop.f32.mrf.mxu0
    %v127 = vadd.f32 0.0, %v126
    %128 = vmatmul.f32.gmra.mxu0 %v81
    %v129 = vpop.f32.mrf.mxu0
    %v130 = vadd.f32 0.0, %v129
    %131 = vmatmul.f32.gmra.mxu0 %v84
    %v132 = vpop.f32.mrf.mxu0
    %v133 = vadd.f32 0.0, %v132
    %134 = vmatmul.f32.gmra.mxu0 %v87
    %v135 = vpop.f32.mrf.mxu0
    %v136 = vadd.f32 0.0, %v135
    %137 = vmatmul.f32.gmra.mxu0 %v90
    %v138 = vpop.f32.mrf.mxu0
    %v139 = vadd.f32 0.0, %v138
    %140 = vmatmul.f32.gmra.mxu0 %v93
    %v141 = vpop.f32.mrf.mxu0
    %v142 = vadd.f32 0.0, %v141
    %143 = vdwg.mxu0
    %144 = vmatpush.msra.mxu0 0.0
    %145 = vmatpush.msra.mxu0 0.0
    %146 = vmatpush.msra.mxu0 0.0
    %147 = vmatpush.msra.mxu0 0.0
    %148 = vmatpush.msra.mxu0 0.0
    %149 = vmatpush.msra.mxu0 0.0
    %150 = vmatpush.msra.mxu0 0.0
    %151 = vmatpush.msra.mxu0 0.0
    %152 = vmatpush.msra.mxu0 0.0
    %153 = vmatpush.msra.mxu0 0.0
    %154 = vmatpush.msra.mxu0 0.0
    %155 = vmatpush.msra.mxu0 0.0
    %156 = vmatpush.msra.mxu0 0.0
    %157 = vmatpush.msra.mxu0 0.0
    %158 = vmatpush.msra.mxu0 0.0
    %159 = vmatpush.msra.mxu0 %v98
    %160 = vmatmul.f32.gmra.mxu0 %v69
    %v161 = vpop.f32.mrf.mxu0
    %v162 = vadd.f32 0.0, %v161
    %163 = vmatmul.f32.gmra.mxu0 %v72
    %v164 = vpop.f32.mrf.mxu0
    %v165 = vadd.f32 0.0, %v164
    %166 = vmatmul.f32.gmra.mxu0 %v75
    %v167 = vpop.f32.mrf.mxu0
    %v168 = vadd.f32 0.0, %v167
    %169 = vmatmul.f32.gmra.mxu0 %v78
    %v170 = vpop.f32.mrf.mxu0
    %v171 = vadd.f32 0.0, %v170
    %172 = vmatmul.f32.gmra.mxu0 %v81
    %v173 = vpop.f32.mrf.mxu0
    %v174 = vadd.f32 0.0, %v173
    %175 = vmatmul.f32.gmra.mxu0 %v84
    %v176 = vpop.f32.mrf.mxu0
    %v177 = vadd.f32 0.0, %v176
    %178 = vmatmul.f32.gmra.mxu0 %v87
    %v179 = vpop.f32.mrf.mxu0
    %v180 = vadd.f32 0.0, %v179
    %181 = vmatmul.f32.gmra.mxu0 %v90
    %v182 = vpop.f32.mrf.mxu0
    %v183 = vadd.f32 0.0, %v182
    %184 = vmatmul.f32.gmra.mxu0 %v93
    %v185 = vpop.f32.mrf.mxu0
    %v186 = vadd.f32 0.0, %v185
    %187 = vdwg.mxu0
    %188 = vst [vmem:[#allocation2] sm:$0xff] %v118
    %189 = vst [vmem:[#allocation2 + $0x8] sm:$0xff] %v162
    %190 = vst [vmem:[#allocation2 + $0x10] sm:$0xff] %v121
    %191 = vst [vmem:[#allocation2 + $0x18] sm:$0xff] %v165
    %192 = vst [vmem:[#allocation2 + $0x20] sm:$0xff] %v124
    %193 = vst [vmem:[#allocation2 + $0x28] sm:$0xff] %v168
    %194 = vst [vmem:[#allocation2 + $0x30] sm:$0xff] %v127
    %195 = vst [vmem:[#allocation2 + $0x38] sm:$0xff] %v171
    %196 = vst [vmem:[#allocation2 + $0x40] sm:$0xff] %v130
    %197 = vst [vmem:[#allocation2 + $0x48] sm:$0xff] %v174
    %198 = vst [vmem:[#allocation2 + $0x50] sm:$0xff] %v133
    %199 = vst [vmem:[#allocation2 + $0x58] sm:$0xff] %v177
    %200 = vst [vmem:[#allocation2 + $0x60] sm:$0xff] %v136
    %201 = vst [vmem:[#allocation2 + $0x68] sm:$0xff] %v180
    %202 = vst [vmem:[#allocation2 + $0x70] sm:$0xff] %v139
    %203 = vst [vmem:[#allocation2 + $0x78] sm:$0xff] %v183
    %204 = vst [vmem:[#allocation2 + $0x80] sm:$0xff] %v142
    %205 = vst [vmem:[#allocation2 + $0x88] sm:$0xff] %v186
    %v206 = vld [vmem:[%s2] sm:$0xff]
    %v207 = vld [vmem:[%s2 + $0x8] sm:$0xff]
    %v208 = vld [vmem:[%s2 + $0x10] sm:$0xff]
    %v209 = vld [vmem:[%s2 + $0x18] sm:$0xff]
    %v210 = vld [vmem:[%s2 + $0x20] sm:$0xff]
    %v211 = vld [vmem:[%s2 + $0x28] sm:$0xff]
    %v212 = vld [vmem:[%s2 + $0x30] sm:$0xff]
    %v213 = vld [vmem:[%s2 + $0x38] sm:$0xff]
    %v214 = vld [vmem:[%s2 + $0x40] sm:$0xff]
    %s215 = scalar_lea.vmem [#allocation3], 8
    %v216 = vld [vmem:[%s215] sm:$0xff]
    %218 = vst [vmem:[#allocation1] ss:$2 sm:$0xff] %v216
    %v219 = vld.sshfl [vmem:[#allocation1] sm:$0xff pattern:$0x75316420]
    %v220 = vld.sshfl [vmem:[#allocation1 + $0x8] sm:$0xff pattern:$0x75316420]
    %v222 = vsel %vm67, %v206, 0
    %v225 = vsel %vm67, %v207, 0
    %v228 = vsel %vm67, %v208, 0
    %v231 = vsel %vm67, %v209, 0
    %v234 = vsel %vm67, %v210, 0
    %v237 = vsel %vm67, %v211, 0
    %v240 = vsel %vm67, %v212, 0
    %v243 = vsel %vm67, %v213, 0
    %v246 = vsel %vm67, %v214, 0
    %v248 = vsel %vm95, %v219, 0
    %v250 = vsel %vm95, %v220, 0
    %252 = vmatpush.msra.mxu0 0.0
    %253 = vmatpush.msra.mxu0 0.0
    %254 = vmatpush.msra.mxu0 0.0
    %255 = vmatpush.msra.mxu0 0.0
    %256 = vmatpush.msra.mxu0 0.0
    %257 = vmatpush.msra.mxu0 0.0
    %258 = vmatpush.msra.mxu0 0.0
    %259 = vmatpush.msra.mxu0 0.0
    %260 = vmatpush.msra.mxu0 0.0
    %261 = vmatpush.msra.mxu0 0.0
    %262 = vmatpush.msra.mxu0 0.0
    %263 = vmatpush.msra.mxu0 0.0
    %264 = vmatpush.msra.mxu0 0.0
    %265 = vmatpush.msra.mxu0 0.0
    %266 = vmatpush.msra.mxu0 0.0
    %267 = vmatpush.msra.mxu0 %v248
    %268 = vmatmul.f32.gmra.mxu0 %v222
    %v269 = vpop.f32.mrf.mxu0
    %v270 = vadd.f32 0.0, %v269
    %271 = vmatmul.f32.gmra.mxu0 %v225
    %v272 = vpop.f32.mrf.mxu0
    %v273 = vadd.f32 0.0, %v272
    %274 = vmatmul.f32.gmra.mxu0 %v228
    %v275 = vpop.f32.mrf.mxu0
    %v276 = vadd.f32 0.0, %v275
    %277 = vmatmul.f32.gmra.mxu0 %v231
    %v278 = vpop.f32.mrf.mxu0
    %v279 = vadd.f32 0.0, %v278
    %280 = vmatmul.f32.gmra.mxu0 %v234
    %v281 = vpop.f32.mrf.mxu0
    %v282 = vadd.f32 0.0, %v281
    %283 = vmatmul.f32.gmra.mxu0 %v237
    %v284 = vpop.f32.mrf.mxu0
    %v285 = vadd.f32 0.0, %v284
    %286 = vmatmul.f32.gmra.mxu0 %v240
    %v287 = vpop.f32.mrf.mxu0
    %v288 = vadd.f32 0.0, %v287
    %289 = vmatmul.f32.gmra.mxu0 %v243
    %v290 = vpop.f32.mrf.mxu0
    %v291 = vadd.f32 0.0, %v290
    %292 = vmatmul.f32.gmra.mxu0 %v246
    %v293 = vpop.f32.mrf.mxu0
    %v294 = vadd.f32 0.0, %v293
    %295 = vdwg.mxu0
    %296 = vmatpush.msra.mxu0 0.0
    %297 = vmatpush.msra.mxu0 0.0
    %298 = vmatpush.msra.mxu0 0.0
    %299 = vmatpush.msra.mxu0 0.0
    %300 = vmatpush.msra.mxu0 0.0
    %301 = vmatpush.msra.mxu0 0.0
    %302 = vmatpush.msra.mxu0 0.0
    %303 = vmatpush.msra.mxu0 0.0
    %304 = vmatpush.msra.mxu0 0.0
    %305 = vmatpush.msra.mxu0 0.0
    %306 = vmatpush.msra.mxu0 0.0
    %307 = vmatpush.msra.mxu0 0.0
    %308 = vmatpush.msra.mxu0 0.0
    %309 = vmatpush.msra.mxu0 0.0
    %310 = vmatpush.msra.mxu0 0.0
    %311 = vmatpush.msra.mxu0 %v250
    %312 = vmatmul.f32.gmra.mxu0 %v222
    %v313 = vpop.f32.mrf.mxu0
    %v314 = vadd.f32 0.0, %v313
    %315 = vmatmul.f32.gmra.mxu0 %v225
    %v316 = vpop.f32.mrf.mxu0
    %v317 = vadd.f32 0.0, %v316
    %318 = vmatmul.f32.gmra.mxu0 %v228
    %v319 = vpop.f32.mrf.mxu0
    %v320 = vadd.f32 0.0, %v319
    %321 = vmatmul.f32.gmra.mxu0 %v231
    %v322 = vpop.f32.mrf.mxu0
    %v323 = vadd.f32 0.0, %v322
    %324 = vmatmul.f32.gmra.mxu0 %v234
    %v325 = vpop.f32.mrf.mxu0
    %v326 = vadd.f32 0.0, %v325
    %327 = vmatmul.f32.gmra.mxu0 %v237
    %v328 = vpop.f32.mrf.mxu0
    %v329 = vadd.f32 0.0, %v328
    %330 = vmatmul.f32.gmra.mxu0 %v240
    %v331 = vpop.f32.mrf.mxu0
    %v332 = vadd.f32 0.0, %v331
    %333 = vmatmul.f32.gmra.mxu0 %v243
    %v334 = vpop.f32.mrf.mxu0
    %v335 = vadd.f32 0.0, %v334
    %336 = vmatmul.f32.gmra.mxu0 %v246
    %v337 = vpop.f32.mrf.mxu0
    %v338 = vadd.f32 0.0, %v337
    %339 = vdwg.mxu0
    %340 = vst [vmem:[#allocation2 + $0x90] sm:$0xff] %v270
    %341 = vst [vmem:[#allocation2 + $0x98] sm:$0xff] %v314
    %342 = vst [vmem:[#allocation2 + $0xa0] sm:$0xff] %v273
    %343 = vst [vmem:[#allocation2 + $0xa8] sm:$0xff] %v317
    %344 = vst [vmem:[#allocation2 + $0xb0] sm:$0xff] %v276
    %345 = vst [vmem:[#allocation2 + $0xb8] sm:$0xff] %v320
    %346 = vst [vmem:[#allocation2 + $0xc0] sm:$0xff] %v279
    %347 = vst [vmem:[#allocation2 + $0xc8] sm:$0xff] %v323
    %348 = vst [vmem:[#allocation2 + $0xd0] sm:$0xff] %v282
    %349 = vst [vmem:[#allocation2 + $0xd8] sm:$0xff] %v326
    %350 = vst [vmem:[#allocation2 + $0xe0] sm:$0xff] %v285
    %351 = vst [vmem:[#allocation2 + $0xe8] sm:$0xff] %v329
    %352 = vst [vmem:[#allocation2 + $0xf0] sm:$0xff] %v288
    %353 = vst [vmem:[#allocation2 + $0xf8] sm:$0xff] %v332
    %354 = vst [vmem:[#allocation2 + $0x100] sm:$0xff] %v291
    %355 = vst [vmem:[#allocation2 + $0x108] sm:$0xff] %v335
    %356 = vst [vmem:[#allocation2 + $0x110] sm:$0xff] %v294
    %357 = vst [vmem:[#allocation2 + $0x118] sm:$0xff] %v338
    %v358 = vld [vmem:[#allocation2] sm:$0xff]
    %v359 = vld [vmem:[#allocation2 + $0x8] sm:$0xff]
    %v360 = vld [vmem:[#allocation2 + $0x10] sm:$0xff]
    %v361 = vld [vmem:[#allocation2 + $0x18] sm:$0xff]
    %v362 = vld [vmem:[#allocation2 + $0x20] sm:$0xff]
    %v363 = vld [vmem:[#allocation2 + $0x28] sm:$0xff]
    %v364 = vld [vmem:[#allocation2 + $0x30] sm:$0xff]
    %v365 = vld [vmem:[#allocation2 + $0x38] sm:$0xff]
    %v366 = vld [vmem:[#allocation2 + $0x40] sm:$0xff]
    %v367 = vld [vmem:[#allocation2 + $0x48] sm:$0xff]
    %v368 = vld [vmem:[#allocation2 + $0x50] sm:$0xff]
    %v369 = vld [vmem:[#allocation2 + $0x58] sm:$0xff]
    %v370 = vld [vmem:[#allocation2 + $0x60] sm:$0xff]
    %v371 = vld [vmem:[#allocation2 + $0x68] sm:$0xff]
    %v372 = vld [vmem:[#allocation2 + $0x70] sm:$0xff]
    %v373 = vld [vmem:[#allocation2 + $0x78] sm:$0xff]
    %v374 = vld [vmem:[#allocation2 + $0x80] sm:$0xff]
    %v375 = vld [vmem:[#allocation2 + $0x88] sm:$0xff]
    %v376 = vld [vmem:[#allocation2 + $0x90] sm:$0xff]
    %v377 = vld [vmem:[#allocation2 + $0x98] sm:$0xff]
    %v378 = vld [vmem:[#allocation2 + $0xa0] sm:$0xff]
    %v379 = vld [vmem:[#allocation2 + $0xa8] sm:$0xff]
    %v380 = vld [vmem:[#allocation2 + $0xb0] sm:$0xff]
    %v381 = vld [vmem:[#allocation2 + $0xb8] sm:$0xff]
    %v382 = vld [vmem:[#allocation2 + $0xc0] sm:$0xff]
    %v383 = vld [vmem:[#allocation2 + $0xc8] sm:$0xff]
    %v384 = vld [vmem:[#allocation2 + $0xd0] sm:$0xff]
    %v385 = vld [vmem:[#allocation2 + $0xd8] sm:$0xff]
    %v386 = vld [vmem:[#allocation2 + $0xe0] sm:$0xff]
    %v387 = vld [vmem:[#allocation2 + $0xe8] sm:$0xff]
    %v388 = vld [vmem:[#allocation2 + $0xf0] sm:$0xff]
    %v389 = vld [vmem:[#allocation2 + $0xf8] sm:$0xff]
    %v390 = vld [vmem:[#allocation2 + $0x100] sm:$0xff]
    %v391 = vld [vmem:[#allocation2 + $0x108] sm:$0xff]
    %v392 = vld [vmem:[#allocation2 + $0x110] sm:$0xff]
    %v393 = vld [vmem:[#allocation2 + $0x118] sm:$0xff]
    %v394 = vpack.c.bf16 %v359, %v358
    %v395 = vpack.c.bf16 %v361, %v360
    %v396 = vpack.c.bf16 %v363, %v362
    %v397 = vpack.c.bf16 %v365, %v364
    %v398 = vpack.c.bf16 %v367, %v366
    %v399 = vpack.c.bf16 %v369, %v368
    %v400 = vpack.c.bf16 %v371, %v370
    %v401 = vpack.c.bf16 %v373, %v372
    %v402 = vpack.c.bf16 %v375, %v374
    %v403 = vpack.c.bf16 %v377, %v376
    %v404 = vpack.c.bf16 %v379, %v378
    %v405 = vpack.c.bf16 %v381, %v380
    %v406 = vpack.c.bf16 %v383, %v382
    %v407 = vpack.c.bf16 %v385, %v384
    %v408 = vpack.c.bf16 %v387, %v386
    %v409 = vpack.c.bf16 %v389, %v388
    %v410 = vpack.c.bf16 %v391, %v390
    %v411 = vpack.c.bf16 %v393, %v392
    %v412 = vunpack.c.l.bf16 %v394
    %v413 = vunpack.c.h.bf16 %v394
    %v414 = vunpack.c.l.bf16 %v395
    %v415 = vunpack.c.h.bf16 %v395
    %v416 = vunpack.c.l.bf16 %v396
    %v417 = vunpack.c.h.bf16 %v396
    %v418 = vunpack.c.l.bf16 %v397
    %v419 = vunpack.c.h.bf16 %v397
    %v420 = vunpack.c.l.bf16 %v398
    %v421 = vunpack.c.h.bf16 %v398
    %v422 = vunpack.c.l.bf16 %v399
    %v423 = vunpack.c.h.bf16 %v399
    %v424 = vunpack.c.l.bf16 %v400
    %v425 = vunpack.c.h.bf16 %v400
    %v426 = vunpack.c.l.bf16 %v401
    %v427 = vunpack.c.h.bf16 %v401
    %v428 = vunpack.c.l.bf16 %v402
    %v429 = vunpack.c.h.bf16 %v402
    %v430 = vunpack.c.l.bf16 %v403
    %v431 = vunpack.c.h.bf16 %v403
    %v432 = vunpack.c.l.bf16 %v404
    %v433 = vunpack.c.h.bf16 %v404
    %v434 = vunpack.c.l.bf16 %v405
    %v435 = vunpack.c.h.bf16 %v405
    %v436 = vunpack.c.l.bf16 %v406
    %v437 = vunpack.c.h.bf16 %v406
    %v438 = vunpack.c.l.bf16 %v407
    %v439 = vunpack.c.h.bf16 %v407
    %v440 = vunpack.c.l.bf16 %v408
    %v441 = vunpack.c.h.bf16 %v408
    %v442 = vunpack.c.l.bf16 %v409
    %v443 = vunpack.c.h.bf16 %v409
    %v444 = vunpack.c.l.bf16 %v410
    %v445 = vunpack.c.h.bf16 %v410
    %v446 = vunpack.c.l.bf16 %v411
    %v447 = vunpack.c.h.bf16 %v411
    %v448 = vsub.f32 %v358, %v412
    %v449 = vsub.f32 %v359, %v413
    %v450 = vsub.f32 %v360, %v414
    %v451 = vsub.f32 %v361, %v415
    %v452 = vsub.f32 %v362, %v416
    %v453 = vsub.f32 %v363, %v417
    %v454 = vsub.f32 %v364, %v418
    %v455 = vsub.f32 %v365, %v419
    %v456 = vsub.f32 %v366, %v420
    %v457 = vsub.f32 %v367, %v421
    %v458 = vsub.f32 %v368, %v422
    %v459 = vsub.f32 %v369, %v423
    %v460 = vsub.f32 %v370, %v424
    %v461 = vsub.f32 %v371, %v425
    %v462 = vsub.f32 %v372, %v426
    %v463 = vsub.f32 %v373, %v427
    %v464 = vsub.f32 %v374, %v428
    %v465 = vsub.f32 %v375, %v429
    %v466 = vsub.f32 %v376, %v430
    %v467 = vsub.f32 %v377, %v431
    %v468 = vsub.f32 %v378, %v432
    %v469 = vsub.f32 %v379, %v433
    %v470 = vsub.f32 %v380, %v434
    %v471 = vsub.f32 %v381, %v435
    %v472 = vsub.f32 %v382, %v436
    %v473 = vsub.f32 %v383, %v437
    %v474 = vsub.f32 %v384, %v438
    %v475 = vsub.f32 %v385, %v439
    %v476 = vsub.f32 %v386, %v440
    %v477 = vsub.f32 %v387, %v441
    %v478 = vsub.f32 %v388, %v442
    %v479 = vsub.f32 %v389, %v443
    %v480 = vsub.f32 %v390, %v444
    %v481 = vsub.f32 %v391, %v445
    %v482 = vsub.f32 %v392, %v446
    %v483 = vsub.f32 %v393, %v447
    %v484 = vpack.c.bf16 %v466, %v448
    %v485 = vpack.c.bf16 %v467, %v449
    %v486 = vpack.c.bf16 %v468, %v450
    %v487 = vpack.c.bf16 %v469, %v451
    %v488 = vpack.c.bf16 %v470, %v452
    %v489 = vpack.c.bf16 %v471, %v453
    %v490 = vpack.c.bf16 %v472, %v454
    %v491 = vpack.c.bf16 %v473, %v455
    %v492 = vpack.c.bf16 %v474, %v456
    %v493 = vpack.c.bf16 %v475, %v457
    %v494 = vpack.c.bf16 %v476, %v458
    %v495 = vpack.c.bf16 %v477, %v459
    %v496 = vpack.c.bf16 %v478, %v460
    %v497 = vpack.c.bf16 %v479, %v461
    %v498 = vpack.c.bf16 %v480, %v462
    %v499 = vpack.c.bf16 %v481, %v463
    %v500 = vpack.c.bf16 %v482, %v464
    %v501 = vpack.c.bf16 %v483, %v465
    %v502 = vld [vmem:[#allocation6] sm:$0xff]
    %v503 = vld [vmem:[#allocation6 + $0x8] sm:$0xff]
    %v504 = vld [vmem:[#allocation6 + $0x10] sm:$0xff]
    %v505 = vld [vmem:[#allocation6 + $0x18] sm:$0xff]
    %v506 = vld [vmem:[#allocation6 + $0x20] sm:$0xff]
    %v507 = vld [vmem:[#allocation6 + $0x28] sm:$0xff]
    %v508 = vld [vmem:[#allocation6 + $0x30] sm:$0xff]
    %v509 = vld [vmem:[#allocation6 + $0x38] sm:$0xff]
    %v510 = vld [vmem:[#allocation6 + $0x40] sm:$0xff]
    %v511 = vld [vmem:[#allocation6 + $0x48] sm:$0xff]
    %v512 = vld [vmem:[#allocation6 + $0x50] sm:$0xff]
    %v513 = vld [vmem:[#allocation6 + $0x58] sm:$0xff]
    %v514 = vld [vmem:[#allocation6 + $0x60] sm:$0xff]
    %v515 = vld [vmem:[#allocation6 + $0x68] sm:$0xff]
    %v516 = vld [vmem:[#allocation6 + $0x70] sm:$0xff]
    %v517 = vld [vmem:[#allocation6 + $0x78] sm:$0xff]
    %v518 = vld [vmem:[#allocation6 + $0x80] sm:$0xff]
    %v519 = vld [vmem:[#allocation6 + $0x88] sm:$0xff]
    %v520 = vld [vmem:[#allocation6 + $0x90] sm:$0xff]
    %v521 = vld [vmem:[#allocation6 + $0x98] sm:$0xff]
    %v522 = vld [vmem:[#allocation6 + $0xa0] sm:$0xff]
    %v523 = vld [vmem:[#allocation6 + $0xa8] sm:$0xff]
    %v524 = vld [vmem:[#allocation6 + $0xb0] sm:$0xff]
    %v525 = vld [vmem:[#allocation6 + $0xb8] sm:$0xff]
    %v526 = vld [vmem:[#allocation6 + $0xc0] sm:$0xff]
    %v527 = vld [vmem:[#allocation6 + $0xc8] sm:$0xff]
    %v528 = vld [vmem:[#allocation6 + $0xd0] sm:$0xff]
    %v529 = vld [vmem:[#allocation6 + $0xd8] sm:$0xff]
    %v530 = vld [vmem:[#allocation6 + $0xe0] sm:$0xff]
    %v531 = vld [vmem:[#allocation6 + $0xe8] sm:$0xff]
    %v532 = vld [vmem:[#allocation6 + $0xf0] sm:$0xff]
    %v533 = vld [vmem:[#allocation6 + $0xf8] sm:$0xff]
    %v534 = vld [vmem:[#allocation6 + $0x100] sm:$0xff]
    %v535 = vld [vmem:[#allocation6 + $0x108] sm:$0xff]
    %v536 = vld [vmem:[#allocation6 + $0x110] sm:$0xff]
    %v537 = vld [vmem:[#allocation6 + $0x118] sm:$0xff]
    %v538 = vld [vmem:[#allocation6 + $0x120] sm:$0xff]
    %v539 = vld [vmem:[#allocation6 + $0x128] sm:$0xff]
    %v540 = vld [vmem:[#allocation6 + $0x130] sm:$0xff]
    %v541 = vld [vmem:[#allocation6 + $0x138] sm:$0xff]
    %v542 = vld [vmem:[#allocation6 + $0x140] sm:$0xff]
    %v543 = vld [vmem:[#allocation6 + $0x148] sm:$0xff]
    %v544 = vld [vmem:[#allocation6 + $0x150] sm:$0xff]
    %v545 = vld [vmem:[#allocation6 + $0x158] sm:$0xff]
    %v546 = vld [vmem:[#allocation6 + $0x160] sm:$0xff]
    %v547 = vld [vmem:[#allocation6 + $0x168] sm:$0xff]
    %v548 = vld [vmem:[#allocation6 + $0x170] sm:$0xff]
    %v549 = vld [vmem:[#allocation6 + $0x178] sm:$0xff]
    %v550 = vld [vmem:[#allocation6 + $0x180] sm:$0xff]
    %v551 = vld [vmem:[#allocation6 + $0x188] sm:$0xff]
    %v552 = vld [vmem:[#allocation6 + $0x190] sm:$0xff]
    %v553 = vld [vmem:[#allocation6 + $0x198] sm:$0xff]
    %v554 = vld [vmem:[#allocation6 + $0x1a0] sm:$0xff]
    %v555 = vld [vmem:[#allocation6 + $0x1a8] sm:$0xff]
    %v556 = vld [vmem:[#allocation6 + $0x1b0] sm:$0xff]
    %v557 = vld [vmem:[#allocation6 + $0x1b8] sm:$0xff]
    %v558 = vld [vmem:[#allocation6 + $0x1c0] sm:$0xff]
    %v559 = vld [vmem:[#allocation6 + $0x1c8] sm:$0xff]
    %v560 = vld [vmem:[#allocation6 + $0x1d0] sm:$0xff]
    %v561 = vld [vmem:[#allocation6 + $0x1d8] sm:$0xff]
    %v562 = vld [vmem:[#allocation6 + $0x1e0] sm:$0xff]
    %v563 = vld [vmem:[#allocation6 + $0x1e8] sm:$0xff]
    %v564 = vld [vmem:[#allocation6 + $0x1f0] sm:$0xff]
    %v565 = vld [vmem:[#allocation6 + $0x1f8] sm:$0xff]
    %v566 = vld [vmem:[#allocation6 + $0x200] sm:$0xff]
    %v567 = vld [vmem:[#allocation6 + $0x208] sm:$0xff]
    %v568 = vld [vmem:[#allocation6 + $0x210] sm:$0xff]
    %v569 = vld [vmem:[#allocation6 + $0x218] sm:$0xff]
    %v570 = vld [vmem:[#allocation6 + $0x220] sm:$0xff]
    %v571 = vld [vmem:[#allocation6 + $0x228] sm:$0xff]
    %v572 = vld [vmem:[#allocation6 + $0x230] sm:$0xff]
    %v573 = vld [vmem:[#allocation6 + $0x238] sm:$0xff]
    %v574 = vld [vmem:[#allocation6 + $0x240] sm:$0xff]
    %v575 = vld [vmem:[#allocation6 + $0x248] sm:$0xff]
    %v576 = vld [vmem:[#allocation6 + $0x250] sm:$0xff]
    %v577 = vld [vmem:[#allocation6 + $0x258] sm:$0xff]
    %v578 = vld [vmem:[#allocation6 + $0x260] sm:$0xff]
    %v579 = vld [vmem:[#allocation6 + $0x268] sm:$0xff]
    %v580 = vld [vmem:[#allocation6 + $0x270] sm:$0xff]
    %v581 = vld [vmem:[#allocation6 + $0x278] sm:$0xff]
    %v582 = vld [vmem:[#allocation6 + $0x280] sm:$0xff]
    %v583 = vld [vmem:[#allocation6 + $0x288] sm:$0xff]
    %v584 = vld [vmem:[#allocation6 + $0x290] sm:$0xff]
    %v585 = vld [vmem:[#allocation6 + $0x298] sm:$0xff]
    %v586 = vld [vmem:[#allocation6 + $0x2a0] sm:$0xff]
    %v587 = vld [vmem:[#allocation6 + $0x2a8] sm:$0xff]
    %v588 = vld [vmem:[#allocation6 + $0x2b0] sm:$0xff]
    %v589 = vld [vmem:[#allocation6 + $0x2b8] sm:$0xff]
    %v590 = vld [vmem:[#allocation6 + $0x2c0] sm:$0xff]
    %v591 = vld [vmem:[#allocation6 + $0x2c8] sm:$0xff]
    %v592 = vld [vmem:[#allocation6 + $0x2d0] sm:$0xff]
    %v593 = vld [vmem:[#allocation6 + $0x2d8] sm:$0xff]
    %v594 = vld [vmem:[#allocation6 + $0x2e0] sm:$0xff]
    %v595 = vld [vmem:[#allocation6 + $0x2e8] sm:$0xff]
    %v596 = vld [vmem:[#allocation6 + $0x2f0] sm:$0xff]
    %v597 = vld [vmem:[#allocation6 + $0x2f8] sm:$0xff]
    %v598 = vld [vmem:[#allocation6 + $0x300] sm:$0xff]
    %v599 = vld [vmem:[#allocation6 + $0x308] sm:$0xff]
    %v600 = vld [vmem:[#allocation6 + $0x310] sm:$0xff]
    %v601 = vld [vmem:[#allocation6 + $0x318] sm:$0xff]
    %v602 = vld [vmem:[#allocation6 + $0x320] sm:$0xff]
    %v603 = vld [vmem:[#allocation6 + $0x328] sm:$0xff]
    %v604 = vld [vmem:[#allocation6 + $0x330] sm:$0xff]
    %v605 = vld [vmem:[#allocation6 + $0x338] sm:$0xff]
    %v606 = vld [vmem:[#allocation6 + $0x340] sm:$0xff]
    %v607 = vld [vmem:[#allocation6 + $0x348] sm:$0xff]
    %v608 = vld [vmem:[#allocation6 + $0x350] sm:$0xff]
    %v609 = vld [vmem:[#allocation6 + $0x358] sm:$0xff]
    %v610 = vld [vmem:[#allocation6 + $0x360] sm:$0xff]
    %v611 = vld [vmem:[#allocation6 + $0x368] sm:$0xff]
    %v612 = vld [vmem:[#allocation6 + $0x370] sm:$0xff]
    %v613 = vld [vmem:[#allocation6 + $0x378] sm:$0xff]
    %v614 = vld [vmem:[#allocation6 + $0x380] sm:$0xff]
    %v615 = vld [vmem:[#allocation6 + $0x388] sm:$0xff]
    %v616 = vld [vmem:[#allocation6 + $0x390] sm:$0xff]
    %v617 = vld [vmem:[#allocation6 + $0x398] sm:$0xff]
    %v618 = vld [vmem:[#allocation6 + $0x3a0] sm:$0xff]
    %v619 = vld [vmem:[#allocation6 + $0x3a8] sm:$0xff]
    %v620 = vld [vmem:[#allocation6 + $0x3b0] sm:$0xff]
    %v621 = vld [vmem:[#allocation6 + $0x3b8] sm:$0xff]
    %v622 = vld [vmem:[#allocation6 + $0x3c0] sm:$0xff]
    %v623 = vld [vmem:[#allocation6 + $0x3c8] sm:$0xff]
    %v624 = vld [vmem:[#allocation6 + $0x3d0] sm:$0xff]
    %v625 = vld [vmem:[#allocation6 + $0x3d8] sm:$0xff]
    %v626 = vld [vmem:[#allocation6 + $0x3e0] sm:$0xff]
    %v627 = vld [vmem:[#allocation6 + $0x3e8] sm:$0xff]
    %v628 = vld [vmem:[#allocation6 + $0x3f0] sm:$0xff]
    %v629 = vld [vmem:[#allocation6 + $0x3f8] sm:$0xff]
    %v630 = vld [vmem:[#allocation6 + $0x400] sm:$0xff]
    %v631 = vld [vmem:[#allocation6 + $0x408] sm:$0xff]
    %v632 = vld [vmem:[#allocation6 + $0x410] sm:$0xff]
    %v633 = vld [vmem:[#allocation6 + $0x418] sm:$0xff]
    %v634 = vld [vmem:[#allocation6 + $0x420] sm:$0xff]
    %v635 = vld [vmem:[#allocation6 + $0x428] sm:$0xff]
    %v636 = vld [vmem:[#allocation6 + $0x430] sm:$0xff]
    %v637 = vld [vmem:[#allocation6 + $0x438] sm:$0xff]
    %v638 = vld [vmem:[#allocation6 + $0x440] sm:$0xff]
    %v639 = vld [vmem:[#allocation6 + $0x448] sm:$0xff]
    %v640 = vld [vmem:[#allocation6 + $0x450] sm:$0xff]
    %v641 = vld [vmem:[#allocation6 + $0x458] sm:$0xff]
    %v642 = vld [vmem:[#allocation6 + $0x460] sm:$0xff]
    %v643 = vld [vmem:[#allocation6 + $0x468] sm:$0xff]
    %v644 = vld [vmem:[#allocation6 + $0x470] sm:$0xff]
    %v645 = vld [vmem:[#allocation6 + $0x478] sm:$0xff]
    %v646 = vld [vmem:[#allocation6 + $0x480] sm:$0xff]
    %v647 = vld [vmem:[#allocation6 + $0x488] sm:$0xff]
    %v648 = vld [vmem:[#allocation6 + $0x490] sm:$0xff]
    %v649 = vld [vmem:[#allocation6 + $0x498] sm:$0xff]
    %v650 = vld [vmem:[#allocation6 + $0x4a0] sm:$0xff]
    %v651 = vld [vmem:[#allocation6 + $0x4a8] sm:$0xff]
    %v652 = vld [vmem:[#allocation6 + $0x4b0] sm:$0xff]
    %v653 = vld [vmem:[#allocation6 + $0x4b8] sm:$0xff]
    %v654 = vld [vmem:[#allocation6 + $0x4c0] sm:$0xff]
    %v655 = vld [vmem:[#allocation6 + $0x4c8] sm:$0xff]
    %v656 = vld [vmem:[#allocation6 + $0x4d0] sm:$0xff]
    %v657 = vld [vmem:[#allocation6 + $0x4d8] sm:$0xff]
    %v658 = vld [vmem:[#allocation6 + $0x4e0] sm:$0xff]
    %v659 = vld [vmem:[#allocation6 + $0x4e8] sm:$0xff]
    %v660 = vld [vmem:[#allocation6 + $0x4f0] sm:$0xff]
    %v661 = vld [vmem:[#allocation6 + $0x4f8] sm:$0xff]
    %v662 = vld [vmem:[#allocation6 + $0x500] sm:$0xff]
    %v663 = vld [vmem:[#allocation6 + $0x508] sm:$0xff]
    %v664 = vld [vmem:[#allocation6 + $0x510] sm:$0xff]
    %v665 = vld [vmem:[#allocation6 + $0x518] sm:$0xff]
    %v666 = vld [vmem:[#allocation6 + $0x520] sm:$0xff]
    %v667 = vld [vmem:[#allocation6 + $0x528] sm:$0xff]
    %v668 = vld [vmem:[#allocation6 + $0x530] sm:$0xff]
    %v669 = vld [vmem:[#allocation6 + $0x538] sm:$0xff]
    %v670 = vld [vmem:[#allocation6 + $0x540] sm:$0xff]
    %v671 = vld [vmem:[#allocation6 + $0x548] sm:$0xff]
    %v672 = vld [vmem:[#allocation6 + $0x550] sm:$0xff]
    %v673 = vld [vmem:[#allocation6 + $0x558] sm:$0xff]
    %v674 = vld [vmem:[#allocation6 + $0x560] sm:$0xff]
    %v675 = vld [vmem:[#allocation6 + $0x568] sm:$0xff]
    %v676 = vld [vmem:[#allocation6 + $0x570] sm:$0xff]
    %v677 = vld [vmem:[#allocation6 + $0x578] sm:$0xff]
    %v678 = vld [vmem:[#allocation6 + $0x580] sm:$0xff]
    %v679 = vld [vmem:[#allocation6 + $0x588] sm:$0xff]
    %v680 = vld [vmem:[#allocation6 + $0x590] sm:$0xff]
    %v681 = vld [vmem:[#allocation6 + $0x598] sm:$0xff]
    %v682 = vld [vmem:[#allocation6 + $0x5a0] sm:$0xff]
    %v683 = vld [vmem:[#allocation6 + $0x5a8] sm:$0xff]
    %v684 = vld [vmem:[#allocation6 + $0x5b0] sm:$0xff]
    %v685 = vld [vmem:[#allocation6 + $0x5b8] sm:$0xff]
    %v686 = vld [vmem:[#allocation6 + $0x5c0] sm:$0xff]
    %v687 = vld [vmem:[#allocation6 + $0x5c8] sm:$0xff]
    %v688 = vld [vmem:[#allocation6 + $0x5d0] sm:$0xff]
    %v689 = vld [vmem:[#allocation6 + $0x5d8] sm:$0xff]
    %v690 = vld [vmem:[#allocation6 + $0x5e0] sm:$0xff]
    %v691 = vld [vmem:[#allocation6 + $0x5e8] sm:$0xff]
    %v692 = vld [vmem:[#allocation6 + $0x5f0] sm:$0xff]
    %v693 = vld [vmem:[#allocation6 + $0x5f8] sm:$0xff]
    %v694 = vld [vmem:[#allocation6 + $0x600] sm:$0xff]
    %v695 = vld [vmem:[#allocation6 + $0x608] sm:$0xff]
    %v696 = vld [vmem:[#allocation6 + $0x610] sm:$0xff]
    %v697 = vld [vmem:[#allocation6 + $0x618] sm:$0xff]
    %v698 = vld [vmem:[#allocation6 + $0x620] sm:$0xff]
    %v699 = vld [vmem:[#allocation6 + $0x628] sm:$0xff]
    %v700 = vld [vmem:[#allocation6 + $0x630] sm:$0xff]
    %v701 = vld [vmem:[#allocation6 + $0x638] sm:$0xff]
    %v702 = vld [vmem:[#allocation6 + $0x640] sm:$0xff]
    %v703 = vld [vmem:[#allocation6 + $0x648] sm:$0xff]
    %v704 = vld [vmem:[#allocation6 + $0x650] sm:$0xff]
    %v705 = vld [vmem:[#allocation6 + $0x658] sm:$0xff]
    %v706 = vld [vmem:[#allocation6 + $0x660] sm:$0xff]
    %v707 = vld [vmem:[#allocation6 + $0x668] sm:$0xff]
    %v708 = vld [vmem:[#allocation6 + $0x670] sm:$0xff]
    %v709 = vld [vmem:[#allocation6 + $0x678] sm:$0xff]
    %v710 = vld [vmem:[#allocation6 + $0x680] sm:$0xff]
    %v711 = vld [vmem:[#allocation6 + $0x688] sm:$0xff]
    %v712 = vld [vmem:[#allocation6 + $0x690] sm:$0xff]
    %v713 = vld [vmem:[#allocation6 + $0x698] sm:$0xff]
    %v714 = vld [vmem:[#allocation6 + $0x6a0] sm:$0xff]
    %v715 = vld [vmem:[#allocation6 + $0x6a8] sm:$0xff]
    %v716 = vld [vmem:[#allocation6 + $0x6b0] sm:$0xff]
    %v717 = vld [vmem:[#allocation6 + $0x6b8] sm:$0xff]
    %v718 = vld [vmem:[#allocation6 + $0x6c0] sm:$0xff]
    %v719 = vld [vmem:[#allocation6 + $0x6c8] sm:$0xff]
    %v720 = vld [vmem:[#allocation6 + $0x6d0] sm:$0xff]
    %v721 = vld [vmem:[#allocation6 + $0x6d8] sm:$0xff]
    %v722 = vld [vmem:[#allocation6 + $0x6e0] sm:$0xff]
    %v723 = vld [vmem:[#allocation6 + $0x6e8] sm:$0xff]
    %v724 = vld [vmem:[#allocation6 + $0x6f0] sm:$0xff]
    %v725 = vld [vmem:[#allocation6 + $0x6f8] sm:$0xff]
    %v726 = vld [vmem:[#allocation6 + $0x700] sm:$0xff]
    %v727 = vld [vmem:[#allocation6 + $0x708] sm:$0xff]
    %v728 = vld [vmem:[#allocation6 + $0x710] sm:$0xff]
    %v729 = vld [vmem:[#allocation6 + $0x718] sm:$0xff]
    %v730 = vld [vmem:[#allocation6 + $0x720] sm:$0xff]
    %v731 = vld [vmem:[#allocation6 + $0x728] sm:$0xff]
    %v732 = vld [vmem:[#allocation6 + $0x730] sm:$0xff]
    %v733 = vld [vmem:[#allocation6 + $0x738] sm:$0xff]
    %v734 = vld [vmem:[#allocation6 + $0x740] sm:$0xff]
    %v735 = vld [vmem:[#allocation6 + $0x748] sm:$0xff]
    %v736 = vld [vmem:[#allocation6 + $0x750] sm:$0xff]
    %v737 = vld [vmem:[#allocation6 + $0x758] sm:$0xff]
    %v738 = vld [vmem:[#allocation6 + $0x760] sm:$0xff]
    %v739 = vld [vmem:[#allocation6 + $0x768] sm:$0xff]
    %v740 = vld [vmem:[#allocation6 + $0x770] sm:$0xff]
    %v741 = vld [vmem:[#allocation6 + $0x778] sm:$0xff]
    %v742 = vld [vmem:[#allocation6 + $0x780] sm:$0xff]
    %v743 = vld [vmem:[#allocation6 + $0x788] sm:$0xff]
    %v744 = vld [vmem:[#allocation6 + $0x790] sm:$0xff]
    %v745 = vld [vmem:[#allocation6 + $0x798] sm:$0xff]
    %v746 = vld [vmem:[#allocation6 + $0x7a0] sm:$0xff]
    %v747 = vld [vmem:[#allocation6 + $0x7a8] sm:$0xff]
    %v748 = vld [vmem:[#allocation6 + $0x7b0] sm:$0xff]
    %v749 = vld [vmem:[#allocation6 + $0x7b8] sm:$0xff]
    %v750 = vld [vmem:[#allocation6 + $0x7c0] sm:$0xff]
    %v751 = vld [vmem:[#allocation6 + $0x7c8] sm:$0xff]
    %v752 = vld [vmem:[#allocation6 + $0x7d0] sm:$0xff]
    %v753 = vld [vmem:[#allocation6 + $0x7d8] sm:$0xff]
    %v754 = vld [vmem:[#allocation6 + $0x7e0] sm:$0xff]
    %v755 = vld [vmem:[#allocation6 + $0x7e8] sm:$0xff]
    %v756 = vld [vmem:[#allocation6 + $0x7f0] sm:$0xff]
    %v757 = vld [vmem:[#allocation6 + $0x7f8] sm:$0xff]
    %v758 = vld [vmem:[#allocation6 + $0x800] sm:$0xff]
    %v759 = vld [vmem:[#allocation6 + $0x808] sm:$0xff]
    %v760 = vld [vmem:[#allocation6 + $0x810] sm:$0xff]
    %v761 = vld [vmem:[#allocation6 + $0x818] sm:$0xff]
    %v762 = vld [vmem:[#allocation6 + $0x820] sm:$0xff]
    %v763 = vld [vmem:[#allocation6 + $0x828] sm:$0xff]
    %v764 = vld [vmem:[#allocation6 + $0x830] sm:$0xff]
    %v765 = vld [vmem:[#allocation6 + $0x838] sm:$0xff]
    %v766 = vld [vmem:[#allocation6 + $0x840] sm:$0xff]
    %v767 = vld [vmem:[#allocation6 + $0x848] sm:$0xff]
    %v768 = vld [vmem:[#allocation6 + $0x850] sm:$0xff]
    %v769 = vld [vmem:[#allocation6 + $0x858] sm:$0xff]
    %v770 = vld [vmem:[#allocation6 + $0x860] sm:$0xff]
    %v771 = vld [vmem:[#allocation6 + $0x868] sm:$0xff]
    %v772 = vld [vmem:[#allocation6 + $0x870] sm:$0xff]
    %v773 = vld [vmem:[#allocation6 + $0x878] sm:$0xff]
    %v774 = vld [vmem:[#allocation6 + $0x880] sm:$0xff]
    %v775 = vld [vmem:[#allocation6 + $0x888] sm:$0xff]
    %v776 = vld [vmem:[#allocation6 + $0x890] sm:$0xff]
    %v777 = vld [vmem:[#allocation6 + $0x898] sm:$0xff]
    %v778 = vld [vmem:[#allocation6 + $0x8a0] sm:$0xff]
    %v779 = vld [vmem:[#allocation6 + $0x8a8] sm:$0xff]
    %v780 = vld [vmem:[#allocation6 + $0x8b0] sm:$0xff]
    %v781 = vld [vmem:[#allocation6 + $0x8b8] sm:$0xff]
    %v782 = vld [vmem:[#allocation6 + $0x8c0] sm:$0xff]
    %v783 = vld [vmem:[#allocation6 + $0x8c8] sm:$0xff]
    %v784 = vld [vmem:[#allocation6 + $0x8d0] sm:$0xff]
    %v785 = vld [vmem:[#allocation6 + $0x8d8] sm:$0xff]
    %v786 = vld [vmem:[#allocation6 + $0x8e0] sm:$0xff]
    %v787 = vld [vmem:[#allocation6 + $0x8e8] sm:$0xff]
    %v788 = vld [vmem:[#allocation6 + $0x8f0] sm:$0xff]
    %v789 = vld [vmem:[#allocation6 + $0x8f8] sm:$0xff]
    %v790 = vld [vmem:[#allocation6 + $0x900] sm:$0xff]
    %v791 = vld [vmem:[#allocation6 + $0x908] sm:$0xff]
    %v792 = vld [vmem:[#allocation6 + $0x910] sm:$0xff]
    %v793 = vld [vmem:[#allocation6 + $0x918] sm:$0xff]
    %v794 = vld [vmem:[#allocation6 + $0x920] sm:$0xff]
    %v795 = vld [vmem:[#allocation6 + $0x928] sm:$0xff]
    %v796 = vld [vmem:[#allocation6 + $0x930] sm:$0xff]
    %v797 = vld [vmem:[#allocation6 + $0x938] sm:$0xff]
    %v798 = vld [vmem:[#allocation6 + $0x940] sm:$0xff]
    %v799 = vld [vmem:[#allocation6 + $0x948] sm:$0xff]
    %v800 = vld [vmem:[#allocation6 + $0x950] sm:$0xff]
    %v801 = vld [vmem:[#allocation6 + $0x958] sm:$0xff]
    %v802 = vld [vmem:[#allocation6 + $0x960] sm:$0xff]
    %v803 = vld [vmem:[#allocation6 + $0x968] sm:$0xff]
    %v804 = vld [vmem:[#allocation6 + $0x970] sm:$0xff]
    %v805 = vld [vmem:[#allocation6 + $0x978] sm:$0xff]
    %v806 = vld [vmem:[#allocation6 + $0x980] sm:$0xff]
    %v807 = vld [vmem:[#allocation6 + $0x988] sm:$0xff]
    %v808 = vld [vmem:[#allocation6 + $0x990] sm:$0xff]
    %v809 = vld [vmem:[#allocation6 + $0x998] sm:$0xff]
    %v810 = vld [vmem:[#allocation6 + $0x9a0] sm:$0xff]
    %v811 = vld [vmem:[#allocation6 + $0x9a8] sm:$0xff]
    %v812 = vld [vmem:[#allocation6 + $0x9b0] sm:$0xff]
    %v813 = vld [vmem:[#allocation6 + $0x9b8] sm:$0xff]
    %v814 = vld [vmem:[#allocation6 + $0x9c0] sm:$0xff]
    %v815 = vld [vmem:[#allocation6 + $0x9c8] sm:$0xff]
    %v816 = vld [vmem:[#allocation6 + $0x9d0] sm:$0xff]
    %v817 = vld [vmem:[#allocation6 + $0x9d8] sm:$0xff]
    %v818 = vld [vmem:[#allocation6 + $0x9e0] sm:$0xff]
    %v819 = vld [vmem:[#allocation6 + $0x9e8] sm:$0xff]
    %v820 = vld [vmem:[#allocation6 + $0x9f0] sm:$0xff]
    %v821 = vld [vmem:[#allocation6 + $0x9f8] sm:$0xff]
    %v822 = vld [vmem:[#allocation6 + $0xa00] sm:$0xff]
    %v823 = vld [vmem:[#allocation6 + $0xa08] sm:$0xff]
    %v824 = vld [vmem:[#allocation6 + $0xa10] sm:$0xff]
    %v825 = vld [vmem:[#allocation6 + $0xa18] sm:$0xff]
    %v826 = vld [vmem:[#allocation6 + $0xa20] sm:$0xff]
    %v827 = vld [vmem:[#allocation6 + $0xa28] sm:$0xff]
    %v828 = vld [vmem:[#allocation6 + $0xa30] sm:$0xff]
    %v829 = vld [vmem:[#allocation6 + $0xa38] sm:$0xff]
    %v830 = vld [vmem:[#allocation6 + $0xa40] sm:$0xff]
    %v831 = vld [vmem:[#allocation6 + $0xa48] sm:$0xff]
    %v832 = vld [vmem:[#allocation6 + $0xa50] sm:$0xff]
    %v833 = vld [vmem:[#allocation6 + $0xa58] sm:$0xff]
    %v834 = vld [vmem:[#allocation6 + $0xa60] sm:$0xff]
    %v835 = vld [vmem:[#allocation6 + $0xa68] sm:$0xff]
    %v836 = vld [vmem:[#allocation6 + $0xa70] sm:$0xff]
    %v837 = vld [vmem:[#allocation6 + $0xa78] sm:$0xff]
    %v838 = vld [vmem:[#allocation6 + $0xa80] sm:$0xff]
    %v839 = vld [vmem:[#allocation6 + $0xa88] sm:$0xff]
    %v840 = vld [vmem:[#allocation6 + $0xa90] sm:$0xff]
    %v841 = vld [vmem:[#allocation6 + $0xa98] sm:$0xff]
    %v842 = vld [vmem:[#allocation6 + $0xaa0] sm:$0xff]
    %v843 = vld [vmem:[#allocation6 + $0xaa8] sm:$0xff]
    %v844 = vld [vmem:[#allocation6 + $0xab0] sm:$0xff]
    %v845 = vld [vmem:[#allocation6 + $0xab8] sm:$0xff]
    %v846 = vld [vmem:[#allocation6 + $0xac0] sm:$0xff]
    %v847 = vld [vmem:[#allocation6 + $0xac8] sm:$0xff]
    %v848 = vld [vmem:[#allocation6 + $0xad0] sm:$0xff]
    %v849 = vld [vmem:[#allocation6 + $0xad8] sm:$0xff]
    %v850 = vld [vmem:[#allocation6 + $0xae0] sm:$0xff]
    %v851 = vld [vmem:[#allocation6 + $0xae8] sm:$0xff]
    %v852 = vld [vmem:[#allocation6 + $0xaf0] sm:$0xff]
    %v853 = vld [vmem:[#allocation6 + $0xaf8] sm:$0xff]
    %v854 = vld [vmem:[#allocation6 + $0xb00] sm:$0xff]
    %v855 = vld [vmem:[#allocation6 + $0xb08] sm:$0xff]
    %v856 = vld [vmem:[#allocation6 + $0xb10] sm:$0xff]
    %v857 = vld [vmem:[#allocation6 + $0xb18] sm:$0xff]
    %v858 = vld [vmem:[#allocation6 + $0xb20] sm:$0xff]
    %v859 = vld [vmem:[#allocation6 + $0xb28] sm:$0xff]
    %v860 = vld [vmem:[#allocation6 + $0xb30] sm:$0xff]
    %v861 = vld [vmem:[#allocation6 + $0xb38] sm:$0xff]
    %v862 = vld [vmem:[#allocation6 + $0xb40] sm:$0xff]
    %v863 = vld [vmem:[#allocation6 + $0xb48] sm:$0xff]
    %v864 = vld [vmem:[#allocation6 + $0xb50] sm:$0xff]
    %v865 = vld [vmem:[#allocation6 + $0xb58] sm:$0xff]
    %v866 = vld [vmem:[#allocation6 + $0xb60] sm:$0xff]
    %v867 = vld [vmem:[#allocation6 + $0xb68] sm:$0xff]
    %v868 = vld [vmem:[#allocation6 + $0xb70] sm:$0xff]
    %v869 = vld [vmem:[#allocation6 + $0xb78] sm:$0xff]
    %v870 = vld [vmem:[#allocation6 + $0xb80] sm:$0xff]
    %v871 = vld [vmem:[#allocation6 + $0xb88] sm:$0xff]
    %v872 = vld [vmem:[#allocation6 + $0xb90] sm:$0xff]
    %v873 = vld [vmem:[#allocation6 + $0xb98] sm:$0xff]
    %v874 = vld [vmem:[#allocation6 + $0xba0] sm:$0xff]
    %v875 = vld [vmem:[#allocation6 + $0xba8] sm:$0xff]
    %v876 = vld [vmem:[#allocation6 + $0xbb0] sm:$0xff]
    %v877 = vld [vmem:[#allocation6 + $0xbb8] sm:$0xff]
    %v878 = vld [vmem:[#allocation6 + $0xbc0] sm:$0xff]
    %v879 = vld [vmem:[#allocation6 + $0xbc8] sm:$0xff]
    %v880 = vld [vmem:[#allocation6 + $0xbd0] sm:$0xff]
    %v881 = vld [vmem:[#allocation6 + $0xbd8] sm:$0xff]
    %v882 = vld [vmem:[#allocation6 + $0xbe0] sm:$0xff]
    %v883 = vld [vmem:[#allocation6 + $0xbe8] sm:$0xff]
    %v884 = vld [vmem:[#allocation6 + $0xbf0] sm:$0xff]
    %v885 = vld [vmem:[#allocation6 + $0xbf8] sm:$0xff]
    %v886 = vld [vmem:[#allocation6 + $0xc00] sm:$0xff]
    %v887 = vld [vmem:[#allocation6 + $0xc08] sm:$0xff]
    %v888 = vld [vmem:[#allocation6 + $0xc10] sm:$0xff]
    %v889 = vld [vmem:[#allocation6 + $0xc18] sm:$0xff]
    %v890 = vld [vmem:[#allocation6 + $0xc20] sm:$0xff]
    %v891 = vld [vmem:[#allocation6 + $0xc28] sm:$0xff]
    %v892 = vld [vmem:[#allocation6 + $0xc30] sm:$0xff]
    %v893 = vld [vmem:[#allocation6 + $0xc38] sm:$0xff]
    %v894 = vld [vmem:[#allocation6 + $0xc40] sm:$0xff]
    %v895 = vld [vmem:[#allocation6 + $0xc48] sm:$0xff]
    %v896 = vld [vmem:[#allocation6 + $0xc50] sm:$0xff]
    %v897 = vld [vmem:[#allocation6 + $0xc58] sm:$0xff]
    %v898 = vld [vmem:[#allocation6 + $0xc60] sm:$0xff]
    %v899 = vld [vmem:[#allocation6 + $0xc68] sm:$0xff]
    %v900 = vld [vmem:[#allocation6 + $0xc70] sm:$0xff]
    %v901 = vld [vmem:[#allocation6 + $0xc78] sm:$0xff]
    %v902 = vld [vmem:[#allocation6 + $0xc80] sm:$0xff]
    %v903 = vld [vmem:[#allocation6 + $0xc88] sm:$0xff]
    %v904 = vld [vmem:[#allocation6 + $0xc90] sm:$0xff]
    %v905 = vld [vmem:[#allocation6 + $0xc98] sm:$0xff]
    %v906 = vld [vmem:[#allocation6 + $0xca0] sm:$0xff]
    %v907 = vld [vmem:[#allocation6 + $0xca8] sm:$0xff]
    %v908 = vld [vmem:[#allocation6 + $0xcb0] sm:$0xff]
    %v909 = vld [vmem:[#allocation6 + $0xcb8] sm:$0xff]
    %v910 = vld [vmem:[#allocation6 + $0xcc0] sm:$0xff]
    %v911 = vld [vmem:[#allocation6 + $0xcc8] sm:$0xff]
    %v912 = vld [vmem:[#allocation6 + $0xcd0] sm:$0xff]
    %v913 = vld [vmem:[#allocation6 + $0xcd8] sm:$0xff]
    %v914 = vld [vmem:[#allocation6 + $0xce0] sm:$0xff]
    %v915 = vld [vmem:[#allocation6 + $0xce8] sm:$0xff]
    %v916 = vld [vmem:[#allocation6 + $0xcf0] sm:$0xff]
    %v917 = vld [vmem:[#allocation6 + $0xcf8] sm:$0xff]
    %v918 = vld [vmem:[#allocation6 + $0xd00] sm:$0xff]
    %v919 = vld [vmem:[#allocation6 + $0xd08] sm:$0xff]
    %v920 = vld [vmem:[#allocation6 + $0xd10] sm:$0xff]
    %v921 = vld [vmem:[#allocation6 + $0xd18] sm:$0xff]
    %v922 = vld [vmem:[#allocation6 + $0xd20] sm:$0xff]
    %v923 = vld [vmem:[#allocation6 + $0xd28] sm:$0xff]
    %v924 = vld [vmem:[#allocation6 + $0xd30] sm:$0xff]
    %v925 = vld [vmem:[#allocation6 + $0xd38] sm:$0xff]
    %v926 = vld [vmem:[#allocation6 + $0xd40] sm:$0xff]
    %v927 = vld [vmem:[#allocation6 + $0xd48] sm:$0xff]
    %v928 = vld [vmem:[#allocation6 + $0xd50] sm:$0xff]
    %v929 = vld [vmem:[#allocation6 + $0xd58] sm:$0xff]
    %v930 = vld [vmem:[#allocation6 + $0xd60] sm:$0xff]
    %v931 = vld [vmem:[#allocation6 + $0xd68] sm:$0xff]
    %v932 = vld [vmem:[#allocation6 + $0xd70] sm:$0xff]
    %v933 = vld [vmem:[#allocation6 + $0xd78] sm:$0xff]
    %v934 = vld [vmem:[#allocation6 + $0xd80] sm:$0xff]
    %v935 = vld [vmem:[#allocation6 + $0xd88] sm:$0xff]
    %v936 = vld [vmem:[#allocation6 + $0xd90] sm:$0xff]
    %v937 = vld [vmem:[#allocation6 + $0xd98] sm:$0xff]
    %v938 = vld [vmem:[#allocation6 + $0xda0] sm:$0xff]
    %v939 = vld [vmem:[#allocation6 + $0xda8] sm:$0xff]
    %v940 = vld [vmem:[#allocation6 + $0xdb0] sm:$0xff]
    %v941 = vld [vmem:[#allocation6 + $0xdb8] sm:$0xff]
    %v942 = vld [vmem:[#allocation6 + $0xdc0] sm:$0xff]
    %v943 = vld [vmem:[#allocation6 + $0xdc8] sm:$0xff]
    %v944 = vld [vmem:[#allocation6 + $0xdd0] sm:$0xff]
    %v945 = vld [vmem:[#allocation6 + $0xdd8] sm:$0xff]
    %v946 = vld [vmem:[#allocation6 + $0xde0] sm:$0xff]
    %v947 = vld [vmem:[#allocation6 + $0xde8] sm:$0xff]
    %v948 = vld [vmem:[#allocation6 + $0xdf0] sm:$0xff]
    %v949 = vld [vmem:[#allocation6 + $0xdf8] sm:$0xff]
    %v950 = vld [vmem:[#allocation6 + $0xe00] sm:$0xff]
    %v951 = vld [vmem:[#allocation6 + $0xe08] sm:$0xff]
    %v952 = vld [vmem:[#allocation6 + $0xe10] sm:$0xff]
    %v953 = vld [vmem:[#allocation6 + $0xe18] sm:$0xff]
    %v954 = vld [vmem:[#allocation6 + $0xe20] sm:$0xff]
    %v955 = vld [vmem:[#allocation6 + $0xe28] sm:$0xff]
    %v956 = vld [vmem:[#allocation6 + $0xe30] sm:$0xff]
    %v957 = vld [vmem:[#allocation6 + $0xe38] sm:$0xff]
    %v958 = vld [vmem:[#allocation6 + $0xe40] sm:$0xff]
    %v959 = vld [vmem:[#allocation6 + $0xe48] sm:$0xff]
    %v960 = vld [vmem:[#allocation6 + $0xe50] sm:$0xff]
    %v961 = vld [vmem:[#allocation6 + $0xe58] sm:$0xff]
    %v962 = vld [vmem:[#allocation6 + $0xe60] sm:$0xff]
    %v963 = vld [vmem:[#allocation6 + $0xe68] sm:$0xff]
    %v964 = vld [vmem:[#allocation6 + $0xe70] sm:$0xff]
    %v965 = vld [vmem:[#allocation6 + $0xe78] sm:$0xff]
    %v966 = vld [vmem:[#allocation6 + $0xe80] sm:$0xff]
    %v967 = vld [vmem:[#allocation6 + $0xe88] sm:$0xff]
    %v968 = vld [vmem:[#allocation6 + $0xe90] sm:$0xff]
    %v969 = vld [vmem:[#allocation6 + $0xe98] sm:$0xff]
    %v970 = vld [vmem:[#allocation6 + $0xea0] sm:$0xff]
    %v971 = vld [vmem:[#allocation6 + $0xea8] sm:$0xff]
    %v972 = vld [vmem:[#allocation6 + $0xeb0] sm:$0xff]
    %v973 = vld [vmem:[#allocation6 + $0xeb8] sm:$0xff]
    %v974 = vld [vmem:[#allocation6 + $0xec0] sm:$0xff]
    %v975 = vld [vmem:[#allocation6 + $0xec8] sm:$0xff]
    %v976 = vld [vmem:[#allocation6 + $0xed0] sm:$0xff]
    %v977 = vld [vmem:[#allocation6 + $0xed8] sm:$0xff]
    %v978 = vld [vmem:[#allocation6 + $0xee0] sm:$0xff]
    %v979 = vld [vmem:[#allocation6 + $0xee8] sm:$0xff]
    %v980 = vld [vmem:[#allocation6 + $0xef0] sm:$0xff]
    %v981 = vld [vmem:[#allocation6 + $0xef8] sm:$0xff]
    %v982 = vld [vmem:[#allocation6 + $0xf00] sm:$0xff]
    %v983 = vld [vmem:[#allocation6 + $0xf08] sm:$0xff]
    %v984 = vld [vmem:[#allocation6 + $0xf10] sm:$0xff]
    %v985 = vld [vmem:[#allocation6 + $0xf18] sm:$0xff]
    %v986 = vld [vmem:[#allocation6 + $0xf20] sm:$0xff]
    %v987 = vld [vmem:[#allocation6 + $0xf28] sm:$0xff]
    %v988 = vld [vmem:[#allocation6 + $0xf30] sm:$0xff]
    %v989 = vld [vmem:[#allocation6 + $0xf38] sm:$0xff]
    %v990 = vld [vmem:[#allocation6 + $0xf40] sm:$0xff]
    %v991 = vld [vmem:[#allocation6 + $0xf48] sm:$0xff]
    %v992 = vld [vmem:[#allocation6 + $0xf50] sm:$0xff]
    %v993 = vld [vmem:[#allocation6 + $0xf58] sm:$0xff]
    %v994 = vld [vmem:[#allocation6 + $0xf60] sm:$0xff]
    %v995 = vld [vmem:[#allocation6 + $0xf68] sm:$0xff]
    %v996 = vld [vmem:[#allocation6 + $0xf70] sm:$0xff]
    %v997 = vld [vmem:[#allocation6 + $0xf78] sm:$0xff]
    %v998 = vld [vmem:[#allocation6 + $0xf80] sm:$0xff]
    %v999 = vld [vmem:[#allocation6 + $0xf88] sm:$0xff]
    %v1000 = vld [vmem:[#allocation6 + $0xf90] sm:$0xff]
    %v1001 = vld [vmem:[#allocation6 + $0xf98] sm:$0xff]
    %v1002 = vld [vmem:[#allocation6 + $0xfa0] sm:$0xff]
    %v1003 = vld [vmem:[#allocation6 + $0xfa8] sm:$0xff]
    %v1004 = vld [vmem:[#allocation6 + $0xfb0] sm:$0xff]
    %v1005 = vld [vmem:[#allocation6 + $0xfb8] sm:$0xff]
    %v1006 = vld [vmem:[#allocation6 + $0xfc0] sm:$0xff]
    %v1007 = vld [vmem:[#allocation6 + $0xfc8] sm:$0xff]
    %v1008 = vld [vmem:[#allocation6 + $0xfd0] sm:$0xff]
    %v1009 = vld [vmem:[#allocation6 + $0xfd8] sm:$0xff]
    %v1010 = vld [vmem:[#allocation6 + $0xfe0] sm:$0xff]
    %v1011 = vld [vmem:[#allocation6 + $0xfe8] sm:$0xff]
    %v1012 = vld [vmem:[#allocation6 + $0xff0] sm:$0xff]
    %v1013 = vld [vmem:[#allocation6 + $0xff8] sm:$0xff]
    %v1014 = vld [vmem:[#allocation6 + $0x1000] sm:$0xff]
    %v1015 = vld [vmem:[#allocation6 + $0x1008] sm:$0xff]
    %v1016 = vld [vmem:[#allocation6 + $0x1010] sm:$0xff]
    %v1017 = vld [vmem:[#allocation6 + $0x1018] sm:$0xff]
    %v1018 = vld [vmem:[#allocation6 + $0x1020] sm:$0xff]
    %v1019 = vld [vmem:[#allocation6 + $0x1028] sm:$0xff]
    %v1020 = vld [vmem:[#allocation6 + $0x1030] sm:$0xff]
    %v1021 = vld [vmem:[#allocation6 + $0x1038] sm:$0xff]
    %v1022 = vld [vmem:[#allocation6 + $0x1040] sm:$0xff]
    %v1023 = vld [vmem:[#allocation6 + $0x1048] sm:$0xff]
    %v1024 = vld [vmem:[#allocation6 + $0x1050] sm:$0xff]
    %v1025 = vld [vmem:[#allocation6 + $0x1058] sm:$0xff]
    %v1026 = vld [vmem:[#allocation6 + $0x1060] sm:$0xff]
    %v1027 = vld [vmem:[#allocation6 + $0x1068] sm:$0xff]
    %v1028 = vld [vmem:[#allocation6 + $0x1070] sm:$0xff]
    %v1029 = vld [vmem:[#allocation6 + $0x1078] sm:$0xff]
    %v1030 = vld [vmem:[#allocation6 + $0x1080] sm:$0xff]
    %v1031 = vld [vmem:[#allocation6 + $0x1088] sm:$0xff]
    %v1032 = vld [vmem:[#allocation6 + $0x1090] sm:$0xff]
    %v1033 = vld [vmem:[#allocation6 + $0x1098] sm:$0xff]
    %v1034 = vld [vmem:[#allocation6 + $0x10a0] sm:$0xff]
    %v1035 = vld [vmem:[#allocation6 + $0x10a8] sm:$0xff]
    %v1036 = vld [vmem:[#allocation6 + $0x10b0] sm:$0xff]
    %v1037 = vld [vmem:[#allocation6 + $0x10b8] sm:$0xff]
    %v1038 = vld [vmem:[#allocation6 + $0x10c0] sm:$0xff]
    %v1039 = vld [vmem:[#allocation6 + $0x10c8] sm:$0xff]
    %v1040 = vld [vmem:[#allocation6 + $0x10d0] sm:$0xff]
    %v1041 = vld [vmem:[#allocation6 + $0x10d8] sm:$0xff]
    %v1042 = vld [vmem:[#allocation6 + $0x10e0] sm:$0xff]
    %v1043 = vld [vmem:[#allocation6 + $0x10e8] sm:$0xff]
    %v1044 = vld [vmem:[#allocation6 + $0x10f0] sm:$0xff]
    %v1045 = vld [vmem:[#allocation6 + $0x10f8] sm:$0xff]
    %v1046 = vld [vmem:[#allocation6 + $0x1100] sm:$0xff]
    %v1047 = vld [vmem:[#allocation6 + $0x1108] sm:$0xff]
    %v1048 = vld [vmem:[#allocation6 + $0x1110] sm:$0xff]
    %v1049 = vld [vmem:[#allocation6 + $0x1118] sm:$0xff]
    %v1050 = vld [vmem:[#allocation6 + $0x1120] sm:$0xff]
    %v1051 = vld [vmem:[#allocation6 + $0x1128] sm:$0xff]
    %v1052 = vld [vmem:[#allocation6 + $0x1130] sm:$0xff]
    %v1053 = vld [vmem:[#allocation6 + $0x1138] sm:$0xff]
    %v1054 = vld [vmem:[#allocation6 + $0x1140] sm:$0xff]
    %v1055 = vld [vmem:[#allocation6 + $0x1148] sm:$0xff]
    %v1056 = vld [vmem:[#allocation6 + $0x1150] sm:$0xff]
    %v1057 = vld [vmem:[#allocation6 + $0x1158] sm:$0xff]
    %v1058 = vld [vmem:[#allocation6 + $0x1160] sm:$0xff]
    %v1059 = vld [vmem:[#allocation6 + $0x1168] sm:$0xff]
    %v1060 = vld [vmem:[#allocation6 + $0x1170] sm:$0xff]
    %v1061 = vld [vmem:[#allocation6 + $0x1178] sm:$0xff]
    %v1062 = vld [vmem:[#allocation6 + $0x1180] sm:$0xff]
    %v1063 = vld [vmem:[#allocation6 + $0x1188] sm:$0xff]
    %v1064 = vld [vmem:[#allocation6 + $0x1190] sm:$0xff]
    %v1065 = vld [vmem:[#allocation6 + $0x1198] sm:$0xff]
    %v1066 = vld [vmem:[#allocation6 + $0x11a0] sm:$0xff]
    %v1067 = vld [vmem:[#allocation6 + $0x11a8] sm:$0xff]
    %v1068 = vld [vmem:[#allocation6 + $0x11b0] sm:$0xff]
    %v1069 = vld [vmem:[#allocation6 + $0x11b8] sm:$0xff]
    %v1070 = vld [vmem:[#allocation6 + $0x11c0] sm:$0xff]
    %v1071 = vld [vmem:[#allocation6 + $0x11c8] sm:$0xff]
    %v1072 = vld [vmem:[#allocation6 + $0x11d0] sm:$0xff]
    %v1073 = vld [vmem:[#allocation6 + $0x11d8] sm:$0xff]
    %v1074 = vld [vmem:[#allocation6 + $0x11e0] sm:$0xff]
    %v1075 = vld [vmem:[#allocation6 + $0x11e8] sm:$0xff]
    %v1076 = vld [vmem:[#allocation6 + $0x11f0] sm:$0xff]
    %v1077 = vld [vmem:[#allocation6 + $0x11f8] sm:$0xff]
    %v1078 = vld [vmem:[#allocation6 + $0x1200] sm:$0xff]
    %v1079 = vld [vmem:[#allocation6 + $0x1208] sm:$0xff]
    %v1080 = vld [vmem:[#allocation6 + $0x1210] sm:$0xff]
    %v1081 = vld [vmem:[#allocation6 + $0x1218] sm:$0xff]
    %v1082 = vld [vmem:[#allocation6 + $0x1220] sm:$0xff]
    %v1083 = vld [vmem:[#allocation6 + $0x1228] sm:$0xff]
    %v1084 = vld [vmem:[#allocation6 + $0x1230] sm:$0xff]
    %v1085 = vld [vmem:[#allocation6 + $0x1238] sm:$0xff]
    %v1086 = vld [vmem:[#allocation6 + $0x1240] sm:$0xff]
    %v1087 = vld [vmem:[#allocation6 + $0x1248] sm:$0xff]
    %v1088 = vld [vmem:[#allocation6 + $0x1250] sm:$0xff]
    %v1089 = vld [vmem:[#allocation6 + $0x1258] sm:$0xff]
    %v1090 = vld [vmem:[#allocation6 + $0x1260] sm:$0xff]
    %v1091 = vld [vmem:[#allocation6 + $0x1268] sm:$0xff]
    %v1092 = vld [vmem:[#allocation6 + $0x1270] sm:$0xff]
    %v1093 = vld [vmem:[#allocation6 + $0x1278] sm:$0xff]
    %v1094 = vld [vmem:[#allocation6 + $0x1280] sm:$0xff]
    %v1095 = vld [vmem:[#allocation6 + $0x1288] sm:$0xff]
    %v1096 = vld [vmem:[#allocation6 + $0x1290] sm:$0xff]
    %v1097 = vld [vmem:[#allocation6 + $0x1298] sm:$0xff]
    %v1098 = vld [vmem:[#allocation6 + $0x12a0] sm:$0xff]
    %v1099 = vld [vmem:[#allocation6 + $0x12a8] sm:$0xff]
    %v1100 = vld [vmem:[#allocation6 + $0x12b0] sm:$0xff]
    %v1101 = vld [vmem:[#allocation6 + $0x12b8] sm:$0xff]
    %v1102 = vld [vmem:[#allocation6 + $0x12c0] sm:$0xff]
    %v1103 = vld [vmem:[#allocation6 + $0x12c8] sm:$0xff]
    %v1104 = vld [vmem:[#allocation6 + $0x12d0] sm:$0xff]
    %v1105 = vld [vmem:[#allocation6 + $0x12d8] sm:$0xff]
    %v1106 = vld [vmem:[#allocation6 + $0x12e0] sm:$0xff]
    %v1107 = vld [vmem:[#allocation6 + $0x12e8] sm:$0xff]
    %v1108 = vld [vmem:[#allocation6 + $0x12f0] sm:$0xff]
    %v1109 = vld [vmem:[#allocation6 + $0x12f8] sm:$0xff]
    %v1110 = vld [vmem:[#allocation6 + $0x1300] sm:$0xff]
    %v1111 = vld [vmem:[#allocation6 + $0x1308] sm:$0xff]
    %v1112 = vld [vmem:[#allocation6 + $0x1310] sm:$0xff]
    %v1113 = vld [vmem:[#allocation6 + $0x1318] sm:$0xff]
    %v1114 = vld [vmem:[#allocation6 + $0x1320] sm:$0xff]
    %v1115 = vld [vmem:[#allocation6 + $0x1328] sm:$0xff]
    %v1116 = vld [vmem:[#allocation6 + $0x1330] sm:$0xff]
    %v1117 = vld [vmem:[#allocation6 + $0x1338] sm:$0xff]
    %v1118 = vld [vmem:[#allocation6 + $0x1340] sm:$0xff]
    %v1119 = vld [vmem:[#allocation6 + $0x1348] sm:$0xff]
    %v1120 = vld [vmem:[#allocation6 + $0x1350] sm:$0xff]
    %v1121 = vld [vmem:[#allocation6 + $0x1358] sm:$0xff]
    %v1122 = vld [vmem:[#allocation6 + $0x1360] sm:$0xff]
    %v1123 = vld [vmem:[#allocation6 + $0x1368] sm:$0xff]
    %v1124 = vld [vmem:[#allocation6 + $0x1370] sm:$0xff]
    %v1125 = vld [vmem:[#allocation6 + $0x1378] sm:$0xff]
    %v1126 = vld [vmem:[#allocation6 + $0x1380] sm:$0xff]
    %v1127 = vld [vmem:[#allocation6 + $0x1388] sm:$0xff]
    %v1128 = vld [vmem:[#allocation6 + $0x1390] sm:$0xff]
    %v1129 = vld [vmem:[#allocation6 + $0x1398] sm:$0xff]
    %v1130 = vld [vmem:[#allocation6 + $0x13a0] sm:$0xff]
    %v1131 = vld [vmem:[#allocation6 + $0x13a8] sm:$0xff]
    %v1132 = vld [vmem:[#allocation6 + $0x13b0] sm:$0xff]
    %v1133 = vld [vmem:[#allocation6 + $0x13b8] sm:$0xff]
    %v1134 = vld [vmem:[#allocation6 + $0x13c0] sm:$0xff]
    %v1135 = vld [vmem:[#allocation6 + $0x13c8] sm:$0xff]
    %v1136 = vld [vmem:[#allocation6 + $0x13d0] sm:$0xff]
    %v1137 = vld [vmem:[#allocation6 + $0x13d8] sm:$0xff]
    %v1138 = vld [vmem:[#allocation6 + $0x13e0] sm:$0xff]
    %v1139 = vld [vmem:[#allocation6 + $0x13e8] sm:$0xff]
    %v1140 = vld [vmem:[#allocation6 + $0x13f0] sm:$0xff]
    %v1141 = vld [vmem:[#allocation6 + $0x13f8] sm:$0xff]
    %v1142 = vld [vmem:[#allocation6 + $0x1400] sm:$0xff]
    %v1143 = vld [vmem:[#allocation6 + $0x1408] sm:$0xff]
    %v1144 = vld [vmem:[#allocation6 + $0x1410] sm:$0xff]
    %v1145 = vld [vmem:[#allocation6 + $0x1418] sm:$0xff]
    %v1146 = vld [vmem:[#allocation6 + $0x1420] sm:$0xff]
    %v1147 = vld [vmem:[#allocation6 + $0x1428] sm:$0xff]
    %v1148 = vld [vmem:[#allocation6 + $0x1430] sm:$0xff]
    %v1149 = vld [vmem:[#allocation6 + $0x1438] sm:$0xff]
    %v1150 = vld [vmem:[#allocation6 + $0x1440] sm:$0xff]
    %v1151 = vld [vmem:[#allocation6 + $0x1448] sm:$0xff]
    %v1152 = vld [vmem:[#allocation6 + $0x1450] sm:$0xff]
    %v1153 = vld [vmem:[#allocation6 + $0x1458] sm:$0xff]
    %v1154 = vld [vmem:[#allocation6 + $0x1460] sm:$0xff]
    %v1155 = vld [vmem:[#allocation6 + $0x1468] sm:$0xff]
    %v1156 = vld [vmem:[#allocation6 + $0x1470] sm:$0xff]
    %v1157 = vld [vmem:[#allocation6 + $0x1478] sm:$0xff]
    %v1158 = vld [vmem:[#allocation6 + $0x1480] sm:$0xff]
    %v1159 = vld [vmem:[#allocation6 + $0x1488] sm:$0xff]
    %v1160 = vld [vmem:[#allocation6 + $0x1490] sm:$0xff]
    %v1161 = vld [vmem:[#allocation6 + $0x1498] sm:$0xff]
    %v1162 = vld [vmem:[#allocation6 + $0x14a0] sm:$0xff]
    %v1163 = vld [vmem:[#allocation6 + $0x14a8] sm:$0xff]
    %v1164 = vld [vmem:[#allocation6 + $0x14b0] sm:$0xff]
    %v1165 = vld [vmem:[#allocation6 + $0x14b8] sm:$0xff]
    %v1166 = vld [vmem:[#allocation6 + $0x14c0] sm:$0xff]
    %v1167 = vld [vmem:[#allocation6 + $0x14c8] sm:$0xff]
    %v1168 = vld [vmem:[#allocation6 + $0x14d0] sm:$0xff]
    %v1169 = vld [vmem:[#allocation6 + $0x14d8] sm:$0xff]
    %v1170 = vld [vmem:[#allocation6 + $0x14e0] sm:$0xff]
    %v1171 = vld [vmem:[#allocation6 + $0x14e8] sm:$0xff]
    %v1172 = vld [vmem:[#allocation6 + $0x14f0] sm:$0xff]
    %v1173 = vld [vmem:[#allocation6 + $0x14f8] sm:$0xff]
    %v1174 = vld [vmem:[#allocation6 + $0x1500] sm:$0xff]
    %v1175 = vld [vmem:[#allocation6 + $0x1508] sm:$0xff]
    %v1176 = vld [vmem:[#allocation6 + $0x1510] sm:$0xff]
    %v1177 = vld [vmem:[#allocation6 + $0x1518] sm:$0xff]
    %v1178 = vld [vmem:[#allocation6 + $0x1520] sm:$0xff]
    %v1179 = vld [vmem:[#allocation6 + $0x1528] sm:$0xff]
    %v1180 = vld [vmem:[#allocation6 + $0x1530] sm:$0xff]
    %v1181 = vld [vmem:[#allocation6 + $0x1538] sm:$0xff]
    %v1182 = vld [vmem:[#allocation6 + $0x1540] sm:$0xff]
    %v1183 = vld [vmem:[#allocation6 + $0x1548] sm:$0xff]
    %v1184 = vld [vmem:[#allocation6 + $0x1550] sm:$0xff]
    %v1185 = vld [vmem:[#allocation6 + $0x1558] sm:$0xff]
    %v1186 = vld [vmem:[#allocation6 + $0x1560] sm:$0xff]
    %v1187 = vld [vmem:[#allocation6 + $0x1568] sm:$0xff]
    %v1188 = vld [vmem:[#allocation6 + $0x1570] sm:$0xff]
    %v1189 = vld [vmem:[#allocation6 + $0x1578] sm:$0xff]
    %v1190 = vld [vmem:[#allocation6 + $0x1580] sm:$0xff]
    %v1191 = vld [vmem:[#allocation6 + $0x1588] sm:$0xff]
    %v1192 = vld [vmem:[#allocation6 + $0x1590] sm:$0xff]
    %v1193 = vld [vmem:[#allocation6 + $0x1598] sm:$0xff]
    %v1194 = vld [vmem:[#allocation6 + $0x15a0] sm:$0xff]
    %v1195 = vld [vmem:[#allocation6 + $0x15a8] sm:$0xff]
    %v1196 = vld [vmem:[#allocation6 + $0x15b0] sm:$0xff]
    %v1197 = vld [vmem:[#allocation6 + $0x15b8] sm:$0xff]
    %v1198 = vld [vmem:[#allocation6 + $0x15c0] sm:$0xff]
    %v1199 = vld [vmem:[#allocation6 + $0x15c8] sm:$0xff]
    %v1200 = vld [vmem:[#allocation6 + $0x15d0] sm:$0xff]
    %v1201 = vld [vmem:[#allocation6 + $0x15d8] sm:$0xff]
    %v1202 = vld [vmem:[#allocation6 + $0x15e0] sm:$0xff]
    %v1203 = vld [vmem:[#allocation6 + $0x15e8] sm:$0xff]
    %v1204 = vld [vmem:[#allocation6 + $0x15f0] sm:$0xff]
    %v1205 = vld [vmem:[#allocation6 + $0x15f8] sm:$0xff]
    %v1206 = vld [vmem:[#allocation6 + $0x1600] sm:$0xff]
    %v1207 = vld [vmem:[#allocation6 + $0x1608] sm:$0xff]
    %v1208 = vld [vmem:[#allocation6 + $0x1610] sm:$0xff]
    %v1209 = vld [vmem:[#allocation6 + $0x1618] sm:$0xff]
    %v1210 = vld [vmem:[#allocation6 + $0x1620] sm:$0xff]
    %v1211 = vld [vmem:[#allocation6 + $0x1628] sm:$0xff]
    %v1212 = vld [vmem:[#allocation6 + $0x1630] sm:$0xff]
    %v1213 = vld [vmem:[#allocation6 + $0x1638] sm:$0xff]
    %v1214 = vld [vmem:[#allocation6 + $0x1640] sm:$0xff]
    %v1215 = vld [vmem:[#allocation6 + $0x1648] sm:$0xff]
    %v1216 = vld [vmem:[#allocation6 + $0x1650] sm:$0xff]
    %v1217 = vld [vmem:[#allocation6 + $0x1658] sm:$0xff]
    %v1218 = vld [vmem:[#allocation6 + $0x1660] sm:$0xff]
    %v1219 = vld [vmem:[#allocation6 + $0x1668] sm:$0xff]
    %v1220 = vld [vmem:[#allocation6 + $0x1670] sm:$0xff]
    %v1221 = vld [vmem:[#allocation6 + $0x1678] sm:$0xff]
    %v1222 = vld [vmem:[#allocation6 + $0x1680] sm:$0xff]
    %v1223 = vld [vmem:[#allocation6 + $0x1688] sm:$0xff]
    %v1224 = vld [vmem:[#allocation6 + $0x1690] sm:$0xff]
    %v1225 = vld [vmem:[#allocation6 + $0x1698] sm:$0xff]
    %v1226 = vld [vmem:[#allocation6 + $0x16a0] sm:$0xff]
    %v1227 = vld [vmem:[#allocation6 + $0x16a8] sm:$0xff]
    %v1228 = vld [vmem:[#allocation6 + $0x16b0] sm:$0xff]
    %v1229 = vld [vmem:[#allocation6 + $0x16b8] sm:$0xff]
    %v1230 = vld [vmem:[#allocation6 + $0x16c0] sm:$0xff]
    %v1231 = vld [vmem:[#allocation6 + $0x16c8] sm:$0xff]
    %v1232 = vld [vmem:[#allocation6 + $0x16d0] sm:$0xff]
    %v1233 = vld [vmem:[#allocation6 + $0x16d8] sm:$0xff]
    %v1234 = vld [vmem:[#allocation6 + $0x16e0] sm:$0xff]
    %v1235 = vld [vmem:[#allocation6 + $0x16e8] sm:$0xff]
    %v1236 = vld [vmem:[#allocation6 + $0x16f0] sm:$0xff]
    %v1237 = vld [vmem:[#allocation6 + $0x16f8] sm:$0xff]
    %v1238 = vld [vmem:[#allocation6 + $0x1700] sm:$0xff]
    %v1239 = vld [vmem:[#allocation6 + $0x1708] sm:$0xff]
    %v1240 = vld [vmem:[#allocation6 + $0x1710] sm:$0xff]
    %v1241 = vld [vmem:[#allocation6 + $0x1718] sm:$0xff]
    %v1242 = vld [vmem:[#allocation6 + $0x1720] sm:$0xff]
    %v1243 = vld [vmem:[#allocation6 + $0x1728] sm:$0xff]
    %v1244 = vld [vmem:[#allocation6 + $0x1730] sm:$0xff]
    %v1245 = vld [vmem:[#allocation6 + $0x1738] sm:$0xff]
    %v1246 = vld [vmem:[#allocation6 + $0x1740] sm:$0xff]
    %v1247 = vld [vmem:[#allocation6 + $0x1748] sm:$0xff]
    %v1248 = vld [vmem:[#allocation6 + $0x1750] sm:$0xff]
    %v1249 = vld [vmem:[#allocation6 + $0x1758] sm:$0xff]
    %v1250 = vld [vmem:[#allocation6 + $0x1760] sm:$0xff]
    %v1251 = vld [vmem:[#allocation6 + $0x1768] sm:$0xff]
    %v1252 = vld [vmem:[#allocation6 + $0x1770] sm:$0xff]
    %v1253 = vld [vmem:[#allocation6 + $0x1778] sm:$0xff]
    %v1254 = vld [vmem:[#allocation6 + $0x1780] sm:$0xff]
    %v1255 = vld [vmem:[#allocation6 + $0x1788] sm:$0xff]
    %v1256 = vld [vmem:[#allocation6 + $0x1790] sm:$0xff]
    %v1257 = vld [vmem:[#allocation6 + $0x1798] sm:$0xff]
    %v1258 = vld [vmem:[#allocation6 + $0x17a0] sm:$0xff]
    %v1259 = vld [vmem:[#allocation6 + $0x17a8] sm:$0xff]
    %v1260 = vld [vmem:[#allocation6 + $0x17b0] sm:$0xff]
    %v1261 = vld [vmem:[#allocation6 + $0x17b8] sm:$0xff]
    %v1262 = vld [vmem:[#allocation6 + $0x17c0] sm:$0xff]
    %v1263 = vld [vmem:[#allocation6 + $0x17c8] sm:$0xff]
    %v1264 = vld [vmem:[#allocation6 + $0x17d0] sm:$0xff]
    %v1265 = vld [vmem:[#allocation6 + $0x17d8] sm:$0xff]
    %v1266 = vld [vmem:[#allocation6 + $0x17e0] sm:$0xff]
    %v1267 = vld [vmem:[#allocation6 + $0x17e8] sm:$0xff]
    %v1268 = vld [vmem:[#allocation6 + $0x17f0] sm:$0xff]
    %v1269 = vld [vmem:[#allocation6 + $0x17f8] sm:$0xff]
    %v1270 = vld [vmem:[#allocation6 + $0x1800] sm:$0xff]
    %v1271 = vld [vmem:[#allocation6 + $0x1808] sm:$0xff]
    %v1272 = vld [vmem:[#allocation6 + $0x1810] sm:$0xff]
    %v1273 = vld [vmem:[#allocation6 + $0x1818] sm:$0xff]
    %v1274 = vld [vmem:[#allocation6 + $0x1820] sm:$0xff]
    %v1275 = vld [vmem:[#allocation6 + $0x1828] sm:$0xff]
    %v1276 = vld [vmem:[#allocation6 + $0x1830] sm:$0xff]
    %v1277 = vld [vmem:[#allocation6 + $0x1838] sm:$0xff]
    %v1278 = vld [vmem:[#allocation6 + $0x1840] sm:$0xff]
    %v1279 = vld [vmem:[#allocation6 + $0x1848] sm:$0xff]
    %v1280 = vld [vmem:[#allocation6 + $0x1850] sm:$0xff]
    %v1281 = vld [vmem:[#allocation6 + $0x1858] sm:$0xff]
    %v1282 = vld [vmem:[#allocation6 + $0x1860] sm:$0xff]
    %v1283 = vld [vmem:[#allocation6 + $0x1868] sm:$0xff]
    %v1284 = vld [vmem:[#allocation6 + $0x1870] sm:$0xff]
    %v1285 = vld [vmem:[#allocation6 + $0x1878] sm:$0xff]
    %v1286 = vld [vmem:[#allocation6 + $0x1880] sm:$0xff]
    %v1287 = vld [vmem:[#allocation6 + $0x1888] sm:$0xff]
    %v1288 = vld [vmem:[#allocation6 + $0x1890] sm:$0xff]
    %v1289 = vld [vmem:[#allocation6 + $0x1898] sm:$0xff]
    %v1290 = vld [vmem:[#allocation6 + $0x18a0] sm:$0xff]
    %v1291 = vld [vmem:[#allocation6 + $0x18a8] sm:$0xff]
    %v1292 = vld [vmem:[#allocation6 + $0x18b0] sm:$0xff]
    %v1293 = vld [vmem:[#allocation6 + $0x18b8] sm:$0xff]
    %v1294 = vld [vmem:[#allocation6 + $0x18c0] sm:$0xff]
    %v1295 = vld [vmem:[#allocation6 + $0x18c8] sm:$0xff]
    %v1296 = vld [vmem:[#allocation6 + $0x18d0] sm:$0xff]
    %v1297 = vld [vmem:[#allocation6 + $0x18d8] sm:$0xff]
    %v1298 = vld [vmem:[#allocation6 + $0x18e0] sm:$0xff]
    %v1299 = vld [vmem:[#allocation6 + $0x18e8] sm:$0xff]
    %v1300 = vld [vmem:[#allocation6 + $0x18f0] sm:$0xff]
    %v1301 = vld [vmem:[#allocation6 + $0x18f8] sm:$0xff]
    %v1302 = vld [vmem:[#allocation6 + $0x1900] sm:$0xff]
    %v1303 = vld [vmem:[#allocation6 + $0x1908] sm:$0xff]
    %v1304 = vld [vmem:[#allocation6 + $0x1910] sm:$0xff]
    %v1305 = vld [vmem:[#allocation6 + $0x1918] sm:$0xff]
    %v1306 = vld [vmem:[#allocation6 + $0x1920] sm:$0xff]
    %v1307 = vld [vmem:[#allocation6 + $0x1928] sm:$0xff]
    %v1308 = vld [vmem:[#allocation6 + $0x1930] sm:$0xff]
    %v1309 = vld [vmem:[#allocation6 + $0x1938] sm:$0xff]
    %v1310 = vld [vmem:[#allocation6 + $0x1940] sm:$0xff]
    %v1311 = vld [vmem:[#allocation6 + $0x1948] sm:$0xff]
    %v1312 = vld [vmem:[#allocation6 + $0x1950] sm:$0xff]
    %v1313 = vld [vmem:[#allocation6 + $0x1958] sm:$0xff]
    %v1314 = vld [vmem:[#allocation6 + $0x1960] sm:$0xff]
    %v1315 = vld [vmem:[#allocation6 + $0x1968] sm:$0xff]
    %v1316 = vld [vmem:[#allocation6 + $0x1970] sm:$0xff]
    %v1317 = vld [vmem:[#allocation6 + $0x1978] sm:$0xff]
    %v1318 = vld [vmem:[#allocation6 + $0x1980] sm:$0xff]
    %v1319 = vld [vmem:[#allocation6 + $0x1988] sm:$0xff]
    %v1320 = vld [vmem:[#allocation6 + $0x1990] sm:$0xff]
    %v1321 = vld [vmem:[#allocation6 + $0x1998] sm:$0xff]
    %v1322 = vld [vmem:[#allocation6 + $0x19a0] sm:$0xff]
    %v1323 = vld [vmem:[#allocation6 + $0x19a8] sm:$0xff]
    %v1324 = vld [vmem:[#allocation6 + $0x19b0] sm:$0xff]
    %v1325 = vld [vmem:[#allocation6 + $0x19b8] sm:$0xff]
    %v1326 = vld [vmem:[#allocation6 + $0x19c0] sm:$0xff]
    %v1327 = vld [vmem:[#allocation6 + $0x19c8] sm:$0xff]
    %v1328 = vld [vmem:[#allocation6 + $0x19d0] sm:$0xff]
    %v1329 = vld [vmem:[#allocation6 + $0x19d8] sm:$0xff]
    %v1330 = vld [vmem:[#allocation6 + $0x19e0] sm:$0xff]
    %v1331 = vld [vmem:[#allocation6 + $0x19e8] sm:$0xff]
    %v1332 = vld [vmem:[#allocation6 + $0x19f0] sm:$0xff]
    %v1333 = vld [vmem:[#allocation6 + $0x19f8] sm:$0xff]
    %v1334 = vld [vmem:[#allocation6 + $0x1a00] sm:$0xff]
    %v1335 = vld [vmem:[#allocation6 + $0x1a08] sm:$0xff]
    %v1336 = vld [vmem:[#allocation6 + $0x1a10] sm:$0xff]
    %v1337 = vld [vmem:[#allocation6 + $0x1a18] sm:$0xff]
    %v1338 = vld [vmem:[#allocation6 + $0x1a20] sm:$0xff]
    %v1339 = vld [vmem:[#allocation6 + $0x1a28] sm:$0xff]
    %v1340 = vld [vmem:[#allocation6 + $0x1a30] sm:$0xff]
    %v1341 = vld [vmem:[#allocation6 + $0x1a38] sm:$0xff]
    %v1342 = vld [vmem:[#allocation6 + $0x1a40] sm:$0xff]
    %v1343 = vld [vmem:[#allocation6 + $0x1a48] sm:$0xff]
    %v1344 = vld [vmem:[#allocation6 + $0x1a50] sm:$0xff]
    %v1345 = vld [vmem:[#allocation6 + $0x1a58] sm:$0xff]
    %v1346 = vld [vmem:[#allocation6 + $0x1a60] sm:$0xff]
    %v1347 = vld [vmem:[#allocation6 + $0x1a68] sm:$0xff]
    %v1348 = vld [vmem:[#allocation6 + $0x1a70] sm:$0xff]
    %v1349 = vld [vmem:[#allocation6 + $0x1a78] sm:$0xff]
    %v1350 = vld [vmem:[#allocation6 + $0x1a80] sm:$0xff]
    %v1351 = vld [vmem:[#allocation6 + $0x1a88] sm:$0xff]
    %v1352 = vld [vmem:[#allocation6 + $0x1a90] sm:$0xff]
    %v1353 = vld [vmem:[#allocation6 + $0x1a98] sm:$0xff]
    %v1354 = vld [vmem:[#allocation6 + $0x1aa0] sm:$0xff]
    %v1355 = vld [vmem:[#allocation6 + $0x1aa8] sm:$0xff]
    %v1356 = vld [vmem:[#allocation6 + $0x1ab0] sm:$0xff]
    %v1357 = vld [vmem:[#allocation6 + $0x1ab8] sm:$0xff]
    %v1358 = vld [vmem:[#allocation6 + $0x1ac0] sm:$0xff]
    %v1359 = vld [vmem:[#allocation6 + $0x1ac8] sm:$0xff]
    %v1360 = vld [vmem:[#allocation6 + $0x1ad0] sm:$0xff]
    %v1361 = vld [vmem:[#allocation6 + $0x1ad8] sm:$0xff]
    %v1362 = vld [vmem:[#allocation6 + $0x1ae0] sm:$0xff]
    %v1363 = vld [vmem:[#allocation6 + $0x1ae8] sm:$0xff]
    %v1364 = vld [vmem:[#allocation6 + $0x1af0] sm:$0xff]
    %v1365 = vld [vmem:[#allocation6 + $0x1af8] sm:$0xff]
    %v1366 = vld [vmem:[#allocation6 + $0x1b00] sm:$0xff]
    %v1367 = vld [vmem:[#allocation6 + $0x1b08] sm:$0xff]
    %v1368 = vld [vmem:[#allocation6 + $0x1b10] sm:$0xff]
    %v1369 = vld [vmem:[#allocation6 + $0x1b18] sm:$0xff]
    %v1370 = vld [vmem:[#allocation6 + $0x1b20] sm:$0xff]
    %v1371 = vld [vmem:[#allocation6 + $0x1b28] sm:$0xff]
    %v1372 = vld [vmem:[#allocation6 + $0x1b30] sm:$0xff]
    %v1373 = vld [vmem:[#allocation6 + $0x1b38] sm:$0xff]
    %v1374 = vld [vmem:[#allocation6 + $0x1b40] sm:$0xff]
    %v1375 = vld [vmem:[#allocation6 + $0x1b48] sm:$0xff]
    %v1376 = vld [vmem:[#allocation6 + $0x1b50] sm:$0xff]
    %v1377 = vld [vmem:[#allocation6 + $0x1b58] sm:$0xff]
    %v1378 = vld [vmem:[#allocation6 + $0x1b60] sm:$0xff]
    %v1379 = vld [vmem:[#allocation6 + $0x1b68] sm:$0xff]
    %v1380 = vld [vmem:[#allocation6 + $0x1b70] sm:$0xff]
    %v1381 = vld [vmem:[#allocation6 + $0x1b78] sm:$0xff]
    %v1382 = vld [vmem:[#allocation6 + $0x1b80] sm:$0xff]
    %v1383 = vld [vmem:[#allocation6 + $0x1b88] sm:$0xff]
    %v1384 = vld [vmem:[#allocation6 + $0x1b90] sm:$0xff]
    %v1385 = vld [vmem:[#allocation6 + $0x1b98] sm:$0xff]
    %v1386 = vld [vmem:[#allocation6 + $0x1ba0] sm:$0xff]
    %v1387 = vld [vmem:[#allocation6 + $0x1ba8] sm:$0xff]
    %v1388 = vld [vmem:[#allocation6 + $0x1bb0] sm:$0xff]
    %v1389 = vld [vmem:[#allocation6 + $0x1bb8] sm:$0xff]
    %v1390 = vld [vmem:[#allocation6 + $0x1bc0] sm:$0xff]
    %v1391 = vld [vmem:[#allocation6 + $0x1bc8] sm:$0xff]
    %v1392 = vld [vmem:[#allocation6 + $0x1bd0] sm:$0xff]
    %v1393 = vld [vmem:[#allocation6 + $0x1bd8] sm:$0xff]
    %v1394 = vld [vmem:[#allocation6 + $0x1be0] sm:$0xff]
    %v1395 = vld [vmem:[#allocation6 + $0x1be8] sm:$0xff]
    %v1396 = vld [vmem:[#allocation6 + $0x1bf0] sm:$0xff]
    %v1397 = vld [vmem:[#allocation6 + $0x1bf8] sm:$0xff]
    %v1398 = vld [vmem:[#allocation6 + $0x1c00] sm:$0xff]
    %v1399 = vld [vmem:[#allocation6 + $0x1c08] sm:$0xff]
    %v1400 = vld [vmem:[#allocation6 + $0x1c10] sm:$0xff]
    %v1401 = vld [vmem:[#allocation6 + $0x1c18] sm:$0xff]
    %v1402 = vld [vmem:[#allocation6 + $0x1c20] sm:$0xff]
    %v1403 = vld [vmem:[#allocation6 + $0x1c28] sm:$0xff]
    %v1404 = vld [vmem:[#allocation6 + $0x1c30] sm:$0xff]
    %v1405 = vld [vmem:[#allocation6 + $0x1c38] sm:$0xff]
    %v1406 = vld [vmem:[#allocation6 + $0x1c40] sm:$0xff]
    %v1407 = vld [vmem:[#allocation6 + $0x1c48] sm:$0xff]
    %v1408 = vld [vmem:[#allocation6 + $0x1c50] sm:$0xff]
    %v1409 = vld [vmem:[#allocation6 + $0x1c58] sm:$0xff]
    %v1410 = vld [vmem:[#allocation6 + $0x1c60] sm:$0xff]
    %v1411 = vld [vmem:[#allocation6 + $0x1c68] sm:$0xff]
    %v1412 = vld [vmem:[#allocation6 + $0x1c70] sm:$0xff]
    %v1413 = vld [vmem:[#allocation6 + $0x1c78] sm:$0xff]
    %v1414 = vld [vmem:[#allocation6 + $0x1c80] sm:$0xff]
    %v1415 = vld [vmem:[#allocation6 + $0x1c88] sm:$0xff]
    %v1416 = vld [vmem:[#allocation6 + $0x1c90] sm:$0xff]
    %v1417 = vld [vmem:[#allocation6 + $0x1c98] sm:$0xff]
    %v1418 = vld [vmem:[#allocation6 + $0x1ca0] sm:$0xff]
    %v1419 = vld [vmem:[#allocation6 + $0x1ca8] sm:$0xff]
    %v1420 = vld [vmem:[#allocation6 + $0x1cb0] sm:$0xff]
    %v1421 = vld [vmem:[#allocation6 + $0x1cb8] sm:$0xff]
    %v1422 = vld [vmem:[#allocation6 + $0x1cc0] sm:$0xff]
    %v1423 = vld [vmem:[#allocation6 + $0x1cc8] sm:$0xff]
    %v1424 = vld [vmem:[#allocation6 + $0x1cd0] sm:$0xff]
    %v1425 = vld [vmem:[#allocation6 + $0x1cd8] sm:$0xff]
    %v1426 = vld [vmem:[#allocation6 + $0x1ce0] sm:$0xff]
    %v1427 = vld [vmem:[#allocation6 + $0x1ce8] sm:$0xff]
    %v1428 = vld [vmem:[#allocation6 + $0x1cf0] sm:$0xff]
    %v1429 = vld [vmem:[#allocation6 + $0x1cf8] sm:$0xff]
    %v1430 = vld [vmem:[#allocation6 + $0x1d00] sm:$0xff]
    %v1431 = vld [vmem:[#allocation6 + $0x1d08] sm:$0xff]
    %v1432 = vld [vmem:[#allocation6 + $0x1d10] sm:$0xff]
    %v1433 = vld [vmem:[#allocation6 + $0x1d18] sm:$0xff]
    %v1434 = vld [vmem:[#allocation6 + $0x1d20] sm:$0xff]
    %v1435 = vld [vmem:[#allocation6 + $0x1d28] sm:$0xff]
    %v1436 = vld [vmem:[#allocation6 + $0x1d30] sm:$0xff]
    %v1437 = vld [vmem:[#allocation6 + $0x1d38] sm:$0xff]
    %v1438 = vld [vmem:[#allocation6 + $0x1d40] sm:$0xff]
    %v1439 = vld [vmem:[#allocation6 + $0x1d48] sm:$0xff]
    %v1440 = vld [vmem:[#allocation6 + $0x1d50] sm:$0xff]
    %v1441 = vld [vmem:[#allocation6 + $0x1d58] sm:$0xff]
    %v1442 = vld [vmem:[#allocation6 + $0x1d60] sm:$0xff]
    %v1443 = vld [vmem:[#allocation6 + $0x1d68] sm:$0xff]
    %v1444 = vld [vmem:[#allocation6 + $0x1d70] sm:$0xff]
    %v1445 = vld [vmem:[#allocation6 + $0x1d78] sm:$0xff]
    %v1446 = vld [vmem:[#allocation6 + $0x1d80] sm:$0xff]
    %v1447 = vld [vmem:[#allocation6 + $0x1d88] sm:$0xff]
    %v1448 = vld [vmem:[#allocation6 + $0x1d90] sm:$0xff]
    %v1449 = vld [vmem:[#allocation6 + $0x1d98] sm:$0xff]
    %v1450 = vld [vmem:[#allocation6 + $0x1da0] sm:$0xff]
    %v1451 = vld [vmem:[#allocation6 + $0x1da8] sm:$0xff]
    %v1452 = vld [vmem:[#allocation6 + $0x1db0] sm:$0xff]
    %v1453 = vld [vmem:[#allocation6 + $0x1db8] sm:$0xff]
    %v1454 = vld [vmem:[#allocation6 + $0x1dc0] sm:$0xff]
    %v1455 = vld [vmem:[#allocation6 + $0x1dc8] sm:$0xff]
    %v1456 = vld [vmem:[#allocation6 + $0x1dd0] sm:$0xff]
    %v1457 = vld [vmem:[#allocation6 + $0x1dd8] sm:$0xff]
    %v1458 = vld [vmem:[#allocation6 + $0x1de0] sm:$0xff]
    %v1459 = vld [vmem:[#allocation6 + $0x1de8] sm:$0xff]
    %v1460 = vld [vmem:[#allocation6 + $0x1df0] sm:$0xff]
    %v1461 = vld [vmem:[#allocation6 + $0x1df8] sm:$0xff]
    %v1462 = vld [vmem:[#allocation6 + $0x1e00] sm:$0xff]
    %v1463 = vld [vmem:[#allocation6 + $0x1e08] sm:$0xff]
    %v1464 = vld [vmem:[#allocation6 + $0x1e10] sm:$0xff]
    %v1465 = vld [vmem:[#allocation6 + $0x1e18] sm:$0xff]
    %v1466 = vld [vmem:[#allocation6 + $0x1e20] sm:$0xff]
    %v1467 = vld [vmem:[#allocation6 + $0x1e28] sm:$0xff]
    %v1468 = vld [vmem:[#allocation6 + $0x1e30] sm:$0xff]
    %v1469 = vld [vmem:[#allocation6 + $0x1e38] sm:$0xff]
    %v1470 = vld [vmem:[#allocation6 + $0x1e40] sm:$0xff]
    %v1471 = vld [vmem:[#allocation6 + $0x1e48] sm:$0xff]
    %v1472 = vld [vmem:[#allocation6 + $0x1e50] sm:$0xff]
    %v1473 = vld [vmem:[#allocation6 + $0x1e58] sm:$0xff]
    %v1474 = vld [vmem:[#allocation6 + $0x1e60] sm:$0xff]
    %v1475 = vld [vmem:[#allocation6 + $0x1e68] sm:$0xff]
    %v1476 = vld [vmem:[#allocation6 + $0x1e70] sm:$0xff]
    %v1477 = vld [vmem:[#allocation6 + $0x1e78] sm:$0xff]
    %v1478 = vld [vmem:[#allocation6 + $0x1e80] sm:$0xff]
    %v1479 = vld [vmem:[#allocation6 + $0x1e88] sm:$0xff]
    %v1480 = vld [vmem:[#allocation6 + $0x1e90] sm:$0xff]
    %v1481 = vld [vmem:[#allocation6 + $0x1e98] sm:$0xff]
    %v1482 = vld [vmem:[#allocation6 + $0x1ea0] sm:$0xff]
    %v1483 = vld [vmem:[#allocation6 + $0x1ea8] sm:$0xff]
    %v1484 = vld [vmem:[#allocation6 + $0x1eb0] sm:$0xff]
    %v1485 = vld [vmem:[#allocation6 + $0x1eb8] sm:$0xff]
    %v1486 = vld [vmem:[#allocation6 + $0x1ec0] sm:$0xff]
    %v1487 = vld [vmem:[#allocation6 + $0x1ec8] sm:$0xff]
    %v1488 = vld [vmem:[#allocation6 + $0x1ed0] sm:$0xff]
    %v1489 = vld [vmem:[#allocation6 + $0x1ed8] sm:$0xff]
    %v1490 = vld [vmem:[#allocation6 + $0x1ee0] sm:$0xff]
    %v1491 = vld [vmem:[#allocation6 + $0x1ee8] sm:$0xff]
    %v1492 = vld [vmem:[#allocation6 + $0x1ef0] sm:$0xff]
    %v1493 = vld [vmem:[#allocation6 + $0x1ef8] sm:$0xff]
    %v1494 = vld [vmem:[#allocation6 + $0x1f00] sm:$0xff]
    %v1495 = vld [vmem:[#allocation6 + $0x1f08] sm:$0xff]
    %v1496 = vld [vmem:[#allocation6 + $0x1f10] sm:$0xff]
    %v1497 = vld [vmem:[#allocation6 + $0x1f18] sm:$0xff]
    %v1498 = vld [vmem:[#allocation6 + $0x1f20] sm:$0xff]
    %v1499 = vld [vmem:[#allocation6 + $0x1f28] sm:$0xff]
    %v1500 = vld [vmem:[#allocation6 + $0x1f30] sm:$0xff]
    %v1501 = vld [vmem:[#allocation6 + $0x1f38] sm:$0xff]
    %v1502 = vld [vmem:[#allocation6 + $0x1f40] sm:$0xff]
    %v1503 = vld [vmem:[#allocation6 + $0x1f48] sm:$0xff]
    %v1504 = vld [vmem:[#allocation6 + $0x1f50] sm:$0xff]
    %v1505 = vld [vmem:[#allocation6 + $0x1f58] sm:$0xff]
    %v1506 = vld [vmem:[#allocation6 + $0x1f60] sm:$0xff]
    %v1507 = vld [vmem:[#allocation6 + $0x1f68] sm:$0xff]
    %v1508 = vld [vmem:[#allocation6 + $0x1f70] sm:$0xff]
    %v1509 = vld [vmem:[#allocation6 + $0x1f78] sm:$0xff]
    %v1510 = vld [vmem:[#allocation6 + $0x1f80] sm:$0xff]
    %v1511 = vld [vmem:[#allocation6 + $0x1f88] sm:$0xff]
    %v1512 = vld [vmem:[#allocation6 + $0x1f90] sm:$0xff]
    %v1513 = vld [vmem:[#allocation6 + $0x1f98] sm:$0xff]
    %v1514 = vld [vmem:[#allocation6 + $0x1fa0] sm:$0xff]
    %v1515 = vld [vmem:[#allocation6 + $0x1fa8] sm:$0xff]
    %v1516 = vld [vmem:[#allocation6 + $0x1fb0] sm:$0xff]
    %v1517 = vld [vmem:[#allocation6 + $0x1fb8] sm:$0xff]
    %v1518 = vld [vmem:[#allocation6 + $0x1fc0] sm:$0xff]
    %v1519 = vld [vmem:[#allocation6 + $0x1fc8] sm:$0xff]
    %v1520 = vld [vmem:[#allocation6 + $0x1fd0] sm:$0xff]
    %v1521 = vld [vmem:[#allocation6 + $0x1fd8] sm:$0xff]
    %v1522 = vld [vmem:[#allocation6 + $0x1fe0] sm:$0xff]
    %v1523 = vld [vmem:[#allocation6 + $0x1fe8] sm:$0xff]
    %v1524 = vld [vmem:[#allocation6 + $0x1ff0] sm:$0xff]
    %v1525 = vld [vmem:[#allocation6 + $0x1ff8] sm:$0xff]
    %v1526 = vld [vmem:[#allocation6 + $0x2000] sm:$0xff]
    %v1527 = vld [vmem:[#allocation6 + $0x2008] sm:$0xff]
    %v1528 = vld [vmem:[#allocation6 + $0x2010] sm:$0xff]
    %v1529 = vld [vmem:[#allocation6 + $0x2018] sm:$0xff]
    %v1530 = vld [vmem:[#allocation6 + $0x2020] sm:$0xff]
    %v1531 = vld [vmem:[#allocation6 + $0x2028] sm:$0xff]
    %v1532 = vld [vmem:[#allocation6 + $0x2030] sm:$0xff]
    %v1533 = vld [vmem:[#allocation6 + $0x2038] sm:$0xff]
    %v1534 = vld [vmem:[#allocation6 + $0x2040] sm:$0xff]
    %v1535 = vld [vmem:[#allocation6 + $0x2048] sm:$0xff]
    %v1536 = vld [vmem:[#allocation6 + $0x2050] sm:$0xff]
    %v1537 = vld [vmem:[#allocation6 + $0x2058] sm:$0xff]
    %v1538 = vld [vmem:[#allocation6 + $0x2060] sm:$0xff]
    %v1539 = vld [vmem:[#allocation6 + $0x2068] sm:$0xff]
    %v1540 = vld [vmem:[#allocation6 + $0x2070] sm:$0xff]
    %v1541 = vld [vmem:[#allocation6 + $0x2078] sm:$0xff]
    %v1542 = vld [vmem:[#allocation6 + $0x2080] sm:$0xff]
    %v1543 = vld [vmem:[#allocation6 + $0x2088] sm:$0xff]
    %v1544 = vld [vmem:[#allocation6 + $0x2090] sm:$0xff]
    %v1545 = vld [vmem:[#allocation6 + $0x2098] sm:$0xff]
    %v1546 = vld [vmem:[#allocation6 + $0x20a0] sm:$0xff]
    %v1547 = vld [vmem:[#allocation6 + $0x20a8] sm:$0xff]
    %v1548 = vld [vmem:[#allocation6 + $0x20b0] sm:$0xff]
    %v1549 = vld [vmem:[#allocation6 + $0x20b8] sm:$0xff]
    %v1550 = vld [vmem:[#allocation6 + $0x20c0] sm:$0xff]
    %v1551 = vld [vmem:[#allocation6 + $0x20c8] sm:$0xff]
    %v1552 = vld [vmem:[#allocation6 + $0x20d0] sm:$0xff]
    %v1553 = vld [vmem:[#allocation6 + $0x20d8] sm:$0xff]
    %v1554 = vld [vmem:[#allocation6 + $0x20e0] sm:$0xff]
    %v1555 = vld [vmem:[#allocation6 + $0x20e8] sm:$0xff]
    %v1556 = vld [vmem:[#allocation6 + $0x20f0] sm:$0xff]
    %v1557 = vld [vmem:[#allocation6 + $0x20f8] sm:$0xff]
    %v1558 = vld [vmem:[#allocation6 + $0x2100] sm:$0xff]
    %v1559 = vld [vmem:[#allocation6 + $0x2108] sm:$0xff]
    %v1560 = vld [vmem:[#allocation6 + $0x2110] sm:$0xff]
    %v1561 = vld [vmem:[#allocation6 + $0x2118] sm:$0xff]
    %v1562 = vld [vmem:[#allocation6 + $0x2120] sm:$0xff]
    %v1563 = vld [vmem:[#allocation6 + $0x2128] sm:$0xff]
    %v1564 = vld [vmem:[#allocation6 + $0x2130] sm:$0xff]
    %v1565 = vld [vmem:[#allocation6 + $0x2138] sm:$0xff]
    %v1566 = vld [vmem:[#allocation6 + $0x2140] sm:$0xff]
    %v1567 = vld [vmem:[#allocation6 + $0x2148] sm:$0xff]
    %v1568 = vld [vmem:[#allocation6 + $0x2150] sm:$0xff]
    %v1569 = vld [vmem:[#allocation6 + $0x2158] sm:$0xff]
    %v1570 = vld [vmem:[#allocation6 + $0x2160] sm:$0xff]
    %v1571 = vld [vmem:[#allocation6 + $0x2168] sm:$0xff]
    %v1572 = vld [vmem:[#allocation6 + $0x2170] sm:$0xff]
    %v1573 = vld [vmem:[#allocation6 + $0x2178] sm:$0xff]
    %v1574 = vld [vmem:[#allocation6 + $0x2180] sm:$0xff]
    %v1575 = vld [vmem:[#allocation6 + $0x2188] sm:$0xff]
    %v1576 = vld [vmem:[#allocation6 + $0x2190] sm:$0xff]
    %v1577 = vld [vmem:[#allocation6 + $0x2198] sm:$0xff]
    %v1578 = vld [vmem:[#allocation6 + $0x21a0] sm:$0xff]
    %v1579 = vld [vmem:[#allocation6 + $0x21a8] sm:$0xff]
    %v1580 = vld [vmem:[#allocation6 + $0x21b0] sm:$0xff]
    %v1581 = vld [vmem:[#allocation6 + $0x21b8] sm:$0xff]
    %v1582 = vld [vmem:[#allocation6 + $0x21c0] sm:$0xff]
    %v1583 = vld [vmem:[#allocation6 + $0x21c8] sm:$0xff]
    %v1584 = vld [vmem:[#allocation6 + $0x21d0] sm:$0xff]
    %v1585 = vld [vmem:[#allocation6 + $0x21d8] sm:$0xff]
    %v1586 = vld [vmem:[#allocation6 + $0x21e0] sm:$0xff]
    %v1587 = vld [vmem:[#allocation6 + $0x21e8] sm:$0xff]
    %v1588 = vld [vmem:[#allocation6 + $0x21f0] sm:$0xff]
    %v1589 = vld [vmem:[#allocation6 + $0x21f8] sm:$0xff]
    %v1590 = vld [vmem:[#allocation6 + $0x2200] sm:$0xff]
    %v1591 = vld [vmem:[#allocation6 + $0x2208] sm:$0xff]
    %v1592 = vld [vmem:[#allocation6 + $0x2210] sm:$0xff]
    %v1593 = vld [vmem:[#allocation6 + $0x2218] sm:$0xff]
    %v1594 = vld [vmem:[#allocation6 + $0x2220] sm:$0xff]
    %v1595 = vld [vmem:[#allocation6 + $0x2228] sm:$0xff]
    %v1596 = vld [vmem:[#allocation6 + $0x2230] sm:$0xff]
    %v1597 = vld [vmem:[#allocation6 + $0x2238] sm:$0xff]
    %v1598 = vld [vmem:[#allocation6 + $0x2240] sm:$0xff]
    %v1599 = vld [vmem:[#allocation6 + $0x2248] sm:$0xff]
    %v1600 = vld [vmem:[#allocation6 + $0x2250] sm:$0xff]
    %v1601 = vld [vmem:[#allocation6 + $0x2258] sm:$0xff]
    %v1602 = vld [vmem:[#allocation6 + $0x2260] sm:$0xff]
    %v1603 = vld [vmem:[#allocation6 + $0x2268] sm:$0xff]
    %v1604 = vld [vmem:[#allocation6 + $0x2270] sm:$0xff]
    %v1605 = vld [vmem:[#allocation6 + $0x2278] sm:$0xff]
    %v1606 = vld [vmem:[#allocation6 + $0x2280] sm:$0xff]
    %v1607 = vld [vmem:[#allocation6 + $0x2288] sm:$0xff]
    %v1608 = vld [vmem:[#allocation6 + $0x2290] sm:$0xff]
    %v1609 = vld [vmem:[#allocation6 + $0x2298] sm:$0xff]
    %v1610 = vld [vmem:[#allocation6 + $0x22a0] sm:$0xff]
    %v1611 = vld [vmem:[#allocation6 + $0x22a8] sm:$0xff]
    %v1612 = vld [vmem:[#allocation6 + $0x22b0] sm:$0xff]
    %v1613 = vld [vmem:[#allocation6 + $0x22b8] sm:$0xff]
    %v1614 = vld [vmem:[#allocation6 + $0x22c0] sm:$0xff]
    %v1615 = vld [vmem:[#allocation6 + $0x22c8] sm:$0xff]
    %v1616 = vld [vmem:[#allocation6 + $0x22d0] sm:$0xff]
    %v1617 = vld [vmem:[#allocation6 + $0x22d8] sm:$0xff]
    %v1618 = vld [vmem:[#allocation6 + $0x22e0] sm:$0xff]
    %v1619 = vld [vmem:[#allocation6 + $0x22e8] sm:$0xff]
    %v1620 = vld [vmem:[#allocation6 + $0x22f0] sm:$0xff]
    %v1621 = vld [vmem:[#allocation6 + $0x22f8] sm:$0xff]
    %v1622 = vld [vmem:[#allocation6 + $0x2300] sm:$0xff]
    %v1623 = vld [vmem:[#allocation6 + $0x2308] sm:$0xff]
    %v1624 = vld [vmem:[#allocation6 + $0x2310] sm:$0xff]
    %v1625 = vld [vmem:[#allocation6 + $0x2318] sm:$0xff]
    %v1626 = vld [vmem:[#allocation6 + $0x2320] sm:$0xff]
    %v1627 = vld [vmem:[#allocation6 + $0x2328] sm:$0xff]
    %v1628 = vld [vmem:[#allocation6 + $0x2330] sm:$0xff]
    %v1629 = vld [vmem:[#allocation6 + $0x2338] sm:$0xff]
    %v1630 = vld [vmem:[#allocation6 + $0x2340] sm:$0xff]
    %v1631 = vld [vmem:[#allocation6 + $0x2348] sm:$0xff]
    %v1632 = vld [vmem:[#allocation6 + $0x2350] sm:$0xff]
    %v1633 = vld [vmem:[#allocation6 + $0x2358] sm:$0xff]
    %v1634 = vld [vmem:[#allocation6 + $0x2360] sm:$0xff]
    %v1635 = vld [vmem:[#allocation6 + $0x2368] sm:$0xff]
    %v1636 = vld [vmem:[#allocation6 + $0x2370] sm:$0xff]
    %v1637 = vld [vmem:[#allocation6 + $0x2378] sm:$0xff]
    %v1638 = vld [vmem:[#allocation6 + $0x2380] sm:$0xff]
    %v1639 = vld [vmem:[#allocation6 + $0x2388] sm:$0xff]
    %v1640 = vld [vmem:[#allocation6 + $0x2390] sm:$0xff]
    %v1641 = vld [vmem:[#allocation6 + $0x2398] sm:$0xff]
    %v1642 = vld [vmem:[#allocation6 + $0x23a0] sm:$0xff]
    %v1643 = vld [vmem:[#allocation6 + $0x23a8] sm:$0xff]
    %v1644 = vld [vmem:[#allocation6 + $0x23b0] sm:$0xff]
    %v1645 = vld [vmem:[#allocation6 + $0x23b8] sm:$0xff]
    %v1646 = vld [vmem:[#allocation6 + $0x23c0] sm:$0xff]
    %v1647 = vld [vmem:[#allocation6 + $0x23c8] sm:$0xff]
    %v1648 = vld [vmem:[#allocation6 + $0x23d0] sm:$0xff]
    %v1649 = vld [vmem:[#allocation6 + $0x23d8] sm:$0xff]
    %v1650 = vld [vmem:[#allocation6 + $0x23e0] sm:$0xff]
    %v1651 = vld [vmem:[#allocation6 + $0x23e8] sm:$0xff]
    %v1652 = vld [vmem:[#allocation6 + $0x23f0] sm:$0xff]
    %v1653 = vld [vmem:[#allocation6 + $0x23f8] sm:$0xff]
    %v2806 = vunpack.c.l.b16 %v502
    %v2807 = vunpack.c.h.b16 %v502
    %v2808 = vunpack.c.l.b16 %v503
    %v2809 = vunpack.c.h.b16 %v503
    %v2810 = vunpack.c.l.b16 %v504
    %v2811 = vunpack.c.h.b16 %v504
    %v2812 = vunpack.c.l.b16 %v505
    %v2813 = vunpack.c.h.b16 %v505
    %v2814 = vunpack.c.l.b16 %v506
    %v2815 = vunpack.c.h.b16 %v506
    %v2816 = vunpack.c.l.b16 %v507
    %v2817 = vunpack.c.h.b16 %v507
    %v2818 = vunpack.c.l.b16 %v508
    %v2819 = vunpack.c.h.b16 %v508
    %v2820 = vunpack.c.l.b16 %v509
    %v2821 = vunpack.c.h.b16 %v509
    %v2822 = vunpack.c.l.b16 %v510
    %v2823 = vunpack.c.h.b16 %v510
    %v2824 = vunpack.c.l.b16 %v511
    %v2825 = vunpack.c.h.b16 %v511
    %v2826 = vunpack.c.l.b16 %v512
    %v2827 = vunpack.c.h.b16 %v512
    %v2828 = vunpack.c.l.b16 %v513
    %v2829 = vunpack.c.h.b16 %v513
    %v2830 = vunpack.c.l.b16 %v514
    %v2831 = vunpack.c.h.b16 %v514
    %v2832 = vunpack.c.l.b16 %v515
    %v2833 = vunpack.c.h.b16 %v515
    %v2834 = vunpack.c.l.b16 %v516
    %v2835 = vunpack.c.h.b16 %v516
    %v2836 = vunpack.c.l.b16 %v517
    %v2837 = vunpack.c.h.b16 %v517
    %v2838 = vunpack.c.l.b16 %v518
    %v2839 = vunpack.c.h.b16 %v518
    %v2840 = vunpack.c.l.b16 %v519
    %v2841 = vunpack.c.h.b16 %v519
    %v2842 = vunpack.c.l.b16 %v520
    %v2843 = vunpack.c.h.b16 %v520
    %v2844 = vunpack.c.l.b16 %v521
    %v2845 = vunpack.c.h.b16 %v521
    %v2846 = vunpack.c.l.b16 %v522
    %v2847 = vunpack.c.h.b16 %v522
    %v2848 = vunpack.c.l.b16 %v523
    %v2849 = vunpack.c.h.b16 %v523
    %v2850 = vunpack.c.l.b16 %v524
    %v2851 = vunpack.c.h.b16 %v524
    %v2852 = vunpack.c.l.b16 %v525
    %v2853 = vunpack.c.h.b16 %v525
    %v2854 = vunpack.c.l.b16 %v526
    %v2855 = vunpack.c.h.b16 %v526
    %v2856 = vunpack.c.l.b16 %v527
    %v2857 = vunpack.c.h.b16 %v527
    %v2858 = vunpack.c.l.b16 %v528
    %v2859 = vunpack.c.h.b16 %v528
    %v2860 = vunpack.c.l.b16 %v529
    %v2861 = vunpack.c.h.b16 %v529
    %v2862 = vunpack.c.l.b16 %v530
    %v2863 = vunpack.c.h.b16 %v530
    %v2864 = vunpack.c.l.b16 %v531
    %v2865 = vunpack.c.h.b16 %v531
    %v2866 = vunpack.c.l.b16 %v532
    %v2867 = vunpack.c.h.b16 %v532
    %v2868 = vunpack.c.l.b16 %v533
    %v2869 = vunpack.c.h.b16 %v533
    %v2870 = vunpack.c.l.b16 %v534
    %v2871 = vunpack.c.h.b16 %v534
    %v2872 = vunpack.c.l.b16 %v535
    %v2873 = vunpack.c.h.b16 %v535
    %v2874 = vunpack.c.l.b16 %v536
    %v2875 = vunpack.c.h.b16 %v536
    %v2876 = vunpack.c.l.b16 %v537
    %v2877 = vunpack.c.h.b16 %v537
    %v2878 = vunpack.c.l.b16 %v538
    %v2879 = vunpack.c.h.b16 %v538
    %v2880 = vunpack.c.l.b16 %v539
    %v2881 = vunpack.c.h.b16 %v539
    %v2882 = vunpack.c.l.b16 %v540
    %v2883 = vunpack.c.h.b16 %v540
    %v2884 = vunpack.c.l.b16 %v541
    %v2885 = vunpack.c.h.b16 %v541
    %v2886 = vunpack.c.l.b16 %v542
    %v2887 = vunpack.c.h.b16 %v542
    %v2888 = vunpack.c.l.b16 %v543
    %v2889 = vunpack.c.h.b16 %v543
    %v2890 = vunpack.c.l.b16 %v544
    %v2891 = vunpack.c.h.b16 %v544
    %v2892 = vunpack.c.l.b16 %v545
    %v2893 = vunpack.c.h.b16 %v545
    %v2894 = vunpack.c.l.b16 %v546
    %v2895 = vunpack.c.h.b16 %v546
    %v2896 = vunpack.c.l.b16 %v547
    %v2897 = vunpack.c.h.b16 %v547
    %v2898 = vunpack.c.l.b16 %v548
    %v2899 = vunpack.c.h.b16 %v548
    %v2900 = vunpack.c.l.b16 %v549
    %v2901 = vunpack.c.h.b16 %v549
    %v2902 = vunpack.c.l.b16 %v550
    %v2903 = vunpack.c.h.b16 %v550
    %v2904 = vunpack.c.l.b16 %v551
    %v2905 = vunpack.c.h.b16 %v551
    %v2906 = vunpack.c.l.b16 %v552
    %v2907 = vunpack.c.h.b16 %v552
    %v2908 = vunpack.c.l.b16 %v553
    %v2909 = vunpack.c.h.b16 %v553
    %v2910 = vunpack.c.l.b16 %v554
    %v2911 = vunpack.c.h.b16 %v554
    %v2912 = vunpack.c.l.b16 %v555
    %v2913 = vunpack.c.h.b16 %v555
    %v2914 = vunpack.c.l.b16 %v556
    %v2915 = vunpack.c.h.b16 %v556
    %v2916 = vunpack.c.l.b16 %v557
    %v2917 = vunpack.c.h.b16 %v557
    %v2918 = vunpack.c.l.b16 %v558
    %v2919 = vunpack.c.h.b16 %v558
    %v2920 = vunpack.c.l.b16 %v559
    %v2921 = vunpack.c.h.b16 %v559
    %v2922 = vunpack.c.l.b16 %v560
    %v2923 = vunpack.c.h.b16 %v560
    %v2924 = vunpack.c.l.b16 %v561
    %v2925 = vunpack.c.h.b16 %v561
    %v2926 = vunpack.c.l.b16 %v562
    %v2927 = vunpack.c.h.b16 %v562
    %v2928 = vunpack.c.l.b16 %v563
    %v2929 = vunpack.c.h.b16 %v563
    %v2930 = vunpack.c.l.b16 %v564
    %v2931 = vunpack.c.h.b16 %v564
    %v2932 = vunpack.c.l.b16 %v565
    %v2933 = vunpack.c.h.b16 %v565
    %v2934 = vunpack.c.l.b16 %v566
    %v2935 = vunpack.c.h.b16 %v566
    %v2936 = vunpack.c.l.b16 %v567
    %v2937 = vunpack.c.h.b16 %v567
    %v2938 = vunpack.c.l.b16 %v568
    %v2939 = vunpack.c.h.b16 %v568
    %v2940 = vunpack.c.l.b16 %v569
    %v2941 = vunpack.c.h.b16 %v569
    %v2942 = vunpack.c.l.b16 %v570
    %v2943 = vunpack.c.h.b16 %v570
    %v2944 = vunpack.c.l.b16 %v571
    %v2945 = vunpack.c.h.b16 %v571
    %v2946 = vunpack.c.l.b16 %v572
    %v2947 = vunpack.c.h.b16 %v572
    %v2948 = vunpack.c.l.b16 %v573
    %v2949 = vunpack.c.h.b16 %v573
    %v2950 = vunpack.c.l.b16 %v574
    %v2951 = vunpack.c.h.b16 %v574
    %v2952 = vunpack.c.l.b16 %v575
    %v2953 = vunpack.c.h.b16 %v575
    %v2954 = vunpack.c.l.b16 %v576
    %v2955 = vunpack.c.h.b16 %v576
    %v2956 = vunpack.c.l.b16 %v577
    %v2957 = vunpack.c.h.b16 %v577
    %v2958 = vunpack.c.l.b16 %v578
    %v2959 = vunpack.c.h.b16 %v578
    %v2960 = vunpack.c.l.b16 %v579
    %v2961 = vunpack.c.h.b16 %v579
    %v2962 = vunpack.c.l.b16 %v580
    %v2963 = vunpack.c.h.b16 %v580
    %v2964 = vunpack.c.l.b16 %v581
    %v2965 = vunpack.c.h.b16 %v581
    %v2966 = vunpack.c.l.b16 %v582
    %v2967 = vunpack.c.h.b16 %v582
    %v2968 = vunpack.c.l.b16 %v583
    %v2969 = vunpack.c.h.b16 %v583
    %v2970 = vunpack.c.l.b16 %v584
    %v2971 = vunpack.c.h.b16 %v584
    %v2972 = vunpack.c.l.b16 %v585
    %v2973 = vunpack.c.h.b16 %v585
    %v2974 = vunpack.c.l.b16 %v586
    %v2975 = vunpack.c.h.b16 %v586
    %v2976 = vunpack.c.l.b16 %v587
    %v2977 = vunpack.c.h.b16 %v587
    %v2978 = vunpack.c.l.b16 %v588
    %v2979 = vunpack.c.h.b16 %v588
    %v2980 = vunpack.c.l.b16 %v589
    %v2981 = vunpack.c.h.b16 %v589
    %v2982 = vunpack.c.l.b16 %v590
    %v2983 = vunpack.c.h.b16 %v590
    %v2984 = vunpack.c.l.b16 %v591
    %v2985 = vunpack.c.h.b16 %v591
    %v2986 = vunpack.c.l.b16 %v592
    %v2987 = vunpack.c.h.b16 %v592
    %v2988 = vunpack.c.l.b16 %v593
    %v2989 = vunpack.c.h.b16 %v593
    %v2990 = vunpack.c.l.b16 %v594
    %v2991 = vunpack.c.h.b16 %v594
    %v2992 = vunpack.c.l.b16 %v595
    %v2993 = vunpack.c.h.b16 %v595
    %v2994 = vunpack.c.l.b16 %v596
    %v2995 = vunpack.c.h.b16 %v596
    %v2996 = vunpack.c.l.b16 %v597
    %v2997 = vunpack.c.h.b16 %v597
    %v2998 = vunpack.c.l.b16 %v598
    %v2999 = vunpack.c.h.b16 %v598
    %v3000 = vunpack.c.l.b16 %v599
    %v3001 = vunpack.c.h.b16 %v599
    %v3002 = vunpack.c.l.b16 %v600
    %v3003 = vunpack.c.h.b16 %v600
    %v3004 = vunpack.c.l.b16 %v601
    %v3005 = vunpack.c.h.b16 %v601
    %v3006 = vunpack.c.l.b16 %v602
    %v3007 = vunpack.c.h.b16 %v602
    %v3008 = vunpack.c.l.b16 %v603
    %v3009 = vunpack.c.h.b16 %v603
    %v3010 = vunpack.c.l.b16 %v604
    %v3011 = vunpack.c.h.b16 %v604
    %v3012 = vunpack.c.l.b16 %v605
    %v3013 = vunpack.c.h.b16 %v605
    %v3014 = vunpack.c.l.b16 %v606
    %v3015 = vunpack.c.h.b16 %v606
    %v3016 = vunpack.c.l.b16 %v607
    %v3017 = vunpack.c.h.b16 %v607
    %v3018 = vunpack.c.l.b16 %v608
    %v3019 = vunpack.c.h.b16 %v608
    %v3020 = vunpack.c.l.b16 %v609
    %v3021 = vunpack.c.h.b16 %v609
    %v3022 = vunpack.c.l.b16 %v610
    %v3023 = vunpack.c.h.b16 %v610
    %v3024 = vunpack.c.l.b16 %v611
    %v3025 = vunpack.c.h.b16 %v611
    %v3026 = vunpack.c.l.b16 %v612
    %v3027 = vunpack.c.h.b16 %v612
    %v3028 = vunpack.c.l.b16 %v613
    %v3029 = vunpack.c.h.b16 %v613
    %v3030 = vunpack.c.l.b16 %v614
    %v3031 = vunpack.c.h.b16 %v614
    %v3032 = vunpack.c.l.b16 %v615
    %v3033 = vunpack.c.h.b16 %v615
    %v3034 = vunpack.c.l.b16 %v616
    %v3035 = vunpack.c.h.b16 %v616
    %v3036 = vunpack.c.l.b16 %v617
    %v3037 = vunpack.c.h.b16 %v617
    %v3038 = vunpack.c.l.b16 %v618
    %v3039 = vunpack.c.h.b16 %v618
    %v3040 = vunpack.c.l.b16 %v619
    %v3041 = vunpack.c.h.b16 %v619
    %v3042 = vunpack.c.l.b16 %v620
    %v3043 = vunpack.c.h.b16 %v620
    %v3044 = vunpack.c.l.b16 %v621
    %v3045 = vunpack.c.h.b16 %v621
    %v3046 = vunpack.c.l.b16 %v622
    %v3047 = vunpack.c.h.b16 %v622
    %v3048 = vunpack.c.l.b16 %v623
    %v3049 = vunpack.c.h.b16 %v623
    %v3050 = vunpack.c.l.b16 %v624
    %v3051 = vunpack.c.h.b16 %v624
    %v3052 = vunpack.c.l.b16 %v625
    %v3053 = vunpack.c.h.b16 %v625
    %v3054 = vunpack.c.l.b16 %v626
    %v3055 = vunpack.c.h.b16 %v626
    %v3056 = vunpack.c.l.b16 %v627
    %v3057 = vunpack.c.h.b16 %v627
    %v3058 = vunpack.c.l.b16 %v628
    %v3059 = vunpack.c.h.b16 %v628
    %v3060 = vunpack.c.l.b16 %v629
    %v3061 = vunpack.c.h.b16 %v629
    %v3062 = vunpack.c.l.b16 %v630
    %v3063 = vunpack.c.h.b16 %v630
    %v3064 = vunpack.c.l.b16 %v631
    %v3065 = vunpack.c.h.b16 %v631
    %v3066 = vunpack.c.l.b16 %v632
    %v3067 = vunpack.c.h.b16 %v632
    %v3068 = vunpack.c.l.b16 %v633
    %v3069 = vunpack.c.h.b16 %v633
    %v3070 = vunpack.c.l.b16 %v634
    %v3071 = vunpack.c.h.b16 %v634
    %v3072 = vunpack.c.l.b16 %v635
    %v3073 = vunpack.c.h.b16 %v635
    %v3074 = vunpack.c.l.b16 %v636
    %v3075 = vunpack.c.h.b16 %v636
    %v3076 = vunpack.c.l.b16 %v637
    %v3077 = vunpack.c.h.b16 %v637
    %v3078 = vunpack.c.l.b16 %v638
    %v3079 = vunpack.c.h.b16 %v638
    %v3080 = vunpack.c.l.b16 %v639
    %v3081 = vunpack.c.h.b16 %v639
    %v3082 = vunpack.c.l.b16 %v640
    %v3083 = vunpack.c.h.b16 %v640
    %v3084 = vunpack.c.l.b16 %v641
    %v3085 = vunpack.c.h.b16 %v641
    %v3086 = vunpack.c.l.b16 %v642
    %v3087 = vunpack.c.h.b16 %v642
    %v3088 = vunpack.c.l.b16 %v643
    %v3089 = vunpack.c.h.b16 %v643
    %v3090 = vunpack.c.l.b16 %v644
    %v3091 = vunpack.c.h.b16 %v644
    %v3092 = vunpack.c.l.b16 %v645
    %v3093 = vunpack.c.h.b16 %v645
    %v3094 = vunpack.c.l.b16 %v646
    %v3095 = vunpack.c.h.b16 %v646
    %v3096 = vunpack.c.l.b16 %v647
    %v3097 = vunpack.c.h.b16 %v647
    %v3098 = vunpack.c.l.b16 %v648
    %v3099 = vunpack.c.h.b16 %v648
    %v3100 = vunpack.c.l.b16 %v649
    %v3101 = vunpack.c.h.b16 %v649
    %v3102 = vunpack.c.l.b16 %v650
    %v3103 = vunpack.c.h.b16 %v650
    %v3104 = vunpack.c.l.b16 %v651
    %v3105 = vunpack.c.h.b16 %v651
    %v3106 = vunpack.c.l.b16 %v652
    %v3107 = vunpack.c.h.b16 %v652
    %v3108 = vunpack.c.l.b16 %v653
    %v3109 = vunpack.c.h.b16 %v653
    %v3110 = vunpack.c.l.b16 %v654
    %v3111 = vunpack.c.h.b16 %v654
    %v3112 = vunpack.c.l.b16 %v655
    %v3113 = vunpack.c.h.b16 %v655
    %v3114 = vunpack.c.l.b16 %v656
    %v3115 = vunpack.c.h.b16 %v656
    %v3116 = vunpack.c.l.b16 %v657
    %v3117 = vunpack.c.h.b16 %v657
    %v3118 = vunpack.c.l.b16 %v658
    %v3119 = vunpack.c.h.b16 %v658
    %v3120 = vunpack.c.l.b16 %v659
    %v3121 = vunpack.c.h.b16 %v659
    %v3122 = vunpack.c.l.b16 %v660
    %v3123 = vunpack.c.h.b16 %v660
    %v3124 = vunpack.c.l.b16 %v661
    %v3125 = vunpack.c.h.b16 %v661
    %v3126 = vunpack.c.l.b16 %v662
    %v3127 = vunpack.c.h.b16 %v662
    %v3128 = vunpack.c.l.b16 %v663
    %v3129 = vunpack.c.h.b16 %v663
    %v3130 = vunpack.c.l.b16 %v664
    %v3131 = vunpack.c.h.b16 %v664
    %v3132 = vunpack.c.l.b16 %v665
    %v3133 = vunpack.c.h.b16 %v665
    %v3134 = vunpack.c.l.b16 %v666
    %v3135 = vunpack.c.h.b16 %v666
    %v3136 = vunpack.c.l.b16 %v667
    %v3137 = vunpack.c.h.b16 %v667
    %v3138 = vunpack.c.l.b16 %v668
    %v3139 = vunpack.c.h.b16 %v668
    %v3140 = vunpack.c.l.b16 %v669
    %v3141 = vunpack.c.h.b16 %v669
    %v3142 = vunpack.c.l.b16 %v670
    %v3143 = vunpack.c.h.b16 %v670
    %v3144 = vunpack.c.l.b16 %v671
    %v3145 = vunpack.c.h.b16 %v671
    %v3146 = vunpack.c.l.b16 %v672
    %v3147 = vunpack.c.h.b16 %v672
    %v3148 = vunpack.c.l.b16 %v673
    %v3149 = vunpack.c.h.b16 %v673
    %v3150 = vunpack.c.l.b16 %v674
    %v3151 = vunpack.c.h.b16 %v674
    %v3152 = vunpack.c.l.b16 %v675
    %v3153 = vunpack.c.h.b16 %v675
    %v3154 = vunpack.c.l.b16 %v676
    %v3155 = vunpack.c.h.b16 %v676
    %v3156 = vunpack.c.l.b16 %v677
    %v3157 = vunpack.c.h.b16 %v677
    %v3158 = vunpack.c.l.b16 %v678
    %v3159 = vunpack.c.h.b16 %v678
    %v3160 = vunpack.c.l.b16 %v679
    %v3161 = vunpack.c.h.b16 %v679
    %v3162 = vunpack.c.l.b16 %v680
    %v3163 = vunpack.c.h.b16 %v680
    %v3164 = vunpack.c.l.b16 %v681
    %v3165 = vunpack.c.h.b16 %v681
    %v3166 = vunpack.c.l.b16 %v682
    %v3167 = vunpack.c.h.b16 %v682
    %v3168 = vunpack.c.l.b16 %v683
    %v3169 = vunpack.c.h.b16 %v683
    %v3170 = vunpack.c.l.b16 %v684
    %v3171 = vunpack.c.h.b16 %v684
    %v3172 = vunpack.c.l.b16 %v685
    %v3173 = vunpack.c.h.b16 %v685
    %v3174 = vunpack.c.l.b16 %v686
    %v3175 = vunpack.c.h.b16 %v686
    %v3176 = vunpack.c.l.b16 %v687
    %v3177 = vunpack.c.h.b16 %v687
    %v3178 = vunpack.c.l.b16 %v688
    %v3179 = vunpack.c.h.b16 %v688
    %v3180 = vunpack.c.l.b16 %v689
    %v3181 = vunpack.c.h.b16 %v689
    %v3182 = vunpack.c.l.b16 %v690
    %v3183 = vunpack.c.h.b16 %v690
    %v3184 = vunpack.c.l.b16 %v691
    %v3185 = vunpack.c.h.b16 %v691
    %v3186 = vunpack.c.l.b16 %v692
    %v3187 = vunpack.c.h.b16 %v692
    %v3188 = vunpack.c.l.b16 %v693
    %v3189 = vunpack.c.h.b16 %v693
    %v3190 = vunpack.c.l.b16 %v694
    %v3191 = vunpack.c.h.b16 %v694
    %v3192 = vunpack.c.l.b16 %v695
    %v3193 = vunpack.c.h.b16 %v695
    %v3194 = vunpack.c.l.b16 %v696
    %v3195 = vunpack.c.h.b16 %v696
    %v3196 = vunpack.c.l.b16 %v697
    %v3197 = vunpack.c.h.b16 %v697
    %v3198 = vunpack.c.l.b16 %v698
    %v3199 = vunpack.c.h.b16 %v698
    %v3200 = vunpack.c.l.b16 %v699
    %v3201 = vunpack.c.h.b16 %v699
    %v3202 = vunpack.c.l.b16 %v700
    %v3203 = vunpack.c.h.b16 %v700
    %v3204 = vunpack.c.l.b16 %v701
    %v3205 = vunpack.c.h.b16 %v701
    %v3206 = vunpack.c.l.b16 %v702
    %v3207 = vunpack.c.h.b16 %v702
    %v3208 = vunpack.c.l.b16 %v703
    %v3209 = vunpack.c.h.b16 %v703
    %v3210 = vunpack.c.l.b16 %v704
    %v3211 = vunpack.c.h.b16 %v704
    %v3212 = vunpack.c.l.b16 %v705
    %v3213 = vunpack.c.h.b16 %v705
    %v3214 = vunpack.c.l.b16 %v706
    %v3215 = vunpack.c.h.b16 %v706
    %v3216 = vunpack.c.l.b16 %v707
    %v3217 = vunpack.c.h.b16 %v707
    %v3218 = vunpack.c.l.b16 %v708
    %v3219 = vunpack.c.h.b16 %v708
    %v3220 = vunpack.c.l.b16 %v709
    %v3221 = vunpack.c.h.b16 %v709
    %v3222 = vunpack.c.l.b16 %v710
    %v3223 = vunpack.c.h.b16 %v710
    %v3224 = vunpack.c.l.b16 %v711
    %v3225 = vunpack.c.h.b16 %v711
    %v3226 = vunpack.c.l.b16 %v712
    %v3227 = vunpack.c.h.b16 %v712
    %v3228 = vunpack.c.l.b16 %v713
    %v3229 = vunpack.c.h.b16 %v713
    %v3230 = vunpack.c.l.b16 %v714
    %v3231 = vunpack.c.h.b16 %v714
    %v3232 = vunpack.c.l.b16 %v715
    %v3233 = vunpack.c.h.b16 %v715
    %v3234 = vunpack.c.l.b16 %v716
    %v3235 = vunpack.c.h.b16 %v716
    %v3236 = vunpack.c.l.b16 %v717
    %v3237 = vunpack.c.h.b16 %v717
    %v3238 = vunpack.c.l.b16 %v718
    %v3239 = vunpack.c.h.b16 %v718
    %v3240 = vunpack.c.l.b16 %v719
    %v3241 = vunpack.c.h.b16 %v719
    %v3242 = vunpack.c.l.b16 %v720
    %v3243 = vunpack.c.h.b16 %v720
    %v3244 = vunpack.c.l.b16 %v721
    %v3245 = vunpack.c.h.b16 %v721
    %v3246 = vunpack.c.l.b16 %v722
    %v3247 = vunpack.c.h.b16 %v722
    %v3248 = vunpack.c.l.b16 %v723
    %v3249 = vunpack.c.h.b16 %v723
    %v3250 = vunpack.c.l.b16 %v724
    %v3251 = vunpack.c.h.b16 %v724
    %v3252 = vunpack.c.l.b16 %v725
    %v3253 = vunpack.c.h.b16 %v725
    %v3254 = vunpack.c.l.b16 %v726
    %v3255 = vunpack.c.h.b16 %v726
    %v3256 = vunpack.c.l.b16 %v727
    %v3257 = vunpack.c.h.b16 %v727
    %v3258 = vunpack.c.l.b16 %v728
    %v3259 = vunpack.c.h.b16 %v728
    %v3260 = vunpack.c.l.b16 %v729
    %v3261 = vunpack.c.h.b16 %v729
    %v3262 = vunpack.c.l.b16 %v730
    %v3263 = vunpack.c.h.b16 %v730
    %v3264 = vunpack.c.l.b16 %v731
    %v3265 = vunpack.c.h.b16 %v731
    %v3266 = vunpack.c.l.b16 %v732
    %v3267 = vunpack.c.h.b16 %v732
    %v3268 = vunpack.c.l.b16 %v733
    %v3269 = vunpack.c.h.b16 %v733
    %v3270 = vunpack.c.l.b16 %v734
    %v3271 = vunpack.c.h.b16 %v734
    %v3272 = vunpack.c.l.b16 %v735
    %v3273 = vunpack.c.h.b16 %v735
    %v3274 = vunpack.c.l.b16 %v736
    %v3275 = vunpack.c.h.b16 %v736
    %v3276 = vunpack.c.l.b16 %v737
    %v3277 = vunpack.c.h.b16 %v737
    %v3278 = vunpack.c.l.b16 %v738
    %v3279 = vunpack.c.h.b16 %v738
    %v3280 = vunpack.c.l.b16 %v739
    %v3281 = vunpack.c.h.b16 %v739
    %v3282 = vunpack.c.l.b16 %v740
    %v3283 = vunpack.c.h.b16 %v740
    %v3284 = vunpack.c.l.b16 %v741
    %v3285 = vunpack.c.h.b16 %v741
    %v3286 = vunpack.c.l.b16 %v742
    %v3287 = vunpack.c.h.b16 %v742
    %v3288 = vunpack.c.l.b16 %v743
    %v3289 = vunpack.c.h.b16 %v743
    %v3290 = vunpack.c.l.b16 %v744
    %v3291 = vunpack.c.h.b16 %v744
    %v3292 = vunpack.c.l.b16 %v745
    %v3293 = vunpack.c.h.b16 %v745
    %v3294 = vunpack.c.l.b16 %v746
    %v3295 = vunpack.c.h.b16 %v746
    %v3296 = vunpack.c.l.b16 %v747
    %v3297 = vunpack.c.h.b16 %v747
    %v3298 = vunpack.c.l.b16 %v748
    %v3299 = vunpack.c.h.b16 %v748
    %v3300 = vunpack.c.l.b16 %v749
    %v3301 = vunpack.c.h.b16 %v749
    %v3302 = vunpack.c.l.b16 %v750
    %v3303 = vunpack.c.h.b16 %v750
    %v3304 = vunpack.c.l.b16 %v751
    %v3305 = vunpack.c.h.b16 %v751
    %v3306 = vunpack.c.l.b16 %v752
    %v3307 = vunpack.c.h.b16 %v752
    %v3308 = vunpack.c.l.b16 %v753
    %v3309 = vunpack.c.h.b16 %v753
    %v3310 = vunpack.c.l.b16 %v754
    %v3311 = vunpack.c.h.b16 %v754
    %v3312 = vunpack.c.l.b16 %v755
    %v3313 = vunpack.c.h.b16 %v755
    %v3314 = vunpack.c.l.b16 %v756
    %v3315 = vunpack.c.h.b16 %v756
    %v3316 = vunpack.c.l.b16 %v757
    %v3317 = vunpack.c.h.b16 %v757
    %v3318 = vunpack.c.l.b16 %v758
    %v3319 = vunpack.c.h.b16 %v758
    %v3320 = vunpack.c.l.b16 %v759
    %v3321 = vunpack.c.h.b16 %v759
    %v3322 = vunpack.c.l.b16 %v760
    %v3323 = vunpack.c.h.b16 %v760
    %v3324 = vunpack.c.l.b16 %v761
    %v3325 = vunpack.c.h.b16 %v761
    %v3326 = vunpack.c.l.b16 %v762
    %v3327 = vunpack.c.h.b16 %v762
    %v3328 = vunpack.c.l.b16 %v763
    %v3329 = vunpack.c.h.b16 %v763
    %v3330 = vunpack.c.l.b16 %v764
    %v3331 = vunpack.c.h.b16 %v764
    %v3332 = vunpack.c.l.b16 %v765
    %v3333 = vunpack.c.h.b16 %v765
    %v3334 = vunpack.c.l.b16 %v766
    %v3335 = vunpack.c.h.b16 %v766
    %v3336 = vunpack.c.l.b16 %v767
    %v3337 = vunpack.c.h.b16 %v767
    %v3338 = vunpack.c.l.b16 %v768
    %v3339 = vunpack.c.h.b16 %v768
    %v3340 = vunpack.c.l.b16 %v769
    %v3341 = vunpack.c.h.b16 %v769
    %v3342 = vunpack.c.l.b16 %v770
    %v3343 = vunpack.c.h.b16 %v770
    %v3344 = vunpack.c.l.b16 %v771
    %v3345 = vunpack.c.h.b16 %v771
    %v3346 = vunpack.c.l.b16 %v772
    %v3347 = vunpack.c.h.b16 %v772
    %v3348 = vunpack.c.l.b16 %v773
    %v3349 = vunpack.c.h.b16 %v773
    %v3350 = vunpack.c.l.b16 %v774
    %v3351 = vunpack.c.h.b16 %v774
    %v3352 = vunpack.c.l.b16 %v775
    %v3353 = vunpack.c.h.b16 %v775
    %v3354 = vunpack.c.l.b16 %v776
    %v3355 = vunpack.c.h.b16 %v776
    %v3356 = vunpack.c.l.b16 %v777
    %v3357 = vunpack.c.h.b16 %v777
    %v3358 = vunpack.c.l.b16 %v778
    %v3359 = vunpack.c.h.b16 %v778
    %v3360 = vunpack.c.l.b16 %v779
    %v3361 = vunpack.c.h.b16 %v779
    %v3362 = vunpack.c.l.b16 %v780
    %v3363 = vunpack.c.h.b16 %v780
    %v3364 = vunpack.c.l.b16 %v781
    %v3365 = vunpack.c.h.b16 %v781
    %v3366 = vunpack.c.l.b16 %v782
    %v3367 = vunpack.c.h.b16 %v782
    %v3368 = vunpack.c.l.b16 %v783
    %v3369 = vunpack.c.h.b16 %v783
    %v3370 = vunpack.c.l.b16 %v784
    %v3371 = vunpack.c.h.b16 %v784
    %v3372 = vunpack.c.l.b16 %v785
    %v3373 = vunpack.c.h.b16 %v785
    %v3374 = vunpack.c.l.b16 %v786
    %v3375 = vunpack.c.h.b16 %v786
    %v3376 = vunpack.c.l.b16 %v787
    %v3377 = vunpack.c.h.b16 %v787
    %v3378 = vunpack.c.l.b16 %v788
    %v3379 = vunpack.c.h.b16 %v788
    %v3380 = vunpack.c.l.b16 %v789
    %v3381 = vunpack.c.h.b16 %v789
    %v3382 = vunpack.c.l.b16 %v790
    %v3383 = vunpack.c.h.b16 %v790
    %v3384 = vunpack.c.l.b16 %v791
    %v3385 = vunpack.c.h.b16 %v791
    %v3386 = vunpack.c.l.b16 %v792
    %v3387 = vunpack.c.h.b16 %v792
    %v3388 = vunpack.c.l.b16 %v793
    %v3389 = vunpack.c.h.b16 %v793
    %v3390 = vunpack.c.l.b16 %v794
    %v3391 = vunpack.c.h.b16 %v794
    %v3392 = vunpack.c.l.b16 %v795
    %v3393 = vunpack.c.h.b16 %v795
    %v3394 = vunpack.c.l.b16 %v796
    %v3395 = vunpack.c.h.b16 %v796
    %v3396 = vunpack.c.l.b16 %v797
    %v3397 = vunpack.c.h.b16 %v797
    %v3398 = vunpack.c.l.b16 %v798
    %v3399 = vunpack.c.h.b16 %v798
    %v3400 = vunpack.c.l.b16 %v799
    %v3401 = vunpack.c.h.b16 %v799
    %v3402 = vunpack.c.l.b16 %v800
    %v3403 = vunpack.c.h.b16 %v800
    %v3404 = vunpack.c.l.b16 %v801
    %v3405 = vunpack.c.h.b16 %v801
    %v3406 = vunpack.c.l.b16 %v802
    %v3407 = vunpack.c.h.b16 %v802
    %v3408 = vunpack.c.l.b16 %v803
    %v3409 = vunpack.c.h.b16 %v803
    %v3410 = vunpack.c.l.b16 %v804
    %v3411 = vunpack.c.h.b16 %v804
    %v3412 = vunpack.c.l.b16 %v805
    %v3413 = vunpack.c.h.b16 %v805
    %v3414 = vunpack.c.l.b16 %v806
    %v3415 = vunpack.c.h.b16 %v806
    %v3416 = vunpack.c.l.b16 %v807
    %v3417 = vunpack.c.h.b16 %v807
    %v3418 = vunpack.c.l.b16 %v808
    %v3419 = vunpack.c.h.b16 %v808
    %v3420 = vunpack.c.l.b16 %v809
    %v3421 = vunpack.c.h.b16 %v809
    %v3422 = vunpack.c.l.b16 %v810
    %v3423 = vunpack.c.h.b16 %v810
    %v3424 = vunpack.c.l.b16 %v811
    %v3425 = vunpack.c.h.b16 %v811
    %v3426 = vunpack.c.l.b16 %v812
    %v3427 = vunpack.c.h.b16 %v812
    %v3428 = vunpack.c.l.b16 %v813
    %v3429 = vunpack.c.h.b16 %v813
    %v3430 = vunpack.c.l.b16 %v814
    %v3431 = vunpack.c.h.b16 %v814
    %v3432 = vunpack.c.l.b16 %v815
    %v3433 = vunpack.c.h.b16 %v815
    %v3434 = vunpack.c.l.b16 %v816
    %v3435 = vunpack.c.h.b16 %v816
    %v3436 = vunpack.c.l.b16 %v817
    %v3437 = vunpack.c.h.b16 %v817
    %v3438 = vunpack.c.l.b16 %v818
    %v3439 = vunpack.c.h.b16 %v818
    %v3440 = vunpack.c.l.b16 %v819
    %v3441 = vunpack.c.h.b16 %v819
    %v3442 = vunpack.c.l.b16 %v820
    %v3443 = vunpack.c.h.b16 %v820
    %v3444 = vunpack.c.l.b16 %v821
    %v3445 = vunpack.c.h.b16 %v821
    %v3446 = vunpack.c.l.b16 %v822
    %v3447 = vunpack.c.h.b16 %v822
    %v3448 = vunpack.c.l.b16 %v823
    %v3449 = vunpack.c.h.b16 %v823
    %v3450 = vunpack.c.l.b16 %v824
    %v3451 = vunpack.c.h.b16 %v824
    %v3452 = vunpack.c.l.b16 %v825
    %v3453 = vunpack.c.h.b16 %v825
    %v3454 = vunpack.c.l.b16 %v826
    %v3455 = vunpack.c.h.b16 %v826
    %v3456 = vunpack.c.l.b16 %v827
    %v3457 = vunpack.c.h.b16 %v827
    %v3458 = vunpack.c.l.b16 %v828
    %v3459 = vunpack.c.h.b16 %v828
    %v3460 = vunpack.c.l.b16 %v829
    %v3461 = vunpack.c.h.b16 %v829
    %v3462 = vunpack.c.l.b16 %v830
    %v3463 = vunpack.c.h.b16 %v830
    %v3464 = vunpack.c.l.b16 %v831
    %v3465 = vunpack.c.h.b16 %v831
    %v3466 = vunpack.c.l.b16 %v832
    %v3467 = vunpack.c.h.b16 %v832
    %v3468 = vunpack.c.l.b16 %v833
    %v3469 = vunpack.c.h.b16 %v833
    %v3470 = vunpack.c.l.b16 %v834
    %v3471 = vunpack.c.h.b16 %v834
    %v3472 = vunpack.c.l.b16 %v835
    %v3473 = vunpack.c.h.b16 %v835
    %v3474 = vunpack.c.l.b16 %v836
    %v3475 = vunpack.c.h.b16 %v836
    %v3476 = vunpack.c.l.b16 %v837
    %v3477 = vunpack.c.h.b16 %v837
    %v3478 = vunpack.c.l.b16 %v838
    %v3479 = vunpack.c.h.b16 %v838
    %v3480 = vunpack.c.l.b16 %v839
    %v3481 = vunpack.c.h.b16 %v839
    %v3482 = vunpack.c.l.b16 %v840
    %v3483 = vunpack.c.h.b16 %v840
    %v3484 = vunpack.c.l.b16 %v841
    %v3485 = vunpack.c.h.b16 %v841
    %v3486 = vunpack.c.l.b16 %v842
    %v3487 = vunpack.c.h.b16 %v842
    %v3488 = vunpack.c.l.b16 %v843
    %v3489 = vunpack.c.h.b16 %v843
    %v3490 = vunpack.c.l.b16 %v844
    %v3491 = vunpack.c.h.b16 %v844
    %v3492 = vunpack.c.l.b16 %v845
    %v3493 = vunpack.c.h.b16 %v845
    %v3494 = vunpack.c.l.b16 %v846
    %v3495 = vunpack.c.h.b16 %v846
    %v3496 = vunpack.c.l.b16 %v847
    %v3497 = vunpack.c.h.b16 %v847
    %v3498 = vunpack.c.l.b16 %v848
    %v3499 = vunpack.c.h.b16 %v848
    %v3500 = vunpack.c.l.b16 %v849
    %v3501 = vunpack.c.h.b16 %v849
    %v3502 = vunpack.c.l.b16 %v850
    %v3503 = vunpack.c.h.b16 %v850
    %v3504 = vunpack.c.l.b16 %v851
    %v3505 = vunpack.c.h.b16 %v851
    %v3506 = vunpack.c.l.b16 %v852
    %v3507 = vunpack.c.h.b16 %v852
    %v3508 = vunpack.c.l.b16 %v853
    %v3509 = vunpack.c.h.b16 %v853
    %v3510 = vunpack.c.l.b16 %v854
    %v3511 = vunpack.c.h.b16 %v854
    %v3512 = vunpack.c.l.b16 %v855
    %v3513 = vunpack.c.h.b16 %v855
    %v3514 = vunpack.c.l.b16 %v856
    %v3515 = vunpack.c.h.b16 %v856
    %v3516 = vunpack.c.l.b16 %v857
    %v3517 = vunpack.c.h.b16 %v857
    %v3518 = vunpack.c.l.b16 %v858
    %v3519 = vunpack.c.h.b16 %v858
    %v3520 = vunpack.c.l.b16 %v859
    %v3521 = vunpack.c.h.b16 %v859
    %v3522 = vunpack.c.l.b16 %v860
    %v3523 = vunpack.c.h.b16 %v860
    %v3524 = vunpack.c.l.b16 %v861
    %v3525 = vunpack.c.h.b16 %v861
    %v3526 = vunpack.c.l.b16 %v862
    %v3527 = vunpack.c.h.b16 %v862
    %v3528 = vunpack.c.l.b16 %v863
    %v3529 = vunpack.c.h.b16 %v863
    %v3530 = vunpack.c.l.b16 %v864
    %v3531 = vunpack.c.h.b16 %v864
    %v3532 = vunpack.c.l.b16 %v865
    %v3533 = vunpack.c.h.b16 %v865
    %v3534 = vunpack.c.l.b16 %v866
    %v3535 = vunpack.c.h.b16 %v866
    %v3536 = vunpack.c.l.b16 %v867
    %v3537 = vunpack.c.h.b16 %v867
    %v3538 = vunpack.c.l.b16 %v868
    %v3539 = vunpack.c.h.b16 %v868
    %v3540 = vunpack.c.l.b16 %v869
    %v3541 = vunpack.c.h.b16 %v869
    %v3542 = vunpack.c.l.b16 %v870
    %v3543 = vunpack.c.h.b16 %v870
    %v3544 = vunpack.c.l.b16 %v871
    %v3545 = vunpack.c.h.b16 %v871
    %v3546 = vunpack.c.l.b16 %v872
    %v3547 = vunpack.c.h.b16 %v872
    %v3548 = vunpack.c.l.b16 %v873
    %v3549 = vunpack.c.h.b16 %v873
    %v3550 = vunpack.c.l.b16 %v874
    %v3551 = vunpack.c.h.b16 %v874
    %v3552 = vunpack.c.l.b16 %v875
    %v3553 = vunpack.c.h.b16 %v875
    %v3554 = vunpack.c.l.b16 %v876
    %v3555 = vunpack.c.h.b16 %v876
    %v3556 = vunpack.c.l.b16 %v877
    %v3557 = vunpack.c.h.b16 %v877
    %v3558 = vunpack.c.l.b16 %v878
    %v3559 = vunpack.c.h.b16 %v878
    %v3560 = vunpack.c.l.b16 %v879
    %v3561 = vunpack.c.h.b16 %v879
    %v3562 = vunpack.c.l.b16 %v880
    %v3563 = vunpack.c.h.b16 %v880
    %v3564 = vunpack.c.l.b16 %v881
    %v3565 = vunpack.c.h.b16 %v881
    %v3566 = vunpack.c.l.b16 %v882
    %v3567 = vunpack.c.h.b16 %v882
    %v3568 = vunpack.c.l.b16 %v883
    %v3569 = vunpack.c.h.b16 %v883
    %v3570 = vunpack.c.l.b16 %v884
    %v3571 = vunpack.c.h.b16 %v884
    %v3572 = vunpack.c.l.b16 %v885
    %v3573 = vunpack.c.h.b16 %v885
    %v3574 = vunpack.c.l.b16 %v886
    %v3575 = vunpack.c.h.b16 %v886
    %v3576 = vunpack.c.l.b16 %v887
    %v3577 = vunpack.c.h.b16 %v887
    %v3578 = vunpack.c.l.b16 %v888
    %v3579 = vunpack.c.h.b16 %v888
    %v3580 = vunpack.c.l.b16 %v889
    %v3581 = vunpack.c.h.b16 %v889
    %v3582 = vunpack.c.l.b16 %v890
    %v3583 = vunpack.c.h.b16 %v890
    %v3584 = vunpack.c.l.b16 %v891
    %v3585 = vunpack.c.h.b16 %v891
    %v3586 = vunpack.c.l.b16 %v892
    %v3587 = vunpack.c.h.b16 %v892
    %v3588 = vunpack.c.l.b16 %v893
    %v3589 = vunpack.c.h.b16 %v893
    %v3590 = vunpack.c.l.b16 %v894
    %v3591 = vunpack.c.h.b16 %v894
    %v3592 = vunpack.c.l.b16 %v895
    %v3593 = vunpack.c.h.b16 %v895
    %v3594 = vunpack.c.l.b16 %v896
    %v3595 = vunpack.c.h.b16 %v896
    %v3596 = vunpack.c.l.b16 %v897
    %v3597 = vunpack.c.h.b16 %v897
    %v3598 = vunpack.c.l.b16 %v898
    %v3599 = vunpack.c.h.b16 %v898
    %v3600 = vunpack.c.l.b16 %v899
    %v3601 = vunpack.c.h.b16 %v899
    %v3602 = vunpack.c.l.b16 %v900
    %v3603 = vunpack.c.h.b16 %v900
    %v3604 = vunpack.c.l.b16 %v901
    %v3605 = vunpack.c.h.b16 %v901
    %v3606 = vunpack.c.l.b16 %v902
    %v3607 = vunpack.c.h.b16 %v902
    %v3608 = vunpack.c.l.b16 %v903
    %v3609 = vunpack.c.h.b16 %v903
    %v3610 = vunpack.c.l.b16 %v904
    %v3611 = vunpack.c.h.b16 %v904
    %v3612 = vunpack.c.l.b16 %v905
    %v3613 = vunpack.c.h.b16 %v905
    %v3614 = vunpack.c.l.b16 %v906
    %v3615 = vunpack.c.h.b16 %v906
    %v3616 = vunpack.c.l.b16 %v907
    %v3617 = vunpack.c.h.b16 %v907
    %v3618 = vunpack.c.l.b16 %v908
    %v3619 = vunpack.c.h.b16 %v908
    %v3620 = vunpack.c.l.b16 %v909
    %v3621 = vunpack.c.h.b16 %v909
    %v3622 = vunpack.c.l.b16 %v910
    %v3623 = vunpack.c.h.b16 %v910
    %v3624 = vunpack.c.l.b16 %v911
    %v3625 = vunpack.c.h.b16 %v911
    %v3626 = vunpack.c.l.b16 %v912
    %v3627 = vunpack.c.h.b16 %v912
    %v3628 = vunpack.c.l.b16 %v913
    %v3629 = vunpack.c.h.b16 %v913
    %v3630 = vunpack.c.l.b16 %v914
    %v3631 = vunpack.c.h.b16 %v914
    %v3632 = vunpack.c.l.b16 %v915
    %v3633 = vunpack.c.h.b16 %v915
    %v3634 = vunpack.c.l.b16 %v916
    %v3635 = vunpack.c.h.b16 %v916
    %v3636 = vunpack.c.l.b16 %v917
    %v3637 = vunpack.c.h.b16 %v917
    %v3638 = vunpack.c.l.b16 %v918
    %v3639 = vunpack.c.h.b16 %v918
    %v3640 = vunpack.c.l.b16 %v919
    %v3641 = vunpack.c.h.b16 %v919
    %v3642 = vunpack.c.l.b16 %v920
    %v3643 = vunpack.c.h.b16 %v920
    %v3644 = vunpack.c.l.b16 %v921
    %v3645 = vunpack.c.h.b16 %v921
    %v3646 = vunpack.c.l.b16 %v922
    %v3647 = vunpack.c.h.b16 %v922
    %v3648 = vunpack.c.l.b16 %v923
    %v3649 = vunpack.c.h.b16 %v923
    %v3650 = vunpack.c.l.b16 %v924
    %v3651 = vunpack.c.h.b16 %v924
    %v3652 = vunpack.c.l.b16 %v925
    %v3653 = vunpack.c.h.b16 %v925
    %v3654 = vunpack.c.l.b16 %v926
    %v3655 = vunpack.c.h.b16 %v926
    %v3656 = vunpack.c.l.b16 %v927
    %v3657 = vunpack.c.h.b16 %v927
    %v3658 = vunpack.c.l.b16 %v928
    %v3659 = vunpack.c.h.b16 %v928
    %v3660 = vunpack.c.l.b16 %v929
    %v3661 = vunpack.c.h.b16 %v929
    %v3662 = vunpack.c.l.b16 %v930
    %v3663 = vunpack.c.h.b16 %v930
    %v3664 = vunpack.c.l.b16 %v931
    %v3665 = vunpack.c.h.b16 %v931
    %v3666 = vunpack.c.l.b16 %v932
    %v3667 = vunpack.c.h.b16 %v932
    %v3668 = vunpack.c.l.b16 %v933
    %v3669 = vunpack.c.h.b16 %v933
    %v3670 = vunpack.c.l.b16 %v934
    %v3671 = vunpack.c.h.b16 %v934
    %v3672 = vunpack.c.l.b16 %v935
    %v3673 = vunpack.c.h.b16 %v935
    %v3674 = vunpack.c.l.b16 %v936
    %v3675 = vunpack.c.h.b16 %v936
    %v3676 = vunpack.c.l.b16 %v937
    %v3677 = vunpack.c.h.b16 %v937
    %v3678 = vunpack.c.l.b16 %v938
    %v3679 = vunpack.c.h.b16 %v938
    %v3680 = vunpack.c.l.b16 %v939
    %v3681 = vunpack.c.h.b16 %v939
    %v3682 = vunpack.c.l.b16 %v940
    %v3683 = vunpack.c.h.b16 %v940
    %v3684 = vunpack.c.l.b16 %v941
    %v3685 = vunpack.c.h.b16 %v941
    %v3686 = vunpack.c.l.b16 %v942
    %v3687 = vunpack.c.h.b16 %v942
    %v3688 = vunpack.c.l.b16 %v943
    %v3689 = vunpack.c.h.b16 %v943
    %v3690 = vunpack.c.l.b16 %v944
    %v3691 = vunpack.c.h.b16 %v944
    %v3692 = vunpack.c.l.b16 %v945
    %v3693 = vunpack.c.h.b16 %v945
    %v3694 = vunpack.c.l.b16 %v946
    %v3695 = vunpack.c.h.b16 %v946
    %v3696 = vunpack.c.l.b16 %v947
    %v3697 = vunpack.c.h.b16 %v947
    %v3698 = vunpack.c.l.b16 %v948
    %v3699 = vunpack.c.h.b16 %v948
    %v3700 = vunpack.c.l.b16 %v949
    %v3701 = vunpack.c.h.b16 %v949
    %v3702 = vunpack.c.l.b16 %v950
    %v3703 = vunpack.c.h.b16 %v950
    %v3704 = vunpack.c.l.b16 %v951
    %v3705 = vunpack.c.h.b16 %v951
    %v3706 = vunpack.c.l.b16 %v952
    %v3707 = vunpack.c.h.b16 %v952
    %v3708 = vunpack.c.l.b16 %v953
    %v3709 = vunpack.c.h.b16 %v953
    %v3710 = vunpack.c.l.b16 %v954
    %v3711 = vunpack.c.h.b16 %v954
    %v3712 = vunpack.c.l.b16 %v955
    %v3713 = vunpack.c.h.b16 %v955
    %v3714 = vunpack.c.l.b16 %v956
    %v3715 = vunpack.c.h.b16 %v956
    %v3716 = vunpack.c.l.b16 %v957
    %v3717 = vunpack.c.h.b16 %v957
    %v3718 = vunpack.c.l.b16 %v958
    %v3719 = vunpack.c.h.b16 %v958
    %v3720 = vunpack.c.l.b16 %v959
    %v3721 = vunpack.c.h.b16 %v959
    %v3722 = vunpack.c.l.b16 %v960
    %v3723 = vunpack.c.h.b16 %v960
    %v3724 = vunpack.c.l.b16 %v961
    %v3725 = vunpack.c.h.b16 %v961
    %v3726 = vunpack.c.l.b16 %v962
    %v3727 = vunpack.c.h.b16 %v962
    %v3728 = vunpack.c.l.b16 %v963
    %v3729 = vunpack.c.h.b16 %v963
    %v3730 = vunpack.c.l.b16 %v964
    %v3731 = vunpack.c.h.b16 %v964
    %v3732 = vunpack.c.l.b16 %v965
    %v3733 = vunpack.c.h.b16 %v965
    %v3734 = vunpack.c.l.b16 %v966
    %v3735 = vunpack.c.h.b16 %v966
    %v3736 = vunpack.c.l.b16 %v967
    %v3737 = vunpack.c.h.b16 %v967
    %v3738 = vunpack.c.l.b16 %v968
    %v3739 = vunpack.c.h.b16 %v968
    %v3740 = vunpack.c.l.b16 %v969
    %v3741 = vunpack.c.h.b16 %v969
    %v3742 = vunpack.c.l.b16 %v970
    %v3743 = vunpack.c.h.b16 %v970
    %v3744 = vunpack.c.l.b16 %v971
    %v3745 = vunpack.c.h.b16 %v971
    %v3746 = vunpack.c.l.b16 %v972
    %v3747 = vunpack.c.h.b16 %v972
    %v3748 = vunpack.c.l.b16 %v973
    %v3749 = vunpack.c.h.b16 %v973
    %v3750 = vunpack.c.l.b16 %v974
    %v3751 = vunpack.c.h.b16 %v974
    %v3752 = vunpack.c.l.b16 %v975
    %v3753 = vunpack.c.h.b16 %v975
    %v3754 = vunpack.c.l.b16 %v976
    %v3755 = vunpack.c.h.b16 %v976
    %v3756 = vunpack.c.l.b16 %v977
    %v3757 = vunpack.c.h.b16 %v977
    %v3758 = vunpack.c.l.b16 %v978
    %v3759 = vunpack.c.h.b16 %v978
    %v3760 = vunpack.c.l.b16 %v979
    %v3761 = vunpack.c.h.b16 %v979
    %v3762 = vunpack.c.l.b16 %v980
    %v3763 = vunpack.c.h.b16 %v980
    %v3764 = vunpack.c.l.b16 %v981
    %v3765 = vunpack.c.h.b16 %v981
    %v3766 = vunpack.c.l.b16 %v982
    %v3767 = vunpack.c.h.b16 %v982
    %v3768 = vunpack.c.l.b16 %v983
    %v3769 = vunpack.c.h.b16 %v983
    %v3770 = vunpack.c.l.b16 %v984
    %v3771 = vunpack.c.h.b16 %v984
    %v3772 = vunpack.c.l.b16 %v985
    %v3773 = vunpack.c.h.b16 %v985
    %v3774 = vunpack.c.l.b16 %v986
    %v3775 = vunpack.c.h.b16 %v986
    %v3776 = vunpack.c.l.b16 %v987
    %v3777 = vunpack.c.h.b16 %v987
    %v3778 = vunpack.c.l.b16 %v988
    %v3779 = vunpack.c.h.b16 %v988
    %v3780 = vunpack.c.l.b16 %v989
    %v3781 = vunpack.c.h.b16 %v989
    %v3782 = vunpack.c.l.b16 %v990
    %v3783 = vunpack.c.h.b16 %v990
    %v3784 = vunpack.c.l.b16 %v991
    %v3785 = vunpack.c.h.b16 %v991
    %v3786 = vunpack.c.l.b16 %v992
    %v3787 = vunpack.c.h.b16 %v992
    %v3788 = vunpack.c.l.b16 %v993
    %v3789 = vunpack.c.h.b16 %v993
    %v3790 = vunpack.c.l.b16 %v994
    %v3791 = vunpack.c.h.b16 %v994
    %v3792 = vunpack.c.l.b16 %v995
    %v3793 = vunpack.c.h.b16 %v995
    %v3794 = vunpack.c.l.b16 %v996
    %v3795 = vunpack.c.h.b16 %v996
    %v3796 = vunpack.c.l.b16 %v997
    %v3797 = vunpack.c.h.b16 %v997
    %v3798 = vunpack.c.l.b16 %v998
    %v3799 = vunpack.c.h.b16 %v998
    %v3800 = vunpack.c.l.b16 %v999
    %v3801 = vunpack.c.h.b16 %v999
    %v3802 = vunpack.c.l.b16 %v1000
    %v3803 = vunpack.c.h.b16 %v1000
    %v3804 = vunpack.c.l.b16 %v1001
    %v3805 = vunpack.c.h.b16 %v1001
    %v3806 = vunpack.c.l.b16 %v1002
    %v3807 = vunpack.c.h.b16 %v1002
    %v3808 = vunpack.c.l.b16 %v1003
    %v3809 = vunpack.c.h.b16 %v1003
    %v3810 = vunpack.c.l.b16 %v1004
    %v3811 = vunpack.c.h.b16 %v1004
    %v3812 = vunpack.c.l.b16 %v1005
    %v3813 = vunpack.c.h.b16 %v1005
    %v3814 = vunpack.c.l.b16 %v1006
    %v3815 = vunpack.c.h.b16 %v1006
    %v3816 = vunpack.c.l.b16 %v1007
    %v3817 = vunpack.c.h.b16 %v1007
    %v3818 = vunpack.c.l.b16 %v1008
    %v3819 = vunpack.c.h.b16 %v1008
    %v3820 = vunpack.c.l.b16 %v1009
    %v3821 = vunpack.c.h.b16 %v1009
    %v3822 = vunpack.c.l.b16 %v1010
    %v3823 = vunpack.c.h.b16 %v1010
    %v3824 = vunpack.c.l.b16 %v1011
    %v3825 = vunpack.c.h.b16 %v1011
    %v3826 = vunpack.c.l.b16 %v1012
    %v3827 = vunpack.c.h.b16 %v1012
    %v3828 = vunpack.c.l.b16 %v1013
    %v3829 = vunpack.c.h.b16 %v1013
    %v3830 = vunpack.c.l.b16 %v1014
    %v3831 = vunpack.c.h.b16 %v1014
    %v3832 = vunpack.c.l.b16 %v1015
    %v3833 = vunpack.c.h.b16 %v1015
    %v3834 = vunpack.c.l.b16 %v1016
    %v3835 = vunpack.c.h.b16 %v1016
    %v3836 = vunpack.c.l.b16 %v1017
    %v3837 = vunpack.c.h.b16 %v1017
    %v3838 = vunpack.c.l.b16 %v1018
    %v3839 = vunpack.c.h.b16 %v1018
    %v3840 = vunpack.c.l.b16 %v1019
    %v3841 = vunpack.c.h.b16 %v1019
    %v3842 = vunpack.c.l.b16 %v1020
    %v3843 = vunpack.c.h.b16 %v1020
    %v3844 = vunpack.c.l.b16 %v1021
    %v3845 = vunpack.c.h.b16 %v1021
    %v3846 = vunpack.c.l.b16 %v1022
    %v3847 = vunpack.c.h.b16 %v1022
    %v3848 = vunpack.c.l.b16 %v1023
    %v3849 = vunpack.c.h.b16 %v1023
    %v3850 = vunpack.c.l.b16 %v1024
    %v3851 = vunpack.c.h.b16 %v1024
    %v3852 = vunpack.c.l.b16 %v1025
    %v3853 = vunpack.c.h.b16 %v1025
    %v3854 = vunpack.c.l.b16 %v1026
    %v3855 = vunpack.c.h.b16 %v1026
    %v3856 = vunpack.c.l.b16 %v1027
    %v3857 = vunpack.c.h.b16 %v1027
    %v3858 = vunpack.c.l.b16 %v1028
    %v3859 = vunpack.c.h.b16 %v1028
    %v3860 = vunpack.c.l.b16 %v1029
    %v3861 = vunpack.c.h.b16 %v1029
    %v3862 = vunpack.c.l.b16 %v1030
    %v3863 = vunpack.c.h.b16 %v1030
    %v3864 = vunpack.c.l.b16 %v1031
    %v3865 = vunpack.c.h.b16 %v1031
    %v3866 = vunpack.c.l.b16 %v1032
    %v3867 = vunpack.c.h.b16 %v1032
    %v3868 = vunpack.c.l.b16 %v1033
    %v3869 = vunpack.c.h.b16 %v1033
    %v3870 = vunpack.c.l.b16 %v1034
    %v3871 = vunpack.c.h.b16 %v1034
    %v3872 = vunpack.c.l.b16 %v1035
    %v3873 = vunpack.c.h.b16 %v1035
    %v3874 = vunpack.c.l.b16 %v1036
    %v3875 = vunpack.c.h.b16 %v1036
    %v3876 = vunpack.c.l.b16 %v1037
    %v3877 = vunpack.c.h.b16 %v1037
    %v3878 = vunpack.c.l.b16 %v1038
    %v3879 = vunpack.c.h.b16 %v1038
    %v3880 = vunpack.c.l.b16 %v1039
    %v3881 = vunpack.c.h.b16 %v1039
    %v3882 = vunpack.c.l.b16 %v1040
    %v3883 = vunpack.c.h.b16 %v1040
    %v3884 = vunpack.c.l.b16 %v1041
    %v3885 = vunpack.c.h.b16 %v1041
    %v3886 = vunpack.c.l.b16 %v1042
    %v3887 = vunpack.c.h.b16 %v1042
    %v3888 = vunpack.c.l.b16 %v1043
    %v3889 = vunpack.c.h.b16 %v1043
    %v3890 = vunpack.c.l.b16 %v1044
    %v3891 = vunpack.c.h.b16 %v1044
    %v3892 = vunpack.c.l.b16 %v1045
    %v3893 = vunpack.c.h.b16 %v1045
    %v3894 = vunpack.c.l.b16 %v1046
    %v3895 = vunpack.c.h.b16 %v1046
    %v3896 = vunpack.c.l.b16 %v1047
    %v3897 = vunpack.c.h.b16 %v1047
    %v3898 = vunpack.c.l.b16 %v1048
    %v3899 = vunpack.c.h.b16 %v1048
    %v3900 = vunpack.c.l.b16 %v1049
    %v3901 = vunpack.c.h.b16 %v1049
    %v3902 = vunpack.c.l.b16 %v1050
    %v3903 = vunpack.c.h.b16 %v1050
    %v3904 = vunpack.c.l.b16 %v1051
    %v3905 = vunpack.c.h.b16 %v1051
    %v3906 = vunpack.c.l.b16 %v1052
    %v3907 = vunpack.c.h.b16 %v1052
    %v3908 = vunpack.c.l.b16 %v1053
    %v3909 = vunpack.c.h.b16 %v1053
    %v3910 = vunpack.c.l.b16 %v1054
    %v3911 = vunpack.c.h.b16 %v1054
    %v3912 = vunpack.c.l.b16 %v1055
    %v3913 = vunpack.c.h.b16 %v1055
    %v3914 = vunpack.c.l.b16 %v1056
    %v3915 = vunpack.c.h.b16 %v1056
    %v3916 = vunpack.c.l.b16 %v1057
    %v3917 = vunpack.c.h.b16 %v1057
    %v3918 = vunpack.c.l.b16 %v1058
    %v3919 = vunpack.c.h.b16 %v1058
    %v3920 = vunpack.c.l.b16 %v1059
    %v3921 = vunpack.c.h.b16 %v1059
    %v3922 = vunpack.c.l.b16 %v1060
    %v3923 = vunpack.c.h.b16 %v1060
    %v3924 = vunpack.c.l.b16 %v1061
    %v3925 = vunpack.c.h.b16 %v1061
    %v3926 = vunpack.c.l.b16 %v1062
    %v3927 = vunpack.c.h.b16 %v1062
    %v3928 = vunpack.c.l.b16 %v1063
    %v3929 = vunpack.c.h.b16 %v1063
    %v3930 = vunpack.c.l.b16 %v1064
    %v3931 = vunpack.c.h.b16 %v1064
    %v3932 = vunpack.c.l.b16 %v1065
    %v3933 = vunpack.c.h.b16 %v1065
    %v3934 = vunpack.c.l.b16 %v1066
    %v3935 = vunpack.c.h.b16 %v1066
    %v3936 = vunpack.c.l.b16 %v1067
    %v3937 = vunpack.c.h.b16 %v1067
    %v3938 = vunpack.c.l.b16 %v1068
    %v3939 = vunpack.c.h.b16 %v1068
    %v3940 = vunpack.c.l.b16 %v1069
    %v3941 = vunpack.c.h.b16 %v1069
    %v3942 = vunpack.c.l.b16 %v1070
    %v3943 = vunpack.c.h.b16 %v1070
    %v3944 = vunpack.c.l.b16 %v1071
    %v3945 = vunpack.c.h.b16 %v1071
    %v3946 = vunpack.c.l.b16 %v1072
    %v3947 = vunpack.c.h.b16 %v1072
    %v3948 = vunpack.c.l.b16 %v1073
    %v3949 = vunpack.c.h.b16 %v1073
    %v3950 = vunpack.c.l.b16 %v1074
    %v3951 = vunpack.c.h.b16 %v1074
    %v3952 = vunpack.c.l.b16 %v1075
    %v3953 = vunpack.c.h.b16 %v1075
    %v3954 = vunpack.c.l.b16 %v1076
    %v3955 = vunpack.c.h.b16 %v1076
    %v3956 = vunpack.c.l.b16 %v1077
    %v3957 = vunpack.c.h.b16 %v1077
    %v3958 = vunpack.c.l.b16 %v1078
    %v3959 = vunpack.c.h.b16 %v1078
    %v3960 = vunpack.c.l.b16 %v1079
    %v3961 = vunpack.c.h.b16 %v1079
    %v3962 = vunpack.c.l.b16 %v1080
    %v3963 = vunpack.c.h.b16 %v1080
    %v3964 = vunpack.c.l.b16 %v1081
    %v3965 = vunpack.c.h.b16 %v1081
    %v3966 = vunpack.c.l.b16 %v1082
    %v3967 = vunpack.c.h.b16 %v1082
    %v3968 = vunpack.c.l.b16 %v1083
    %v3969 = vunpack.c.h.b16 %v1083
    %v3970 = vunpack.c.l.b16 %v1084
    %v3971 = vunpack.c.h.b16 %v1084
    %v3972 = vunpack.c.l.b16 %v1085
    %v3973 = vunpack.c.h.b16 %v1085
    %v3974 = vunpack.c.l.b16 %v1086
    %v3975 = vunpack.c.h.b16 %v1086
    %v3976 = vunpack.c.l.b16 %v1087
    %v3977 = vunpack.c.h.b16 %v1087
    %v3978 = vunpack.c.l.b16 %v1088
    %v3979 = vunpack.c.h.b16 %v1088
    %v3980 = vunpack.c.l.b16 %v1089
    %v3981 = vunpack.c.h.b16 %v1089
    %v3982 = vunpack.c.l.b16 %v1090
    %v3983 = vunpack.c.h.b16 %v1090
    %v3984 = vunpack.c.l.b16 %v1091
    %v3985 = vunpack.c.h.b16 %v1091
    %v3986 = vunpack.c.l.b16 %v1092
    %v3987 = vunpack.c.h.b16 %v1092
    %v3988 = vunpack.c.l.b16 %v1093
    %v3989 = vunpack.c.h.b16 %v1093
    %v3990 = vunpack.c.l.b16 %v1094
    %v3991 = vunpack.c.h.b16 %v1094
    %v3992 = vunpack.c.l.b16 %v1095
    %v3993 = vunpack.c.h.b16 %v1095
    %v3994 = vunpack.c.l.b16 %v1096
    %v3995 = vunpack.c.h.b16 %v1096
    %v3996 = vunpack.c.l.b16 %v1097
    %v3997 = vunpack.c.h.b16 %v1097
    %v3998 = vunpack.c.l.b16 %v1098
    %v3999 = vunpack.c.h.b16 %v1098
    %v4000 = vunpack.c.l.b16 %v1099
    %v4001 = vunpack.c.h.b16 %v1099
    %v4002 = vunpack.c.l.b16 %v1100
    %v4003 = vunpack.c.h.b16 %v1100
    %v4004 = vunpack.c.l.b16 %v1101
    %v4005 = vunpack.c.h.b16 %v1101
    %v4006 = vunpack.c.l.b16 %v1102
    %v4007 = vunpack.c.h.b16 %v1102
    %v4008 = vunpack.c.l.b16 %v1103
    %v4009 = vunpack.c.h.b16 %v1103
    %v4010 = vunpack.c.l.b16 %v1104
    %v4011 = vunpack.c.h.b16 %v1104
    %v4012 = vunpack.c.l.b16 %v1105
    %v4013 = vunpack.c.h.b16 %v1105
    %v4014 = vunpack.c.l.b16 %v1106
    %v4015 = vunpack.c.h.b16 %v1106
    %v4016 = vunpack.c.l.b16 %v1107
    %v4017 = vunpack.c.h.b16 %v1107
    %v4018 = vunpack.c.l.b16 %v1108
    %v4019 = vunpack.c.h.b16 %v1108
    %v4020 = vunpack.c.l.b16 %v1109
    %v4021 = vunpack.c.h.b16 %v1109
    %v4022 = vunpack.c.l.b16 %v1110
    %v4023 = vunpack.c.h.b16 %v1110
    %v4024 = vunpack.c.l.b16 %v1111
    %v4025 = vunpack.c.h.b16 %v1111
    %v4026 = vunpack.c.l.b16 %v1112
    %v4027 = vunpack.c.h.b16 %v1112
    %v4028 = vunpack.c.l.b16 %v1113
    %v4029 = vunpack.c.h.b16 %v1113
    %v4030 = vunpack.c.l.b16 %v1114
    %v4031 = vunpack.c.h.b16 %v1114
    %v4032 = vunpack.c.l.b16 %v1115
    %v4033 = vunpack.c.h.b16 %v1115
    %v4034 = vunpack.c.l.b16 %v1116
    %v4035 = vunpack.c.h.b16 %v1116
    %v4036 = vunpack.c.l.b16 %v1117
    %v4037 = vunpack.c.h.b16 %v1117
    %v4038 = vunpack.c.l.b16 %v1118
    %v4039 = vunpack.c.h.b16 %v1118
    %v4040 = vunpack.c.l.b16 %v1119
    %v4041 = vunpack.c.h.b16 %v1119
    %v4042 = vunpack.c.l.b16 %v1120
    %v4043 = vunpack.c.h.b16 %v1120
    %v4044 = vunpack.c.l.b16 %v1121
    %v4045 = vunpack.c.h.b16 %v1121
    %v4046 = vunpack.c.l.b16 %v1122
    %v4047 = vunpack.c.h.b16 %v1122
    %v4048 = vunpack.c.l.b16 %v1123
    %v4049 = vunpack.c.h.b16 %v1123
    %v4050 = vunpack.c.l.b16 %v1124
    %v4051 = vunpack.c.h.b16 %v1124
    %v4052 = vunpack.c.l.b16 %v1125
    %v4053 = vunpack.c.h.b16 %v1125
    %v4054 = vunpack.c.l.b16 %v1126
    %v4055 = vunpack.c.h.b16 %v1126
    %v4056 = vunpack.c.l.b16 %v1127
    %v4057 = vunpack.c.h.b16 %v1127
    %v4058 = vunpack.c.l.b16 %v1128
    %v4059 = vunpack.c.h.b16 %v1128
    %v4060 = vunpack.c.l.b16 %v1129
    %v4061 = vunpack.c.h.b16 %v1129
    %v4062 = vunpack.c.l.b16 %v1130
    %v4063 = vunpack.c.h.b16 %v1130
    %v4064 = vunpack.c.l.b16 %v1131
    %v4065 = vunpack.c.h.b16 %v1131
    %v4066 = vunpack.c.l.b16 %v1132
    %v4067 = vunpack.c.h.b16 %v1132
    %v4068 = vunpack.c.l.b16 %v1133
    %v4069 = vunpack.c.h.b16 %v1133
    %v4070 = vunpack.c.l.b16 %v1134
    %v4071 = vunpack.c.h.b16 %v1134
    %v4072 = vunpack.c.l.b16 %v1135
    %v4073 = vunpack.c.h.b16 %v1135
    %v4074 = vunpack.c.l.b16 %v1136
    %v4075 = vunpack.c.h.b16 %v1136
    %v4076 = vunpack.c.l.b16 %v1137
    %v4077 = vunpack.c.h.b16 %v1137
    %v4078 = vunpack.c.l.b16 %v1138
    %v4079 = vunpack.c.h.b16 %v1138
    %v4080 = vunpack.c.l.b16 %v1139
    %v4081 = vunpack.c.h.b16 %v1139
    %v4082 = vunpack.c.l.b16 %v1140
    %v4083 = vunpack.c.h.b16 %v1140
    %v4084 = vunpack.c.l.b16 %v1141
    %v4085 = vunpack.c.h.b16 %v1141
    %v4086 = vunpack.c.l.b16 %v1142
    %v4087 = vunpack.c.h.b16 %v1142
    %v4088 = vunpack.c.l.b16 %v1143
    %v4089 = vunpack.c.h.b16 %v1143
    %v4090 = vunpack.c.l.b16 %v1144
    %v4091 = vunpack.c.h.b16 %v1144
    %v4092 = vunpack.c.l.b16 %v1145
    %v4093 = vunpack.c.h.b16 %v1145
    %v4094 = vunpack.c.l.b16 %v1146
    %v4095 = vunpack.c.h.b16 %v1146
    %v4096 = vunpack.c.l.b16 %v1147
    %v4097 = vunpack.c.h.b16 %v1147
    %v4098 = vunpack.c.l.b16 %v1148
    %v4099 = vunpack.c.h.b16 %v1148
    %v4100 = vunpack.c.l.b16 %v1149
    %v4101 = vunpack.c.h.b16 %v1149
    %v4102 = vunpack.c.l.b16 %v1150
    %v4103 = vunpack.c.h.b16 %v1150
    %v4104 = vunpack.c.l.b16 %v1151
    %v4105 = vunpack.c.h.b16 %v1151
    %v4106 = vunpack.c.l.b16 %v1152
    %v4107 = vunpack.c.h.b16 %v1152
    %v4108 = vunpack.c.l.b16 %v1153
    %v4109 = vunpack.c.h.b16 %v1153
    %v4110 = vunpack.c.l.b16 %v1154
    %v4111 = vunpack.c.h.b16 %v1154
    %v4112 = vunpack.c.l.b16 %v1155
    %v4113 = vunpack.c.h.b16 %v1155
    %v4114 = vunpack.c.l.b16 %v1156
    %v4115 = vunpack.c.h.b16 %v1156
    %v4116 = vunpack.c.l.b16 %v1157
    %v4117 = vunpack.c.h.b16 %v1157
    %v4118 = vunpack.c.l.b16 %v1158
    %v4119 = vunpack.c.h.b16 %v1158
    %v4120 = vunpack.c.l.b16 %v1159
    %v4121 = vunpack.c.h.b16 %v1159
    %v4122 = vunpack.c.l.b16 %v1160
    %v4123 = vunpack.c.h.b16 %v1160
    %v4124 = vunpack.c.l.b16 %v1161
    %v4125 = vunpack.c.h.b16 %v1161
    %v4126 = vunpack.c.l.b16 %v1162
    %v4127 = vunpack.c.h.b16 %v1162
    %v4128 = vunpack.c.l.b16 %v1163
    %v4129 = vunpack.c.h.b16 %v1163
    %v4130 = vunpack.c.l.b16 %v1164
    %v4131 = vunpack.c.h.b16 %v1164
    %v4132 = vunpack.c.l.b16 %v1165
    %v4133 = vunpack.c.h.b16 %v1165
    %v4134 = vunpack.c.l.b16 %v1166
    %v4135 = vunpack.c.h.b16 %v1166
    %v4136 = vunpack.c.l.b16 %v1167
    %v4137 = vunpack.c.h.b16 %v1167
    %v4138 = vunpack.c.l.b16 %v1168
    %v4139 = vunpack.c.h.b16 %v1168
    %v4140 = vunpack.c.l.b16 %v1169
    %v4141 = vunpack.c.h.b16 %v1169
    %v4142 = vunpack.c.l.b16 %v1170
    %v4143 = vunpack.c.h.b16 %v1170
    %v4144 = vunpack.c.l.b16 %v1171
    %v4145 = vunpack.c.h.b16 %v1171
    %v4146 = vunpack.c.l.b16 %v1172
    %v4147 = vunpack.c.h.b16 %v1172
    %v4148 = vunpack.c.l.b16 %v1173
    %v4149 = vunpack.c.h.b16 %v1173
    %v4150 = vunpack.c.l.b16 %v1174
    %v4151 = vunpack.c.h.b16 %v1174
    %v4152 = vunpack.c.l.b16 %v1175
    %v4153 = vunpack.c.h.b16 %v1175
    %v4154 = vunpack.c.l.b16 %v1176
    %v4155 = vunpack.c.h.b16 %v1176
    %v4156 = vunpack.c.l.b16 %v1177
    %v4157 = vunpack.c.h.b16 %v1177
    %v4158 = vunpack.c.l.b16 %v1178
    %v4159 = vunpack.c.h.b16 %v1178
    %v4160 = vunpack.c.l.b16 %v1179
    %v4161 = vunpack.c.h.b16 %v1179
    %v4162 = vunpack.c.l.b16 %v1180
    %v4163 = vunpack.c.h.b16 %v1180
    %v4164 = vunpack.c.l.b16 %v1181
    %v4165 = vunpack.c.h.b16 %v1181
    %v4166 = vunpack.c.l.b16 %v1182
    %v4167 = vunpack.c.h.b16 %v1182
    %v4168 = vunpack.c.l.b16 %v1183
    %v4169 = vunpack.c.h.b16 %v1183
    %v4170 = vunpack.c.l.b16 %v1184
    %v4171 = vunpack.c.h.b16 %v1184
    %v4172 = vunpack.c.l.b16 %v1185
    %v4173 = vunpack.c.h.b16 %v1185
    %v4174 = vunpack.c.l.b16 %v1186
    %v4175 = vunpack.c.h.b16 %v1186
    %v4176 = vunpack.c.l.b16 %v1187
    %v4177 = vunpack.c.h.b16 %v1187
    %v4178 = vunpack.c.l.b16 %v1188
    %v4179 = vunpack.c.h.b16 %v1188
    %v4180 = vunpack.c.l.b16 %v1189
    %v4181 = vunpack.c.h.b16 %v1189
    %v4182 = vunpack.c.l.b16 %v1190
    %v4183 = vunpack.c.h.b16 %v1190
    %v4184 = vunpack.c.l.b16 %v1191
    %v4185 = vunpack.c.h.b16 %v1191
    %v4186 = vunpack.c.l.b16 %v1192
    %v4187 = vunpack.c.h.b16 %v1192
    %v4188 = vunpack.c.l.b16 %v1193
    %v4189 = vunpack.c.h.b16 %v1193
    %v4190 = vunpack.c.l.b16 %v1194
    %v4191 = vunpack.c.h.b16 %v1194
    %v4192 = vunpack.c.l.b16 %v1195
    %v4193 = vunpack.c.h.b16 %v1195
    %v4194 = vunpack.c.l.b16 %v1196
    %v4195 = vunpack.c.h.b16 %v1196
    %v4196 = vunpack.c.l.b16 %v1197
    %v4197 = vunpack.c.h.b16 %v1197
    %v4198 = vunpack.c.l.b16 %v1198
    %v4199 = vunpack.c.h.b16 %v1198
    %v4200 = vunpack.c.l.b16 %v1199
    %v4201 = vunpack.c.h.b16 %v1199
    %v4202 = vunpack.c.l.b16 %v1200
    %v4203 = vunpack.c.h.b16 %v1200
    %v4204 = vunpack.c.l.b16 %v1201
    %v4205 = vunpack.c.h.b16 %v1201
    %v4206 = vunpack.c.l.b16 %v1202
    %v4207 = vunpack.c.h.b16 %v1202
    %v4208 = vunpack.c.l.b16 %v1203
    %v4209 = vunpack.c.h.b16 %v1203
    %v4210 = vunpack.c.l.b16 %v1204
    %v4211 = vunpack.c.h.b16 %v1204
    %v4212 = vunpack.c.l.b16 %v1205
    %v4213 = vunpack.c.h.b16 %v1205
    %v4214 = vunpack.c.l.b16 %v1206
    %v4215 = vunpack.c.h.b16 %v1206
    %v4216 = vunpack.c.l.b16 %v1207
    %v4217 = vunpack.c.h.b16 %v1207
    %v4218 = vunpack.c.l.b16 %v1208
    %v4219 = vunpack.c.h.b16 %v1208
    %v4220 = vunpack.c.l.b16 %v1209
    %v4221 = vunpack.c.h.b16 %v1209
    %v4222 = vunpack.c.l.b16 %v1210
    %v4223 = vunpack.c.h.b16 %v1210
    %v4224 = vunpack.c.l.b16 %v1211
    %v4225 = vunpack.c.h.b16 %v1211
    %v4226 = vunpack.c.l.b16 %v1212
    %v4227 = vunpack.c.h.b16 %v1212
    %v4228 = vunpack.c.l.b16 %v1213
    %v4229 = vunpack.c.h.b16 %v1213
    %v4230 = vunpack.c.l.b16 %v1214
    %v4231 = vunpack.c.h.b16 %v1214
    %v4232 = vunpack.c.l.b16 %v1215
    %v4233 = vunpack.c.h.b16 %v1215
    %v4234 = vunpack.c.l.b16 %v1216
    %v4235 = vunpack.c.h.b16 %v1216
    %v4236 = vunpack.c.l.b16 %v1217
    %v4237 = vunpack.c.h.b16 %v1217
    %v4238 = vunpack.c.l.b16 %v1218
    %v4239 = vunpack.c.h.b16 %v1218
    %v4240 = vunpack.c.l.b16 %v1219
    %v4241 = vunpack.c.h.b16 %v1219
    %v4242 = vunpack.c.l.b16 %v1220
    %v4243 = vunpack.c.h.b16 %v1220
    %v4244 = vunpack.c.l.b16 %v1221
    %v4245 = vunpack.c.h.b16 %v1221
    %v4246 = vunpack.c.l.b16 %v1222
    %v4247 = vunpack.c.h.b16 %v1222
    %v4248 = vunpack.c.l.b16 %v1223
    %v4249 = vunpack.c.h.b16 %v1223
    %v4250 = vunpack.c.l.b16 %v1224
    %v4251 = vunpack.c.h.b16 %v1224
    %v4252 = vunpack.c.l.b16 %v1225
    %v4253 = vunpack.c.h.b16 %v1225
    %v4254 = vunpack.c.l.b16 %v1226
    %v4255 = vunpack.c.h.b16 %v1226
    %v4256 = vunpack.c.l.b16 %v1227
    %v4257 = vunpack.c.h.b16 %v1227
    %v4258 = vunpack.c.l.b16 %v1228
    %v4259 = vunpack.c.h.b16 %v1228
    %v4260 = vunpack.c.l.b16 %v1229
    %v4261 = vunpack.c.h.b16 %v1229
    %v4262 = vunpack.c.l.b16 %v1230
    %v4263 = vunpack.c.h.b16 %v1230
    %v4264 = vunpack.c.l.b16 %v1231
    %v4265 = vunpack.c.h.b16 %v1231
    %v4266 = vunpack.c.l.b16 %v1232
    %v4267 = vunpack.c.h.b16 %v1232
    %v4268 = vunpack.c.l.b16 %v1233
    %v4269 = vunpack.c.h.b16 %v1233
    %v4270 = vunpack.c.l.b16 %v1234
    %v4271 = vunpack.c.h.b16 %v1234
    %v4272 = vunpack.c.l.b16 %v1235
    %v4273 = vunpack.c.h.b16 %v1235
    %v4274 = vunpack.c.l.b16 %v1236
    %v4275 = vunpack.c.h.b16 %v1236
    %v4276 = vunpack.c.l.b16 %v1237
    %v4277 = vunpack.c.h.b16 %v1237
    %v4278 = vunpack.c.l.b16 %v1238
    %v4279 = vunpack.c.h.b16 %v1238
    %v4280 = vunpack.c.l.b16 %v1239
    %v4281 = vunpack.c.h.b16 %v1239
    %v4282 = vunpack.c.l.b16 %v1240
    %v4283 = vunpack.c.h.b16 %v1240
    %v4284 = vunpack.c.l.b16 %v1241
    %v4285 = vunpack.c.h.b16 %v1241
    %v4286 = vunpack.c.l.b16 %v1242
    %v4287 = vunpack.c.h.b16 %v1242
    %v4288 = vunpack.c.l.b16 %v1243
    %v4289 = vunpack.c.h.b16 %v1243
    %v4290 = vunpack.c.l.b16 %v1244
    %v4291 = vunpack.c.h.b16 %v1244
    %v4292 = vunpack.c.l.b16 %v1245
    %v4293 = vunpack.c.h.b16 %v1245
    %v4294 = vunpack.c.l.b16 %v1246
    %v4295 = vunpack.c.h.b16 %v1246
    %v4296 = vunpack.c.l.b16 %v1247
    %v4297 = vunpack.c.h.b16 %v1247
    %v4298 = vunpack.c.l.b16 %v1248
    %v4299 = vunpack.c.h.b16 %v1248
    %v4300 = vunpack.c.l.b16 %v1249
    %v4301 = vunpack.c.h.b16 %v1249
    %v4302 = vunpack.c.l.b16 %v1250
    %v4303 = vunpack.c.h.b16 %v1250
    %v4304 = vunpack.c.l.b16 %v1251
    %v4305 = vunpack.c.h.b16 %v1251
    %v4306 = vunpack.c.l.b16 %v1252
    %v4307 = vunpack.c.h.b16 %v1252
    %v4308 = vunpack.c.l.b16 %v1253
    %v4309 = vunpack.c.h.b16 %v1253
    %v4310 = vunpack.c.l.b16 %v1254
    %v4311 = vunpack.c.h.b16 %v1254
    %v4312 = vunpack.c.l.b16 %v1255
    %v4313 = vunpack.c.h.b16 %v1255
    %v4314 = vunpack.c.l.b16 %v1256
    %v4315 = vunpack.c.h.b16 %v1256
    %v4316 = vunpack.c.l.b16 %v1257
    %v4317 = vunpack.c.h.b16 %v1257
    %v4318 = vunpack.c.l.b16 %v1258
    %v4319 = vunpack.c.h.b16 %v1258
    %v4320 = vunpack.c.l.b16 %v1259
    %v4321 = vunpack.c.h.b16 %v1259
    %v4322 = vunpack.c.l.b16 %v1260
    %v4323 = vunpack.c.h.b16 %v1260
    %v4324 = vunpack.c.l.b16 %v1261
    %v4325 = vunpack.c.h.b16 %v1261
    %v4326 = vunpack.c.l.b16 %v1262
    %v4327 = vunpack.c.h.b16 %v1262
    %v4328 = vunpack.c.l.b16 %v1263
    %v4329 = vunpack.c.h.b16 %v1263
    %v4330 = vunpack.c.l.b16 %v1264
    %v4331 = vunpack.c.h.b16 %v1264
    %v4332 = vunpack.c.l.b16 %v1265
    %v4333 = vunpack.c.h.b16 %v1265
    %v4334 = vunpack.c.l.b16 %v1266
    %v4335 = vunpack.c.h.b16 %v1266
    %v4336 = vunpack.c.l.b16 %v1267
    %v4337 = vunpack.c.h.b16 %v1267
    %v4338 = vunpack.c.l.b16 %v1268
    %v4339 = vunpack.c.h.b16 %v1268
    %v4340 = vunpack.c.l.b16 %v1269
    %v4341 = vunpack.c.h.b16 %v1269
    %v4342 = vunpack.c.l.b16 %v1270
    %v4343 = vunpack.c.h.b16 %v1270
    %v4344 = vunpack.c.l.b16 %v1271
    %v4345 = vunpack.c.h.b16 %v1271
    %v4346 = vunpack.c.l.b16 %v1272
    %v4347 = vunpack.c.h.b16 %v1272
    %v4348 = vunpack.c.l.b16 %v1273
    %v4349 = vunpack.c.h.b16 %v1273
    %v4350 = vunpack.c.l.b16 %v1274
    %v4351 = vunpack.c.h.b16 %v1274
    %v4352 = vunpack.c.l.b16 %v1275
    %v4353 = vunpack.c.h.b16 %v1275
    %v4354 = vunpack.c.l.b16 %v1276
    %v4355 = vunpack.c.h.b16 %v1276
    %v4356 = vunpack.c.l.b16 %v1277
    %v4357 = vunpack.c.h.b16 %v1277
    %v4358 = vunpack.c.l.b16 %v1278
    %v4359 = vunpack.c.h.b16 %v1278
    %v4360 = vunpack.c.l.b16 %v1279
    %v4361 = vunpack.c.h.b16 %v1279
    %v4362 = vunpack.c.l.b16 %v1280
    %v4363 = vunpack.c.h.b16 %v1280
    %v4364 = vunpack.c.l.b16 %v1281
    %v4365 = vunpack.c.h.b16 %v1281
    %v4366 = vunpack.c.l.b16 %v1282
    %v4367 = vunpack.c.h.b16 %v1282
    %v4368 = vunpack.c.l.b16 %v1283
    %v4369 = vunpack.c.h.b16 %v1283
    %v4370 = vunpack.c.l.b16 %v1284
    %v4371 = vunpack.c.h.b16 %v1284
    %v4372 = vunpack.c.l.b16 %v1285
    %v4373 = vunpack.c.h.b16 %v1285
    %v4374 = vunpack.c.l.b16 %v1286
    %v4375 = vunpack.c.h.b16 %v1286
    %v4376 = vunpack.c.l.b16 %v1287
    %v4377 = vunpack.c.h.b16 %v1287
    %v4378 = vunpack.c.l.b16 %v1288
    %v4379 = vunpack.c.h.b16 %v1288
    %v4380 = vunpack.c.l.b16 %v1289
    %v4381 = vunpack.c.h.b16 %v1289
    %v4382 = vunpack.c.l.b16 %v1290
    %v4383 = vunpack.c.h.b16 %v1290
    %v4384 = vunpack.c.l.b16 %v1291
    %v4385 = vunpack.c.h.b16 %v1291
    %v4386 = vunpack.c.l.b16 %v1292
    %v4387 = vunpack.c.h.b16 %v1292
    %v4388 = vunpack.c.l.b16 %v1293
    %v4389 = vunpack.c.h.b16 %v1293
    %v4390 = vunpack.c.l.b16 %v1294
    %v4391 = vunpack.c.h.b16 %v1294
    %v4392 = vunpack.c.l.b16 %v1295
    %v4393 = vunpack.c.h.b16 %v1295
    %v4394 = vunpack.c.l.b16 %v1296
    %v4395 = vunpack.c.h.b16 %v1296
    %v4396 = vunpack.c.l.b16 %v1297
    %v4397 = vunpack.c.h.b16 %v1297
    %v4398 = vunpack.c.l.b16 %v1298
    %v4399 = vunpack.c.h.b16 %v1298
    %v4400 = vunpack.c.l.b16 %v1299
    %v4401 = vunpack.c.h.b16 %v1299
    %v4402 = vunpack.c.l.b16 %v1300
    %v4403 = vunpack.c.h.b16 %v1300
    %v4404 = vunpack.c.l.b16 %v1301
    %v4405 = vunpack.c.h.b16 %v1301
    %v4406 = vunpack.c.l.b16 %v1302
    %v4407 = vunpack.c.h.b16 %v1302
    %v4408 = vunpack.c.l.b16 %v1303
    %v4409 = vunpack.c.h.b16 %v1303
    %v4410 = vunpack.c.l.b16 %v1304
    %v4411 = vunpack.c.h.b16 %v1304
    %v4412 = vunpack.c.l.b16 %v1305
    %v4413 = vunpack.c.h.b16 %v1305
    %v4414 = vunpack.c.l.b16 %v1306
    %v4415 = vunpack.c.h.b16 %v1306
    %v4416 = vunpack.c.l.b16 %v1307
    %v4417 = vunpack.c.h.b16 %v1307
    %v4418 = vunpack.c.l.b16 %v1308
    %v4419 = vunpack.c.h.b16 %v1308
    %v4420 = vunpack.c.l.b16 %v1309
    %v4421 = vunpack.c.h.b16 %v1309
    %v4422 = vunpack.c.l.b16 %v1310
    %v4423 = vunpack.c.h.b16 %v1310
    %v4424 = vunpack.c.l.b16 %v1311
    %v4425 = vunpack.c.h.b16 %v1311
    %v4426 = vunpack.c.l.b16 %v1312
    %v4427 = vunpack.c.h.b16 %v1312
    %v4428 = vunpack.c.l.b16 %v1313
    %v4429 = vunpack.c.h.b16 %v1313
    %v4430 = vunpack.c.l.b16 %v1314
    %v4431 = vunpack.c.h.b16 %v1314
    %v4432 = vunpack.c.l.b16 %v1315
    %v4433 = vunpack.c.h.b16 %v1315
    %v4434 = vunpack.c.l.b16 %v1316
    %v4435 = vunpack.c.h.b16 %v1316
    %v4436 = vunpack.c.l.b16 %v1317
    %v4437 = vunpack.c.h.b16 %v1317
    %v4438 = vunpack.c.l.b16 %v1318
    %v4439 = vunpack.c.h.b16 %v1318
    %v4440 = vunpack.c.l.b16 %v1319
    %v4441 = vunpack.c.h.b16 %v1319
    %v4442 = vunpack.c.l.b16 %v1320
    %v4443 = vunpack.c.h.b16 %v1320
    %v4444 = vunpack.c.l.b16 %v1321
    %v4445 = vunpack.c.h.b16 %v1321
    %v4446 = vunpack.c.l.b16 %v1322
    %v4447 = vunpack.c.h.b16 %v1322
    %v4448 = vunpack.c.l.b16 %v1323
    %v4449 = vunpack.c.h.b16 %v1323
    %v4450 = vunpack.c.l.b16 %v1324
    %v4451 = vunpack.c.h.b16 %v1324
    %v4452 = vunpack.c.l.b16 %v1325
    %v4453 = vunpack.c.h.b16 %v1325
    %v4454 = vunpack.c.l.b16 %v1326
    %v4455 = vunpack.c.h.b16 %v1326
    %v4456 = vunpack.c.l.b16 %v1327
    %v4457 = vunpack.c.h.b16 %v1327
    %v4458 = vunpack.c.l.b16 %v1328
    %v4459 = vunpack.c.h.b16 %v1328
    %v4460 = vunpack.c.l.b16 %v1329
    %v4461 = vunpack.c.h.b16 %v1329
    %v4462 = vunpack.c.l.b16 %v1330
    %v4463 = vunpack.c.h.b16 %v1330
    %v4464 = vunpack.c.l.b16 %v1331
    %v4465 = vunpack.c.h.b16 %v1331
    %v4466 = vunpack.c.l.b16 %v1332
    %v4467 = vunpack.c.h.b16 %v1332
    %v4468 = vunpack.c.l.b16 %v1333
    %v4469 = vunpack.c.h.b16 %v1333
    %v4470 = vunpack.c.l.b16 %v1334
    %v4471 = vunpack.c.h.b16 %v1334
    %v4472 = vunpack.c.l.b16 %v1335
    %v4473 = vunpack.c.h.b16 %v1335
    %v4474 = vunpack.c.l.b16 %v1336
    %v4475 = vunpack.c.h.b16 %v1336
    %v4476 = vunpack.c.l.b16 %v1337
    %v4477 = vunpack.c.h.b16 %v1337
    %v4478 = vunpack.c.l.b16 %v1338
    %v4479 = vunpack.c.h.b16 %v1338
    %v4480 = vunpack.c.l.b16 %v1339
    %v4481 = vunpack.c.h.b16 %v1339
    %v4482 = vunpack.c.l.b16 %v1340
    %v4483 = vunpack.c.h.b16 %v1340
    %v4484 = vunpack.c.l.b16 %v1341
    %v4485 = vunpack.c.h.b16 %v1341
    %v4486 = vunpack.c.l.b16 %v1342
    %v4487 = vunpack.c.h.b16 %v1342
    %v4488 = vunpack.c.l.b16 %v1343
    %v4489 = vunpack.c.h.b16 %v1343
    %v4490 = vunpack.c.l.b16 %v1344
    %v4491 = vunpack.c.h.b16 %v1344
    %v4492 = vunpack.c.l.b16 %v1345
    %v4493 = vunpack.c.h.b16 %v1345
    %v4494 = vunpack.c.l.b16 %v1346
    %v4495 = vunpack.c.h.b16 %v1346
    %v4496 = vunpack.c.l.b16 %v1347
    %v4497 = vunpack.c.h.b16 %v1347
    %v4498 = vunpack.c.l.b16 %v1348
    %v4499 = vunpack.c.h.b16 %v1348
    %v4500 = vunpack.c.l.b16 %v1349
    %v4501 = vunpack.c.h.b16 %v1349
    %v4502 = vunpack.c.l.b16 %v1350
    %v4503 = vunpack.c.h.b16 %v1350
    %v4504 = vunpack.c.l.b16 %v1351
    %v4505 = vunpack.c.h.b16 %v1351
    %v4506 = vunpack.c.l.b16 %v1352
    %v4507 = vunpack.c.h.b16 %v1352
    %v4508 = vunpack.c.l.b16 %v1353
    %v4509 = vunpack.c.h.b16 %v1353
    %v4510 = vunpack.c.l.b16 %v1354
    %v4511 = vunpack.c.h.b16 %v1354
    %v4512 = vunpack.c.l.b16 %v1355
    %v4513 = vunpack.c.h.b16 %v1355
    %v4514 = vunpack.c.l.b16 %v1356
    %v4515 = vunpack.c.h.b16 %v1356
    %v4516 = vunpack.c.l.b16 %v1357
    %v4517 = vunpack.c.h.b16 %v1357
    %v4518 = vunpack.c.l.b16 %v1358
    %v4519 = vunpack.c.h.b16 %v1358
    %v4520 = vunpack.c.l.b16 %v1359
    %v4521 = vunpack.c.h.b16 %v1359
    %v4522 = vunpack.c.l.b16 %v1360
    %v4523 = vunpack.c.h.b16 %v1360
    %v4524 = vunpack.c.l.b16 %v1361
    %v4525 = vunpack.c.h.b16 %v1361
    %v4526 = vunpack.c.l.b16 %v1362
    %v4527 = vunpack.c.h.b16 %v1362
    %v4528 = vunpack.c.l.b16 %v1363
    %v4529 = vunpack.c.h.b16 %v1363
    %v4530 = vunpack.c.l.b16 %v1364
    %v4531 = vunpack.c.h.b16 %v1364
    %v4532 = vunpack.c.l.b16 %v1365
    %v4533 = vunpack.c.h.b16 %v1365
    %v4534 = vunpack.c.l.b16 %v1366
    %v4535 = vunpack.c.h.b16 %v1366
    %v4536 = vunpack.c.l.b16 %v1367
    %v4537 = vunpack.c.h.b16 %v1367
    %v4538 = vunpack.c.l.b16 %v1368
    %v4539 = vunpack.c.h.b16 %v1368
    %v4540 = vunpack.c.l.b16 %v1369
    %v4541 = vunpack.c.h.b16 %v1369
    %v4542 = vunpack.c.l.b16 %v1370
    %v4543 = vunpack.c.h.b16 %v1370
    %v4544 = vunpack.c.l.b16 %v1371
    %v4545 = vunpack.c.h.b16 %v1371
    %v4546 = vunpack.c.l.b16 %v1372
    %v4547 = vunpack.c.h.b16 %v1372
    %v4548 = vunpack.c.l.b16 %v1373
    %v4549 = vunpack.c.h.b16 %v1373
    %v4550 = vunpack.c.l.b16 %v1374
    %v4551 = vunpack.c.h.b16 %v1374
    %v4552 = vunpack.c.l.b16 %v1375
    %v4553 = vunpack.c.h.b16 %v1375
    %v4554 = vunpack.c.l.b16 %v1376
    %v4555 = vunpack.c.h.b16 %v1376
    %v4556 = vunpack.c.l.b16 %v1377
    %v4557 = vunpack.c.h.b16 %v1377
    %v4558 = vunpack.c.l.b16 %v1378
    %v4559 = vunpack.c.h.b16 %v1378
    %v4560 = vunpack.c.l.b16 %v1379
    %v4561 = vunpack.c.h.b16 %v1379
    %v4562 = vunpack.c.l.b16 %v1380
    %v4563 = vunpack.c.h.b16 %v1380
    %v4564 = vunpack.c.l.b16 %v1381
    %v4565 = vunpack.c.h.b16 %v1381
    %v4566 = vunpack.c.l.b16 %v1382
    %v4567 = vunpack.c.h.b16 %v1382
    %v4568 = vunpack.c.l.b16 %v1383
    %v4569 = vunpack.c.h.b16 %v1383
    %v4570 = vunpack.c.l.b16 %v1384
    %v4571 = vunpack.c.h.b16 %v1384
    %v4572 = vunpack.c.l.b16 %v1385
    %v4573 = vunpack.c.h.b16 %v1385
    %v4574 = vunpack.c.l.b16 %v1386
    %v4575 = vunpack.c.h.b16 %v1386
    %v4576 = vunpack.c.l.b16 %v1387
    %v4577 = vunpack.c.h.b16 %v1387
    %v4578 = vunpack.c.l.b16 %v1388
    %v4579 = vunpack.c.h.b16 %v1388
    %v4580 = vunpack.c.l.b16 %v1389
    %v4581 = vunpack.c.h.b16 %v1389
    %v4582 = vunpack.c.l.b16 %v1390
    %v4583 = vunpack.c.h.b16 %v1390
    %v4584 = vunpack.c.l.b16 %v1391
    %v4585 = vunpack.c.h.b16 %v1391
    %v4586 = vunpack.c.l.b16 %v1392
    %v4587 = vunpack.c.h.b16 %v1392
    %v4588 = vunpack.c.l.b16 %v1393
    %v4589 = vunpack.c.h.b16 %v1393
    %v4590 = vunpack.c.l.b16 %v1394
    %v4591 = vunpack.c.h.b16 %v1394
    %v4592 = vunpack.c.l.b16 %v1395
    %v4593 = vunpack.c.h.b16 %v1395
    %v4594 = vunpack.c.l.b16 %v1396
    %v4595 = vunpack.c.h.b16 %v1396
    %v4596 = vunpack.c.l.b16 %v1397
    %v4597 = vunpack.c.h.b16 %v1397
    %v4598 = vunpack.c.l.b16 %v1398
    %v4599 = vunpack.c.h.b16 %v1398
    %v4600 = vunpack.c.l.b16 %v1399
    %v4601 = vunpack.c.h.b16 %v1399
    %v4602 = vunpack.c.l.b16 %v1400
    %v4603 = vunpack.c.h.b16 %v1400
    %v4604 = vunpack.c.l.b16 %v1401
    %v4605 = vunpack.c.h.b16 %v1401
    %v4606 = vunpack.c.l.b16 %v1402
    %v4607 = vunpack.c.h.b16 %v1402
    %v4608 = vunpack.c.l.b16 %v1403
    %v4609 = vunpack.c.h.b16 %v1403
    %v4610 = vunpack.c.l.b16 %v1404
    %v4611 = vunpack.c.h.b16 %v1404
    %v4612 = vunpack.c.l.b16 %v1405
    %v4613 = vunpack.c.h.b16 %v1405
    %v4614 = vunpack.c.l.b16 %v1406
    %v4615 = vunpack.c.h.b16 %v1406
    %v4616 = vunpack.c.l.b16 %v1407
    %v4617 = vunpack.c.h.b16 %v1407
    %v4618 = vunpack.c.l.b16 %v1408
    %v4619 = vunpack.c.h.b16 %v1408
    %v4620 = vunpack.c.l.b16 %v1409
    %v4621 = vunpack.c.h.b16 %v1409
    %v4622 = vunpack.c.l.b16 %v1410
    %v4623 = vunpack.c.h.b16 %v1410
    %v4624 = vunpack.c.l.b16 %v1411
    %v4625 = vunpack.c.h.b16 %v1411
    %v4626 = vunpack.c.l.b16 %v1412
    %v4627 = vunpack.c.h.b16 %v1412
    %v4628 = vunpack.c.l.b16 %v1413
    %v4629 = vunpack.c.h.b16 %v1413
    %v4630 = vunpack.c.l.b16 %v1414
    %v4631 = vunpack.c.h.b16 %v1414
    %v4632 = vunpack.c.l.b16 %v1415
    %v4633 = vunpack.c.h.b16 %v1415
    %v4634 = vunpack.c.l.b16 %v1416
    %v4635 = vunpack.c.h.b16 %v1416
    %v4636 = vunpack.c.l.b16 %v1417
    %v4637 = vunpack.c.h.b16 %v1417
    %v4638 = vunpack.c.l.b16 %v1418
    %v4639 = vunpack.c.h.b16 %v1418
    %v4640 = vunpack.c.l.b16 %v1419
    %v4641 = vunpack.c.h.b16 %v1419
    %v4642 = vunpack.c.l.b16 %v1420
    %v4643 = vunpack.c.h.b16 %v1420
    %v4644 = vunpack.c.l.b16 %v1421
    %v4645 = vunpack.c.h.b16 %v1421
    %v4646 = vunpack.c.l.b16 %v1422
    %v4647 = vunpack.c.h.b16 %v1422
    %v4648 = vunpack.c.l.b16 %v1423
    %v4649 = vunpack.c.h.b16 %v1423
    %v4650 = vunpack.c.l.b16 %v1424
    %v4651 = vunpack.c.h.b16 %v1424
    %v4652 = vunpack.c.l.b16 %v1425
    %v4653 = vunpack.c.h.b16 %v1425
    %v4654 = vunpack.c.l.b16 %v1426
    %v4655 = vunpack.c.h.b16 %v1426
    %v4656 = vunpack.c.l.b16 %v1427
    %v4657 = vunpack.c.h.b16 %v1427
    %v4658 = vunpack.c.l.b16 %v1428
    %v4659 = vunpack.c.h.b16 %v1428
    %v4660 = vunpack.c.l.b16 %v1429
    %v4661 = vunpack.c.h.b16 %v1429
    %v4662 = vunpack.c.l.b16 %v1430
    %v4663 = vunpack.c.h.b16 %v1430
    %v4664 = vunpack.c.l.b16 %v1431
    %v4665 = vunpack.c.h.b16 %v1431
    %v4666 = vunpack.c.l.b16 %v1432
    %v4667 = vunpack.c.h.b16 %v1432
    %v4668 = vunpack.c.l.b16 %v1433
    %v4669 = vunpack.c.h.b16 %v1433
    %v4670 = vunpack.c.l.b16 %v1434
    %v4671 = vunpack.c.h.b16 %v1434
    %v4672 = vunpack.c.l.b16 %v1435
    %v4673 = vunpack.c.h.b16 %v1435
    %v4674 = vunpack.c.l.b16 %v1436
    %v4675 = vunpack.c.h.b16 %v1436
    %v4676 = vunpack.c.l.b16 %v1437
    %v4677 = vunpack.c.h.b16 %v1437
    %v4678 = vunpack.c.l.b16 %v1438
    %v4679 = vunpack.c.h.b16 %v1438
    %v4680 = vunpack.c.l.b16 %v1439
    %v4681 = vunpack.c.h.b16 %v1439
    %v4682 = vunpack.c.l.b16 %v1440
    %v4683 = vunpack.c.h.b16 %v1440
    %v4684 = vunpack.c.l.b16 %v1441
    %v4685 = vunpack.c.h.b16 %v1441
    %v4686 = vunpack.c.l.b16 %v1442
    %v4687 = vunpack.c.h.b16 %v1442
    %v4688 = vunpack.c.l.b16 %v1443
    %v4689 = vunpack.c.h.b16 %v1443
    %v4690 = vunpack.c.l.b16 %v1444
    %v4691 = vunpack.c.h.b16 %v1444
    %v4692 = vunpack.c.l.b16 %v1445
    %v4693 = vunpack.c.h.b16 %v1445
    %v4694 = vunpack.c.l.b16 %v1446
    %v4695 = vunpack.c.h.b16 %v1446
    %v4696 = vunpack.c.l.b16 %v1447
    %v4697 = vunpack.c.h.b16 %v1447
    %v4698 = vunpack.c.l.b16 %v1448
    %v4699 = vunpack.c.h.b16 %v1448
    %v4700 = vunpack.c.l.b16 %v1449
    %v4701 = vunpack.c.h.b16 %v1449
    %v4702 = vunpack.c.l.b16 %v1450
    %v4703 = vunpack.c.h.b16 %v1450
    %v4704 = vunpack.c.l.b16 %v1451
    %v4705 = vunpack.c.h.b16 %v1451
    %v4706 = vunpack.c.l.b16 %v1452
    %v4707 = vunpack.c.h.b16 %v1452
    %v4708 = vunpack.c.l.b16 %v1453
    %v4709 = vunpack.c.h.b16 %v1453
    %v4710 = vunpack.c.l.b16 %v1454
    %v4711 = vunpack.c.h.b16 %v1454
    %v4712 = vunpack.c.l.b16 %v1455
    %v4713 = vunpack.c.h.b16 %v1455
    %v4714 = vunpack.c.l.b16 %v1456
    %v4715 = vunpack.c.h.b16 %v1456
    %v4716 = vunpack.c.l.b16 %v1457
    %v4717 = vunpack.c.h.b16 %v1457
    %v4718 = vunpack.c.l.b16 %v1458
    %v4719 = vunpack.c.h.b16 %v1458
    %v4720 = vunpack.c.l.b16 %v1459
    %v4721 = vunpack.c.h.b16 %v1459
    %v4722 = vunpack.c.l.b16 %v1460
    %v4723 = vunpack.c.h.b16 %v1460
    %v4724 = vunpack.c.l.b16 %v1461
    %v4725 = vunpack.c.h.b16 %v1461
    %v4726 = vunpack.c.l.b16 %v1462
    %v4727 = vunpack.c.h.b16 %v1462
    %v4728 = vunpack.c.l.b16 %v1463
    %v4729 = vunpack.c.h.b16 %v1463
    %v4730 = vunpack.c.l.b16 %v1464
    %v4731 = vunpack.c.h.b16 %v1464
    %v4732 = vunpack.c.l.b16 %v1465
    %v4733 = vunpack.c.h.b16 %v1465
    %v4734 = vunpack.c.l.b16 %v1466
    %v4735 = vunpack.c.h.b16 %v1466
    %v4736 = vunpack.c.l.b16 %v1467
    %v4737 = vunpack.c.h.b16 %v1467
    %v4738 = vunpack.c.l.b16 %v1468
    %v4739 = vunpack.c.h.b16 %v1468
    %v4740 = vunpack.c.l.b16 %v1469
    %v4741 = vunpack.c.h.b16 %v1469
    %v4742 = vunpack.c.l.b16 %v1470
    %v4743 = vunpack.c.h.b16 %v1470
    %v4744 = vunpack.c.l.b16 %v1471
    %v4745 = vunpack.c.h.b16 %v1471
    %v4746 = vunpack.c.l.b16 %v1472
    %v4747 = vunpack.c.h.b16 %v1472
    %v4748 = vunpack.c.l.b16 %v1473
    %v4749 = vunpack.c.h.b16 %v1473
    %v4750 = vunpack.c.l.b16 %v1474
    %v4751 = vunpack.c.h.b16 %v1474
    %v4752 = vunpack.c.l.b16 %v1475
    %v4753 = vunpack.c.h.b16 %v1475
    %v4754 = vunpack.c.l.b16 %v1476
    %v4755 = vunpack.c.h.b16 %v1476
    %v4756 = vunpack.c.l.b16 %v1477
    %v4757 = vunpack.c.h.b16 %v1477
    %v4758 = vunpack.c.l.b16 %v1478
    %v4759 = vunpack.c.h.b16 %v1478
    %v4760 = vunpack.c.l.b16 %v1479
    %v4761 = vunpack.c.h.b16 %v1479
    %v4762 = vunpack.c.l.b16 %v1480
    %v4763 = vunpack.c.h.b16 %v1480
    %v4764 = vunpack.c.l.b16 %v1481
    %v4765 = vunpack.c.h.b16 %v1481
    %v4766 = vunpack.c.l.b16 %v1482
    %v4767 = vunpack.c.h.b16 %v1482
    %v4768 = vunpack.c.l.b16 %v1483
    %v4769 = vunpack.c.h.b16 %v1483
    %v4770 = vunpack.c.l.b16 %v1484
    %v4771 = vunpack.c.h.b16 %v1484
    %v4772 = vunpack.c.l.b16 %v1485
    %v4773 = vunpack.c.h.b16 %v1485
    %v4774 = vunpack.c.l.b16 %v1486
    %v4775 = vunpack.c.h.b16 %v1486
    %v4776 = vunpack.c.l.b16 %v1487
    %v4777 = vunpack.c.h.b16 %v1487
    %v4778 = vunpack.c.l.b16 %v1488
    %v4779 = vunpack.c.h.b16 %v1488
    %v4780 = vunpack.c.l.b16 %v1489
    %v4781 = vunpack.c.h.b16 %v1489
    %v4782 = vunpack.c.l.b16 %v1490
    %v4783 = vunpack.c.h.b16 %v1490
    %v4784 = vunpack.c.l.b16 %v1491
    %v4785 = vunpack.c.h.b16 %v1491
    %v4786 = vunpack.c.l.b16 %v1492
    %v4787 = vunpack.c.h.b16 %v1492
    %v4788 = vunpack.c.l.b16 %v1493
    %v4789 = vunpack.c.h.b16 %v1493
    %v4790 = vunpack.c.l.b16 %v1494
    %v4791 = vunpack.c.h.b16 %v1494
    %v4792 = vunpack.c.l.b16 %v1495
    %v4793 = vunpack.c.h.b16 %v1495
    %v4794 = vunpack.c.l.b16 %v1496
    %v4795 = vunpack.c.h.b16 %v1496
    %v4796 = vunpack.c.l.b16 %v1497
    %v4797 = vunpack.c.h.b16 %v1497
    %v4798 = vunpack.c.l.b16 %v1498
    %v4799 = vunpack.c.h.b16 %v1498
    %v4800 = vunpack.c.l.b16 %v1499
    %v4801 = vunpack.c.h.b16 %v1499
    %v4802 = vunpack.c.l.b16 %v1500
    %v4803 = vunpack.c.h.b16 %v1500
    %v4804 = vunpack.c.l.b16 %v1501
    %v4805 = vunpack.c.h.b16 %v1501
    %v4806 = vunpack.c.l.b16 %v1502
    %v4807 = vunpack.c.h.b16 %v1502
    %v4808 = vunpack.c.l.b16 %v1503
    %v4809 = vunpack.c.h.b16 %v1503
    %v4810 = vunpack.c.l.b16 %v1504
    %v4811 = vunpack.c.h.b16 %v1504
    %v4812 = vunpack.c.l.b16 %v1505
    %v4813 = vunpack.c.h.b16 %v1505
    %v4814 = vunpack.c.l.b16 %v1506
    %v4815 = vunpack.c.h.b16 %v1506
    %v4816 = vunpack.c.l.b16 %v1507
    %v4817 = vunpack.c.h.b16 %v1507
    %v4818 = vunpack.c.l.b16 %v1508
    %v4819 = vunpack.c.h.b16 %v1508
    %v4820 = vunpack.c.l.b16 %v1509
    %v4821 = vunpack.c.h.b16 %v1509
    %v4822 = vunpack.c.l.b16 %v1510
    %v4823 = vunpack.c.h.b16 %v1510
    %v4824 = vunpack.c.l.b16 %v1511
    %v4825 = vunpack.c.h.b16 %v1511
    %v4826 = vunpack.c.l.b16 %v1512
    %v4827 = vunpack.c.h.b16 %v1512
    %v4828 = vunpack.c.l.b16 %v1513
    %v4829 = vunpack.c.h.b16 %v1513
    %v4830 = vunpack.c.l.b16 %v1514
    %v4831 = vunpack.c.h.b16 %v1514
    %v4832 = vunpack.c.l.b16 %v1515
    %v4833 = vunpack.c.h.b16 %v1515
    %v4834 = vunpack.c.l.b16 %v1516
    %v4835 = vunpack.c.h.b16 %v1516
    %v4836 = vunpack.c.l.b16 %v1517
    %v4837 = vunpack.c.h.b16 %v1517
    %v4838 = vunpack.c.l.b16 %v1518
    %v4839 = vunpack.c.h.b16 %v1518
    %v4840 = vunpack.c.l.b16 %v1519
    %v4841 = vunpack.c.h.b16 %v1519
    %v4842 = vunpack.c.l.b16 %v1520
    %v4843 = vunpack.c.h.b16 %v1520
    %v4844 = vunpack.c.l.b16 %v1521
    %v4845 = vunpack.c.h.b16 %v1521
    %v4846 = vunpack.c.l.b16 %v1522
    %v4847 = vunpack.c.h.b16 %v1522
    %v4848 = vunpack.c.l.b16 %v1523
    %v4849 = vunpack.c.h.b16 %v1523
    %v4850 = vunpack.c.l.b16 %v1524
    %v4851 = vunpack.c.h.b16 %v1524
    %v4852 = vunpack.c.l.b16 %v1525
    %v4853 = vunpack.c.h.b16 %v1525
    %v4854 = vunpack.c.l.b16 %v1526
    %v4855 = vunpack.c.h.b16 %v1526
    %v4856 = vunpack.c.l.b16 %v1527
    %v4857 = vunpack.c.h.b16 %v1527
    %v4858 = vunpack.c.l.b16 %v1528
    %v4859 = vunpack.c.h.b16 %v1528
    %v4860 = vunpack.c.l.b16 %v1529
    %v4861 = vunpack.c.h.b16 %v1529
    %v4862 = vunpack.c.l.b16 %v1530
    %v4863 = vunpack.c.h.b16 %v1530
    %v4864 = vunpack.c.l.b16 %v1531
    %v4865 = vunpack.c.h.b16 %v1531
    %v4866 = vunpack.c.l.b16 %v1532
    %v4867 = vunpack.c.h.b16 %v1532
    %v4868 = vunpack.c.l.b16 %v1533
    %v4869 = vunpack.c.h.b16 %v1533
    %v4870 = vunpack.c.l.b16 %v1534
    %v4871 = vunpack.c.h.b16 %v1534
    %v4872 = vunpack.c.l.b16 %v1535
    %v4873 = vunpack.c.h.b16 %v1535
    %v4874 = vunpack.c.l.b16 %v1536
    %v4875 = vunpack.c.h.b16 %v1536
    %v4876 = vunpack.c.l.b16 %v1537
    %v4877 = vunpack.c.h.b16 %v1537
    %v4878 = vunpack.c.l.b16 %v1538
    %v4879 = vunpack.c.h.b16 %v1538
    %v4880 = vunpack.c.l.b16 %v1539
    %v4881 = vunpack.c.h.b16 %v1539
    %v4882 = vunpack.c.l.b16 %v1540
    %v4883 = vunpack.c.h.b16 %v1540
    %v4884 = vunpack.c.l.b16 %v1541
    %v4885 = vunpack.c.h.b16 %v1541
    %v4886 = vunpack.c.l.b16 %v1542
    %v4887 = vunpack.c.h.b16 %v1542
    %v4888 = vunpack.c.l.b16 %v1543
    %v4889 = vunpack.c.h.b16 %v1543
    %v4890 = vunpack.c.l.b16 %v1544
    %v4891 = vunpack.c.h.b16 %v1544
    %v4892 = vunpack.c.l.b16 %v1545
    %v4893 = vunpack.c.h.b16 %v1545
    %v4894 = vunpack.c.l.b16 %v1546
    %v4895 = vunpack.c.h.b16 %v1546
    %v4896 = vunpack.c.l.b16 %v1547
    %v4897 = vunpack.c.h.b16 %v1547
    %v4898 = vunpack.c.l.b16 %v1548
    %v4899 = vunpack.c.h.b16 %v1548
    %v4900 = vunpack.c.l.b16 %v1549
    %v4901 = vunpack.c.h.b16 %v1549
    %v4902 = vunpack.c.l.b16 %v1550
    %v4903 = vunpack.c.h.b16 %v1550
    %v4904 = vunpack.c.l.b16 %v1551
    %v4905 = vunpack.c.h.b16 %v1551
    %v4906 = vunpack.c.l.b16 %v1552
    %v4907 = vunpack.c.h.b16 %v1552
    %v4908 = vunpack.c.l.b16 %v1553
    %v4909 = vunpack.c.h.b16 %v1553
    %v4910 = vunpack.c.l.b16 %v1554
    %v4911 = vunpack.c.h.b16 %v1554
    %v4912 = vunpack.c.l.b16 %v1555
    %v4913 = vunpack.c.h.b16 %v1555
    %v4914 = vunpack.c.l.b16 %v1556
    %v4915 = vunpack.c.h.b16 %v1556
    %v4916 = vunpack.c.l.b16 %v1557
    %v4917 = vunpack.c.h.b16 %v1557
    %v4918 = vunpack.c.l.b16 %v1558
    %v4919 = vunpack.c.h.b16 %v1558
    %v4920 = vunpack.c.l.b16 %v1559
    %v4921 = vunpack.c.h.b16 %v1559
    %v4922 = vunpack.c.l.b16 %v1560
    %v4923 = vunpack.c.h.b16 %v1560
    %v4924 = vunpack.c.l.b16 %v1561
    %v4925 = vunpack.c.h.b16 %v1561
    %v4926 = vunpack.c.l.b16 %v1562
    %v4927 = vunpack.c.h.b16 %v1562
    %v4928 = vunpack.c.l.b16 %v1563
    %v4929 = vunpack.c.h.b16 %v1563
    %v4930 = vunpack.c.l.b16 %v1564
    %v4931 = vunpack.c.h.b16 %v1564
    %v4932 = vunpack.c.l.b16 %v1565
    %v4933 = vunpack.c.h.b16 %v1565
    %v4934 = vunpack.c.l.b16 %v1566
    %v4935 = vunpack.c.h.b16 %v1566
    %v4936 = vunpack.c.l.b16 %v1567
    %v4937 = vunpack.c.h.b16 %v1567
    %v4938 = vunpack.c.l.b16 %v1568
    %v4939 = vunpack.c.h.b16 %v1568
    %v4940 = vunpack.c.l.b16 %v1569
    %v4941 = vunpack.c.h.b16 %v1569
    %v4942 = vunpack.c.l.b16 %v1570
    %v4943 = vunpack.c.h.b16 %v1570
    %v4944 = vunpack.c.l.b16 %v1571
    %v4945 = vunpack.c.h.b16 %v1571
    %v4946 = vunpack.c.l.b16 %v1572
    %v4947 = vunpack.c.h.b16 %v1572
    %v4948 = vunpack.c.l.b16 %v1573
    %v4949 = vunpack.c.h.b16 %v1573
    %v4950 = vunpack.c.l.b16 %v1574
    %v4951 = vunpack.c.h.b16 %v1574
    %v4952 = vunpack.c.l.b16 %v1575
    %v4953 = vunpack.c.h.b16 %v1575
    %v4954 = vunpack.c.l.b16 %v1576
    %v4955 = vunpack.c.h.b16 %v1576
    %v4956 = vunpack.c.l.b16 %v1577
    %v4957 = vunpack.c.h.b16 %v1577
    %v4958 = vunpack.c.l.b16 %v1578
    %v4959 = vunpack.c.h.b16 %v1578
    %v4960 = vunpack.c.l.b16 %v1579
    %v4961 = vunpack.c.h.b16 %v1579
    %v4962 = vunpack.c.l.b16 %v1580
    %v4963 = vunpack.c.h.b16 %v1580
    %v4964 = vunpack.c.l.b16 %v1581
    %v4965 = vunpack.c.h.b16 %v1581
    %v4966 = vunpack.c.l.b16 %v1582
    %v4967 = vunpack.c.h.b16 %v1582
    %v4968 = vunpack.c.l.b16 %v1583
    %v4969 = vunpack.c.h.b16 %v1583
    %v4970 = vunpack.c.l.b16 %v1584
    %v4971 = vunpack.c.h.b16 %v1584
    %v4972 = vunpack.c.l.b16 %v1585
    %v4973 = vunpack.c.h.b16 %v1585
    %v4974 = vunpack.c.l.b16 %v1586
    %v4975 = vunpack.c.h.b16 %v1586
    %v4976 = vunpack.c.l.b16 %v1587
    %v4977 = vunpack.c.h.b16 %v1587
    %v4978 = vunpack.c.l.b16 %v1588
    %v4979 = vunpack.c.h.b16 %v1588
    %v4980 = vunpack.c.l.b16 %v1589
    %v4981 = vunpack.c.h.b16 %v1589
    %v4982 = vunpack.c.l.b16 %v1590
    %v4983 = vunpack.c.h.b16 %v1590
    %v4984 = vunpack.c.l.b16 %v1591
    %v4985 = vunpack.c.h.b16 %v1591
    %v4986 = vunpack.c.l.b16 %v1592
    %v4987 = vunpack.c.h.b16 %v1592
    %v4988 = vunpack.c.l.b16 %v1593
    %v4989 = vunpack.c.h.b16 %v1593
    %v4990 = vunpack.c.l.b16 %v1594
    %v4991 = vunpack.c.h.b16 %v1594
    %v4992 = vunpack.c.l.b16 %v1595
    %v4993 = vunpack.c.h.b16 %v1595
    %v4994 = vunpack.c.l.b16 %v1596
    %v4995 = vunpack.c.h.b16 %v1596
    %v4996 = vunpack.c.l.b16 %v1597
    %v4997 = vunpack.c.h.b16 %v1597
    %v4998 = vunpack.c.l.b16 %v1598
    %v4999 = vunpack.c.h.b16 %v1598
    %v5000 = vunpack.c.l.b16 %v1599
    %v5001 = vunpack.c.h.b16 %v1599
    %v5002 = vunpack.c.l.b16 %v1600
    %v5003 = vunpack.c.h.b16 %v1600
    %v5004 = vunpack.c.l.b16 %v1601
    %v5005 = vunpack.c.h.b16 %v1601
    %v5006 = vunpack.c.l.b16 %v1602
    %v5007 = vunpack.c.h.b16 %v1602
    %v5008 = vunpack.c.l.b16 %v1603
    %v5009 = vunpack.c.h.b16 %v1603
    %v5010 = vunpack.c.l.b16 %v1604
    %v5011 = vunpack.c.h.b16 %v1604
    %v5012 = vunpack.c.l.b16 %v1605
    %v5013 = vunpack.c.h.b16 %v1605
    %v5014 = vunpack.c.l.b16 %v1606
    %v5015 = vunpack.c.h.b16 %v1606
    %v5016 = vunpack.c.l.b16 %v1607
    %v5017 = vunpack.c.h.b16 %v1607
    %v5018 = vunpack.c.l.b16 %v1608
    %v5019 = vunpack.c.h.b16 %v1608
    %v5020 = vunpack.c.l.b16 %v1609
    %v5021 = vunpack.c.h.b16 %v1609
    %v5022 = vunpack.c.l.b16 %v1610
    %v5023 = vunpack.c.h.b16 %v1610
    %v5024 = vunpack.c.l.b16 %v1611
    %v5025 = vunpack.c.h.b16 %v1611
    %v5026 = vunpack.c.l.b16 %v1612
    %v5027 = vunpack.c.h.b16 %v1612
    %v5028 = vunpack.c.l.b16 %v1613
    %v5029 = vunpack.c.h.b16 %v1613
    %v5030 = vunpack.c.l.b16 %v1614
    %v5031 = vunpack.c.h.b16 %v1614
    %v5032 = vunpack.c.l.b16 %v1615
    %v5033 = vunpack.c.h.b16 %v1615
    %v5034 = vunpack.c.l.b16 %v1616
    %v5035 = vunpack.c.h.b16 %v1616
    %v5036 = vunpack.c.l.b16 %v1617
    %v5037 = vunpack.c.h.b16 %v1617
    %v5038 = vunpack.c.l.b16 %v1618
    %v5039 = vunpack.c.h.b16 %v1618
    %v5040 = vunpack.c.l.b16 %v1619
    %v5041 = vunpack.c.h.b16 %v1619
    %v5042 = vunpack.c.l.b16 %v1620
    %v5043 = vunpack.c.h.b16 %v1620
    %v5044 = vunpack.c.l.b16 %v1621
    %v5045 = vunpack.c.h.b16 %v1621
    %v5046 = vunpack.c.l.b16 %v1622
    %v5047 = vunpack.c.h.b16 %v1622
    %v5048 = vunpack.c.l.b16 %v1623
    %v5049 = vunpack.c.h.b16 %v1623
    %v5050 = vunpack.c.l.b16 %v1624
    %v5051 = vunpack.c.h.b16 %v1624
    %v5052 = vunpack.c.l.b16 %v1625
    %v5053 = vunpack.c.h.b16 %v1625
    %v5054 = vunpack.c.l.b16 %v1626
    %v5055 = vunpack.c.h.b16 %v1626
    %v5056 = vunpack.c.l.b16 %v1627
    %v5057 = vunpack.c.h.b16 %v1627
    %v5058 = vunpack.c.l.b16 %v1628
    %v5059 = vunpack.c.h.b16 %v1628
    %v5060 = vunpack.c.l.b16 %v1629
    %v5061 = vunpack.c.h.b16 %v1629
    %v5062 = vunpack.c.l.b16 %v1630
    %v5063 = vunpack.c.h.b16 %v1630
    %v5064 = vunpack.c.l.b16 %v1631
    %v5065 = vunpack.c.h.b16 %v1631
    %v5066 = vunpack.c.l.b16 %v1632
    %v5067 = vunpack.c.h.b16 %v1632
    %v5068 = vunpack.c.l.b16 %v1633
    %v5069 = vunpack.c.h.b16 %v1633
    %v5070 = vunpack.c.l.b16 %v1634
    %v5071 = vunpack.c.h.b16 %v1634
    %v5072 = vunpack.c.l.b16 %v1635
    %v5073 = vunpack.c.h.b16 %v1635
    %v5074 = vunpack.c.l.b16 %v1636
    %v5075 = vunpack.c.h.b16 %v1636
    %v5076 = vunpack.c.l.b16 %v1637
    %v5077 = vunpack.c.h.b16 %v1637
    %v5078 = vunpack.c.l.b16 %v1638
    %v5079 = vunpack.c.h.b16 %v1638
    %v5080 = vunpack.c.l.b16 %v1639
    %v5081 = vunpack.c.h.b16 %v1639
    %v5082 = vunpack.c.l.b16 %v1640
    %v5083 = vunpack.c.h.b16 %v1640
    %v5084 = vunpack.c.l.b16 %v1641
    %v5085 = vunpack.c.h.b16 %v1641
    %v5086 = vunpack.c.l.b16 %v1642
    %v5087 = vunpack.c.h.b16 %v1642
    %v5088 = vunpack.c.l.b16 %v1643
    %v5089 = vunpack.c.h.b16 %v1643
    %v5090 = vunpack.c.l.b16 %v1644
    %v5091 = vunpack.c.h.b16 %v1644
    %v5092 = vunpack.c.l.b16 %v1645
    %v5093 = vunpack.c.h.b16 %v1645
    %v5094 = vunpack.c.l.b16 %v1646
    %v5095 = vunpack.c.h.b16 %v1646
    %v5096 = vunpack.c.l.b16 %v1647
    %v5097 = vunpack.c.h.b16 %v1647
    %v5098 = vunpack.c.l.b16 %v1648
    %v5099 = vunpack.c.h.b16 %v1648
    %v5100 = vunpack.c.l.b16 %v1649
    %v5101 = vunpack.c.h.b16 %v1649
    %v5102 = vunpack.c.l.b16 %v1650
    %v5103 = vunpack.c.h.b16 %v1650
    %v5104 = vunpack.c.l.b16 %v1651
    %v5105 = vunpack.c.h.b16 %v1651
    %v5106 = vunpack.c.l.b16 %v1652
    %v5107 = vunpack.c.h.b16 %v1652
    %v5108 = vunpack.c.l.b16 %v1653
    %v5109 = vunpack.c.h.b16 %v1653
    %v5110 = vpack.c.b16 %v2814, %v2806
    %v5111 = vpack.c.b16 %v2815, %v2807
    %v5112 = vpack.c.b16 %v2816, %v2808
    %v5113 = vpack.c.b16 %v2817, %v2809
    %v5114 = vpack.c.b16 %v2818, %v2810
    %v5115 = vpack.c.b16 %v2819, %v2811
    %v5116 = vpack.c.b16 %v2820, %v2812
    %v5117 = vpack.c.b16 %v2821, %v2813
    %v5118 = vpack.c.b16 %v2830, %v2822
    %v5119 = vpack.c.b16 %v2831, %v2823
    %v5120 = vpack.c.b16 %v2832, %v2824
    %v5121 = vpack.c.b16 %v2833, %v2825
    %v5122 = vpack.c.b16 %v2834, %v2826
    %v5123 = vpack.c.b16 %v2835, %v2827
    %v5124 = vpack.c.b16 %v2836, %v2828
    %v5125 = vpack.c.b16 %v2837, %v2829
    %v5126 = vpack.c.b16 %v2846, %v2838
    %v5127 = vpack.c.b16 %v2847, %v2839
    %v5128 = vpack.c.b16 %v2848, %v2840
    %v5129 = vpack.c.b16 %v2849, %v2841
    %v5130 = vpack.c.b16 %v2850, %v2842
    %v5131 = vpack.c.b16 %v2851, %v2843
    %v5132 = vpack.c.b16 %v2852, %v2844
    %v5133 = vpack.c.b16 %v2853, %v2845
    %v5134 = vpack.c.b16 %v2862, %v2854
    %v5135 = vpack.c.b16 %v2863, %v2855
    %v5136 = vpack.c.b16 %v2864, %v2856
    %v5137 = vpack.c.b16 %v2865, %v2857
    %v5138 = vpack.c.b16 %v2866, %v2858
    %v5139 = vpack.c.b16 %v2867, %v2859
    %v5140 = vpack.c.b16 %v2868, %v2860
    %v5141 = vpack.c.b16 %v2869, %v2861
    %v5142 = vpack.c.b16 %v2878, %v2870
    %v5143 = vpack.c.b16 %v2879, %v2871
    %v5144 = vpack.c.b16 %v2880, %v2872
    %v5145 = vpack.c.b16 %v2881, %v2873
    %v5146 = vpack.c.b16 %v2882, %v2874
    %v5147 = vpack.c.b16 %v2883, %v2875
    %v5148 = vpack.c.b16 %v2884, %v2876
    %v5149 = vpack.c.b16 %v2885, %v2877
    %v5150 = vpack.c.b16 %v2894, %v2886
    %v5151 = vpack.c.b16 %v2895, %v2887
    %v5152 = vpack.c.b16 %v2896, %v2888
    %v5153 = vpack.c.b16 %v2897, %v2889
    %v5154 = vpack.c.b16 %v2898, %v2890
    %v5155 = vpack.c.b16 %v2899, %v2891
    %v5156 = vpack.c.b16 %v2900, %v2892
    %v5157 = vpack.c.b16 %v2901, %v2893
    %v5158 = vpack.c.b16 %v2910, %v2902
    %v5159 = vpack.c.b16 %v2911, %v2903
    %v5160 = vpack.c.b16 %v2912, %v2904
    %v5161 = vpack.c.b16 %v2913, %v2905
    %v5162 = vpack.c.b16 %v2914, %v2906
    %v5163 = vpack.c.b16 %v2915, %v2907
    %v5164 = vpack.c.b16 %v2916, %v2908
    %v5165 = vpack.c.b16 %v2917, %v2909
    %v5166 = vpack.c.b16 %v2926, %v2918
    %v5167 = vpack.c.b16 %v2927, %v2919
    %v5168 = vpack.c.b16 %v2928, %v2920
    %v5169 = vpack.c.b16 %v2929, %v2921
    %v5170 = vpack.c.b16 %v2930, %v2922
    %v5171 = vpack.c.b16 %v2931, %v2923
    %v5172 = vpack.c.b16 %v2932, %v2924
    %v5173 = vpack.c.b16 %v2933, %v2925
    %v5174 = vpack.c.b16 %v2942, %v2934
    %v5175 = vpack.c.b16 %v2943, %v2935
    %v5176 = vpack.c.b16 %v2944, %v2936
    %v5177 = vpack.c.b16 %v2945, %v2937
    %v5178 = vpack.c.b16 %v2946, %v2938
    %v5179 = vpack.c.b16 %v2947, %v2939
    %v5180 = vpack.c.b16 %v2948, %v2940
    %v5181 = vpack.c.b16 %v2949, %v2941
    %v5182 = vpack.c.b16 %v2958, %v2950
    %v5183 = vpack.c.b16 %v2959, %v2951
    %v5184 = vpack.c.b16 %v2960, %v2952
    %v5185 = vpack.c.b16 %v2961, %v2953
    %v5186 = vpack.c.b16 %v2962, %v2954
    %v5187 = vpack.c.b16 %v2963, %v2955
    %v5188 = vpack.c.b16 %v2964, %v2956
    %v5189 = vpack.c.b16 %v2965, %v2957
    %v5190 = vpack.c.b16 %v2974, %v2966
    %v5191 = vpack.c.b16 %v2975, %v2967
    %v5192 = vpack.c.b16 %v2976, %v2968
    %v5193 = vpack.c.b16 %v2977, %v2969
    %v5194 = vpack.c.b16 %v2978, %v2970
    %v5195 = vpack.c.b16 %v2979, %v2971
    %v5196 = vpack.c.b16 %v2980, %v2972
    %v5197 = vpack.c.b16 %v2981, %v2973
    %v5198 = vpack.c.b16 %v2990, %v2982
    %v5199 = vpack.c.b16 %v2991, %v2983
    %v5200 = vpack.c.b16 %v2992, %v2984
    %v5201 = vpack.c.b16 %v2993, %v2985
    %v5202 = vpack.c.b16 %v2994, %v2986
    %v5203 = vpack.c.b16 %v2995, %v2987
    %v5204 = vpack.c.b16 %v2996, %v2988
    %v5205 = vpack.c.b16 %v2997, %v2989
    %v5206 = vpack.c.b16 %v3006, %v2998
    %v5207 = vpack.c.b16 %v3007, %v2999
    %v5208 = vpack.c.b16 %v3008, %v3000
    %v5209 = vpack.c.b16 %v3009, %v3001
    %v5210 = vpack.c.b16 %v3010, %v3002
    %v5211 = vpack.c.b16 %v3011, %v3003
    %v5212 = vpack.c.b16 %v3012, %v3004
    %v5213 = vpack.c.b16 %v3013, %v3005
    %v5214 = vpack.c.b16 %v3022, %v3014
    %v5215 = vpack.c.b16 %v3023, %v3015
    %v5216 = vpack.c.b16 %v3024, %v3016
    %v5217 = vpack.c.b16 %v3025, %v3017
    %v5218 = vpack.c.b16 %v3026, %v3018
    %v5219 = vpack.c.b16 %v3027, %v3019
    %v5220 = vpack.c.b16 %v3028, %v3020
    %v5221 = vpack.c.b16 %v3029, %v3021
    %v5222 = vpack.c.b16 %v3038, %v3030
    %v5223 = vpack.c.b16 %v3039, %v3031
    %v5224 = vpack.c.b16 %v3040, %v3032
    %v5225 = vpack.c.b16 %v3041, %v3033
    %v5226 = vpack.c.b16 %v3042, %v3034
    %v5227 = vpack.c.b16 %v3043, %v3035
    %v5228 = vpack.c.b16 %v3044, %v3036
    %v5229 = vpack.c.b16 %v3045, %v3037
    %v5230 = vpack.c.b16 %v3054, %v3046
    %v5231 = vpack.c.b16 %v3055, %v3047
    %v5232 = vpack.c.b16 %v3056, %v3048
    %v5233 = vpack.c.b16 %v3057, %v3049
    %v5234 = vpack.c.b16 %v3058, %v3050
    %v5235 = vpack.c.b16 %v3059, %v3051
    %v5236 = vpack.c.b16 %v3060, %v3052
    %v5237 = vpack.c.b16 %v3061, %v3053
    %v5238 = vpack.c.b16 %v3070, %v3062
    %v5239 = vpack.c.b16 %v3071, %v3063
    %v5240 = vpack.c.b16 %v3072, %v3064
    %v5241 = vpack.c.b16 %v3073, %v3065
    %v5242 = vpack.c.b16 %v3074, %v3066
    %v5243 = vpack.c.b16 %v3075, %v3067
    %v5244 = vpack.c.b16 %v3076, %v3068
    %v5245 = vpack.c.b16 %v3077, %v3069
    %v5246 = vpack.c.b16 %v3086, %v3078
    %v5247 = vpack.c.b16 %v3087, %v3079
    %v5248 = vpack.c.b16 %v3088, %v3080
    %v5249 = vpack.c.b16 %v3089, %v3081
    %v5250 = vpack.c.b16 %v3090, %v3082
    %v5251 = vpack.c.b16 %v3091, %v3083
    %v5252 = vpack.c.b16 %v3092, %v3084
    %v5253 = vpack.c.b16 %v3093, %v3085
    %v5254 = vpack.c.b16 %v3102, %v3094
    %v5255 = vpack.c.b16 %v3103, %v3095
    %v5256 = vpack.c.b16 %v3104, %v3096
    %v5257 = vpack.c.b16 %v3105, %v3097
    %v5258 = vpack.c.b16 %v3106, %v3098
    %v5259 = vpack.c.b16 %v3107, %v3099
    %v5260 = vpack.c.b16 %v3108, %v3100
    %v5261 = vpack.c.b16 %v3109, %v3101
    %v5262 = vpack.c.b16 %v3118, %v3110
    %v5263 = vpack.c.b16 %v3119, %v3111
    %v5264 = vpack.c.b16 %v3120, %v3112
    %v5265 = vpack.c.b16 %v3121, %v3113
    %v5266 = vpack.c.b16 %v3122, %v3114
    %v5267 = vpack.c.b16 %v3123, %v3115
    %v5268 = vpack.c.b16 %v3124, %v3116
    %v5269 = vpack.c.b16 %v3125, %v3117
    %v5270 = vpack.c.b16 %v3134, %v3126
    %v5271 = vpack.c.b16 %v3135, %v3127
    %v5272 = vpack.c.b16 %v3136, %v3128
    %v5273 = vpack.c.b16 %v3137, %v3129
    %v5274 = vpack.c.b16 %v3138, %v3130
    %v5275 = vpack.c.b16 %v3139, %v3131
    %v5276 = vpack.c.b16 %v3140, %v3132
    %v5277 = vpack.c.b16 %v3141, %v3133
    %v5278 = vpack.c.b16 %v3150, %v3142
    %v5279 = vpack.c.b16 %v3151, %v3143
    %v5280 = vpack.c.b16 %v3152, %v3144
    %v5281 = vpack.c.b16 %v3153, %v3145
    %v5282 = vpack.c.b16 %v3154, %v3146
    %v5283 = vpack.c.b16 %v3155, %v3147
    %v5284 = vpack.c.b16 %v3156, %v3148
    %v5285 = vpack.c.b16 %v3157, %v3149
    %v5286 = vpack.c.b16 %v3166, %v3158
    %v5287 = vpack.c.b16 %v3167, %v3159
    %v5288 = vpack.c.b16 %v3168, %v3160
    %v5289 = vpack.c.b16 %v3169, %v3161
    %v5290 = vpack.c.b16 %v3170, %v3162
    %v5291 = vpack.c.b16 %v3171, %v3163
    %v5292 = vpack.c.b16 %v3172, %v3164
    %v5293 = vpack.c.b16 %v3173, %v3165
    %v5294 = vpack.c.b16 %v3182, %v3174
    %v5295 = vpack.c.b16 %v3183, %v3175
    %v5296 = vpack.c.b16 %v3184, %v3176
    %v5297 = vpack.c.b16 %v3185, %v3177
    %v5298 = vpack.c.b16 %v3186, %v3178
    %v5299 = vpack.c.b16 %v3187, %v3179
    %v5300 = vpack.c.b16 %v3188, %v3180
    %v5301 = vpack.c.b16 %v3189, %v3181
    %v5302 = vpack.c.b16 %v3198, %v3190
    %v5303 = vpack.c.b16 %v3199, %v3191
    %v5304 = vpack.c.b16 %v3200, %v3192
    %v5305 = vpack.c.b16 %v3201, %v3193
    %v5306 = vpack.c.b16 %v3202, %v3194
    %v5307 = vpack.c.b16 %v3203, %v3195
    %v5308 = vpack.c.b16 %v3204, %v3196
    %v5309 = vpack.c.b16 %v3205, %v3197
    %v5310 = vpack.c.b16 %v3214, %v3206
    %v5311 = vpack.c.b16 %v3215, %v3207
    %v5312 = vpack.c.b16 %v3216, %v3208
    %v5313 = vpack.c.b16 %v3217, %v3209
    %v5314 = vpack.c.b16 %v3218, %v3210
    %v5315 = vpack.c.b16 %v3219, %v3211
    %v5316 = vpack.c.b16 %v3220, %v3212
    %v5317 = vpack.c.b16 %v3221, %v3213
    %v5318 = vpack.c.b16 %v3230, %v3222
    %v5319 = vpack.c.b16 %v3231, %v3223
    %v5320 = vpack.c.b16 %v3232, %v3224
    %v5321 = vpack.c.b16 %v3233, %v3225
    %v5322 = vpack.c.b16 %v3234, %v3226
    %v5323 = vpack.c.b16 %v3235, %v3227
    %v5324 = vpack.c.b16 %v3236, %v3228
    %v5325 = vpack.c.b16 %v3237, %v3229
    %v5326 = vpack.c.b16 %v3246, %v3238
    %v5327 = vpack.c.b16 %v3247, %v3239
    %v5328 = vpack.c.b16 %v3248, %v3240
    %v5329 = vpack.c.b16 %v3249, %v3241
    %v5330 = vpack.c.b16 %v3250, %v3242
    %v5331 = vpack.c.b16 %v3251, %v3243
    %v5332 = vpack.c.b16 %v3252, %v3244
    %v5333 = vpack.c.b16 %v3253, %v3245
    %v5334 = vpack.c.b16 %v3262, %v3254
    %v5335 = vpack.c.b16 %v3263, %v3255
    %v5336 = vpack.c.b16 %v3264, %v3256
    %v5337 = vpack.c.b16 %v3265, %v3257
    %v5338 = vpack.c.b16 %v3266, %v3258
    %v5339 = vpack.c.b16 %v3267, %v3259
    %v5340 = vpack.c.b16 %v3268, %v3260
    %v5341 = vpack.c.b16 %v3269, %v3261
    %v5342 = vpack.c.b16 %v3278, %v3270
    %v5343 = vpack.c.b16 %v3279, %v3271
    %v5344 = vpack.c.b16 %v3280, %v3272
    %v5345 = vpack.c.b16 %v3281, %v3273
    %v5346 = vpack.c.b16 %v3282, %v3274
    %v5347 = vpack.c.b16 %v3283, %v3275
    %v5348 = vpack.c.b16 %v3284, %v3276
    %v5349 = vpack.c.b16 %v3285, %v3277
    %v5350 = vpack.c.b16 %v3294, %v3286
    %v5351 = vpack.c.b16 %v3295, %v3287
    %v5352 = vpack.c.b16 %v3296, %v3288
    %v5353 = vpack.c.b16 %v3297, %v3289
    %v5354 = vpack.c.b16 %v3298, %v3290
    %v5355 = vpack.c.b16 %v3299, %v3291
    %v5356 = vpack.c.b16 %v3300, %v3292
    %v5357 = vpack.c.b16 %v3301, %v3293
    %v5358 = vpack.c.b16 %v3310, %v3302
    %v5359 = vpack.c.b16 %v3311, %v3303
    %v5360 = vpack.c.b16 %v3312, %v3304
    %v5361 = vpack.c.b16 %v3313, %v3305
    %v5362 = vpack.c.b16 %v3314, %v3306
    %v5363 = vpack.c.b16 %v3315, %v3307
    %v5364 = vpack.c.b16 %v3316, %v3308
    %v5365 = vpack.c.b16 %v3317, %v3309
    %v5366 = vpack.c.b16 %v3326, %v3318
    %v5367 = vpack.c.b16 %v3327, %v3319
    %v5368 = vpack.c.b16 %v3328, %v3320
    %v5369 = vpack.c.b16 %v3329, %v3321
    %v5370 = vpack.c.b16 %v3330, %v3322
    %v5371 = vpack.c.b16 %v3331, %v3323
    %v5372 = vpack.c.b16 %v3332, %v3324
    %v5373 = vpack.c.b16 %v3333, %v3325
    %v5374 = vpack.c.b16 %v3342, %v3334
    %v5375 = vpack.c.b16 %v3343, %v3335
    %v5376 = vpack.c.b16 %v3344, %v3336
    %v5377 = vpack.c.b16 %v3345, %v3337
    %v5378 = vpack.c.b16 %v3346, %v3338
    %v5379 = vpack.c.b16 %v3347, %v3339
    %v5380 = vpack.c.b16 %v3348, %v3340
    %v5381 = vpack.c.b16 %v3349, %v3341
    %v5382 = vpack.c.b16 %v3358, %v3350
    %v5383 = vpack.c.b16 %v3359, %v3351
    %v5384 = vpack.c.b16 %v3360, %v3352
    %v5385 = vpack.c.b16 %v3361, %v3353
    %v5386 = vpack.c.b16 %v3362, %v3354
    %v5387 = vpack.c.b16 %v3363, %v3355
    %v5388 = vpack.c.b16 %v3364, %v3356
    %v5389 = vpack.c.b16 %v3365, %v3357
    %v5390 = vpack.c.b16 %v3374, %v3366
    %v5391 = vpack.c.b16 %v3375, %v3367
    %v5392 = vpack.c.b16 %v3376, %v3368
    %v5393 = vpack.c.b16 %v3377, %v3369
    %v5394 = vpack.c.b16 %v3378, %v3370
    %v5395 = vpack.c.b16 %v3379, %v3371
    %v5396 = vpack.c.b16 %v3380, %v3372
    %v5397 = vpack.c.b16 %v3381, %v3373
    %v5398 = vpack.c.b16 %v3390, %v3382
    %v5399 = vpack.c.b16 %v3391, %v3383
    %v5400 = vpack.c.b16 %v3392, %v3384
    %v5401 = vpack.c.b16 %v3393, %v3385
    %v5402 = vpack.c.b16 %v3394, %v3386
    %v5403 = vpack.c.b16 %v3395, %v3387
    %v5404 = vpack.c.b16 %v3396, %v3388
    %v5405 = vpack.c.b16 %v3397, %v3389
    %v5406 = vpack.c.b16 %v3406, %v3398
    %v5407 = vpack.c.b16 %v3407, %v3399
    %v5408 = vpack.c.b16 %v3408, %v3400
    %v5409 = vpack.c.b16 %v3409, %v3401
    %v5410 = vpack.c.b16 %v3410, %v3402
    %v5411 = vpack.c.b16 %v3411, %v3403
    %v5412 = vpack.c.b16 %v3412, %v3404
    %v5413 = vpack.c.b16 %v3413, %v3405
    %v5414 = vpack.c.b16 %v3422, %v3414
    %v5415 = vpack.c.b16 %v3423, %v3415
    %v5416 = vpack.c.b16 %v3424, %v3416
    %v5417 = vpack.c.b16 %v3425, %v3417
    %v5418 = vpack.c.b16 %v3426, %v3418
    %v5419 = vpack.c.b16 %v3427, %v3419
    %v5420 = vpack.c.b16 %v3428, %v3420
    %v5421 = vpack.c.b16 %v3429, %v3421
    %v5422 = vpack.c.b16 %v3438, %v3430
    %v5423 = vpack.c.b16 %v3439, %v3431
    %v5424 = vpack.c.b16 %v3440, %v3432
    %v5425 = vpack.c.b16 %v3441, %v3433
    %v5426 = vpack.c.b16 %v3442, %v3434
    %v5427 = vpack.c.b16 %v3443, %v3435
    %v5428 = vpack.c.b16 %v3444, %v3436
    %v5429 = vpack.c.b16 %v3445, %v3437
    %v5430 = vpack.c.b16 %v3454, %v3446
    %v5431 = vpack.c.b16 %v3455, %v3447
    %v5432 = vpack.c.b16 %v3456, %v3448
    %v5433 = vpack.c.b16 %v3457, %v3449
    %v5434 = vpack.c.b16 %v3458, %v3450
    %v5435 = vpack.c.b16 %v3459, %v3451
    %v5436 = vpack.c.b16 %v3460, %v3452
    %v5437 = vpack.c.b16 %v3461, %v3453
    %v5438 = vpack.c.b16 %v3470, %v3462
    %v5439 = vpack.c.b16 %v3471, %v3463
    %v5440 = vpack.c.b16 %v3472, %v3464
    %v5441 = vpack.c.b16 %v3473, %v3465
    %v5442 = vpack.c.b16 %v3474, %v3466
    %v5443 = vpack.c.b16 %v3475, %v3467
    %v5444 = vpack.c.b16 %v3476, %v3468
    %v5445 = vpack.c.b16 %v3477, %v3469
    %v5446 = vpack.c.b16 %v3486, %v3478
    %v5447 = vpack.c.b16 %v3487, %v3479
    %v5448 = vpack.c.b16 %v3488, %v3480
    %v5449 = vpack.c.b16 %v3489, %v3481
    %v5450 = vpack.c.b16 %v3490, %v3482
    %v5451 = vpack.c.b16 %v3491, %v3483
    %v5452 = vpack.c.b16 %v3492, %v3484
    %v5453 = vpack.c.b16 %v3493, %v3485
    %v5454 = vpack.c.b16 %v3502, %v3494
    %v5455 = vpack.c.b16 %v3503, %v3495
    %v5456 = vpack.c.b16 %v3504, %v3496
    %v5457 = vpack.c.b16 %v3505, %v3497
    %v5458 = vpack.c.b16 %v3506, %v3498
    %v5459 = vpack.c.b16 %v3507, %v3499
    %v5460 = vpack.c.b16 %v3508, %v3500
    %v5461 = vpack.c.b16 %v3509, %v3501
    %v5462 = vpack.c.b16 %v3518, %v3510
    %v5463 = vpack.c.b16 %v3519, %v3511
    %v5464 = vpack.c.b16 %v3520, %v3512
    %v5465 = vpack.c.b16 %v3521, %v3513
    %v5466 = vpack.c.b16 %v3522, %v3514
    %v5467 = vpack.c.b16 %v3523, %v3515
    %v5468 = vpack.c.b16 %v3524, %v3516
    %v5469 = vpack.c.b16 %v3525, %v3517
    %v5470 = vpack.c.b16 %v3534, %v3526
    %v5471 = vpack.c.b16 %v3535, %v3527
    %v5472 = vpack.c.b16 %v3536, %v3528
    %v5473 = vpack.c.b16 %v3537, %v3529
    %v5474 = vpack.c.b16 %v3538, %v3530
    %v5475 = vpack.c.b16 %v3539, %v3531
    %v5476 = vpack.c.b16 %v3540, %v3532
    %v5477 = vpack.c.b16 %v3541, %v3533
    %v5478 = vpack.c.b16 %v3550, %v3542
    %v5479 = vpack.c.b16 %v3551, %v3543
    %v5480 = vpack.c.b16 %v3552, %v3544
    %v5481 = vpack.c.b16 %v3553, %v3545
    %v5482 = vpack.c.b16 %v3554, %v3546
    %v5483 = vpack.c.b16 %v3555, %v3547
    %v5484 = vpack.c.b16 %v3556, %v3548
    %v5485 = vpack.c.b16 %v3557, %v3549
    %v5486 = vpack.c.b16 %v3566, %v3558
    %v5487 = vpack.c.b16 %v3567, %v3559
    %v5488 = vpack.c.b16 %v3568, %v3560
    %v5489 = vpack.c.b16 %v3569, %v3561
    %v5490 = vpack.c.b16 %v3570, %v3562
    %v5491 = vpack.c.b16 %v3571, %v3563
    %v5492 = vpack.c.b16 %v3572, %v3564
    %v5493 = vpack.c.b16 %v3573, %v3565
    %v5494 = vpack.c.b16 %v3582, %v3574
    %v5495 = vpack.c.b16 %v3583, %v3575
    %v5496 = vpack.c.b16 %v3584, %v3576
    %v5497 = vpack.c.b16 %v3585, %v3577
    %v5498 = vpack.c.b16 %v3586, %v3578
    %v5499 = vpack.c.b16 %v3587, %v3579
    %v5500 = vpack.c.b16 %v3588, %v3580
    %v5501 = vpack.c.b16 %v3589, %v3581
    %v5502 = vpack.c.b16 %v3598, %v3590
    %v5503 = vpack.c.b16 %v3599, %v3591
    %v5504 = vpack.c.b16 %v3600, %v3592
    %v5505 = vpack.c.b16 %v3601, %v3593
    %v5506 = vpack.c.b16 %v3602, %v3594
    %v5507 = vpack.c.b16 %v3603, %v3595
    %v5508 = vpack.c.b16 %v3604, %v3596
    %v5509 = vpack.c.b16 %v3605, %v3597
    %v5510 = vpack.c.b16 %v3614, %v3606
    %v5511 = vpack.c.b16 %v3615, %v3607
    %v5512 = vpack.c.b16 %v3616, %v3608
    %v5513 = vpack.c.b16 %v3617, %v3609
    %v5514 = vpack.c.b16 %v3618, %v3610
    %v5515 = vpack.c.b16 %v3619, %v3611
    %v5516 = vpack.c.b16 %v3620, %v3612
    %v5517 = vpack.c.b16 %v3621, %v3613
    %v5518 = vpack.c.b16 %v3630, %v3622
    %v5519 = vpack.c.b16 %v3631, %v3623
    %v5520 = vpack.c.b16 %v3632, %v3624
    %v5521 = vpack.c.b16 %v3633, %v3625
    %v5522 = vpack.c.b16 %v3634, %v3626
    %v5523 = vpack.c.b16 %v3635, %v3627
    %v5524 = vpack.c.b16 %v3636, %v3628
    %v5525 = vpack.c.b16 %v3637, %v3629
    %v5526 = vpack.c.b16 %v3646, %v3638
    %v5527 = vpack.c.b16 %v3647, %v3639
    %v5528 = vpack.c.b16 %v3648, %v3640
    %v5529 = vpack.c.b16 %v3649, %v3641
    %v5530 = vpack.c.b16 %v3650, %v3642
    %v5531 = vpack.c.b16 %v3651, %v3643
    %v5532 = vpack.c.b16 %v3652, %v3644
    %v5533 = vpack.c.b16 %v3653, %v3645
    %v5534 = vpack.c.b16 %v3662, %v3654
    %v5535 = vpack.c.b16 %v3663, %v3655
    %v5536 = vpack.c.b16 %v3664, %v3656
    %v5537 = vpack.c.b16 %v3665, %v3657
    %v5538 = vpack.c.b16 %v3666, %v3658
    %v5539 = vpack.c.b16 %v3667, %v3659
    %v5540 = vpack.c.b16 %v3668, %v3660
    %v5541 = vpack.c.b16 %v3669, %v3661
    %v5542 = vpack.c.b16 %v3678, %v3670
    %v5543 = vpack.c.b16 %v3679, %v3671
    %v5544 = vpack.c.b16 %v3680, %v3672
    %v5545 = vpack.c.b16 %v3681, %v3673
    %v5546 = vpack.c.b16 %v3682, %v3674
    %v5547 = vpack.c.b16 %v3683, %v3675
    %v5548 = vpack.c.b16 %v3684, %v3676
    %v5549 = vpack.c.b16 %v3685, %v3677
    %v5550 = vpack.c.b16 %v3694, %v3686
    %v5551 = vpack.c.b16 %v3695, %v3687
    %v5552 = vpack.c.b16 %v3696, %v3688
    %v5553 = vpack.c.b16 %v3697, %v3689
    %v5554 = vpack.c.b16 %v3698, %v3690
    %v5555 = vpack.c.b16 %v3699, %v3691
    %v5556 = vpack.c.b16 %v3700, %v3692
    %v5557 = vpack.c.b16 %v3701, %v3693
    %v5558 = vpack.c.b16 %v3710, %v3702
    %v5559 = vpack.c.b16 %v3711, %v3703
    %v5560 = vpack.c.b16 %v3712, %v3704
    %v5561 = vpack.c.b16 %v3713, %v3705
    %v5562 = vpack.c.b16 %v3714, %v3706
    %v5563 = vpack.c.b16 %v3715, %v3707
    %v5564 = vpack.c.b16 %v3716, %v3708
    %v5565 = vpack.c.b16 %v3717, %v3709
    %v5566 = vpack.c.b16 %v3726, %v3718
    %v5567 = vpack.c.b16 %v3727, %v3719
    %v5568 = vpack.c.b16 %v3728, %v3720
    %v5569 = vpack.c.b16 %v3729, %v3721
    %v5570 = vpack.c.b16 %v3730, %v3722
    %v5571 = vpack.c.b16 %v3731, %v3723
    %v5572 = vpack.c.b16 %v3732, %v3724
    %v5573 = vpack.c.b16 %v3733, %v3725
    %v5574 = vpack.c.b16 %v3742, %v3734
    %v5575 = vpack.c.b16 %v3743, %v3735
    %v5576 = vpack.c.b16 %v3744, %v3736
    %v5577 = vpack.c.b16 %v3745, %v3737
    %v5578 = vpack.c.b16 %v3746, %v3738
    %v5579 = vpack.c.b16 %v3747, %v3739
    %v5580 = vpack.c.b16 %v3748, %v3740
    %v5581 = vpack.c.b16 %v3749, %v3741
    %v5582 = vpack.c.b16 %v3758, %v3750
    %v5583 = vpack.c.b16 %v3759, %v3751
    %v5584 = vpack.c.b16 %v3760, %v3752
    %v5585 = vpack.c.b16 %v3761, %v3753
    %v5586 = vpack.c.b16 %v3762, %v3754
    %v5587 = vpack.c.b16 %v3763, %v3755
    %v5588 = vpack.c.b16 %v3764, %v3756
    %v5589 = vpack.c.b16 %v3765, %v3757
    %v5590 = vpack.c.b16 %v3774, %v3766
    %v5591 = vpack.c.b16 %v3775, %v3767
    %v5592 = vpack.c.b16 %v3776, %v3768
    %v5593 = vpack.c.b16 %v3777, %v3769
    %v5594 = vpack.c.b16 %v3778, %v3770
    %v5595 = vpack.c.b16 %v3779, %v3771
    %v5596 = vpack.c.b16 %v3780, %v3772
    %v5597 = vpack.c.b16 %v3781, %v3773
    %v5598 = vpack.c.b16 %v3790, %v3782
    %v5599 = vpack.c.b16 %v3791, %v3783
    %v5600 = vpack.c.b16 %v3792, %v3784
    %v5601 = vpack.c.b16 %v3793, %v3785
    %v5602 = vpack.c.b16 %v3794, %v3786
    %v5603 = vpack.c.b16 %v3795, %v3787
    %v5604 = vpack.c.b16 %v3796, %v3788
    %v5605 = vpack.c.b16 %v3797, %v3789
    %v5606 = vpack.c.b16 %v3806, %v3798
    %v5607 = vpack.c.b16 %v3807, %v3799
    %v5608 = vpack.c.b16 %v3808, %v3800
    %v5609 = vpack.c.b16 %v3809, %v3801
    %v5610 = vpack.c.b16 %v3810, %v3802
    %v5611 = vpack.c.b16 %v3811, %v3803
    %v5612 = vpack.c.b16 %v3812, %v3804
    %v5613 = vpack.c.b16 %v3813, %v3805
    %v5614 = vpack.c.b16 %v3822, %v3814
    %v5615 = vpack.c.b16 %v3823, %v3815
    %v5616 = vpack.c.b16 %v3824, %v3816
    %v5617 = vpack.c.b16 %v3825, %v3817
    %v5618 = vpack.c.b16 %v3826, %v3818
    %v5619 = vpack.c.b16 %v3827, %v3819
    %v5620 = vpack.c.b16 %v3828, %v3820
    %v5621 = vpack.c.b16 %v3829, %v3821
    %v5622 = vpack.c.b16 %v3838, %v3830
    %v5623 = vpack.c.b16 %v3839, %v3831
    %v5624 = vpack.c.b16 %v3840, %v3832
    %v5625 = vpack.c.b16 %v3841, %v3833
    %v5626 = vpack.c.b16 %v3842, %v3834
    %v5627 = vpack.c.b16 %v3843, %v3835
    %v5628 = vpack.c.b16 %v3844, %v3836
    %v5629 = vpack.c.b16 %v3845, %v3837
    %v5630 = vpack.c.b16 %v3854, %v3846
    %v5631 = vpack.c.b16 %v3855, %v3847
    %v5632 = vpack.c.b16 %v3856, %v3848
    %v5633 = vpack.c.b16 %v3857, %v3849
    %v5634 = vpack.c.b16 %v3858, %v3850
    %v5635 = vpack.c.b16 %v3859, %v3851
    %v5636 = vpack.c.b16 %v3860, %v3852
    %v5637 = vpack.c.b16 %v3861, %v3853
    %v5638 = vpack.c.b16 %v3870, %v3862
    %v5639 = vpack.c.b16 %v3871, %v3863
    %v5640 = vpack.c.b16 %v3872, %v3864
    %v5641 = vpack.c.b16 %v3873, %v3865
    %v5642 = vpack.c.b16 %v3874, %v3866
    %v5643 = vpack.c.b16 %v3875, %v3867
    %v5644 = vpack.c.b16 %v3876, %v3868
    %v5645 = vpack.c.b16 %v3877, %v3869
    %v5646 = vpack.c.b16 %v3886, %v3878
    %v5647 = vpack.c.b16 %v3887, %v3879
    %v5648 = vpack.c.b16 %v3888, %v3880
    %v5649 = vpack.c.b16 %v3889, %v3881
    %v5650 = vpack.c.b16 %v3890, %v3882
    %v5651 = vpack.c.b16 %v3891, %v3883
    %v5652 = vpack.c.b16 %v3892, %v3884
    %v5653 = vpack.c.b16 %v3893, %v3885
    %v5654 = vpack.c.b16 %v3902, %v3894
    %v5655 = vpack.c.b16 %v3903, %v3895
    %v5656 = vpack.c.b16 %v3904, %v3896
    %v5657 = vpack.c.b16 %v3905, %v3897
    %v5658 = vpack.c.b16 %v3906, %v3898
    %v5659 = vpack.c.b16 %v3907, %v3899
    %v5660 = vpack.c.b16 %v3908, %v3900
    %v5661 = vpack.c.b16 %v3909, %v3901
    %v5662 = vpack.c.b16 %v3918, %v3910
    %v5663 = vpack.c.b16 %v3919, %v3911
    %v5664 = vpack.c.b16 %v3920, %v3912
    %v5665 = vpack.c.b16 %v3921, %v3913
    %v5666 = vpack.c.b16 %v3922, %v3914
    %v5667 = vpack.c.b16 %v3923, %v3915
    %v5668 = vpack.c.b16 %v3924, %v3916
    %v5669 = vpack.c.b16 %v3925, %v3917
    %v5670 = vpack.c.b16 %v3934, %v3926
    %v5671 = vpack.c.b16 %v3935, %v3927
    %v5672 = vpack.c.b16 %v3936, %v3928
    %v5673 = vpack.c.b16 %v3937, %v3929
    %v5674 = vpack.c.b16 %v3938, %v3930
    %v5675 = vpack.c.b16 %v3939, %v3931
    %v5676 = vpack.c.b16 %v3940, %v3932
    %v5677 = vpack.c.b16 %v3941, %v3933
    %v5678 = vpack.c.b16 %v3950, %v3942
    %v5679 = vpack.c.b16 %v3951, %v3943
    %v5680 = vpack.c.b16 %v3952, %v3944
    %v5681 = vpack.c.b16 %v3953, %v3945
    %v5682 = vpack.c.b16 %v3954, %v3946
    %v5683 = vpack.c.b16 %v3955, %v3947
    %v5684 = vpack.c.b16 %v3956, %v3948
    %v5685 = vpack.c.b16 %v3957, %v3949
    %v5686 = vpack.c.b16 %v3966, %v3958
    %v5687 = vpack.c.b16 %v3967, %v3959
    %v5688 = vpack.c.b16 %v3968, %v3960
    %v5689 = vpack.c.b16 %v3969, %v3961
    %v5690 = vpack.c.b16 %v3970, %v3962
    %v5691 = vpack.c.b16 %v3971, %v3963
    %v5692 = vpack.c.b16 %v3972, %v3964
    %v5693 = vpack.c.b16 %v3973, %v3965
    %v5694 = vpack.c.b16 %v3982, %v3974
    %v5695 = vpack.c.b16 %v3983, %v3975
    %v5696 = vpack.c.b16 %v3984, %v3976
    %v5697 = vpack.c.b16 %v3985, %v3977
    %v5698 = vpack.c.b16 %v3986, %v3978
    %v5699 = vpack.c.b16 %v3987, %v3979
    %v5700 = vpack.c.b16 %v3988, %v3980
    %v5701 = vpack.c.b16 %v3989, %v3981
    %v5702 = vpack.c.b16 %v3998, %v3990
    %v5703 = vpack.c.b16 %v3999, %v3991
    %v5704 = vpack.c.b16 %v4000, %v3992
    %v5705 = vpack.c.b16 %v4001, %v3993
    %v5706 = vpack.c.b16 %v4002, %v3994
    %v5707 = vpack.c.b16 %v4003, %v3995
    %v5708 = vpack.c.b16 %v4004, %v3996
    %v5709 = vpack.c.b16 %v4005, %v3997
    %v5710 = vpack.c.b16 %v4014, %v4006
    %v5711 = vpack.c.b16 %v4015, %v4007
    %v5712 = vpack.c.b16 %v4016, %v4008
    %v5713 = vpack.c.b16 %v4017, %v4009
    %v5714 = vpack.c.b16 %v4018, %v4010
    %v5715 = vpack.c.b16 %v4019, %v4011
    %v5716 = vpack.c.b16 %v4020, %v4012
    %v5717 = vpack.c.b16 %v4021, %v4013
    %v5718 = vpack.c.b16 %v4030, %v4022
    %v5719 = vpack.c.b16 %v4031, %v4023
    %v5720 = vpack.c.b16 %v4032, %v4024
    %v5721 = vpack.c.b16 %v4033, %v4025
    %v5722 = vpack.c.b16 %v4034, %v4026
    %v5723 = vpack.c.b16 %v4035, %v4027
    %v5724 = vpack.c.b16 %v4036, %v4028
    %v5725 = vpack.c.b16 %v4037, %v4029
    %v5726 = vpack.c.b16 %v4046, %v4038
    %v5727 = vpack.c.b16 %v4047, %v4039
    %v5728 = vpack.c.b16 %v4048, %v4040
    %v5729 = vpack.c.b16 %v4049, %v4041
    %v5730 = vpack.c.b16 %v4050, %v4042
    %v5731 = vpack.c.b16 %v4051, %v4043
    %v5732 = vpack.c.b16 %v4052, %v4044
    %v5733 = vpack.c.b16 %v4053, %v4045
    %v5734 = vpack.c.b16 %v4062, %v4054
    %v5735 = vpack.c.b16 %v4063, %v4055
    %v5736 = vpack.c.b16 %v4064, %v4056
    %v5737 = vpack.c.b16 %v4065, %v4057
    %v5738 = vpack.c.b16 %v4066, %v4058
    %v5739 = vpack.c.b16 %v4067, %v4059
    %v5740 = vpack.c.b16 %v4068, %v4060
    %v5741 = vpack.c.b16 %v4069, %v4061
    %v5742 = vpack.c.b16 %v4078, %v4070
    %v5743 = vpack.c.b16 %v4079, %v4071
    %v5744 = vpack.c.b16 %v4080, %v4072
    %v5745 = vpack.c.b16 %v4081, %v4073
    %v5746 = vpack.c.b16 %v4082, %v4074
    %v5747 = vpack.c.b16 %v4083, %v4075
    %v5748 = vpack.c.b16 %v4084, %v4076
    %v5749 = vpack.c.b16 %v4085, %v4077
    %v5750 = vpack.c.b16 %v4094, %v4086
    %v5751 = vpack.c.b16 %v4095, %v4087
    %v5752 = vpack.c.b16 %v4096, %v4088
    %v5753 = vpack.c.b16 %v4097, %v4089
    %v5754 = vpack.c.b16 %v4098, %v4090
    %v5755 = vpack.c.b16 %v4099, %v4091
    %v5756 = vpack.c.b16 %v4100, %v4092
    %v5757 = vpack.c.b16 %v4101, %v4093
    %v5758 = vpack.c.b16 %v4110, %v4102
    %v5759 = vpack.c.b16 %v4111, %v4103
    %v5760 = vpack.c.b16 %v4112, %v4104
    %v5761 = vpack.c.b16 %v4113, %v4105
    %v5762 = vpack.c.b16 %v4114, %v4106
    %v5763 = vpack.c.b16 %v4115, %v4107
    %v5764 = vpack.c.b16 %v4116, %v4108
    %v5765 = vpack.c.b16 %v4117, %v4109
    %v5766 = vpack.c.b16 %v4126, %v4118
    %v5767 = vpack.c.b16 %v4127, %v4119
    %v5768 = vpack.c.b16 %v4128, %v4120
    %v5769 = vpack.c.b16 %v4129, %v4121
    %v5770 = vpack.c.b16 %v4130, %v4122
    %v5771 = vpack.c.b16 %v4131, %v4123
    %v5772 = vpack.c.b16 %v4132, %v4124
    %v5773 = vpack.c.b16 %v4133, %v4125
    %v5774 = vpack.c.b16 %v4142, %v4134
    %v5775 = vpack.c.b16 %v4143, %v4135
    %v5776 = vpack.c.b16 %v4144, %v4136
    %v5777 = vpack.c.b16 %v4145, %v4137
    %v5778 = vpack.c.b16 %v4146, %v4138
    %v5779 = vpack.c.b16 %v4147, %v4139
    %v5780 = vpack.c.b16 %v4148, %v4140
    %v5781 = vpack.c.b16 %v4149, %v4141
    %v5782 = vpack.c.b16 %v4158, %v4150
    %v5783 = vpack.c.b16 %v4159, %v4151
    %v5784 = vpack.c.b16 %v4160, %v4152
    %v5785 = vpack.c.b16 %v4161, %v4153
    %v5786 = vpack.c.b16 %v4162, %v4154
    %v5787 = vpack.c.b16 %v4163, %v4155
    %v5788 = vpack.c.b16 %v4164, %v4156
    %v5789 = vpack.c.b16 %v4165, %v4157
    %v5790 = vpack.c.b16 %v4174, %v4166
    %v5791 = vpack.c.b16 %v4175, %v4167
    %v5792 = vpack.c.b16 %v4176, %v4168
    %v5793 = vpack.c.b16 %v4177, %v4169
    %v5794 = vpack.c.b16 %v4178, %v4170
    %v5795 = vpack.c.b16 %v4179, %v4171
    %v5796 = vpack.c.b16 %v4180, %v4172
    %v5797 = vpack.c.b16 %v4181, %v4173
    %v5798 = vpack.c.b16 %v4190, %v4182
    %v5799 = vpack.c.b16 %v4191, %v4183
    %v5800 = vpack.c.b16 %v4192, %v4184
    %v5801 = vpack.c.b16 %v4193, %v4185
    %v5802 = vpack.c.b16 %v4194, %v4186
    %v5803 = vpack.c.b16 %v4195, %v4187
    %v5804 = vpack.c.b16 %v4196, %v4188
    %v5805 = vpack.c.b16 %v4197, %v4189
    %v5806 = vpack.c.b16 %v4206, %v4198
    %v5807 = vpack.c.b16 %v4207, %v4199
    %v5808 = vpack.c.b16 %v4208, %v4200
    %v5809 = vpack.c.b16 %v4209, %v4201
    %v5810 = vpack.c.b16 %v4210, %v4202
    %v5811 = vpack.c.b16 %v4211, %v4203
    %v5812 = vpack.c.b16 %v4212, %v4204
    %v5813 = vpack.c.b16 %v4213, %v4205
    %v5814 = vpack.c.b16 %v4222, %v4214
    %v5815 = vpack.c.b16 %v4223, %v4215
    %v5816 = vpack.c.b16 %v4224, %v4216
    %v5817 = vpack.c.b16 %v4225, %v4217
    %v5818 = vpack.c.b16 %v4226, %v4218
    %v5819 = vpack.c.b16 %v4227, %v4219
    %v5820 = vpack.c.b16 %v4228, %v4220
    %v5821 = vpack.c.b16 %v4229, %v4221
    %v5822 = vpack.c.b16 %v4238, %v4230
    %v5823 = vpack.c.b16 %v4239, %v4231
    %v5824 = vpack.c.b16 %v4240, %v4232
    %v5825 = vpack.c.b16 %v4241, %v4233
    %v5826 = vpack.c.b16 %v4242, %v4234
    %v5827 = vpack.c.b16 %v4243, %v4235
    %v5828 = vpack.c.b16 %v4244, %v4236
    %v5829 = vpack.c.b16 %v4245, %v4237
    %v5830 = vpack.c.b16 %v4254, %v4246
    %v5831 = vpack.c.b16 %v4255, %v4247
    %v5832 = vpack.c.b16 %v4256, %v4248
    %v5833 = vpack.c.b16 %v4257, %v4249
    %v5834 = vpack.c.b16 %v4258, %v4250
    %v5835 = vpack.c.b16 %v4259, %v4251
    %v5836 = vpack.c.b16 %v4260, %v4252
    %v5837 = vpack.c.b16 %v4261, %v4253
    %v5838 = vpack.c.b16 %v4270, %v4262
    %v5839 = vpack.c.b16 %v4271, %v4263
    %v5840 = vpack.c.b16 %v4272, %v4264
    %v5841 = vpack.c.b16 %v4273, %v4265
    %v5842 = vpack.c.b16 %v4274, %v4266
    %v5843 = vpack.c.b16 %v4275, %v4267
    %v5844 = vpack.c.b16 %v4276, %v4268
    %v5845 = vpack.c.b16 %v4277, %v4269
    %v5846 = vpack.c.b16 %v4286, %v4278
    %v5847 = vpack.c.b16 %v4287, %v4279
    %v5848 = vpack.c.b16 %v4288, %v4280
    %v5849 = vpack.c.b16 %v4289, %v4281
    %v5850 = vpack.c.b16 %v4290, %v4282
    %v5851 = vpack.c.b16 %v4291, %v4283
    %v5852 = vpack.c.b16 %v4292, %v4284
    %v5853 = vpack.c.b16 %v4293, %v4285
    %v5854 = vpack.c.b16 %v4302, %v4294
    %v5855 = vpack.c.b16 %v4303, %v4295
    %v5856 = vpack.c.b16 %v4304, %v4296
    %v5857 = vpack.c.b16 %v4305, %v4297
    %v5858 = vpack.c.b16 %v4306, %v4298
    %v5859 = vpack.c.b16 %v4307, %v4299
    %v5860 = vpack.c.b16 %v4308, %v4300
    %v5861 = vpack.c.b16 %v4309, %v4301
    %v5862 = vpack.c.b16 %v4318, %v4310
    %v5863 = vpack.c.b16 %v4319, %v4311
    %v5864 = vpack.c.b16 %v4320, %v4312
    %v5865 = vpack.c.b16 %v4321, %v4313
    %v5866 = vpack.c.b16 %v4322, %v4314
    %v5867 = vpack.c.b16 %v4323, %v4315
    %v5868 = vpack.c.b16 %v4324, %v4316
    %v5869 = vpack.c.b16 %v4325, %v4317
    %v5870 = vpack.c.b16 %v4334, %v4326
    %v5871 = vpack.c.b16 %v4335, %v4327
    %v5872 = vpack.c.b16 %v4336, %v4328
    %v5873 = vpack.c.b16 %v4337, %v4329
    %v5874 = vpack.c.b16 %v4338, %v4330
    %v5875 = vpack.c.b16 %v4339, %v4331
    %v5876 = vpack.c.b16 %v4340, %v4332
    %v5877 = vpack.c.b16 %v4341, %v4333
    %v5878 = vpack.c.b16 %v4350, %v4342
    %v5879 = vpack.c.b16 %v4351, %v4343
    %v5880 = vpack.c.b16 %v4352, %v4344
    %v5881 = vpack.c.b16 %v4353, %v4345
    %v5882 = vpack.c.b16 %v4354, %v4346
    %v5883 = vpack.c.b16 %v4355, %v4347
    %v5884 = vpack.c.b16 %v4356, %v4348
    %v5885 = vpack.c.b16 %v4357, %v4349
    %v5886 = vpack.c.b16 %v4366, %v4358
    %v5887 = vpack.c.b16 %v4367, %v4359
    %v5888 = vpack.c.b16 %v4368, %v4360
    %v5889 = vpack.c.b16 %v4369, %v4361
    %v5890 = vpack.c.b16 %v4370, %v4362
    %v5891 = vpack.c.b16 %v4371, %v4363
    %v5892 = vpack.c.b16 %v4372, %v4364
    %v5893 = vpack.c.b16 %v4373, %v4365
    %v5894 = vpack.c.b16 %v4382, %v4374
    %v5895 = vpack.c.b16 %v4383, %v4375
    %v5896 = vpack.c.b16 %v4384, %v4376
    %v5897 = vpack.c.b16 %v4385, %v4377
    %v5898 = vpack.c.b16 %v4386, %v4378
    %v5899 = vpack.c.b16 %v4387, %v4379
    %v5900 = vpack.c.b16 %v4388, %v4380
    %v5901 = vpack.c.b16 %v4389, %v4381
    %v5902 = vpack.c.b16 %v4398, %v4390
    %v5903 = vpack.c.b16 %v4399, %v4391
    %v5904 = vpack.c.b16 %v4400, %v4392
    %v5905 = vpack.c.b16 %v4401, %v4393
    %v5906 = vpack.c.b16 %v4402, %v4394
    %v5907 = vpack.c.b16 %v4403, %v4395
    %v5908 = vpack.c.b16 %v4404, %v4396
    %v5909 = vpack.c.b16 %v4405, %v4397
    %v5910 = vpack.c.b16 %v4414, %v4406
    %v5911 = vpack.c.b16 %v4415, %v4407
    %v5912 = vpack.c.b16 %v4416, %v4408
    %v5913 = vpack.c.b16 %v4417, %v4409
    %v5914 = vpack.c.b16 %v4418, %v4410
    %v5915 = vpack.c.b16 %v4419, %v4411
    %v5916 = vpack.c.b16 %v4420, %v4412
    %v5917 = vpack.c.b16 %v4421, %v4413
    %v5918 = vpack.c.b16 %v4430, %v4422
    %v5919 = vpack.c.b16 %v4431, %v4423
    %v5920 = vpack.c.b16 %v4432, %v4424
    %v5921 = vpack.c.b16 %v4433, %v4425
    %v5922 = vpack.c.b16 %v4434, %v4426
    %v5923 = vpack.c.b16 %v4435, %v4427
    %v5924 = vpack.c.b16 %v4436, %v4428
    %v5925 = vpack.c.b16 %v4437, %v4429
    %v5926 = vpack.c.b16 %v4446, %v4438
    %v5927 = vpack.c.b16 %v4447, %v4439
    %v5928 = vpack.c.b16 %v4448, %v4440
    %v5929 = vpack.c.b16 %v4449, %v4441
    %v5930 = vpack.c.b16 %v4450, %v4442
    %v5931 = vpack.c.b16 %v4451, %v4443
    %v5932 = vpack.c.b16 %v4452, %v4444
    %v5933 = vpack.c.b16 %v4453, %v4445
    %v5934 = vpack.c.b16 %v4462, %v4454
    %v5935 = vpack.c.b16 %v4463, %v4455
    %v5936 = vpack.c.b16 %v4464, %v4456
    %v5937 = vpack.c.b16 %v4465, %v4457
    %v5938 = vpack.c.b16 %v4466, %v4458
    %v5939 = vpack.c.b16 %v4467, %v4459
    %v5940 = vpack.c.b16 %v4468, %v4460
    %v5941 = vpack.c.b16 %v4469, %v4461
    %v5942 = vpack.c.b16 %v4478, %v4470
    %v5943 = vpack.c.b16 %v4479, %v4471
    %v5944 = vpack.c.b16 %v4480, %v4472
    %v5945 = vpack.c.b16 %v4481, %v4473
    %v5946 = vpack.c.b16 %v4482, %v4474
    %v5947 = vpack.c.b16 %v4483, %v4475
    %v5948 = vpack.c.b16 %v4484, %v4476
    %v5949 = vpack.c.b16 %v4485, %v4477
    %v5950 = vpack.c.b16 %v4494, %v4486
    %v5951 = vpack.c.b16 %v4495, %v4487
    %v5952 = vpack.c.b16 %v4496, %v4488
    %v5953 = vpack.c.b16 %v4497, %v4489
    %v5954 = vpack.c.b16 %v4498, %v4490
    %v5955 = vpack.c.b16 %v4499, %v4491
    %v5956 = vpack.c.b16 %v4500, %v4492
    %v5957 = vpack.c.b16 %v4501, %v4493
    %v5958 = vpack.c.b16 %v4510, %v4502
    %v5959 = vpack.c.b16 %v4511, %v4503
    %v5960 = vpack.c.b16 %v4512, %v4504
    %v5961 = vpack.c.b16 %v4513, %v4505
    %v5962 = vpack.c.b16 %v4514, %v4506
    %v5963 = vpack.c.b16 %v4515, %v4507
    %v5964 = vpack.c.b16 %v4516, %v4508
    %v5965 = vpack.c.b16 %v4517, %v4509
    %v5966 = vpack.c.b16 %v4526, %v4518
    %v5967 = vpack.c.b16 %v4527, %v4519
    %v5968 = vpack.c.b16 %v4528, %v4520
    %v5969 = vpack.c.b16 %v4529, %v4521
    %v5970 = vpack.c.b16 %v4530, %v4522
    %v5971 = vpack.c.b16 %v4531, %v4523
    %v5972 = vpack.c.b16 %v4532, %v4524
    %v5973 = vpack.c.b16 %v4533, %v4525
    %v5974 = vpack.c.b16 %v4542, %v4534
    %v5975 = vpack.c.b16 %v4543, %v4535
    %v5976 = vpack.c.b16 %v4544, %v4536
    %v5977 = vpack.c.b16 %v4545, %v4537
    %v5978 = vpack.c.b16 %v4546, %v4538
    %v5979 = vpack.c.b16 %v4547, %v4539
    %v5980 = vpack.c.b16 %v4548, %v4540
    %v5981 = vpack.c.b16 %v4549, %v4541
    %v5982 = vpack.c.b16 %v4558, %v4550
    %v5983 = vpack.c.b16 %v4559, %v4551
    %v5984 = vpack.c.b16 %v4560, %v4552
    %v5985 = vpack.c.b16 %v4561, %v4553
    %v5986 = vpack.c.b16 %v4562, %v4554
    %v5987 = vpack.c.b16 %v4563, %v4555
    %v5988 = vpack.c.b16 %v4564, %v4556
    %v5989 = vpack.c.b16 %v4565, %v4557
    %v5990 = vpack.c.b16 %v4574, %v4566
    %v5991 = vpack.c.b16 %v4575, %v4567
    %v5992 = vpack.c.b16 %v4576, %v4568
    %v5993 = vpack.c.b16 %v4577, %v4569
    %v5994 = vpack.c.b16 %v4578, %v4570
    %v5995 = vpack.c.b16 %v4579, %v4571
    %v5996 = vpack.c.b16 %v4580, %v4572
    %v5997 = vpack.c.b16 %v4581, %v4573
    %v5998 = vpack.c.b16 %v4590, %v4582
    %v5999 = vpack.c.b16 %v4591, %v4583
    %v6000 = vpack.c.b16 %v4592, %v4584
    %v6001 = vpack.c.b16 %v4593, %v4585
    %v6002 = vpack.c.b16 %v4594, %v4586
    %v6003 = vpack.c.b16 %v4595, %v4587
    %v6004 = vpack.c.b16 %v4596, %v4588
    %v6005 = vpack.c.b16 %v4597, %v4589
    %v6006 = vpack.c.b16 %v4606, %v4598
    %v6007 = vpack.c.b16 %v4607, %v4599
    %v6008 = vpack.c.b16 %v4608, %v4600
    %v6009 = vpack.c.b16 %v4609, %v4601
    %v6010 = vpack.c.b16 %v4610, %v4602
    %v6011 = vpack.c.b16 %v4611, %v4603
    %v6012 = vpack.c.b16 %v4612, %v4604
    %v6013 = vpack.c.b16 %v4613, %v4605
    %v6014 = vpack.c.b16 %v4622, %v4614
    %v6015 = vpack.c.b16 %v4623, %v4615
    %v6016 = vpack.c.b16 %v4624, %v4616
    %v6017 = vpack.c.b16 %v4625, %v4617
    %v6018 = vpack.c.b16 %v4626, %v4618
    %v6019 = vpack.c.b16 %v4627, %v4619
    %v6020 = vpack.c.b16 %v4628, %v4620
    %v6021 = vpack.c.b16 %v4629, %v4621
    %v6022 = vpack.c.b16 %v4638, %v4630
    %v6023 = vpack.c.b16 %v4639, %v4631
    %v6024 = vpack.c.b16 %v4640, %v4632
    %v6025 = vpack.c.b16 %v4641, %v4633
    %v6026 = vpack.c.b16 %v4642, %v4634
    %v6027 = vpack.c.b16 %v4643, %v4635
    %v6028 = vpack.c.b16 %v4644, %v4636
    %v6029 = vpack.c.b16 %v4645, %v4637
    %v6030 = vpack.c.b16 %v4654, %v4646
    %v6031 = vpack.c.b16 %v4655, %v4647
    %v6032 = vpack.c.b16 %v4656, %v4648
    %v6033 = vpack.c.b16 %v4657, %v4649
    %v6034 = vpack.c.b16 %v4658, %v4650
    %v6035 = vpack.c.b16 %v4659, %v4651
    %v6036 = vpack.c.b16 %v4660, %v4652
    %v6037 = vpack.c.b16 %v4661, %v4653
    %v6038 = vpack.c.b16 %v4670, %v4662
    %v6039 = vpack.c.b16 %v4671, %v4663
    %v6040 = vpack.c.b16 %v4672, %v4664
    %v6041 = vpack.c.b16 %v4673, %v4665
    %v6042 = vpack.c.b16 %v4674, %v4666
    %v6043 = vpack.c.b16 %v4675, %v4667
    %v6044 = vpack.c.b16 %v4676, %v4668
    %v6045 = vpack.c.b16 %v4677, %v4669
    %v6046 = vpack.c.b16 %v4686, %v4678
    %v6047 = vpack.c.b16 %v4687, %v4679
    %v6048 = vpack.c.b16 %v4688, %v4680
    %v6049 = vpack.c.b16 %v4689, %v4681
    %v6050 = vpack.c.b16 %v4690, %v4682
    %v6051 = vpack.c.b16 %v4691, %v4683
    %v6052 = vpack.c.b16 %v4692, %v4684
    %v6053 = vpack.c.b16 %v4693, %v4685
    %v6054 = vpack.c.b16 %v4702, %v4694
    %v6055 = vpack.c.b16 %v4703, %v4695
    %v6056 = vpack.c.b16 %v4704, %v4696
    %v6057 = vpack.c.b16 %v4705, %v4697
    %v6058 = vpack.c.b16 %v4706, %v4698
    %v6059 = vpack.c.b16 %v4707, %v4699
    %v6060 = vpack.c.b16 %v4708, %v4700
    %v6061 = vpack.c.b16 %v4709, %v4701
    %v6062 = vpack.c.b16 %v4718, %v4710
    %v6063 = vpack.c.b16 %v4719, %v4711
    %v6064 = vpack.c.b16 %v4720, %v4712
    %v6065 = vpack.c.b16 %v4721, %v4713
    %v6066 = vpack.c.b16 %v4722, %v4714
    %v6067 = vpack.c.b16 %v4723, %v4715
    %v6068 = vpack.c.b16 %v4724, %v4716
    %v6069 = vpack.c.b16 %v4725, %v4717
    %v6070 = vpack.c.b16 %v4734, %v4726
    %v6071 = vpack.c.b16 %v4735, %v4727
    %v6072 = vpack.c.b16 %v4736, %v4728
    %v6073 = vpack.c.b16 %v4737, %v4729
    %v6074 = vpack.c.b16 %v4738, %v4730
    %v6075 = vpack.c.b16 %v4739, %v4731
    %v6076 = vpack.c.b16 %v4740, %v4732
    %v6077 = vpack.c.b16 %v4741, %v4733
    %v6078 = vpack.c.b16 %v4750, %v4742
    %v6079 = vpack.c.b16 %v4751, %v4743
    %v6080 = vpack.c.b16 %v4752, %v4744
    %v6081 = vpack.c.b16 %v4753, %v4745
    %v6082 = vpack.c.b16 %v4754, %v4746
    %v6083 = vpack.c.b16 %v4755, %v4747
    %v6084 = vpack.c.b16 %v4756, %v4748
    %v6085 = vpack.c.b16 %v4757, %v4749
    %v6086 = vpack.c.b16 %v4766, %v4758
    %v6087 = vpack.c.b16 %v4767, %v4759
    %v6088 = vpack.c.b16 %v4768, %v4760
    %v6089 = vpack.c.b16 %v4769, %v4761
    %v6090 = vpack.c.b16 %v4770, %v4762
    %v6091 = vpack.c.b16 %v4771, %v4763
    %v6092 = vpack.c.b16 %v4772, %v4764
    %v6093 = vpack.c.b16 %v4773, %v4765
    %v6094 = vpack.c.b16 %v4782, %v4774
    %v6095 = vpack.c.b16 %v4783, %v4775
    %v6096 = vpack.c.b16 %v4784, %v4776
    %v6097 = vpack.c.b16 %v4785, %v4777
    %v6098 = vpack.c.b16 %v4786, %v4778
    %v6099 = vpack.c.b16 %v4787, %v4779
    %v6100 = vpack.c.b16 %v4788, %v4780
    %v6101 = vpack.c.b16 %v4789, %v4781
    %v6102 = vpack.c.b16 %v4798, %v4790
    %v6103 = vpack.c.b16 %v4799, %v4791
    %v6104 = vpack.c.b16 %v4800, %v4792
    %v6105 = vpack.c.b16 %v4801, %v4793
    %v6106 = vpack.c.b16 %v4802, %v4794
    %v6107 = vpack.c.b16 %v4803, %v4795
    %v6108 = vpack.c.b16 %v4804, %v4796
    %v6109 = vpack.c.b16 %v4805, %v4797
    %v6110 = vpack.c.b16 %v4814, %v4806
    %v6111 = vpack.c.b16 %v4815, %v4807
    %v6112 = vpack.c.b16 %v4816, %v4808
    %v6113 = vpack.c.b16 %v4817, %v4809
    %v6114 = vpack.c.b16 %v4818, %v4810
    %v6115 = vpack.c.b16 %v4819, %v4811
    %v6116 = vpack.c.b16 %v4820, %v4812
    %v6117 = vpack.c.b16 %v4821, %v4813
    %v6118 = vpack.c.b16 %v4830, %v4822
    %v6119 = vpack.c.b16 %v4831, %v4823
    %v6120 = vpack.c.b16 %v4832, %v4824
    %v6121 = vpack.c.b16 %v4833, %v4825
    %v6122 = vpack.c.b16 %v4834, %v4826
    %v6123 = vpack.c.b16 %v4835, %v4827
    %v6124 = vpack.c.b16 %v4836, %v4828
    %v6125 = vpack.c.b16 %v4837, %v4829
    %v6126 = vpack.c.b16 %v4846, %v4838
    %v6127 = vpack.c.b16 %v4847, %v4839
    %v6128 = vpack.c.b16 %v4848, %v4840
    %v6129 = vpack.c.b16 %v4849, %v4841
    %v6130 = vpack.c.b16 %v4850, %v4842
    %v6131 = vpack.c.b16 %v4851, %v4843
    %v6132 = vpack.c.b16 %v4852, %v4844
    %v6133 = vpack.c.b16 %v4853, %v4845
    %v6134 = vpack.c.b16 %v4862, %v4854
    %v6135 = vpack.c.b16 %v4863, %v4855
    %v6136 = vpack.c.b16 %v4864, %v4856
    %v6137 = vpack.c.b16 %v4865, %v4857
    %v6138 = vpack.c.b16 %v4866, %v4858
    %v6139 = vpack.c.b16 %v4867, %v4859
    %v6140 = vpack.c.b16 %v4868, %v4860
    %v6141 = vpack.c.b16 %v4869, %v4861
    %v6142 = vpack.c.b16 %v4878, %v4870
    %v6143 = vpack.c.b16 %v4879, %v4871
    %v6144 = vpack.c.b16 %v4880, %v4872
    %v6145 = vpack.c.b16 %v4881, %v4873
    %v6146 = vpack.c.b16 %v4882, %v4874
    %v6147 = vpack.c.b16 %v4883, %v4875
    %v6148 = vpack.c.b16 %v4884, %v4876
    %v6149 = vpack.c.b16 %v4885, %v4877
    %v6150 = vpack.c.b16 %v4894, %v4886
    %v6151 = vpack.c.b16 %v4895, %v4887
    %v6152 = vpack.c.b16 %v4896, %v4888
    %v6153 = vpack.c.b16 %v4897, %v4889
    %v6154 = vpack.c.b16 %v4898, %v4890
    %v6155 = vpack.c.b16 %v4899, %v4891
    %v6156 = vpack.c.b16 %v4900, %v4892
    %v6157 = vpack.c.b16 %v4901, %v4893
    %v6158 = vpack.c.b16 %v4910, %v4902
    %v6159 = vpack.c.b16 %v4911, %v4903
    %v6160 = vpack.c.b16 %v4912, %v4904
    %v6161 = vpack.c.b16 %v4913, %v4905
    %v6162 = vpack.c.b16 %v4914, %v4906
    %v6163 = vpack.c.b16 %v4915, %v4907
    %v6164 = vpack.c.b16 %v4916, %v4908
    %v6165 = vpack.c.b16 %v4917, %v4909
    %v6166 = vpack.c.b16 %v4926, %v4918
    %v6167 = vpack.c.b16 %v4927, %v4919
    %v6168 = vpack.c.b16 %v4928, %v4920
    %v6169 = vpack.c.b16 %v4929, %v4921
    %v6170 = vpack.c.b16 %v4930, %v4922
    %v6171 = vpack.c.b16 %v4931, %v4923
    %v6172 = vpack.c.b16 %v4932, %v4924
    %v6173 = vpack.c.b16 %v4933, %v4925
    %v6174 = vpack.c.b16 %v4942, %v4934
    %v6175 = vpack.c.b16 %v4943, %v4935
    %v6176 = vpack.c.b16 %v4944, %v4936
    %v6177 = vpack.c.b16 %v4945, %v4937
    %v6178 = vpack.c.b16 %v4946, %v4938
    %v6179 = vpack.c.b16 %v4947, %v4939
    %v6180 = vpack.c.b16 %v4948, %v4940
    %v6181 = vpack.c.b16 %v4949, %v4941
    %v6182 = vpack.c.b16 %v4958, %v4950
    %v6183 = vpack.c.b16 %v4959, %v4951
    %v6184 = vpack.c.b16 %v4960, %v4952
    %v6185 = vpack.c.b16 %v4961, %v4953
    %v6186 = vpack.c.b16 %v4962, %v4954
    %v6187 = vpack.c.b16 %v4963, %v4955
    %v6188 = vpack.c.b16 %v4964, %v4956
    %v6189 = vpack.c.b16 %v4965, %v4957
    %v6190 = vpack.c.b16 %v4974, %v4966
    %v6191 = vpack.c.b16 %v4975, %v4967
    %v6192 = vpack.c.b16 %v4976, %v4968
    %v6193 = vpack.c.b16 %v4977, %v4969
    %v6194 = vpack.c.b16 %v4978, %v4970
    %v6195 = vpack.c.b16 %v4979, %v4971
    %v6196 = vpack.c.b16 %v4980, %v4972
    %v6197 = vpack.c.b16 %v4981, %v4973
    %v6198 = vpack.c.b16 %v4990, %v4982
    %v6199 = vpack.c.b16 %v4991, %v4983
    %v6200 = vpack.c.b16 %v4992, %v4984
    %v6201 = vpack.c.b16 %v4993, %v4985
    %v6202 = vpack.c.b16 %v4994, %v4986
    %v6203 = vpack.c.b16 %v4995, %v4987
    %v6204 = vpack.c.b16 %v4996, %v4988
    %v6205 = vpack.c.b16 %v4997, %v4989
    %v6206 = vpack.c.b16 %v5006, %v4998
    %v6207 = vpack.c.b16 %v5007, %v4999
    %v6208 = vpack.c.b16 %v5008, %v5000
    %v6209 = vpack.c.b16 %v5009, %v5001
    %v6210 = vpack.c.b16 %v5010, %v5002
    %v6211 = vpack.c.b16 %v5011, %v5003
    %v6212 = vpack.c.b16 %v5012, %v5004
    %v6213 = vpack.c.b16 %v5013, %v5005
    %v6214 = vpack.c.b16 %v5022, %v5014
    %v6215 = vpack.c.b16 %v5023, %v5015
    %v6216 = vpack.c.b16 %v5024, %v5016
    %v6217 = vpack.c.b16 %v5025, %v5017
    %v6218 = vpack.c.b16 %v5026, %v5018
    %v6219 = vpack.c.b16 %v5027, %v5019
    %v6220 = vpack.c.b16 %v5028, %v5020
    %v6221 = vpack.c.b16 %v5029, %v5021
    %v6222 = vpack.c.b16 %v5038, %v5030
    %v6223 = vpack.c.b16 %v5039, %v5031
    %v6224 = vpack.c.b16 %v5040, %v5032
    %v6225 = vpack.c.b16 %v5041, %v5033
    %v6226 = vpack.c.b16 %v5042, %v5034
    %v6227 = vpack.c.b16 %v5043, %v5035
    %v6228 = vpack.c.b16 %v5044, %v5036
    %v6229 = vpack.c.b16 %v5045, %v5037
    %v6230 = vpack.c.b16 %v5054, %v5046
    %v6231 = vpack.c.b16 %v5055, %v5047
    %v6232 = vpack.c.b16 %v5056, %v5048
    %v6233 = vpack.c.b16 %v5057, %v5049
    %v6234 = vpack.c.b16 %v5058, %v5050
    %v6235 = vpack.c.b16 %v5059, %v5051
    %v6236 = vpack.c.b16 %v5060, %v5052
    %v6237 = vpack.c.b16 %v5061, %v5053
    %v6238 = vpack.c.b16 %v5070, %v5062
    %v6239 = vpack.c.b16 %v5071, %v5063
    %v6240 = vpack.c.b16 %v5072, %v5064
    %v6241 = vpack.c.b16 %v5073, %v5065
    %v6242 = vpack.c.b16 %v5074, %v5066
    %v6243 = vpack.c.b16 %v5075, %v5067
    %v6244 = vpack.c.b16 %v5076, %v5068
    %v6245 = vpack.c.b16 %v5077, %v5069
    %v6246 = vpack.c.b16 %v5086, %v5078
    %v6247 = vpack.c.b16 %v5087, %v5079
    %v6248 = vpack.c.b16 %v5088, %v5080
    %v6249 = vpack.c.b16 %v5089, %v5081
    %v6250 = vpack.c.b16 %v5090, %v5082
    %v6251 = vpack.c.b16 %v5091, %v5083
    %v6252 = vpack.c.b16 %v5092, %v5084
    %v6253 = vpack.c.b16 %v5093, %v5085
    %v6254 = vpack.c.b16 %v5102, %v5094
    %v6255 = vpack.c.b16 %v5103, %v5095
    %v6256 = vpack.c.b16 %v5104, %v5096
    %v6257 = vpack.c.b16 %v5105, %v5097
    %v6258 = vpack.c.b16 %v5106, %v5098
    %v6259 = vpack.c.b16 %v5107, %v5099
    %v6260 = vpack.c.b16 %v5108, %v5100
    %v6261 = vpack.c.b16 %v5109, %v5101
    %7414 = vmatpush.bf16.msra.mxu0 %v5166
    %7415 = vmatpush.bf16.msra.mxu0 %v5158
    %7416 = vmatpush.bf16.msra.mxu0 %v5150
    %7417 = vmatpush.bf16.msra.mxu0 %v5142
    %7418 = vmatpush.bf16.msra.mxu0 %v5134
    %7419 = vmatpush.bf16.msra.mxu0 %v5126
    %7420 = vmatpush.bf16.msra.mxu0 %v5118
    %7421 = vmatpush.bf16.msra.mxu0 %v5110
    %7422 = vmatmul.bf16.gmra.mxu0 %v484
    %v7423 = vpop.f32.mrf.mxu0
    %v7424 = vadd.f32 0.0, %v7423
    %v7425 = vpop.f32.mrf.mxu0
    %v7426 = vadd.f32 0.0, %v7425
    %7427 = vdwg.mxu0
    %7428 = vmatpush.bf16.msra.mxu0 %v5230
    %7429 = vmatpush.bf16.msra.mxu0 %v5222
    %7430 = vmatpush.bf16.msra.mxu0 %v5214
    %7431 = vmatpush.bf16.msra.mxu0 %v5206
    %7432 = vmatpush.bf16.msra.mxu0 %v5198
    %7433 = vmatpush.bf16.msra.mxu0 %v5190
    %7434 = vmatpush.bf16.msra.mxu0 %v5182
    %7435 = vmatpush.bf16.msra.mxu0 %v5174
    %7436 = vmatmul.bf16.gmra.mxu0 %v485
    %v7437 = vpop.f32.mrf.mxu0
    %v7438 = vadd.f32 %v7424, %v7437
    %v7439 = vpop.f32.mrf.mxu0
    %v7440 = vadd.f32 %v7426, %v7439
    %7441 = vdwg.mxu0
    %7442 = vmatpush.bf16.msra.mxu0 %v5294
    %7443 = vmatpush.bf16.msra.mxu0 %v5286
    %7444 = vmatpush.bf16.msra.mxu0 %v5278
    %7445 = vmatpush.bf16.msra.mxu0 %v5270
    %7446 = vmatpush.bf16.msra.mxu0 %v5262
    %7447 = vmatpush.bf16.msra.mxu0 %v5254
    %7448 = vmatpush.bf16.msra.mxu0 %v5246
    %7449 = vmatpush.bf16.msra.mxu0 %v5238
    %7450 = vmatmul.bf16.gmra.mxu0 %v486
    %v7451 = vpop.f32.mrf.mxu0
    %v7452 = vadd.f32 %v7438, %v7451
    %v7453 = vpop.f32.mrf.mxu0
    %v7454 = vadd.f32 %v7440, %v7453
    %7455 = vdwg.mxu0
    %7456 = vmatpush.bf16.msra.mxu0 %v5358
    %7457 = vmatpush.bf16.msra.mxu0 %v5350
    %7458 = vmatpush.bf16.msra.mxu0 %v5342
    %7459 = vmatpush.bf16.msra.mxu0 %v5334
    %7460 = vmatpush.bf16.msra.mxu0 %v5326
    %7461 = vmatpush.bf16.msra.mxu0 %v5318
    %7462 = vmatpush.bf16.msra.mxu0 %v5310
    %7463 = vmatpush.bf16.msra.mxu0 %v5302
    %7464 = vmatmul.bf16.gmra.mxu0 %v487
    %v7465 = vpop.f32.mrf.mxu0
    %v7466 = vadd.f32 %v7452, %v7465
    %v7467 = vpop.f32.mrf.mxu0
    %v7468 = vadd.f32 %v7454, %v7467
    %7469 = vdwg.mxu0
    %7470 = vmatpush.bf16.msra.mxu0 %v5422
    %7471 = vmatpush.bf16.msra.mxu0 %v5414
    %7472 = vmatpush.bf16.msra.mxu0 %v5406
    %7473 = vmatpush.bf16.msra.mxu0 %v5398
    %7474 = vmatpush.bf16.msra.mxu0 %v5390
    %7475 = vmatpush.bf16.msra.mxu0 %v5382
    %7476 = vmatpush.bf16.msra.mxu0 %v5374
    %7477 = vmatpush.bf16.msra.mxu0 %v5366
    %7478 = vmatmul.bf16.gmra.mxu0 %v488
    %v7479 = vpop.f32.mrf.mxu0
    %v7480 = vadd.f32 %v7466, %v7479
    %v7481 = vpop.f32.mrf.mxu0
    %v7482 = vadd.f32 %v7468, %v7481
    %7483 = vdwg.mxu0
    %7484 = vmatpush.bf16.msra.mxu0 %v5486
    %7485 = vmatpush.bf16.msra.mxu0 %v5478
    %7486 = vmatpush.bf16.msra.mxu0 %v5470
    %7487 = vmatpush.bf16.msra.mxu0 %v5462
    %7488 = vmatpush.bf16.msra.mxu0 %v5454
    %7489 = vmatpush.bf16.msra.mxu0 %v5446
    %7490 = vmatpush.bf16.msra.mxu0 %v5438
    %7491 = vmatpush.bf16.msra.mxu0 %v5430
    %7492 = vmatmul.bf16.gmra.mxu0 %v489
    %v7493 = vpop.f32.mrf.mxu0
    %v7494 = vadd.f32 %v7480, %v7493
    %v7495 = vpop.f32.mrf.mxu0
    %v7496 = vadd.f32 %v7482, %v7495
    %7497 = vdwg.mxu0
    %7498 = vmatpush.bf16.msra.mxu0 %v5550
    %7499 = vmatpush.bf16.msra.mxu0 %v5542
    %7500 = vmatpush.bf16.msra.mxu0 %v5534
    %7501 = vmatpush.bf16.msra.mxu0 %v5526
    %7502 = vmatpush.bf16.msra.mxu0 %v5518
    %7503 = vmatpush.bf16.msra.mxu0 %v5510
    %7504 = vmatpush.bf16.msra.mxu0 %v5502
    %7505 = vmatpush.bf16.msra.mxu0 %v5494
    %7506 = vmatmul.bf16.gmra.mxu0 %v490
    %v7507 = vpop.f32.mrf.mxu0
    %v7508 = vadd.f32 %v7494, %v7507
    %v7509 = vpop.f32.mrf.mxu0
    %v7510 = vadd.f32 %v7496, %v7509
    %7511 = vdwg.mxu0
    %7512 = vmatpush.bf16.msra.mxu0 %v5614
    %7513 = vmatpush.bf16.msra.mxu0 %v5606
    %7514 = vmatpush.bf16.msra.mxu0 %v5598
    %7515 = vmatpush.bf16.msra.mxu0 %v5590
    %7516 = vmatpush.bf16.msra.mxu0 %v5582
    %7517 = vmatpush.bf16.msra.mxu0 %v5574
    %7518 = vmatpush.bf16.msra.mxu0 %v5566
    %7519 = vmatpush.bf16.msra.mxu0 %v5558
    %7520 = vmatmul.bf16.gmra.mxu0 %v491
    %v7521 = vpop.f32.mrf.mxu0
    %v7522 = vadd.f32 %v7508, %v7521
    %v7523 = vpop.f32.mrf.mxu0
    %v7524 = vadd.f32 %v7510, %v7523
    %7525 = vdwg.mxu0
    %7526 = vmatpush.bf16.msra.mxu0 %v5678
    %7527 = vmatpush.bf16.msra.mxu0 %v5670
    %7528 = vmatpush.bf16.msra.mxu0 %v5662
    %7529 = vmatpush.bf16.msra.mxu0 %v5654
    %7530 = vmatpush.bf16.msra.mxu0 %v5646
    %7531 = vmatpush.bf16.msra.mxu0 %v5638
    %7532 = vmatpush.bf16.msra.mxu0 %v5630
    %7533 = vmatpush.bf16.msra.mxu0 %v5622
    %7534 = vmatmul.bf16.gmra.mxu0 %v492
    %v7535 = vpop.f32.mrf.mxu0
    %v7536 = vadd.f32 %v7522, %v7535
    %v7537 = vpop.f32.mrf.mxu0
    %v7538 = vadd.f32 %v7524, %v7537
    %7539 = vdwg.mxu0
    %7540 = vmatpush.bf16.msra.mxu0 %v5742
    %7541 = vmatpush.bf16.msra.mxu0 %v5734
    %7542 = vmatpush.bf16.msra.mxu0 %v5726
    %7543 = vmatpush.bf16.msra.mxu0 %v5718
    %7544 = vmatpush.bf16.msra.mxu0 %v5710
    %7545 = vmatpush.bf16.msra.mxu0 %v5702
    %7546 = vmatpush.bf16.msra.mxu0 %v5694
    %7547 = vmatpush.bf16.msra.mxu0 %v5686
    %7548 = vmatmul.bf16.gmra.mxu0 %v493
    %v7549 = vpop.f32.mrf.mxu0
    %v7550 = vadd.f32 %v7536, %v7549
    %v7551 = vpop.f32.mrf.mxu0
    %v7552 = vadd.f32 %v7538, %v7551
    %7553 = vdwg.mxu0
    %7554 = vmatpush.bf16.msra.mxu0 %v5806
    %7555 = vmatpush.bf16.msra.mxu0 %v5798
    %7556 = vmatpush.bf16.msra.mxu0 %v5790
    %7557 = vmatpush.bf16.msra.mxu0 %v5782
    %7558 = vmatpush.bf16.msra.mxu0 %v5774
    %7559 = vmatpush.bf16.msra.mxu0 %v5766
    %7560 = vmatpush.bf16.msra.mxu0 %v5758
    %7561 = vmatpush.bf16.msra.mxu0 %v5750
    %7562 = vmatmul.bf16.gmra.mxu0 %v494
    %v7563 = vpop.f32.mrf.mxu0
    %v7564 = vadd.f32 %v7550, %v7563
    %v7565 = vpop.f32.mrf.mxu0
    %v7566 = vadd.f32 %v7552, %v7565
    %7567 = vdwg.mxu0
    %7568 = vmatpush.bf16.msra.mxu0 %v5870
    %7569 = vmatpush.bf16.msra.mxu0 %v5862
    %7570 = vmatpush.bf16.msra.mxu0 %v5854
    %7571 = vmatpush.bf16.msra.mxu0 %v5846
    %7572 = vmatpush.bf16.msra.mxu0 %v5838
    %7573 = vmatpush.bf16.msra.mxu0 %v5830
    %7574 = vmatpush.bf16.msra.mxu0 %v5822
    %7575 = vmatpush.bf16.msra.mxu0 %v5814
    %7576 = vmatmul.bf16.gmra.mxu0 %v495
    %v7577 = vpop.f32.mrf.mxu0
    %v7578 = vadd.f32 %v7564, %v7577
    %v7579 = vpop.f32.mrf.mxu0
    %v7580 = vadd.f32 %v7566, %v7579
    %7581 = vdwg.mxu0
    %7582 = vmatpush.bf16.msra.mxu0 %v5934
    %7583 = vmatpush.bf16.msra.mxu0 %v5926
    %7584 = vmatpush.bf16.msra.mxu0 %v5918
    %7585 = vmatpush.bf16.msra.mxu0 %v5910
    %7586 = vmatpush.bf16.msra.mxu0 %v5902
    %7587 = vmatpush.bf16.msra.mxu0 %v5894
    %7588 = vmatpush.bf16.msra.mxu0 %v5886
    %7589 = vmatpush.bf16.msra.mxu0 %v5878
    %7590 = vmatmul.bf16.gmra.mxu0 %v496
    %v7591 = vpop.f32.mrf.mxu0
    %v7592 = vadd.f32 %v7578, %v7591
    %v7593 = vpop.f32.mrf.mxu0
    %v7594 = vadd.f32 %v7580, %v7593
    %7595 = vdwg.mxu0
    %7596 = vmatpush.bf16.msra.mxu0 %v5998
    %7597 = vmatpush.bf16.msra.mxu0 %v5990
    %7598 = vmatpush.bf16.msra.mxu0 %v5982
    %7599 = vmatpush.bf16.msra.mxu0 %v5974
    %7600 = vmatpush.bf16.msra.mxu0 %v5966
    %7601 = vmatpush.bf16.msra.mxu0 %v5958
    %7602 = vmatpush.bf16.msra.mxu0 %v5950
    %7603 = vmatpush.bf16.msra.mxu0 %v5942
    %7604 = vmatmul.bf16.gmra.mxu0 %v497
    %v7605 = vpop.f32.mrf.mxu0
    %v7606 = vadd.f32 %v7592, %v7605
    %v7607 = vpop.f32.mrf.mxu0
    %v7608 = vadd.f32 %v7594, %v7607
    %7609 = vdwg.mxu0
    %7610 = vmatpush.bf16.msra.mxu0 %v6062
    %7611 = vmatpush.bf16.msra.mxu0 %v6054
    %7612 = vmatpush.bf16.msra.mxu0 %v6046
    %7613 = vmatpush.bf16.msra.mxu0 %v6038
    %7614 = vmatpush.bf16.msra.mxu0 %v6030
    %7615 = vmatpush.bf16.msra.mxu0 %v6022
    %7616 = vmatpush.bf16.msra.mxu0 %v6014
    %7617 = vmatpush.bf16.msra.mxu0 %v6006
    %7618 = vmatmul.bf16.gmra.mxu0 %v498
    %v7619 = vpop.f32.mrf.mxu0
    %v7620 = vadd.f32 %v7606, %v7619
    %v7621 = vpop.f32.mrf.mxu0
    %v7622 = vadd.f32 %v7608, %v7621
    %7623 = vdwg.mxu0
    %7624 = vmatpush.bf16.msra.mxu0 %v6126
    %7625 = vmatpush.bf16.msra.mxu0 %v6118
    %7626 = vmatpush.bf16.msra.mxu0 %v6110
    %7627 = vmatpush.bf16.msra.mxu0 %v6102
    %7628 = vmatpush.bf16.msra.mxu0 %v6094
    %7629 = vmatpush.bf16.msra.mxu0 %v6086
    %7630 = vmatpush.bf16.msra.mxu0 %v6078
    %7631 = vmatpush.bf16.msra.mxu0 %v6070
    %7632 = vmatmul.bf16.gmra.mxu0 %v499
    %v7633 = vpop.f32.mrf.mxu0
    %v7634 = vadd.f32 %v7620, %v7633
    %v7635 = vpop.f32.mrf.mxu0
    %v7636 = vadd.f32 %v7622, %v7635
    %7637 = vdwg.mxu0
    %7638 = vmatpush.bf16.msra.mxu0 %v6190
    %7639 = vmatpush.bf16.msra.mxu0 %v6182
    %7640 = vmatpush.bf16.msra.mxu0 %v6174
    %7641 = vmatpush.bf16.msra.mxu0 %v6166
    %7642 = vmatpush.bf16.msra.mxu0 %v6158
    %7643 = vmatpush.bf16.msra.mxu0 %v6150
    %7644 = vmatpush.bf16.msra.mxu0 %v6142
    %7645 = vmatpush.bf16.msra.mxu0 %v6134
    %7646 = vmatmul.bf16.gmra.mxu0 %v500
    %v7647 = vpop.f32.mrf.mxu0
    %v7648 = vadd.f32 %v7634, %v7647
    %v7649 = vpop.f32.mrf.mxu0
    %v7650 = vadd.f32 %v7636, %v7649
    %7651 = vdwg.mxu0
    %7652 = vmatpush.bf16.msra.mxu0 %v6254
    %7653 = vmatpush.bf16.msra.mxu0 %v6246
    %7654 = vmatpush.bf16.msra.mxu0 %v6238
    %7655 = vmatpush.bf16.msra.mxu0 %v6230
    %7656 = vmatpush.bf16.msra.mxu0 %v6222
    %7657 = vmatpush.bf16.msra.mxu0 %v6214
    %7658 = vmatpush.bf16.msra.mxu0 %v6206
    %7659 = vmatpush.bf16.msra.mxu0 %v6198
    %7660 = vmatmul.bf16.gmra.mxu0 %v501
    %v7661 = vpop.f32.mrf.mxu0
    %v7662 = vadd.f32 %v7648, %v7661
    %v7663 = vpop.f32.mrf.mxu0
    %v7664 = vadd.f32 %v7650, %v7663
    %7665 = vdwg.mxu0
    %7666 = vmatpush.bf16.msra.mxu0 %v5167
    %7667 = vmatpush.bf16.msra.mxu0 %v5159
    %7668 = vmatpush.bf16.msra.mxu0 %v5151
    %7669 = vmatpush.bf16.msra.mxu0 %v5143
    %7670 = vmatpush.bf16.msra.mxu0 %v5135
    %7671 = vmatpush.bf16.msra.mxu0 %v5127
    %7672 = vmatpush.bf16.msra.mxu0 %v5119
    %7673 = vmatpush.bf16.msra.mxu0 %v5111
    %7674 = vmatmul.bf16.gmra.mxu0 %v484
    %v7675 = vpop.f32.mrf.mxu0
    %v7676 = vadd.f32 0.0, %v7675
    %v7677 = vpop.f32.mrf.mxu0
    %v7678 = vadd.f32 0.0, %v7677
    %7679 = vdwg.mxu0
    %7680 = vmatpush.bf16.msra.mxu0 %v5231
    %7681 = vmatpush.bf16.msra.mxu0 %v5223
    %7682 = vmatpush.bf16.msra.mxu0 %v5215
    %7683 = vmatpush.bf16.msra.mxu0 %v5207
    %7684 = vmatpush.bf16.msra.mxu0 %v5199
    %7685 = vmatpush.bf16.msra.mxu0 %v5191
    %7686 = vmatpush.bf16.msra.mxu0 %v5183
    %7687 = vmatpush.bf16.msra.mxu0 %v5175
    %7688 = vmatmul.bf16.gmra.mxu0 %v485
    %v7689 = vpop.f32.mrf.mxu0
    %v7690 = vadd.f32 %v7676, %v7689
    %v7691 = vpop.f32.mrf.mxu0
    %v7692 = vadd.f32 %v7678, %v7691
    %7693 = vdwg.mxu0
    %7694 = vmatpush.bf16.msra.mxu0 %v5295
    %7695 = vmatpush.bf16.msra.mxu0 %v5287
    %7696 = vmatpush.bf16.msra.mxu0 %v5279
    %7697 = vmatpush.bf16.msra.mxu0 %v5271
    %7698 = vmatpush.bf16.msra.mxu0 %v5263
    %7699 = vmatpush.bf16.msra.mxu0 %v5255
    %7700 = vmatpush.bf16.msra.mxu0 %v5247
    %7701 = vmatpush.bf16.msra.mxu0 %v5239
    %7702 = vmatmul.bf16.gmra.mxu0 %v486
    %v7703 = vpop.f32.mrf.mxu0
    %v7704 = vadd.f32 %v7690, %v7703
    %v7705 = vpop.f32.mrf.mxu0
    %v7706 = vadd.f32 %v7692, %v7705
    %7707 = vdwg.mxu0
    %7708 = vmatpush.bf16.msra.mxu0 %v5359
    %7709 = vmatpush.bf16.msra.mxu0 %v5351
    %7710 = vmatpush.bf16.msra.mxu0 %v5343
    %7711 = vmatpush.bf16.msra.mxu0 %v5335
    %7712 = vmatpush.bf16.msra.mxu0 %v5327
    %7713 = vmatpush.bf16.msra.mxu0 %v5319
    %7714 = vmatpush.bf16.msra.mxu0 %v5311
    %7715 = vmatpush.bf16.msra.mxu0 %v5303
    %7716 = vmatmul.bf16.gmra.mxu0 %v487
    %v7717 = vpop.f32.mrf.mxu0
    %v7718 = vadd.f32 %v7704, %v7717
    %v7719 = vpop.f32.mrf.mxu0
    %v7720 = vadd.f32 %v7706, %v7719
    %7721 = vdwg.mxu0
    %7722 = vmatpush.bf16.msra.mxu0 %v5423
    %7723 = vmatpush.bf16.msra.mxu0 %v5415
    %7724 = vmatpush.bf16.msra.mxu0 %v5407
    %7725 = vmatpush.bf16.msra.mxu0 %v5399
    %7726 = vmatpush.bf16.msra.mxu0 %v5391
    %7727 = vmatpush.bf16.msra.mxu0 %v5383
    %7728 = vmatpush.bf16.msra.mxu0 %v5375
    %7729 = vmatpush.bf16.msra.mxu0 %v5367
    %7730 = vmatmul.bf16.gmra.mxu0 %v488
    %v7731 = vpop.f32.mrf.mxu0
    %v7732 = vadd.f32 %v7718, %v7731
    %v7733 = vpop.f32.mrf.mxu0
    %v7734 = vadd.f32 %v7720, %v7733
    %7735 = vdwg.mxu0
    %7736 = vmatpush.bf16.msra.mxu0 %v5487
    %7737 = vmatpush.bf16.msra.mxu0 %v5479
    %7738 = vmatpush.bf16.msra.mxu0 %v5471
    %7739 = vmatpush.bf16.msra.mxu0 %v5463
    %7740 = vmatpush.bf16.msra.mxu0 %v5455
    %7741 = vmatpush.bf16.msra.mxu0 %v5447
    %7742 = vmatpush.bf16.msra.mxu0 %v5439
    %7743 = vmatpush.bf16.msra.mxu0 %v5431
    %7744 = vmatmul.bf16.gmra.mxu0 %v489
    %v7745 = vpop.f32.mrf.mxu0
    %v7746 = vadd.f32 %v7732, %v7745
    %v7747 = vpop.f32.mrf.mxu0
    %v7748 = vadd.f32 %v7734, %v7747
    %7749 = vdwg.mxu0
    %7750 = vmatpush.bf16.msra.mxu0 %v5551
    %7751 = vmatpush.bf16.msra.mxu0 %v5543
    %7752 = vmatpush.bf16.msra.mxu0 %v5535
    %7753 = vmatpush.bf16.msra.mxu0 %v5527
    %7754 = vmatpush.bf16.msra.mxu0 %v5519
    %7755 = vmatpush.bf16.msra.mxu0 %v5511
    %7756 = vmatpush.bf16.msra.mxu0 %v5503
    %7757 = vmatpush.bf16.msra.mxu0 %v5495
    %7758 = vmatmul.bf16.gmra.mxu0 %v490
    %v7759 = vpop.f32.mrf.mxu0
    %v7760 = vadd.f32 %v7746, %v7759
    %v7761 = vpop.f32.mrf.mxu0
    %v7762 = vadd.f32 %v7748, %v7761
    %7763 = vdwg.mxu0
    %7764 = vmatpush.bf16.msra.mxu0 %v5615
    %7765 = vmatpush.bf16.msra.mxu0 %v5607
    %7766 = vmatpush.bf16.msra.mxu0 %v5599
    %7767 = vmatpush.bf16.msra.mxu0 %v5591
    %7768 = vmatpush.bf16.msra.mxu0 %v5583
    %7769 = vmatpush.bf16.msra.mxu0 %v5575
    %7770 = vmatpush.bf16.msra.mxu0 %v5567
    %7771 = vmatpush.bf16.msra.mxu0 %v5559
    %7772 = vmatmul.bf16.gmra.mxu0 %v491
    %v7773 = vpop.f32.mrf.mxu0
    %v7774 = vadd.f32 %v7760, %v7773
    %v7775 = vpop.f32.mrf.mxu0
    %v7776 = vadd.f32 %v7762, %v7775
    %7777 = vdwg.mxu0
    %7778 = vmatpush.bf16.msra.mxu0 %v5679
    %7779 = vmatpush.bf16.msra.mxu0 %v5671
    %7780 = vmatpush.bf16.msra.mxu0 %v5663
    %7781 = vmatpush.bf16.msra.mxu0 %v5655
    %7782 = vmatpush.bf16.msra.mxu0 %v5647
    %7783 = vmatpush.bf16.msra.mxu0 %v5639
    %7784 = vmatpush.bf16.msra.mxu0 %v5631
    %7785 = vmatpush.bf16.msra.mxu0 %v5623
    %7786 = vmatmul.bf16.gmra.mxu0 %v492
    %v7787 = vpop.f32.mrf.mxu0
    %v7788 = vadd.f32 %v7774, %v7787
    %v7789 = vpop.f32.mrf.mxu0
    %v7790 = vadd.f32 %v7776, %v7789
    %7791 = vdwg.mxu0
    %7792 = vmatpush.bf16.msra.mxu0 %v5743
    %7793 = vmatpush.bf16.msra.mxu0 %v5735
    %7794 = vmatpush.bf16.msra.mxu0 %v5727
    %7795 = vmatpush.bf16.msra.mxu0 %v5719
    %7796 = vmatpush.bf16.msra.mxu0 %v5711
    %7797 = vmatpush.bf16.msra.mxu0 %v5703
    %7798 = vmatpush.bf16.msra.mxu0 %v5695
    %7799 = vmatpush.bf16.msra.mxu0 %v5687
    %7800 = vmatmul.bf16.gmra.mxu0 %v493
    %v7801 = vpop.f32.mrf.mxu0
    %v7802 = vadd.f32 %v7788, %v7801
    %v7803 = vpop.f32.mrf.mxu0
    %v7804 = vadd.f32 %v7790, %v7803
    %7805 = vdwg.mxu0
    %7806 = vmatpush.bf16.msra.mxu0 %v5807
    %7807 = vmatpush.bf16.msra.mxu0 %v5799
    %7808 = vmatpush.bf16.msra.mxu0 %v5791
    %7809 = vmatpush.bf16.msra.mxu0 %v5783
    %7810 = vmatpush.bf16.msra.mxu0 %v5775
    %7811 = vmatpush.bf16.msra.mxu0 %v5767
    %7812 = vmatpush.bf16.msra.mxu0 %v5759
    %7813 = vmatpush.bf16.msra.mxu0 %v5751
    %7814 = vmatmul.bf16.gmra.mxu0 %v494
    %v7815 = vpop.f32.mrf.mxu0
    %v7816 = vadd.f32 %v7802, %v7815
    %v7817 = vpop.f32.mrf.mxu0
    %v7818 = vadd.f32 %v7804, %v7817
    %7819 = vdwg.mxu0
    %7820 = vmatpush.bf16.msra.mxu0 %v5871
    %7821 = vmatpush.bf16.msra.mxu0 %v5863
    %7822 = vmatpush.bf16.msra.mxu0 %v5855
    %7823 = vmatpush.bf16.msra.mxu0 %v5847
    %7824 = vmatpush.bf16.msra.mxu0 %v5839
    %7825 = vmatpush.bf16.msra.mxu0 %v5831
    %7826 = vmatpush.bf16.msra.mxu0 %v5823
    %7827 = vmatpush.bf16.msra.mxu0 %v5815
    %7828 = vmatmul.bf16.gmra.mxu0 %v495
    %v7829 = vpop.f32.mrf.mxu0
    %v7830 = vadd.f32 %v7816, %v7829
    %v7831 = vpop.f32.mrf.mxu0
    %v7832 = vadd.f32 %v7818, %v7831
    %7833 = vdwg.mxu0
    %7834 = vmatpush.bf16.msra.mxu0 %v5935
    %7835 = vmatpush.bf16.msra.mxu0 %v5927
    %7836 = vmatpush.bf16.msra.mxu0 %v5919
    %7837 = vmatpush.bf16.msra.mxu0 %v5911
    %7838 = vmatpush.bf16.msra.mxu0 %v5903
    %7839 = vmatpush.bf16.msra.mxu0 %v5895
    %7840 = vmatpush.bf16.msra.mxu0 %v5887
    %7841 = vmatpush.bf16.msra.mxu0 %v5879
    %7842 = vmatmul.bf16.gmra.mxu0 %v496
    %v7843 = vpop.f32.mrf.mxu0
    %v7844 = vadd.f32 %v7830, %v7843
    %v7845 = vpop.f32.mrf.mxu0
    %v7846 = vadd.f32 %v7832, %v7845
    %7847 = vdwg.mxu0
    %7848 = vmatpush.bf16.msra.mxu0 %v5999
    %7849 = vmatpush.bf16.msra.mxu0 %v5991
    %7850 = vmatpush.bf16.msra.mxu0 %v5983
    %7851 = vmatpush.bf16.msra.mxu0 %v5975
    %7852 = vmatpush.bf16.msra.mxu0 %v5967
    %7853 = vmatpush.bf16.msra.mxu0 %v5959
    %7854 = vmatpush.bf16.msra.mxu0 %v5951
    %7855 = vmatpush.bf16.msra.mxu0 %v5943
    %7856 = vmatmul.bf16.gmra.mxu0 %v497
    %v7857 = vpop.f32.mrf.mxu0
    %v7858 = vadd.f32 %v7844, %v7857
    %v7859 = vpop.f32.mrf.mxu0
    %v7860 = vadd.f32 %v7846, %v7859
    %7861 = vdwg.mxu0
    %7862 = vmatpush.bf16.msra.mxu0 %v6063
    %7863 = vmatpush.bf16.msra.mxu0 %v6055
    %7864 = vmatpush.bf16.msra.mxu0 %v6047
    %7865 = vmatpush.bf16.msra.mxu0 %v6039
    %7866 = vmatpush.bf16.msra.mxu0 %v6031
    %7867 = vmatpush.bf16.msra.mxu0 %v6023
    %7868 = vmatpush.bf16.msra.mxu0 %v6015
    %7869 = vmatpush.bf16.msra.mxu0 %v6007
    %7870 = vmatmul.bf16.gmra.mxu0 %v498
    %v7871 = vpop.f32.mrf.mxu0
    %v7872 = vadd.f32 %v7858, %v7871
    %v7873 = vpop.f32.mrf.mxu0
    %v7874 = vadd.f32 %v7860, %v7873
    %7875 = vdwg.mxu0
    %7876 = vmatpush.bf16.msra.mxu0 %v6127
    %7877 = vmatpush.bf16.msra.mxu0 %v6119
    %7878 = vmatpush.bf16.msra.mxu0 %v6111
    %7879 = vmatpush.bf16.msra.mxu0 %v6103
    %7880 = vmatpush.bf16.msra.mxu0 %v6095
    %7881 = vmatpush.bf16.msra.mxu0 %v6087
    %7882 = vmatpush.bf16.msra.mxu0 %v6079
    %7883 = vmatpush.bf16.msra.mxu0 %v6071
    %7884 = vmatmul.bf16.gmra.mxu0 %v499
    %v7885 = vpop.f32.mrf.mxu0
    %v7886 = vadd.f32 %v7872, %v7885
    %v7887 = vpop.f32.mrf.mxu0
    %v7888 = vadd.f32 %v7874, %v7887
    %7889 = vdwg.mxu0
    %7890 = vmatpush.bf16.msra.mxu0 %v6191
    %7891 = vmatpush.bf16.msra.mxu0 %v6183
    %7892 = vmatpush.bf16.msra.mxu0 %v6175
    %7893 = vmatpush.bf16.msra.mxu0 %v6167
    %7894 = vmatpush.bf16.msra.mxu0 %v6159
    %7895 = vmatpush.bf16.msra.mxu0 %v6151
    %7896 = vmatpush.bf16.msra.mxu0 %v6143
    %7897 = vmatpush.bf16.msra.mxu0 %v6135
    %7898 = vmatmul.bf16.gmra.mxu0 %v500
    %v7899 = vpop.f32.mrf.mxu0
    %v7900 = vadd.f32 %v7886, %v7899
    %v7901 = vpop.f32.mrf.mxu0
    %v7902 = vadd.f32 %v7888, %v7901
    %7903 = vdwg.mxu0
    %7904 = vmatpush.bf16.msra.mxu0 %v6255
    %7905 = vmatpush.bf16.msra.mxu0 %v6247
    %7906 = vmatpush.bf16.msra.mxu0 %v6239
    %7907 = vmatpush.bf16.msra.mxu0 %v6231
    %7908 = vmatpush.bf16.msra.mxu0 %v6223
    %7909 = vmatpush.bf16.msra.mxu0 %v6215
    %7910 = vmatpush.bf16.msra.mxu0 %v6207
    %7911 = vmatpush.bf16.msra.mxu0 %v6199
    %7912 = vmatmul.bf16.gmra.mxu0 %v501
    %v7913 = vpop.f32.mrf.mxu0
    %v7914 = vadd.f32 %v7900, %v7913
    %v7915 = vpop.f32.mrf.mxu0
    %v7916 = vadd.f32 %v7902, %v7915
    %7917 = vdwg.mxu0
    %7918 = vmatpush.bf16.msra.mxu0 %v5168
    %7919 = vmatpush.bf16.msra.mxu0 %v5160
    %7920 = vmatpush.bf16.msra.mxu0 %v5152
    %7921 = vmatpush.bf16.msra.mxu0 %v5144
    %7922 = vmatpush.bf16.msra.mxu0 %v5136
    %7923 = vmatpush.bf16.msra.mxu0 %v5128
    %7924 = vmatpush.bf16.msra.mxu0 %v5120
    %7925 = vmatpush.bf16.msra.mxu0 %v5112
    %7926 = vmatmul.bf16.gmra.mxu0 %v484
    %v7927 = vpop.f32.mrf.mxu0
    %v7928 = vadd.f32 0.0, %v7927
    %v7929 = vpop.f32.mrf.mxu0
    %v7930 = vadd.f32 0.0, %v7929
    %7931 = vdwg.mxu0
    %7932 = vmatpush.bf16.msra.mxu0 %v5232
    %7933 = vmatpush.bf16.msra.mxu0 %v5224
    %7934 = vmatpush.bf16.msra.mxu0 %v5216
    %7935 = vmatpush.bf16.msra.mxu0 %v5208
    %7936 = vmatpush.bf16.msra.mxu0 %v5200
    %7937 = vmatpush.bf16.msra.mxu0 %v5192
    %7938 = vmatpush.bf16.msra.mxu0 %v5184
    %7939 = vmatpush.bf16.msra.mxu0 %v5176
    %7940 = vmatmul.bf16.gmra.mxu0 %v485
    %v7941 = vpop.f32.mrf.mxu0
    %v7942 = vadd.f32 %v7928, %v7941
    %v7943 = vpop.f32.mrf.mxu0
    %v7944 = vadd.f32 %v7930, %v7943
    %7945 = vdwg.mxu0
    %7946 = vmatpush.bf16.msra.mxu0 %v5296
    %7947 = vmatpush.bf16.msra.mxu0 %v5288
    %7948 = vmatpush.bf16.msra.mxu0 %v5280
    %7949 = vmatpush.bf16.msra.mxu0 %v5272
    %7950 = vmatpush.bf16.msra.mxu0 %v5264
    %7951 = vmatpush.bf16.msra.mxu0 %v5256
    %7952 = vmatpush.bf16.msra.mxu0 %v5248
    %7953 = vmatpush.bf16.msra.mxu0 %v5240
    %7954 = vmatmul.bf16.gmra.mxu0 %v486
    %v7955 = vpop.f32.mrf.mxu0
    %v7956 = vadd.f32 %v7942, %v7955
    %v7957 = vpop.f32.mrf.mxu0
    %v7958 = vadd.f32 %v7944, %v7957
    %7959 = vdwg.mxu0
    %7960 = vmatpush.bf16.msra.mxu0 %v5360
    %7961 = vmatpush.bf16.msra.mxu0 %v5352
    %7962 = vmatpush.bf16.msra.mxu0 %v5344
    %7963 = vmatpush.bf16.msra.mxu0 %v5336
    %7964 = vmatpush.bf16.msra.mxu0 %v5328
    %7965 = vmatpush.bf16.msra.mxu0 %v5320
    %7966 = vmatpush.bf16.msra.mxu0 %v5312
    %7967 = vmatpush.bf16.msra.mxu0 %v5304
    %7968 = vmatmul.bf16.gmra.mxu0 %v487
    %v7969 = vpop.f32.mrf.mxu0
    %v7970 = vadd.f32 %v7956, %v7969
    %v7971 = vpop.f32.mrf.mxu0
    %v7972 = vadd.f32 %v7958, %v7971
    %7973 = vdwg.mxu0
    %7974 = vmatpush.bf16.msra.mxu0 %v5424
    %7975 = vmatpush.bf16.msra.mxu0 %v5416
    %7976 = vmatpush.bf16.msra.mxu0 %v5408
    %7977 = vmatpush.bf16.msra.mxu0 %v5400
    %7978 = vmatpush.bf16.msra.mxu0 %v5392
    %7979 = vmatpush.bf16.msra.mxu0 %v5384
    %7980 = vmatpush.bf16.msra.mxu0 %v5376
    %7981 = vmatpush.bf16.msra.mxu0 %v5368
    %7982 = vmatmul.bf16.gmra.mxu0 %v488
    %v7983 = vpop.f32.mrf.mxu0
    %v7984 = vadd.f32 %v7970, %v7983
    %v7985 = vpop.f32.mrf.mxu0
    %v7986 = vadd.f32 %v7972, %v7985
    %7987 = vdwg.mxu0
    %7988 = vmatpush.bf16.msra.mxu0 %v5488
    %7989 = vmatpush.bf16.msra.mxu0 %v5480
    %7990 = vmatpush.bf16.msra.mxu0 %v5472
    %7991 = vmatpush.bf16.msra.mxu0 %v5464
    %7992 = vmatpush.bf16.msra.mxu0 %v5456
    %7993 = vmatpush.bf16.msra.mxu0 %v5448
    %7994 = vmatpush.bf16.msra.mxu0 %v5440
    %7995 = vmatpush.bf16.msra.mxu0 %v5432
    %7996 = vmatmul.bf16.gmra.mxu0 %v489
    %v7997 = vpop.f32.mrf.mxu0
    %v7998 = vadd.f32 %v7984, %v7997
    %v7999 = vpop.f32.mrf.mxu0
    %v8000 = vadd.f32 %v7986, %v7999
    %8001 = vdwg.mxu0
    %8002 = vmatpush.bf16.msra.mxu0 %v5552
    %8003 = vmatpush.bf16.msra.mxu0 %v5544
    %8004 = vmatpush.bf16.msra.mxu0 %v5536
    %8005 = vmatpush.bf16.msra.mxu0 %v5528
    %8006 = vmatpush.bf16.msra.mxu0 %v5520
    %8007 = vmatpush.bf16.msra.mxu0 %v5512
    %8008 = vmatpush.bf16.msra.mxu0 %v5504
    %8009 = vmatpush.bf16.msra.mxu0 %v5496
    %8010 = vmatmul.bf16.gmra.mxu0 %v490
    %v8011 = vpop.f32.mrf.mxu0
    %v8012 = vadd.f32 %v7998, %v8011
    %v8013 = vpop.f32.mrf.mxu0
    %v8014 = vadd.f32 %v8000, %v8013
    %8015 = vdwg.mxu0
    %8016 = vmatpush.bf16.msra.mxu0 %v5616
    %8017 = vmatpush.bf16.msra.mxu0 %v5608
    %8018 = vmatpush.bf16.msra.mxu0 %v5600
    %8019 = vmatpush.bf16.msra.mxu0 %v5592
    %8020 = vmatpush.bf16.msra.mxu0 %v5584
    %8021 = vmatpush.bf16.msra.mxu0 %v5576
    %8022 = vmatpush.bf16.msra.mxu0 %v5568
    %8023 = vmatpush.bf16.msra.mxu0 %v5560
    %8024 = vmatmul.bf16.gmra.mxu0 %v491
    %v8025 = vpop.f32.mrf.mxu0
    %v8026 = vadd.f32 %v8012, %v8025
    %v8027 = vpop.f32.mrf.mxu0
    %v8028 = vadd.f32 %v8014, %v8027
    %8029 = vdwg.mxu0
    %8030 = vmatpush.bf16.msra.mxu0 %v5680
    %8031 = vmatpush.bf16.msra.mxu0 %v5672
    %8032 = vmatpush.bf16.msra.mxu0 %v5664
    %8033 = vmatpush.bf16.msra.mxu0 %v5656
    %8034 = vmatpush.bf16.msra.mxu0 %v5648
    %8035 = vmatpush.bf16.msra.mxu0 %v5640
    %8036 = vmatpush.bf16.msra.mxu0 %v5632
    %8037 = vmatpush.bf16.msra.mxu0 %v5624
    %8038 = vmatmul.bf16.gmra.mxu0 %v492
    %v8039 = vpop.f32.mrf.mxu0
    %v8040 = vadd.f32 %v8026, %v8039
    %v8041 = vpop.f32.mrf.mxu0
    %v8042 = vadd.f32 %v8028, %v8041
    %8043 = vdwg.mxu0
    %8044 = vmatpush.bf16.msra.mxu0 %v5744
    %8045 = vmatpush.bf16.msra.mxu0 %v5736
    %8046 = vmatpush.bf16.msra.mxu0 %v5728
    %8047 = vmatpush.bf16.msra.mxu0 %v5720
    %8048 = vmatpush.bf16.msra.mxu0 %v5712
    %8049 = vmatpush.bf16.msra.mxu0 %v5704
    %8050 = vmatpush.bf16.msra.mxu0 %v5696
    %8051 = vmatpush.bf16.msra.mxu0 %v5688
    %8052 = vmatmul.bf16.gmra.mxu0 %v493
    %v8053 = vpop.f32.mrf.mxu0
    %v8054 = vadd.f32 %v8040, %v8053
    %v8055 = vpop.f32.mrf.mxu0
    %v8056 = vadd.f32 %v8042, %v8055
    %8057 = vdwg.mxu0
    %8058 = vmatpush.bf16.msra.mxu0 %v5808
    %8059 = vmatpush.bf16.msra.mxu0 %v5800
    %8060 = vmatpush.bf16.msra.mxu0 %v5792
    %8061 = vmatpush.bf16.msra.mxu0 %v5784
    %8062 = vmatpush.bf16.msra.mxu0 %v5776
    %8063 = vmatpush.bf16.msra.mxu0 %v5768
    %8064 = vmatpush.bf16.msra.mxu0 %v5760
    %8065 = vmatpush.bf16.msra.mxu0 %v5752
    %8066 = vmatmul.bf16.gmra.mxu0 %v494
    %v8067 = vpop.f32.mrf.mxu0
    %v8068 = vadd.f32 %v8054, %v8067
    %v8069 = vpop.f32.mrf.mxu0
    %v8070 = vadd.f32 %v8056, %v8069
    %8071 = vdwg.mxu0
    %8072 = vmatpush.bf16.msra.mxu0 %v5872
    %8073 = vmatpush.bf16.msra.mxu0 %v5864
    %8074 = vmatpush.bf16.msra.mxu0 %v5856
    %8075 = vmatpush.bf16.msra.mxu0 %v5848
    %8076 = vmatpush.bf16.msra.mxu0 %v5840
    %8077 = vmatpush.bf16.msra.mxu0 %v5832
    %8078 = vmatpush.bf16.msra.mxu0 %v5824
    %8079 = vmatpush.bf16.msra.mxu0 %v5816
    %8080 = vmatmul.bf16.gmra.mxu0 %v495
    %v8081 = vpop.f32.mrf.mxu0
    %v8082 = vadd.f32 %v8068, %v8081
    %v8083 = vpop.f32.mrf.mxu0
    %v8084 = vadd.f32 %v8070, %v8083
    %8085 = vdwg.mxu0
    %8086 = vmatpush.bf16.msra.mxu0 %v5936
    %8087 = vmatpush.bf16.msra.mxu0 %v5928
    %8088 = vmatpush.bf16.msra.mxu0 %v5920
    %8089 = vmatpush.bf16.msra.mxu0 %v5912
    %8090 = vmatpush.bf16.msra.mxu0 %v5904
    %8091 = vmatpush.bf16.msra.mxu0 %v5896
    %8092 = vmatpush.bf16.msra.mxu0 %v5888
    %8093 = vmatpush.bf16.msra.mxu0 %v5880
    %8094 = vmatmul.bf16.gmra.mxu0 %v496
    %v8095 = vpop.f32.mrf.mxu0
    %v8096 = vadd.f32 %v8082, %v8095
    %v8097 = vpop.f32.mrf.mxu0
    %v8098 = vadd.f32 %v8084, %v8097
    %8099 = vdwg.mxu0
    %8100 = vmatpush.bf16.msra.mxu0 %v6000
    %8101 = vmatpush.bf16.msra.mxu0 %v5992
    %8102 = vmatpush.bf16.msra.mxu0 %v5984
    %8103 = vmatpush.bf16.msra.mxu0 %v5976
    %8104 = vmatpush.bf16.msra.mxu0 %v5968
    %8105 = vmatpush.bf16.msra.mxu0 %v5960
    %8106 = vmatpush.bf16.msra.mxu0 %v5952
    %8107 = vmatpush.bf16.msra.mxu0 %v5944
    %8108 = vmatmul.bf16.gmra.mxu0 %v497
    %v8109 = vpop.f32.mrf.mxu0
    %v8110 = vadd.f32 %v8096, %v8109
    %v8111 = vpop.f32.mrf.mxu0
    %v8112 = vadd.f32 %v8098, %v8111
    %8113 = vdwg.mxu0
    %8114 = vmatpush.bf16.msra.mxu0 %v6064
    %8115 = vmatpush.bf16.msra.mxu0 %v6056
    %8116 = vmatpush.bf16.msra.mxu0 %v6048
    %8117 = vmatpush.bf16.msra.mxu0 %v6040
    %8118 = vmatpush.bf16.msra.mxu0 %v6032
    %8119 = vmatpush.bf16.msra.mxu0 %v6024
    %8120 = vmatpush.bf16.msra.mxu0 %v6016
    %8121 = vmatpush.bf16.msra.mxu0 %v6008
    %8122 = vmatmul.bf16.gmra.mxu0 %v498
    %v8123 = vpop.f32.mrf.mxu0
    %v8124 = vadd.f32 %v8110, %v8123
    %v8125 = vpop.f32.mrf.mxu0
    %v8126 = vadd.f32 %v8112, %v8125
    %8127 = vdwg.mxu0
    %8128 = vmatpush.bf16.msra.mxu0 %v6128
    %8129 = vmatpush.bf16.msra.mxu0 %v6120
    %8130 = vmatpush.bf16.msra.mxu0 %v6112
    %8131 = vmatpush.bf16.msra.mxu0 %v6104
    %8132 = vmatpush.bf16.msra.mxu0 %v6096
    %8133 = vmatpush.bf16.msra.mxu0 %v6088
    %8134 = vmatpush.bf16.msra.mxu0 %v6080
    %8135 = vmatpush.bf16.msra.mxu0 %v6072
    %8136 = vmatmul.bf16.gmra.mxu0 %v499
    %v8137 = vpop.f32.mrf.mxu0
    %v8138 = vadd.f32 %v8124, %v8137
    %v8139 = vpop.f32.mrf.mxu0
    %v8140 = vadd.f32 %v8126, %v8139
    %8141 = vdwg.mxu0
    %8142 = vmatpush.bf16.msra.mxu0 %v6192
    %8143 = vmatpush.bf16.msra.mxu0 %v6184
    %8144 = vmatpush.bf16.msra.mxu0 %v6176
    %8145 = vmatpush.bf16.msra.mxu0 %v6168
    %8146 = vmatpush.bf16.msra.mxu0 %v6160
    %8147 = vmatpush.bf16.msra.mxu0 %v6152
    %8148 = vmatpush.bf16.msra.mxu0 %v6144
    %8149 = vmatpush.bf16.msra.mxu0 %v6136
    %8150 = vmatmul.bf16.gmra.mxu0 %v500
    %v8151 = vpop.f32.mrf.mxu0
    %v8152 = vadd.f32 %v8138, %v8151
    %v8153 = vpop.f32.mrf.mxu0
    %v8154 = vadd.f32 %v8140, %v8153
    %8155 = vdwg.mxu0
    %8156 = vmatpush.bf16.msra.mxu0 %v6256
    %8157 = vmatpush.bf16.msra.mxu0 %v6248
    %8158 = vmatpush.bf16.msra.mxu0 %v6240
    %8159 = vmatpush.bf16.msra.mxu0 %v6232
    %8160 = vmatpush.bf16.msra.mxu0 %v6224
    %8161 = vmatpush.bf16.msra.mxu0 %v6216
    %8162 = vmatpush.bf16.msra.mxu0 %v6208
    %8163 = vmatpush.bf16.msra.mxu0 %v6200
    %8164 = vmatmul.bf16.gmra.mxu0 %v501
    %v8165 = vpop.f32.mrf.mxu0
    %v8166 = vadd.f32 %v8152, %v8165
    %v8167 = vpop.f32.mrf.mxu0
    %v8168 = vadd.f32 %v8154, %v8167
    %8169 = vdwg.mxu0
    %8170 = vmatpush.bf16.msra.mxu0 %v5169
    %8171 = vmatpush.bf16.msra.mxu0 %v5161
    %8172 = vmatpush.bf16.msra.mxu0 %v5153
    %8173 = vmatpush.bf16.msra.mxu0 %v5145
    %8174 = vmatpush.bf16.msra.mxu0 %v5137
    %8175 = vmatpush.bf16.msra.mxu0 %v5129
    %8176 = vmatpush.bf16.msra.mxu0 %v5121
    %8177 = vmatpush.bf16.msra.mxu0 %v5113
    %8178 = vmatmul.bf16.gmra.mxu0 %v484
    %v8179 = vpop.f32.mrf.mxu0
    %v8180 = vadd.f32 0.0, %v8179
    %v8181 = vpop.f32.mrf.mxu0
    %v8182 = vadd.f32 0.0, %v8181
    %8183 = vdwg.mxu0
    %8184 = vmatpush.bf16.msra.mxu0 %v5233
    %8185 = vmatpush.bf16.msra.mxu0 %v5225
    %8186 = vmatpush.bf16.msra.mxu0 %v5217
    %8187 = vmatpush.bf16.msra.mxu0 %v5209
    %8188 = vmatpush.bf16.msra.mxu0 %v5201
    %8189 = vmatpush.bf16.msra.mxu0 %v5193
    %8190 = vmatpush.bf16.msra.mxu0 %v5185
    %8191 = vmatpush.bf16.msra.mxu0 %v5177
    %8192 = vmatmul.bf16.gmra.mxu0 %v485
    %v8193 = vpop.f32.mrf.mxu0
    %v8194 = vadd.f32 %v8180, %v8193
    %v8195 = vpop.f32.mrf.mxu0
    %v8196 = vadd.f32 %v8182, %v8195
    %8197 = vdwg.mxu0
    %8198 = vmatpush.bf16.msra.mxu0 %v5297
    %8199 = vmatpush.bf16.msra.mxu0 %v5289
    %8200 = vmatpush.bf16.msra.mxu0 %v5281
    %8201 = vmatpush.bf16.msra.mxu0 %v5273
    %8202 = vmatpush.bf16.msra.mxu0 %v5265
    %8203 = vmatpush.bf16.msra.mxu0 %v5257
    %8204 = vmatpush.bf16.msra.mxu0 %v5249
    %8205 = vmatpush.bf16.msra.mxu0 %v5241
    %8206 = vmatmul.bf16.gmra.mxu0 %v486
    %v8207 = vpop.f32.mrf.mxu0
    %v8208 = vadd.f32 %v8194, %v8207
    %v8209 = vpop.f32.mrf.mxu0
    %v8210 = vadd.f32 %v8196, %v8209
    %8211 = vdwg.mxu0
    %8212 = vmatpush.bf16.msra.mxu0 %v5361
    %8213 = vmatpush.bf16.msra.mxu0 %v5353
    %8214 = vmatpush.bf16.msra.mxu0 %v5345
    %8215 = vmatpush.bf16.msra.mxu0 %v5337
    %8216 = vmatpush.bf16.msra.mxu0 %v5329
    %8217 = vmatpush.bf16.msra.mxu0 %v5321
    %8218 = vmatpush.bf16.msra.mxu0 %v5313
    %8219 = vmatpush.bf16.msra.mxu0 %v5305
    %8220 = vmatmul.bf16.gmra.mxu0 %v487
    %v8221 = vpop.f32.mrf.mxu0
    %v8222 = vadd.f32 %v8208, %v8221
    %v8223 = vpop.f32.mrf.mxu0
    %v8224 = vadd.f32 %v8210, %v8223
    %8225 = vdwg.mxu0
    %8226 = vmatpush.bf16.msra.mxu0 %v5425
    %8227 = vmatpush.bf16.msra.mxu0 %v5417
    %8228 = vmatpush.bf16.msra.mxu0 %v5409
    %8229 = vmatpush.bf16.msra.mxu0 %v5401
    %8230 = vmatpush.bf16.msra.mxu0 %v5393
    %8231 = vmatpush.bf16.msra.mxu0 %v5385
    %8232 = vmatpush.bf16.msra.mxu0 %v5377
    %8233 = vmatpush.bf16.msra.mxu0 %v5369
    %8234 = vmatmul.bf16.gmra.mxu0 %v488
    %v8235 = vpop.f32.mrf.mxu0
    %v8236 = vadd.f32 %v8222, %v8235
    %v8237 = vpop.f32.mrf.mxu0
    %v8238 = vadd.f32 %v8224, %v8237
    %8239 = vdwg.mxu0
    %8240 = vmatpush.bf16.msra.mxu0 %v5489
    %8241 = vmatpush.bf16.msra.mxu0 %v5481
    %8242 = vmatpush.bf16.msra.mxu0 %v5473
    %8243 = vmatpush.bf16.msra.mxu0 %v5465
    %8244 = vmatpush.bf16.msra.mxu0 %v5457
    %8245 = vmatpush.bf16.msra.mxu0 %v5449
    %8246 = vmatpush.bf16.msra.mxu0 %v5441
    %8247 = vmatpush.bf16.msra.mxu0 %v5433
    %8248 = vmatmul.bf16.gmra.mxu0 %v489
    %v8249 = vpop.f32.mrf.mxu0
    %v8250 = vadd.f32 %v8236, %v8249
    %v8251 = vpop.f32.mrf.mxu0
    %v8252 = vadd.f32 %v8238, %v8251
    %8253 = vdwg.mxu0
    %8254 = vmatpush.bf16.msra.mxu0 %v5553
    %8255 = vmatpush.bf16.msra.mxu0 %v5545
    %8256 = vmatpush.bf16.msra.mxu0 %v5537
    %8257 = vmatpush.bf16.msra.mxu0 %v5529
    %8258 = vmatpush.bf16.msra.mxu0 %v5521
    %8259 = vmatpush.bf16.msra.mxu0 %v5513
    %8260 = vmatpush.bf16.msra.mxu0 %v5505
    %8261 = vmatpush.bf16.msra.mxu0 %v5497
    %8262 = vmatmul.bf16.gmra.mxu0 %v490
    %v8263 = vpop.f32.mrf.mxu0
    %v8264 = vadd.f32 %v8250, %v8263
    %v8265 = vpop.f32.mrf.mxu0
    %v8266 = vadd.f32 %v8252, %v8265
    %8267 = vdwg.mxu0
    %8268 = vmatpush.bf16.msra.mxu0 %v5617
    %8269 = vmatpush.bf16.msra.mxu0 %v5609
    %8270 = vmatpush.bf16.msra.mxu0 %v5601
    %8271 = vmatpush.bf16.msra.mxu0 %v5593
    %8272 = vmatpush.bf16.msra.mxu0 %v5585
    %8273 = vmatpush.bf16.msra.mxu0 %v5577
    %8274 = vmatpush.bf16.msra.mxu0 %v5569
    %8275 = vmatpush.bf16.msra.mxu0 %v5561
    %8276 = vmatmul.bf16.gmra.mxu0 %v491
    %v8277 = vpop.f32.mrf.mxu0
    %v8278 = vadd.f32 %v8264, %v8277
    %v8279 = vpop.f32.mrf.mxu0
    %v8280 = vadd.f32 %v8266, %v8279
    %8281 = vdwg.mxu0
    %8282 = vmatpush.bf16.msra.mxu0 %v5681
    %8283 = vmatpush.bf16.msra.mxu0 %v5673
    %8284 = vmatpush.bf16.msra.mxu0 %v5665
    %8285 = vmatpush.bf16.msra.mxu0 %v5657
    %8286 = vmatpush.bf16.msra.mxu0 %v5649
    %8287 = vmatpush.bf16.msra.mxu0 %v5641
    %8288 = vmatpush.bf16.msra.mxu0 %v5633
    %8289 = vmatpush.bf16.msra.mxu0 %v5625
    %8290 = vmatmul.bf16.gmra.mxu0 %v492
    %v8291 = vpop.f32.mrf.mxu0
    %v8292 = vadd.f32 %v8278, %v8291
    %v8293 = vpop.f32.mrf.mxu0
    %v8294 = vadd.f32 %v8280, %v8293
    %8295 = vdwg.mxu0
    %8296 = vmatpush.bf16.msra.mxu0 %v5745
    %8297 = vmatpush.bf16.msra.mxu0 %v5737
    %8298 = vmatpush.bf16.msra.mxu0 %v5729
    %8299 = vmatpush.bf16.msra.mxu0 %v5721
    %8300 = vmatpush.bf16.msra.mxu0 %v5713
    %8301 = vmatpush.bf16.msra.mxu0 %v5705
    %8302 = vmatpush.bf16.msra.mxu0 %v5697
    %8303 = vmatpush.bf16.msra.mxu0 %v5689
    %8304 = vmatmul.bf16.gmra.mxu0 %v493
    %v8305 = vpop.f32.mrf.mxu0
    %v8306 = vadd.f32 %v8292, %v8305
    %v8307 = vpop.f32.mrf.mxu0
    %v8308 = vadd.f32 %v8294, %v8307
    %8309 = vdwg.mxu0
    %8310 = vmatpush.bf16.msra.mxu0 %v5809
    %8311 = vmatpush.bf16.msra.mxu0 %v5801
    %8312 = vmatpush.bf16.msra.mxu0 %v5793
    %8313 = vmatpush.bf16.msra.mxu0 %v5785
    %8314 = vmatpush.bf16.msra.mxu0 %v5777
    %8315 = vmatpush.bf16.msra.mxu0 %v5769
    %8316 = vmatpush.bf16.msra.mxu0 %v5761
    %8317 = vmatpush.bf16.msra.mxu0 %v5753
    %8318 = vmatmul.bf16.gmra.mxu0 %v494
    %v8319 = vpop.f32.mrf.mxu0
    %v8320 = vadd.f32 %v8306, %v8319
    %v8321 = vpop.f32.mrf.mxu0
    %v8322 = vadd.f32 %v8308, %v8321
    %8323 = vdwg.mxu0
    %8324 = vmatpush.bf16.msra.mxu0 %v5873
    %8325 = vmatpush.bf16.msra.mxu0 %v5865
    %8326 = vmatpush.bf16.msra.mxu0 %v5857
    %8327 = vmatpush.bf16.msra.mxu0 %v5849
    %8328 = vmatpush.bf16.msra.mxu0 %v5841
    %8329 = vmatpush.bf16.msra.mxu0 %v5833
    %8330 = vmatpush.bf16.msra.mxu0 %v5825
    %8331 = vmatpush.bf16.msra.mxu0 %v5817
    %8332 = vmatmul.bf16.gmra.mxu0 %v495
    %v8333 = vpop.f32.mrf.mxu0
    %v8334 = vadd.f32 %v8320, %v8333
    %v8335 = vpop.f32.mrf.mxu0
    %v8336 = vadd.f32 %v8322, %v8335
    %8337 = vdwg.mxu0
    %8338 = vmatpush.bf16.msra.mxu0 %v5937
    %8339 = vmatpush.bf16.msra.mxu0 %v5929
    %8340 = vmatpush.bf16.msra.mxu0 %v5921
    %8341 = vmatpush.bf16.msra.mxu0 %v5913
    %8342 = vmatpush.bf16.msra.mxu0 %v5905
    %8343 = vmatpush.bf16.msra.mxu0 %v5897
    %8344 = vmatpush.bf16.msra.mxu0 %v5889
    %8345 = vmatpush.bf16.msra.mxu0 %v5881
    %8346 = vmatmul.bf16.gmra.mxu0 %v496
    %v8347 = vpop.f32.mrf.mxu0
    %v8348 = vadd.f32 %v8334, %v8347
    %v8349 = vpop.f32.mrf.mxu0
    %v8350 = vadd.f32 %v8336, %v8349
    %8351 = vdwg.mxu0
    %8352 = vmatpush.bf16.msra.mxu0 %v6001
    %8353 = vmatpush.bf16.msra.mxu0 %v5993
    %8354 = vmatpush.bf16.msra.mxu0 %v5985
    %8355 = vmatpush.bf16.msra.mxu0 %v5977
    %8356 = vmatpush.bf16.msra.mxu0 %v5969
    %8357 = vmatpush.bf16.msra.mxu0 %v5961
    %8358 = vmatpush.bf16.msra.mxu0 %v5953
    %8359 = vmatpush.bf16.msra.mxu0 %v5945
    %8360 = vmatmul.bf16.gmra.mxu0 %v497
    %v8361 = vpop.f32.mrf.mxu0
    %v8362 = vadd.f32 %v8348, %v8361
    %v8363 = vpop.f32.mrf.mxu0
    %v8364 = vadd.f32 %v8350, %v8363
    %8365 = vdwg.mxu0
    %8366 = vmatpush.bf16.msra.mxu0 %v6065
    %8367 = vmatpush.bf16.msra.mxu0 %v6057
    %8368 = vmatpush.bf16.msra.mxu0 %v6049
    %8369 = vmatpush.bf16.msra.mxu0 %v6041
    %8370 = vmatpush.bf16.msra.mxu0 %v6033
    %8371 = vmatpush.bf16.msra.mxu0 %v6025
    %8372 = vmatpush.bf16.msra.mxu0 %v6017
    %8373 = vmatpush.bf16.msra.mxu0 %v6009
    %8374 = vmatmul.bf16.gmra.mxu0 %v498
    %v8375 = vpop.f32.mrf.mxu0
    %v8376 = vadd.f32 %v8362, %v8375
    %v8377 = vpop.f32.mrf.mxu0
    %v8378 = vadd.f32 %v8364, %v8377
    %8379 = vdwg.mxu0
    %8380 = vmatpush.bf16.msra.mxu0 %v6129
    %8381 = vmatpush.bf16.msra.mxu0 %v6121
    %8382 = vmatpush.bf16.msra.mxu0 %v6113
    %8383 = vmatpush.bf16.msra.mxu0 %v6105
    %8384 = vmatpush.bf16.msra.mxu0 %v6097
    %8385 = vmatpush.bf16.msra.mxu0 %v6089
    %8386 = vmatpush.bf16.msra.mxu0 %v6081
    %8387 = vmatpush.bf16.msra.mxu0 %v6073
    %8388 = vmatmul.bf16.gmra.mxu0 %v499
    %v8389 = vpop.f32.mrf.mxu0
    %v8390 = vadd.f32 %v8376, %v8389
    %v8391 = vpop.f32.mrf.mxu0
    %v8392 = vadd.f32 %v8378, %v8391
    %8393 = vdwg.mxu0
    %8394 = vmatpush.bf16.msra.mxu0 %v6193
    %8395 = vmatpush.bf16.msra.mxu0 %v6185
    %8396 = vmatpush.bf16.msra.mxu0 %v6177
    %8397 = vmatpush.bf16.msra.mxu0 %v6169
    %8398 = vmatpush.bf16.msra.mxu0 %v6161
    %8399 = vmatpush.bf16.msra.mxu0 %v6153
    %8400 = vmatpush.bf16.msra.mxu0 %v6145
    %8401 = vmatpush.bf16.msra.mxu0 %v6137
    %8402 = vmatmul.bf16.gmra.mxu0 %v500
    %v8403 = vpop.f32.mrf.mxu0
    %v8404 = vadd.f32 %v8390, %v8403
    %v8405 = vpop.f32.mrf.mxu0
    %v8406 = vadd.f32 %v8392, %v8405
    %8407 = vdwg.mxu0
    %8408 = vmatpush.bf16.msra.mxu0 %v6257
    %8409 = vmatpush.bf16.msra.mxu0 %v6249
    %8410 = vmatpush.bf16.msra.mxu0 %v6241
    %8411 = vmatpush.bf16.msra.mxu0 %v6233
    %8412 = vmatpush.bf16.msra.mxu0 %v6225
    %8413 = vmatpush.bf16.msra.mxu0 %v6217
    %8414 = vmatpush.bf16.msra.mxu0 %v6209
    %8415 = vmatpush.bf16.msra.mxu0 %v6201
    %8416 = vmatmul.bf16.gmra.mxu0 %v501
    %v8417 = vpop.f32.mrf.mxu0
    %v8418 = vadd.f32 %v8404, %v8417
    %v8419 = vpop.f32.mrf.mxu0
    %v8420 = vadd.f32 %v8406, %v8419
    %8421 = vdwg.mxu0
    %8422 = vmatpush.bf16.msra.mxu0 %v5170
    %8423 = vmatpush.bf16.msra.mxu0 %v5162
    %8424 = vmatpush.bf16.msra.mxu0 %v5154
    %8425 = vmatpush.bf16.msra.mxu0 %v5146
    %8426 = vmatpush.bf16.msra.mxu0 %v5138
    %8427 = vmatpush.bf16.msra.mxu0 %v5130
    %8428 = vmatpush.bf16.msra.mxu0 %v5122
    %8429 = vmatpush.bf16.msra.mxu0 %v5114
    %8430 = vmatmul.bf16.gmra.mxu0 %v484
    %v8431 = vpop.f32.mrf.mxu0
    %v8432 = vadd.f32 0.0, %v8431
    %v8433 = vpop.f32.mrf.mxu0
    %v8434 = vadd.f32 0.0, %v8433
    %8435 = vdwg.mxu0
    %8436 = vmatpush.bf16.msra.mxu0 %v5234
    %8437 = vmatpush.bf16.msra.mxu0 %v5226
    %8438 = vmatpush.bf16.msra.mxu0 %v5218
    %8439 = vmatpush.bf16.msra.mxu0 %v5210
    %8440 = vmatpush.bf16.msra.mxu0 %v5202
    %8441 = vmatpush.bf16.msra.mxu0 %v5194
    %8442 = vmatpush.bf16.msra.mxu0 %v5186
    %8443 = vmatpush.bf16.msra.mxu0 %v5178
    %8444 = vmatmul.bf16.gmra.mxu0 %v485
    %v8445 = vpop.f32.mrf.mxu0
    %v8446 = vadd.f32 %v8432, %v8445
    %v8447 = vpop.f32.mrf.mxu0
    %v8448 = vadd.f32 %v8434, %v8447
    %8449 = vdwg.mxu0
    %8450 = vmatpush.bf16.msra.mxu0 %v5298
    %8451 = vmatpush.bf16.msra.mxu0 %v5290
    %8452 = vmatpush.bf16.msra.mxu0 %v5282
    %8453 = vmatpush.bf16.msra.mxu0 %v5274
    %8454 = vmatpush.bf16.msra.mxu0 %v5266
    %8455 = vmatpush.bf16.msra.mxu0 %v5258
    %8456 = vmatpush.bf16.msra.mxu0 %v5250
    %8457 = vmatpush.bf16.msra.mxu0 %v5242
    %8458 = vmatmul.bf16.gmra.mxu0 %v486
    %v8459 = vpop.f32.mrf.mxu0
    %v8460 = vadd.f32 %v8446, %v8459
    %v8461 = vpop.f32.mrf.mxu0
    %v8462 = vadd.f32 %v8448, %v8461
    %8463 = vdwg.mxu0
    %8464 = vmatpush.bf16.msra.mxu0 %v5362
    %8465 = vmatpush.bf16.msra.mxu0 %v5354
    %8466 = vmatpush.bf16.msra.mxu0 %v5346
    %8467 = vmatpush.bf16.msra.mxu0 %v5338
    %8468 = vmatpush.bf16.msra.mxu0 %v5330
    %8469 = vmatpush.bf16.msra.mxu0 %v5322
    %8470 = vmatpush.bf16.msra.mxu0 %v5314
    %8471 = vmatpush.bf16.msra.mxu0 %v5306
    %8472 = vmatmul.bf16.gmra.mxu0 %v487
    %v8473 = vpop.f32.mrf.mxu0
    %v8474 = vadd.f32 %v8460, %v8473
    %v8475 = vpop.f32.mrf.mxu0
    %v8476 = vadd.f32 %v8462, %v8475
    %8477 = vdwg.mxu0
    %8478 = vmatpush.bf16.msra.mxu0 %v5426
    %8479 = vmatpush.bf16.msra.mxu0 %v5418
    %8480 = vmatpush.bf16.msra.mxu0 %v5410
    %8481 = vmatpush.bf16.msra.mxu0 %v5402
    %8482 = vmatpush.bf16.msra.mxu0 %v5394
    %8483 = vmatpush.bf16.msra.mxu0 %v5386
    %8484 = vmatpush.bf16.msra.mxu0 %v5378
    %8485 = vmatpush.bf16.msra.mxu0 %v5370
    %8486 = vmatmul.bf16.gmra.mxu0 %v488
    %v8487 = vpop.f32.mrf.mxu0
    %v8488 = vadd.f32 %v8474, %v8487
    %v8489 = vpop.f32.mrf.mxu0
    %v8490 = vadd.f32 %v8476, %v8489
    %8491 = vdwg.mxu0
    %8492 = vmatpush.bf16.msra.mxu0 %v5490
    %8493 = vmatpush.bf16.msra.mxu0 %v5482
    %8494 = vmatpush.bf16.msra.mxu0 %v5474
    %8495 = vmatpush.bf16.msra.mxu0 %v5466
    %8496 = vmatpush.bf16.msra.mxu0 %v5458
    %8497 = vmatpush.bf16.msra.mxu0 %v5450
    %8498 = vmatpush.bf16.msra.mxu0 %v5442
    %8499 = vmatpush.bf16.msra.mxu0 %v5434
    %8500 = vmatmul.bf16.gmra.mxu0 %v489
    %v8501 = vpop.f32.mrf.mxu0
    %v8502 = vadd.f32 %v8488, %v8501
    %v8503 = vpop.f32.mrf.mxu0
    %v8504 = vadd.f32 %v8490, %v8503
    %8505 = vdwg.mxu0
    %8506 = vmatpush.bf16.msra.mxu0 %v5554
    %8507 = vmatpush.bf16.msra.mxu0 %v5546
    %8508 = vmatpush.bf16.msra.mxu0 %v5538
    %8509 = vmatpush.bf16.msra.mxu0 %v5530
    %8510 = vmatpush.bf16.msra.mxu0 %v5522
    %8511 = vmatpush.bf16.msra.mxu0 %v5514
    %8512 = vmatpush.bf16.msra.mxu0 %v5506
    %8513 = vmatpush.bf16.msra.mxu0 %v5498
    %8514 = vmatmul.bf16.gmra.mxu0 %v490
    %v8515 = vpop.f32.mrf.mxu0
    %v8516 = vadd.f32 %v8502, %v8515
    %v8517 = vpop.f32.mrf.mxu0
    %v8518 = vadd.f32 %v8504, %v8517
    %8519 = vdwg.mxu0
    %8520 = vmatpush.bf16.msra.mxu0 %v5618
    %8521 = vmatpush.bf16.msra.mxu0 %v5610
    %8522 = vmatpush.bf16.msra.mxu0 %v5602
    %8523 = vmatpush.bf16.msra.mxu0 %v5594
    %8524 = vmatpush.bf16.msra.mxu0 %v5586
    %8525 = vmatpush.bf16.msra.mxu0 %v5578
    %8526 = vmatpush.bf16.msra.mxu0 %v5570
    %8527 = vmatpush.bf16.msra.mxu0 %v5562
    %8528 = vmatmul.bf16.gmra.mxu0 %v491
    %v8529 = vpop.f32.mrf.mxu0
    %v8530 = vadd.f32 %v8516, %v8529
    %v8531 = vpop.f32.mrf.mxu0
    %v8532 = vadd.f32 %v8518, %v8531
    %8533 = vdwg.mxu0
    %8534 = vmatpush.bf16.msra.mxu0 %v5682
    %8535 = vmatpush.bf16.msra.mxu0 %v5674
    %8536 = vmatpush.bf16.msra.mxu0 %v5666
    %8537 = vmatpush.bf16.msra.mxu0 %v5658
    %8538 = vmatpush.bf16.msra.mxu0 %v5650
    %8539 = vmatpush.bf16.msra.mxu0 %v5642
    %8540 = vmatpush.bf16.msra.mxu0 %v5634
    %8541 = vmatpush.bf16.msra.mxu0 %v5626
    %8542 = vmatmul.bf16.gmra.mxu0 %v492
    %v8543 = vpop.f32.mrf.mxu0
    %v8544 = vadd.f32 %v8530, %v8543
    %v8545 = vpop.f32.mrf.mxu0
    %v8546 = vadd.f32 %v8532, %v8545
    %8547 = vdwg.mxu0
    %8548 = vmatpush.bf16.msra.mxu0 %v5746
    %8549 = vmatpush.bf16.msra.mxu0 %v5738
    %8550 = vmatpush.bf16.msra.mxu0 %v5730
    %8551 = vmatpush.bf16.msra.mxu0 %v5722
    %8552 = vmatpush.bf16.msra.mxu0 %v5714
    %8553 = vmatpush.bf16.msra.mxu0 %v5706
    %8554 = vmatpush.bf16.msra.mxu0 %v5698
    %8555 = vmatpush.bf16.msra.mxu0 %v5690
    %8556 = vmatmul.bf16.gmra.mxu0 %v493
    %v8557 = vpop.f32.mrf.mxu0
    %v8558 = vadd.f32 %v8544, %v8557
    %v8559 = vpop.f32.mrf.mxu0
    %v8560 = vadd.f32 %v8546, %v8559
    %8561 = vdwg.mxu0
    %8562 = vmatpush.bf16.msra.mxu0 %v5810
    %8563 = vmatpush.bf16.msra.mxu0 %v5802
    %8564 = vmatpush.bf16.msra.mxu0 %v5794
    %8565 = vmatpush.bf16.msra.mxu0 %v5786
    %8566 = vmatpush.bf16.msra.mxu0 %v5778
    %8567 = vmatpush.bf16.msra.mxu0 %v5770
    %8568 = vmatpush.bf16.msra.mxu0 %v5762
    %8569 = vmatpush.bf16.msra.mxu0 %v5754
    %8570 = vmatmul.bf16.gmra.mxu0 %v494
    %v8571 = vpop.f32.mrf.mxu0
    %v8572 = vadd.f32 %v8558, %v8571
    %v8573 = vpop.f32.mrf.mxu0
    %v8574 = vadd.f32 %v8560, %v8573
    %8575 = vdwg.mxu0
    %8576 = vmatpush.bf16.msra.mxu0 %v5874
    %8577 = vmatpush.bf16.msra.mxu0 %v5866
    %8578 = vmatpush.bf16.msra.mxu0 %v5858
    %8579 = vmatpush.bf16.msra.mxu0 %v5850
    %8580 = vmatpush.bf16.msra.mxu0 %v5842
    %8581 = vmatpush.bf16.msra.mxu0 %v5834
    %8582 = vmatpush.bf16.msra.mxu0 %v5826
    %8583 = vmatpush.bf16.msra.mxu0 %v5818
    %8584 = vmatmul.bf16.gmra.mxu0 %v495
    %v8585 = vpop.f32.mrf.mxu0
    %v8586 = vadd.f32 %v8572, %v8585
    %v8587 = vpop.f32.mrf.mxu0
    %v8588 = vadd.f32 %v8574, %v8587
    %8589 = vdwg.mxu0
    %8590 = vmatpush.bf16.msra.mxu0 %v5938
    %8591 = vmatpush.bf16.msra.mxu0 %v5930
    %8592 = vmatpush.bf16.msra.mxu0 %v5922
    %8593 = vmatpush.bf16.msra.mxu0 %v5914
    %8594 = vmatpush.bf16.msra.mxu0 %v5906
    %8595 = vmatpush.bf16.msra.mxu0 %v5898
    %8596 = vmatpush.bf16.msra.mxu0 %v5890
    %8597 = vmatpush.bf16.msra.mxu0 %v5882
    %8598 = vmatmul.bf16.gmra.mxu0 %v496
    %v8599 = vpop.f32.mrf.mxu0
    %v8600 = vadd.f32 %v8586, %v8599
    %v8601 = vpop.f32.mrf.mxu0
    %v8602 = vadd.f32 %v8588, %v8601
    %8603 = vdwg.mxu0
    %8604 = vmatpush.bf16.msra.mxu0 %v6002
    %8605 = vmatpush.bf16.msra.mxu0 %v5994
    %8606 = vmatpush.bf16.msra.mxu0 %v5986
    %8607 = vmatpush.bf16.msra.mxu0 %v5978
    %8608 = vmatpush.bf16.msra.mxu0 %v5970
    %8609 = vmatpush.bf16.msra.mxu0 %v5962
    %8610 = vmatpush.bf16.msra.mxu0 %v5954
    %8611 = vmatpush.bf16.msra.mxu0 %v5946
    %8612 = vmatmul.bf16.gmra.mxu0 %v497
    %v8613 = vpop.f32.mrf.mxu0
    %v8614 = vadd.f32 %v8600, %v8613
    %v8615 = vpop.f32.mrf.mxu0
    %v8616 = vadd.f32 %v8602, %v8615
    %8617 = vdwg.mxu0
    %8618 = vmatpush.bf16.msra.mxu0 %v6066
    %8619 = vmatpush.bf16.msra.mxu0 %v6058
    %8620 = vmatpush.bf16.msra.mxu0 %v6050
    %8621 = vmatpush.bf16.msra.mxu0 %v6042
    %8622 = vmatpush.bf16.msra.mxu0 %v6034
    %8623 = vmatpush.bf16.msra.mxu0 %v6026
    %8624 = vmatpush.bf16.msra.mxu0 %v6018
    %8625 = vmatpush.bf16.msra.mxu0 %v6010
    %8626 = vmatmul.bf16.gmra.mxu0 %v498
    %v8627 = vpop.f32.mrf.mxu0
    %v8628 = vadd.f32 %v8614, %v8627
    %v8629 = vpop.f32.mrf.mxu0
    %v8630 = vadd.f32 %v8616, %v8629
    %8631 = vdwg.mxu0
    %8632 = vmatpush.bf16.msra.mxu0 %v6130
    %8633 = vmatpush.bf16.msra.mxu0 %v6122
    %8634 = vmatpush.bf16.msra.mxu0 %v6114
    %8635 = vmatpush.bf16.msra.mxu0 %v6106
    %8636 = vmatpush.bf16.msra.mxu0 %v6098
    %8637 = vmatpush.bf16.msra.mxu0 %v6090
    %8638 = vmatpush.bf16.msra.mxu0 %v6082
    %8639 = vmatpush.bf16.msra.mxu0 %v6074
    %8640 = vmatmul.bf16.gmra.mxu0 %v499
    %v8641 = vpop.f32.mrf.mxu0
    %v8642 = vadd.f32 %v8628, %v8641
    %v8643 = vpop.f32.mrf.mxu0
    %v8644 = vadd.f32 %v8630, %v8643
    %8645 = vdwg.mxu0
    %8646 = vmatpush.bf16.msra.mxu0 %v6194
    %8647 = vmatpush.bf16.msra.mxu0 %v6186
    %8648 = vmatpush.bf16.msra.mxu0 %v6178
    %8649 = vmatpush.bf16.msra.mxu0 %v6170
    %8650 = vmatpush.bf16.msra.mxu0 %v6162
    %8651 = vmatpush.bf16.msra.mxu0 %v6154
    %8652 = vmatpush.bf16.msra.mxu0 %v6146
    %8653 = vmatpush.bf16.msra.mxu0 %v6138
    %8654 = vmatmul.bf16.gmra.mxu0 %v500
    %v8655 = vpop.f32.mrf.mxu0
    %v8656 = vadd.f32 %v8642, %v8655
    %v8657 = vpop.f32.mrf.mxu0
    %v8658 = vadd.f32 %v8644, %v8657
    %8659 = vdwg.mxu0
    %8660 = vmatpush.bf16.msra.mxu0 %v6258
    %8661 = vmatpush.bf16.msra.mxu0 %v6250
    %8662 = vmatpush.bf16.msra.mxu0 %v6242
    %8663 = vmatpush.bf16.msra.mxu0 %v6234
    %8664 = vmatpush.bf16.msra.mxu0 %v6226
    %8665 = vmatpush.bf16.msra.mxu0 %v6218
    %8666 = vmatpush.bf16.msra.mxu0 %v6210
    %8667 = vmatpush.bf16.msra.mxu0 %v6202
    %8668 = vmatmul.bf16.gmra.mxu0 %v501
    %v8669 = vpop.f32.mrf.mxu0
    %v8670 = vadd.f32 %v8656, %v8669
    %v8671 = vpop.f32.mrf.mxu0
    %v8672 = vadd.f32 %v8658, %v8671
    %8673 = vdwg.mxu0
    %8674 = vmatpush.bf16.msra.mxu0 %v5171
    %8675 = vmatpush.bf16.msra.mxu0 %v5163
    %8676 = vmatpush.bf16.msra.mxu0 %v5155
    %8677 = vmatpush.bf16.msra.mxu0 %v5147
    %8678 = vmatpush.bf16.msra.mxu0 %v5139
    %8679 = vmatpush.bf16.msra.mxu0 %v5131
    %8680 = vmatpush.bf16.msra.mxu0 %v5123
    %8681 = vmatpush.bf16.msra.mxu0 %v5115
    %8682 = vmatmul.bf16.gmra.mxu0 %v484
    %v8683 = vpop.f32.mrf.mxu0
    %v8684 = vadd.f32 0.0, %v8683
    %v8685 = vpop.f32.mrf.mxu0
    %v8686 = vadd.f32 0.0, %v8685
    %8687 = vdwg.mxu0
    %8688 = vmatpush.bf16.msra.mxu0 %v5235
    %8689 = vmatpush.bf16.msra.mxu0 %v5227
    %8690 = vmatpush.bf16.msra.mxu0 %v5219
    %8691 = vmatpush.bf16.msra.mxu0 %v5211
    %8692 = vmatpush.bf16.msra.mxu0 %v5203
    %8693 = vmatpush.bf16.msra.mxu0 %v5195
    %8694 = vmatpush.bf16.msra.mxu0 %v5187
    %8695 = vmatpush.bf16.msra.mxu0 %v5179
    %8696 = vmatmul.bf16.gmra.mxu0 %v485
    %v8697 = vpop.f32.mrf.mxu0
    %v8698 = vadd.f32 %v8684, %v8697
    %v8699 = vpop.f32.mrf.mxu0
    %v8700 = vadd.f32 %v8686, %v8699
    %8701 = vdwg.mxu0
    %8702 = vmatpush.bf16.msra.mxu0 %v5299
    %8703 = vmatpush.bf16.msra.mxu0 %v5291
    %8704 = vmatpush.bf16.msra.mxu0 %v5283
    %8705 = vmatpush.bf16.msra.mxu0 %v5275
    %8706 = vmatpush.bf16.msra.mxu0 %v5267
    %8707 = vmatpush.bf16.msra.mxu0 %v5259
    %8708 = vmatpush.bf16.msra.mxu0 %v5251
    %8709 = vmatpush.bf16.msra.mxu0 %v5243
    %8710 = vmatmul.bf16.gmra.mxu0 %v486
    %v8711 = vpop.f32.mrf.mxu0
    %v8712 = vadd.f32 %v8698, %v8711
    %v8713 = vpop.f32.mrf.mxu0
    %v8714 = vadd.f32 %v8700, %v8713
    %8715 = vdwg.mxu0
    %8716 = vmatpush.bf16.msra.mxu0 %v5363
    %8717 = vmatpush.bf16.msra.mxu0 %v5355
    %8718 = vmatpush.bf16.msra.mxu0 %v5347
    %8719 = vmatpush.bf16.msra.mxu0 %v5339
    %8720 = vmatpush.bf16.msra.mxu0 %v5331
    %8721 = vmatpush.bf16.msra.mxu0 %v5323
    %8722 = vmatpush.bf16.msra.mxu0 %v5315
    %8723 = vmatpush.bf16.msra.mxu0 %v5307
    %8724 = vmatmul.bf16.gmra.mxu0 %v487
    %v8725 = vpop.f32.mrf.mxu0
    %v8726 = vadd.f32 %v8712, %v8725
    %v8727 = vpop.f32.mrf.mxu0
    %v8728 = vadd.f32 %v8714, %v8727
    %8729 = vdwg.mxu0
    %8730 = vmatpush.bf16.msra.mxu0 %v5427
    %8731 = vmatpush.bf16.msra.mxu0 %v5419
    %8732 = vmatpush.bf16.msra.mxu0 %v5411
    %8733 = vmatpush.bf16.msra.mxu0 %v5403
    %8734 = vmatpush.bf16.msra.mxu0 %v5395
    %8735 = vmatpush.bf16.msra.mxu0 %v5387
    %8736 = vmatpush.bf16.msra.mxu0 %v5379
    %8737 = vmatpush.bf16.msra.mxu0 %v5371
    %8738 = vmatmul.bf16.gmra.mxu0 %v488
    %v8739 = vpop.f32.mrf.mxu0
    %v8740 = vadd.f32 %v8726, %v8739
    %v8741 = vpop.f32.mrf.mxu0
    %v8742 = vadd.f32 %v8728, %v8741
    %8743 = vdwg.mxu0
    %8744 = vmatpush.bf16.msra.mxu0 %v5491
    %8745 = vmatpush.bf16.msra.mxu0 %v5483
    %8746 = vmatpush.bf16.msra.mxu0 %v5475
    %8747 = vmatpush.bf16.msra.mxu0 %v5467
    %8748 = vmatpush.bf16.msra.mxu0 %v5459
    %8749 = vmatpush.bf16.msra.mxu0 %v5451
    %8750 = vmatpush.bf16.msra.mxu0 %v5443
    %8751 = vmatpush.bf16.msra.mxu0 %v5435
    %8752 = vmatmul.bf16.gmra.mxu0 %v489
    %v8753 = vpop.f32.mrf.mxu0
    %v8754 = vadd.f32 %v8740, %v8753
    %v8755 = vpop.f32.mrf.mxu0
    %v8756 = vadd.f32 %v8742, %v8755
    %8757 = vdwg.mxu0
    %8758 = vmatpush.bf16.msra.mxu0 %v5555
    %8759 = vmatpush.bf16.msra.mxu0 %v5547
    %8760 = vmatpush.bf16.msra.mxu0 %v5539
    %8761 = vmatpush.bf16.msra.mxu0 %v5531
    %8762 = vmatpush.bf16.msra.mxu0 %v5523
    %8763 = vmatpush.bf16.msra.mxu0 %v5515
    %8764 = vmatpush.bf16.msra.mxu0 %v5507
    %8765 = vmatpush.bf16.msra.mxu0 %v5499
    %8766 = vmatmul.bf16.gmra.mxu0 %v490
    %v8767 = vpop.f32.mrf.mxu0
    %v8768 = vadd.f32 %v8754, %v8767
    %v8769 = vpop.f32.mrf.mxu0
    %v8770 = vadd.f32 %v8756, %v8769
    %8771 = vdwg.mxu0
    %8772 = vmatpush.bf16.msra.mxu0 %v5619
    %8773 = vmatpush.bf16.msra.mxu0 %v5611
    %8774 = vmatpush.bf16.msra.mxu0 %v5603
    %8775 = vmatpush.bf16.msra.mxu0 %v5595
    %8776 = vmatpush.bf16.msra.mxu0 %v5587
    %8777 = vmatpush.bf16.msra.mxu0 %v5579
    %8778 = vmatpush.bf16.msra.mxu0 %v5571
    %8779 = vmatpush.bf16.msra.mxu0 %v5563
    %8780 = vmatmul.bf16.gmra.mxu0 %v491
    %v8781 = vpop.f32.mrf.mxu0
    %v8782 = vadd.f32 %v8768, %v8781
    %v8783 = vpop.f32.mrf.mxu0
    %v8784 = vadd.f32 %v8770, %v8783
    %8785 = vdwg.mxu0
    %8786 = vmatpush.bf16.msra.mxu0 %v5683
    %8787 = vmatpush.bf16.msra.mxu0 %v5675
    %8788 = vmatpush.bf16.msra.mxu0 %v5667
    %8789 = vmatpush.bf16.msra.mxu0 %v5659
    %8790 = vmatpush.bf16.msra.mxu0 %v5651
    %8791 = vmatpush.bf16.msra.mxu0 %v5643
    %8792 = vmatpush.bf16.msra.mxu0 %v5635
    %8793 = vmatpush.bf16.msra.mxu0 %v5627
    %8794 = vmatmul.bf16.gmra.mxu0 %v492
    %v8795 = vpop.f32.mrf.mxu0
    %v8796 = vadd.f32 %v8782, %v8795
    %v8797 = vpop.f32.mrf.mxu0
    %v8798 = vadd.f32 %v8784, %v8797
    %8799 = vdwg.mxu0
    %8800 = vmatpush.bf16.msra.mxu0 %v5747
    %8801 = vmatpush.bf16.msra.mxu0 %v5739
    %8802 = vmatpush.bf16.msra.mxu0 %v5731
    %8803 = vmatpush.bf16.msra.mxu0 %v5723
    %8804 = vmatpush.bf16.msra.mxu0 %v5715
    %8805 = vmatpush.bf16.msra.mxu0 %v5707
    %8806 = vmatpush.bf16.msra.mxu0 %v5699
    %8807 = vmatpush.bf16.msra.mxu0 %v5691
    %8808 = vmatmul.bf16.gmra.mxu0 %v493
    %v8809 = vpop.f32.mrf.mxu0
    %v8810 = vadd.f32 %v8796, %v8809
    %v8811 = vpop.f32.mrf.mxu0
    %v8812 = vadd.f32 %v8798, %v8811
    %8813 = vdwg.mxu0
    %8814 = vmatpush.bf16.msra.mxu0 %v5811
    %8815 = vmatpush.bf16.msra.mxu0 %v5803
    %8816 = vmatpush.bf16.msra.mxu0 %v5795
    %8817 = vmatpush.bf16.msra.mxu0 %v5787
    %8818 = vmatpush.bf16.msra.mxu0 %v5779
    %8819 = vmatpush.bf16.msra.mxu0 %v5771
    %8820 = vmatpush.bf16.msra.mxu0 %v5763
    %8821 = vmatpush.bf16.msra.mxu0 %v5755
    %8822 = vmatmul.bf16.gmra.mxu0 %v494
    %v8823 = vpop.f32.mrf.mxu0
    %v8824 = vadd.f32 %v8810, %v8823
    %v8825 = vpop.f32.mrf.mxu0
    %v8826 = vadd.f32 %v8812, %v8825
    %8827 = vdwg.mxu0
    %8828 = vmatpush.bf16.msra.mxu0 %v5875
    %8829 = vmatpush.bf16.msra.mxu0 %v5867
    %8830 = vmatpush.bf16.msra.mxu0 %v5859
    %8831 = vmatpush.bf16.msra.mxu0 %v5851
    %8832 = vmatpush.bf16.msra.mxu0 %v5843
    %8833 = vmatpush.bf16.msra.mxu0 %v5835
    %8834 = vmatpush.bf16.msra.mxu0 %v5827
    %8835 = vmatpush.bf16.msra.mxu0 %v5819
    %8836 = vmatmul.bf16.gmra.mxu0 %v495
    %v8837 = vpop.f32.mrf.mxu0
    %v8838 = vadd.f32 %v8824, %v8837
    %v8839 = vpop.f32.mrf.mxu0
    %v8840 = vadd.f32 %v8826, %v8839
    %8841 = vdwg.mxu0
    %8842 = vmatpush.bf16.msra.mxu0 %v5939
    %8843 = vmatpush.bf16.msra.mxu0 %v5931
    %8844 = vmatpush.bf16.msra.mxu0 %v5923
    %8845 = vmatpush.bf16.msra.mxu0 %v5915
    %8846 = vmatpush.bf16.msra.mxu0 %v5907
    %8847 = vmatpush.bf16.msra.mxu0 %v5899
    %8848 = vmatpush.bf16.msra.mxu0 %v5891
    %8849 = vmatpush.bf16.msra.mxu0 %v5883
    %8850 = vmatmul.bf16.gmra.mxu0 %v496
    %v8851 = vpop.f32.mrf.mxu0
    %v8852 = vadd.f32 %v8838, %v8851
    %v8853 = vpop.f32.mrf.mxu0
    %v8854 = vadd.f32 %v8840, %v8853
    %8855 = vdwg.mxu0
    %8856 = vmatpush.bf16.msra.mxu0 %v6003
    %8857 = vmatpush.bf16.msra.mxu0 %v5995
    %8858 = vmatpush.bf16.msra.mxu0 %v5987
    %8859 = vmatpush.bf16.msra.mxu0 %v5979
    %8860 = vmatpush.bf16.msra.mxu0 %v5971
    %8861 = vmatpush.bf16.msra.mxu0 %v5963
    %8862 = vmatpush.bf16.msra.mxu0 %v5955
    %8863 = vmatpush.bf16.msra.mxu0 %v5947
    %8864 = vmatmul.bf16.gmra.mxu0 %v497
    %v8865 = vpop.f32.mrf.mxu0
    %v8866 = vadd.f32 %v8852, %v8865
    %v8867 = vpop.f32.mrf.mxu0
    %v8868 = vadd.f32 %v8854, %v8867
    %8869 = vdwg.mxu0
    %8870 = vmatpush.bf16.msra.mxu0 %v6067
    %8871 = vmatpush.bf16.msra.mxu0 %v6059
    %8872 = vmatpush.bf16.msra.mxu0 %v6051
    %8873 = vmatpush.bf16.msra.mxu0 %v6043
    %8874 = vmatpush.bf16.msra.mxu0 %v6035
    %8875 = vmatpush.bf16.msra.mxu0 %v6027
    %8876 = vmatpush.bf16.msra.mxu0 %v6019
    %8877 = vmatpush.bf16.msra.mxu0 %v6011
    %8878 = vmatmul.bf16.gmra.mxu0 %v498
    %v8879 = vpop.f32.mrf.mxu0
    %v8880 = vadd.f32 %v8866, %v8879
    %v8881 = vpop.f32.mrf.mxu0
    %v8882 = vadd.f32 %v8868, %v8881
    %8883 = vdwg.mxu0
    %8884 = vmatpush.bf16.msra.mxu0 %v6131
    %8885 = vmatpush.bf16.msra.mxu0 %v6123
    %8886 = vmatpush.bf16.msra.mxu0 %v6115
    %8887 = vmatpush.bf16.msra.mxu0 %v6107
    %8888 = vmatpush.bf16.msra.mxu0 %v6099
    %8889 = vmatpush.bf16.msra.mxu0 %v6091
    %8890 = vmatpush.bf16.msra.mxu0 %v6083
    %8891 = vmatpush.bf16.msra.mxu0 %v6075
    %8892 = vmatmul.bf16.gmra.mxu0 %v499
    %v8893 = vpop.f32.mrf.mxu0
    %v8894 = vadd.f32 %v8880, %v8893
    %v8895 = vpop.f32.mrf.mxu0
    %v8896 = vadd.f32 %v8882, %v8895
    %8897 = vdwg.mxu0
    %8898 = vmatpush.bf16.msra.mxu0 %v6195
    %8899 = vmatpush.bf16.msra.mxu0 %v6187
    %8900 = vmatpush.bf16.msra.mxu0 %v6179
    %8901 = vmatpush.bf16.msra.mxu0 %v6171
    %8902 = vmatpush.bf16.msra.mxu0 %v6163
    %8903 = vmatpush.bf16.msra.mxu0 %v6155
    %8904 = vmatpush.bf16.msra.mxu0 %v6147
    %8905 = vmatpush.bf16.msra.mxu0 %v6139
    %8906 = vmatmul.bf16.gmra.mxu0 %v500
    %v8907 = vpop.f32.mrf.mxu0
    %v8908 = vadd.f32 %v8894, %v8907
    %v8909 = vpop.f32.mrf.mxu0
    %v8910 = vadd.f32 %v8896, %v8909
    %8911 = vdwg.mxu0
    %8912 = vmatpush.bf16.msra.mxu0 %v6259
    %8913 = vmatpush.bf16.msra.mxu0 %v6251
    %8914 = vmatpush.bf16.msra.mxu0 %v6243
    %8915 = vmatpush.bf16.msra.mxu0 %v6235
    %8916 = vmatpush.bf16.msra.mxu0 %v6227
    %8917 = vmatpush.bf16.msra.mxu0 %v6219
    %8918 = vmatpush.bf16.msra.mxu0 %v6211
    %8919 = vmatpush.bf16.msra.mxu0 %v6203
    %8920 = vmatmul.bf16.gmra.mxu0 %v501
    %v8921 = vpop.f32.mrf.mxu0
    %v8922 = vadd.f32 %v8908, %v8921
    %v8923 = vpop.f32.mrf.mxu0
    %v8924 = vadd.f32 %v8910, %v8923
    %8925 = vdwg.mxu0
    %8926 = vmatpush.bf16.msra.mxu0 %v5172
    %8927 = vmatpush.bf16.msra.mxu0 %v5164
    %8928 = vmatpush.bf16.msra.mxu0 %v5156
    %8929 = vmatpush.bf16.msra.mxu0 %v5148
    %8930 = vmatpush.bf16.msra.mxu0 %v5140
    %8931 = vmatpush.bf16.msra.mxu0 %v5132
    %8932 = vmatpush.bf16.msra.mxu0 %v5124
    %8933 = vmatpush.bf16.msra.mxu0 %v5116
    %8934 = vmatmul.bf16.gmra.mxu0 %v484
    %v8935 = vpop.f32.mrf.mxu0
    %v8936 = vadd.f32 0.0, %v8935
    %v8937 = vpop.f32.mrf.mxu0
    %v8938 = vadd.f32 0.0, %v8937
    %8939 = vdwg.mxu0
    %8940 = vmatpush.bf16.msra.mxu0 %v5236
    %8941 = vmatpush.bf16.msra.mxu0 %v5228
    %8942 = vmatpush.bf16.msra.mxu0 %v5220
    %8943 = vmatpush.bf16.msra.mxu0 %v5212
    %8944 = vmatpush.bf16.msra.mxu0 %v5204
    %8945 = vmatpush.bf16.msra.mxu0 %v5196
    %8946 = vmatpush.bf16.msra.mxu0 %v5188
    %8947 = vmatpush.bf16.msra.mxu0 %v5180
    %8948 = vmatmul.bf16.gmra.mxu0 %v485
    %v8949 = vpop.f32.mrf.mxu0
    %v8950 = vadd.f32 %v8936, %v8949
    %v8951 = vpop.f32.mrf.mxu0
    %v8952 = vadd.f32 %v8938, %v8951
    %8953 = vdwg.mxu0
    %8954 = vmatpush.bf16.msra.mxu0 %v5300
    %8955 = vmatpush.bf16.msra.mxu0 %v5292
    %8956 = vmatpush.bf16.msra.mxu0 %v5284
    %8957 = vmatpush.bf16.msra.mxu0 %v5276
    %8958 = vmatpush.bf16.msra.mxu0 %v5268
    %8959 = vmatpush.bf16.msra.mxu0 %v5260
    %8960 = vmatpush.bf16.msra.mxu0 %v5252
    %8961 = vmatpush.bf16.msra.mxu0 %v5244
    %8962 = vmatmul.bf16.gmra.mxu0 %v486
    %v8963 = vpop.f32.mrf.mxu0
    %v8964 = vadd.f32 %v8950, %v8963
    %v8965 = vpop.f32.mrf.mxu0
    %v8966 = vadd.f32 %v8952, %v8965
    %8967 = vdwg.mxu0
    %8968 = vmatpush.bf16.msra.mxu0 %v5364
    %8969 = vmatpush.bf16.msra.mxu0 %v5356
    %8970 = vmatpush.bf16.msra.mxu0 %v5348
    %8971 = vmatpush.bf16.msra.mxu0 %v5340
    %8972 = vmatpush.bf16.msra.mxu0 %v5332
    %8973 = vmatpush.bf16.msra.mxu0 %v5324
    %8974 = vmatpush.bf16.msra.mxu0 %v5316
    %8975 = vmatpush.bf16.msra.mxu0 %v5308
    %8976 = vmatmul.bf16.gmra.mxu0 %v487
    %v8977 = vpop.f32.mrf.mxu0
    %v8978 = vadd.f32 %v8964, %v8977
    %v8979 = vpop.f32.mrf.mxu0
    %v8980 = vadd.f32 %v8966, %v8979
    %8981 = vdwg.mxu0
    %8982 = vmatpush.bf16.msra.mxu0 %v5428
    %8983 = vmatpush.bf16.msra.mxu0 %v5420
    %8984 = vmatpush.bf16.msra.mxu0 %v5412
    %8985 = vmatpush.bf16.msra.mxu0 %v5404
    %8986 = vmatpush.bf16.msra.mxu0 %v5396
    %8987 = vmatpush.bf16.msra.mxu0 %v5388
    %8988 = vmatpush.bf16.msra.mxu0 %v5380
    %8989 = vmatpush.bf16.msra.mxu0 %v5372
    %8990 = vmatmul.bf16.gmra.mxu0 %v488
    %v8991 = vpop.f32.mrf.mxu0
    %v8992 = vadd.f32 %v8978, %v8991
    %v8993 = vpop.f32.mrf.mxu0
    %v8994 = vadd.f32 %v8980, %v8993
    %8995 = vdwg.mxu0
    %8996 = vmatpush.bf16.msra.mxu0 %v5492
    %8997 = vmatpush.bf16.msra.mxu0 %v5484
    %8998 = vmatpush.bf16.msra.mxu0 %v5476
    %8999 = vmatpush.bf16.msra.mxu0 %v5468
    %9000 = vmatpush.bf16.msra.mxu0 %v5460
    %9001 = vmatpush.bf16.msra.mxu0 %v5452
    %9002 = vmatpush.bf16.msra.mxu0 %v5444
    %9003 = vmatpush.bf16.msra.mxu0 %v5436
    %9004 = vmatmul.bf16.gmra.mxu0 %v489
    %v9005 = vpop.f32.mrf.mxu0
    %v9006 = vadd.f32 %v8992, %v9005
    %v9007 = vpop.f32.mrf.mxu0
    %v9008 = vadd.f32 %v8994, %v9007
    %9009 = vdwg.mxu0
    %9010 = vmatpush.bf16.msra.mxu0 %v5556
    %9011 = vmatpush.bf16.msra.mxu0 %v5548
    %9012 = vmatpush.bf16.msra.mxu0 %v5540
    %9013 = vmatpush.bf16.msra.mxu0 %v5532
    %9014 = vmatpush.bf16.msra.mxu0 %v5524
    %9015 = vmatpush.bf16.msra.mxu0 %v5516
    %9016 = vmatpush.bf16.msra.mxu0 %v5508
    %9017 = vmatpush.bf16.msra.mxu0 %v5500
    %9018 = vmatmul.bf16.gmra.mxu0 %v490
    %v9019 = vpop.f32.mrf.mxu0
    %v9020 = vadd.f32 %v9006, %v9019
    %v9021 = vpop.f32.mrf.mxu0
    %v9022 = vadd.f32 %v9008, %v9021
    %9023 = vdwg.mxu0
    %9024 = vmatpush.bf16.msra.mxu0 %v5620
    %9025 = vmatpush.bf16.msra.mxu0 %v5612
    %9026 = vmatpush.bf16.msra.mxu0 %v5604
    %9027 = vmatpush.bf16.msra.mxu0 %v5596
    %9028 = vmatpush.bf16.msra.mxu0 %v5588
    %9029 = vmatpush.bf16.msra.mxu0 %v5580
    %9030 = vmatpush.bf16.msra.mxu0 %v5572
    %9031 = vmatpush.bf16.msra.mxu0 %v5564
    %9032 = vmatmul.bf16.gmra.mxu0 %v491
    %v9033 = vpop.f32.mrf.mxu0
    %v9034 = vadd.f32 %v9020, %v9033
    %v9035 = vpop.f32.mrf.mxu0
    %v9036 = vadd.f32 %v9022, %v9035
    %9037 = vdwg.mxu0
    %9038 = vmatpush.bf16.msra.mxu0 %v5684
    %9039 = vmatpush.bf16.msra.mxu0 %v5676
    %9040 = vmatpush.bf16.msra.mxu0 %v5668
    %9041 = vmatpush.bf16.msra.mxu0 %v5660
    %9042 = vmatpush.bf16.msra.mxu0 %v5652
    %9043 = vmatpush.bf16.msra.mxu0 %v5644
    %9044 = vmatpush.bf16.msra.mxu0 %v5636
    %9045 = vmatpush.bf16.msra.mxu0 %v5628
    %9046 = vmatmul.bf16.gmra.mxu0 %v492
    %v9047 = vpop.f32.mrf.mxu0
    %v9048 = vadd.f32 %v9034, %v9047
    %v9049 = vpop.f32.mrf.mxu0
    %v9050 = vadd.f32 %v9036, %v9049
    %9051 = vdwg.mxu0
    %9052 = vmatpush.bf16.msra.mxu0 %v5748
    %9053 = vmatpush.bf16.msra.mxu0 %v5740
    %9054 = vmatpush.bf16.msra.mxu0 %v5732
    %9055 = vmatpush.bf16.msra.mxu0 %v5724
    %9056 = vmatpush.bf16.msra.mxu0 %v5716
    %9057 = vmatpush.bf16.msra.mxu0 %v5708
    %9058 = vmatpush.bf16.msra.mxu0 %v5700
    %9059 = vmatpush.bf16.msra.mxu0 %v5692
    %9060 = vmatmul.bf16.gmra.mxu0 %v493
    %v9061 = vpop.f32.mrf.mxu0
    %v9062 = vadd.f32 %v9048, %v9061
    %v9063 = vpop.f32.mrf.mxu0
    %v9064 = vadd.f32 %v9050, %v9063
    %9065 = vdwg.mxu0
    %9066 = vmatpush.bf16.msra.mxu0 %v5812
    %9067 = vmatpush.bf16.msra.mxu0 %v5804
    %9068 = vmatpush.bf16.msra.mxu0 %v5796
    %9069 = vmatpush.bf16.msra.mxu0 %v5788
    %9070 = vmatpush.bf16.msra.mxu0 %v5780
    %9071 = vmatpush.bf16.msra.mxu0 %v5772
    %9072 = vmatpush.bf16.msra.mxu0 %v5764
    %9073 = vmatpush.bf16.msra.mxu0 %v5756
    %9074 = vmatmul.bf16.gmra.mxu0 %v494
    %v9075 = vpop.f32.mrf.mxu0
    %v9076 = vadd.f32 %v9062, %v9075
    %v9077 = vpop.f32.mrf.mxu0
    %v9078 = vadd.f32 %v9064, %v9077
    %9079 = vdwg.mxu0
    %9080 = vmatpush.bf16.msra.mxu0 %v5876
    %9081 = vmatpush.bf16.msra.mxu0 %v5868
    %9082 = vmatpush.bf16.msra.mxu0 %v5860
    %9083 = vmatpush.bf16.msra.mxu0 %v5852
    %9084 = vmatpush.bf16.msra.mxu0 %v5844
    %9085 = vmatpush.bf16.msra.mxu0 %v5836
    %9086 = vmatpush.bf16.msra.mxu0 %v5828
    %9087 = vmatpush.bf16.msra.mxu0 %v5820
    %9088 = vmatmul.bf16.gmra.mxu0 %v495
    %v9089 = vpop.f32.mrf.mxu0
    %v9090 = vadd.f32 %v9076, %v9089
    %v9091 = vpop.f32.mrf.mxu0
    %v9092 = vadd.f32 %v9078, %v9091
    %9093 = vdwg.mxu0
    %9094 = vmatpush.bf16.msra.mxu0 %v5940
    %9095 = vmatpush.bf16.msra.mxu0 %v5932
    %9096 = vmatpush.bf16.msra.mxu0 %v5924
    %9097 = vmatpush.bf16.msra.mxu0 %v5916
    %9098 = vmatpush.bf16.msra.mxu0 %v5908
    %9099 = vmatpush.bf16.msra.mxu0 %v5900
    %9100 = vmatpush.bf16.msra.mxu0 %v5892
    %9101 = vmatpush.bf16.msra.mxu0 %v5884
    %9102 = vmatmul.bf16.gmra.mxu0 %v496
    %v9103 = vpop.f32.mrf.mxu0
    %v9104 = vadd.f32 %v9090, %v9103
    %v9105 = vpop.f32.mrf.mxu0
    %v9106 = vadd.f32 %v9092, %v9105
    %9107 = vdwg.mxu0
    %9108 = vmatpush.bf16.msra.mxu0 %v6004
    %9109 = vmatpush.bf16.msra.mxu0 %v5996
    %9110 = vmatpush.bf16.msra.mxu0 %v5988
    %9111 = vmatpush.bf16.msra.mxu0 %v5980
    %9112 = vmatpush.bf16.msra.mxu0 %v5972
    %9113 = vmatpush.bf16.msra.mxu0 %v5964
    %9114 = vmatpush.bf16.msra.mxu0 %v5956
    %9115 = vmatpush.bf16.msra.mxu0 %v5948
    %9116 = vmatmul.bf16.gmra.mxu0 %v497
    %v9117 = vpop.f32.mrf.mxu0
    %v9118 = vadd.f32 %v9104, %v9117
    %v9119 = vpop.f32.mrf.mxu0
    %v9120 = vadd.f32 %v9106, %v9119
    %9121 = vdwg.mxu0
    %9122 = vmatpush.bf16.msra.mxu0 %v6068
    %9123 = vmatpush.bf16.msra.mxu0 %v6060
    %9124 = vmatpush.bf16.msra.mxu0 %v6052
    %9125 = vmatpush.bf16.msra.mxu0 %v6044
    %9126 = vmatpush.bf16.msra.mxu0 %v6036
    %9127 = vmatpush.bf16.msra.mxu0 %v6028
    %9128 = vmatpush.bf16.msra.mxu0 %v6020
    %9129 = vmatpush.bf16.msra.mxu0 %v6012
    %9130 = vmatmul.bf16.gmra.mxu0 %v498
    %v9131 = vpop.f32.mrf.mxu0
    %v9132 = vadd.f32 %v9118, %v9131
    %v9133 = vpop.f32.mrf.mxu0
    %v9134 = vadd.f32 %v9120, %v9133
    %9135 = vdwg.mxu0
    %9136 = vmatpush.bf16.msra.mxu0 %v6132
    %9137 = vmatpush.bf16.msra.mxu0 %v6124
    %9138 = vmatpush.bf16.msra.mxu0 %v6116
    %9139 = vmatpush.bf16.msra.mxu0 %v6108
    %9140 = vmatpush.bf16.msra.mxu0 %v6100
    %9141 = vmatpush.bf16.msra.mxu0 %v6092
    %9142 = vmatpush.bf16.msra.mxu0 %v6084
    %9143 = vmatpush.bf16.msra.mxu0 %v6076
    %9144 = vmatmul.bf16.gmra.mxu0 %v499
    %v9145 = vpop.f32.mrf.mxu0
    %v9146 = vadd.f32 %v9132, %v9145
    %v9147 = vpop.f32.mrf.mxu0
    %v9148 = vadd.f32 %v9134, %v9147
    %9149 = vdwg.mxu0
    %9150 = vmatpush.bf16.msra.mxu0 %v6196
    %9151 = vmatpush.bf16.msra.mxu0 %v6188
    %9152 = vmatpush.bf16.msra.mxu0 %v6180
    %9153 = vmatpush.bf16.msra.mxu0 %v6172
    %9154 = vmatpush.bf16.msra.mxu0 %v6164
    %9155 = vmatpush.bf16.msra.mxu0 %v6156
    %9156 = vmatpush.bf16.msra.mxu0 %v6148
    %9157 = vmatpush.bf16.msra.mxu0 %v6140
    %9158 = vmatmul.bf16.gmra.mxu0 %v500
    %v9159 = vpop.f32.mrf.mxu0
    %v9160 = vadd.f32 %v9146, %v9159
    %v9161 = vpop.f32.mrf.mxu0
    %v9162 = vadd.f32 %v9148, %v9161
    %9163 = vdwg.mxu0
    %9164 = vmatpush.bf16.msra.mxu0 %v6260
    %9165 = vmatpush.bf16.msra.mxu0 %v6252
    %9166 = vmatpush.bf16.msra.mxu0 %v6244
    %9167 = vmatpush.bf16.msra.mxu0 %v6236
    %9168 = vmatpush.bf16.msra.mxu0 %v6228
    %9169 = vmatpush.bf16.msra.mxu0 %v6220
    %9170 = vmatpush.bf16.msra.mxu0 %v6212
    %9171 = vmatpush.bf16.msra.mxu0 %v6204
    %9172 = vmatmul.bf16.gmra.mxu0 %v501
    %v9173 = vpop.f32.mrf.mxu0
    %v9174 = vadd.f32 %v9160, %v9173
    %v9175 = vpop.f32.mrf.mxu0
    %v9176 = vadd.f32 %v9162, %v9175
    %9177 = vdwg.mxu0
    %9178 = vmatpush.bf16.msra.mxu0 %v5173
    %9179 = vmatpush.bf16.msra.mxu0 %v5165
    %9180 = vmatpush.bf16.msra.mxu0 %v5157
    %9181 = vmatpush.bf16.msra.mxu0 %v5149
    %9182 = vmatpush.bf16.msra.mxu0 %v5141
    %9183 = vmatpush.bf16.msra.mxu0 %v5133
    %9184 = vmatpush.bf16.msra.mxu0 %v5125
    %9185 = vmatpush.bf16.msra.mxu0 %v5117
    %9186 = vmatmul.bf16.gmra.mxu0 %v484
    %v9187 = vpop.f32.mrf.mxu0
    %v9188 = vadd.f32 0.0, %v9187
    %v9189 = vpop.f32.mrf.mxu0
    %v9190 = vadd.f32 0.0, %v9189
    %9191 = vdwg.mxu0
    %9192 = vmatpush.bf16.msra.mxu0 %v5237
    %9193 = vmatpush.bf16.msra.mxu0 %v5229
    %9194 = vmatpush.bf16.msra.mxu0 %v5221
    %9195 = vmatpush.bf16.msra.mxu0 %v5213
    %9196 = vmatpush.bf16.msra.mxu0 %v5205
    %9197 = vmatpush.bf16.msra.mxu0 %v5197
    %9198 = vmatpush.bf16.msra.mxu0 %v5189
    %9199 = vmatpush.bf16.msra.mxu0 %v5181
    %9200 = vmatmul.bf16.gmra.mxu0 %v485
    %v9201 = vpop.f32.mrf.mxu0
    %v9202 = vadd.f32 %v9188, %v9201
    %v9203 = vpop.f32.mrf.mxu0
    %v9204 = vadd.f32 %v9190, %v9203
    %9205 = vdwg.mxu0
    %9206 = vmatpush.bf16.msra.mxu0 %v5301
    %9207 = vmatpush.bf16.msra.mxu0 %v5293
    %9208 = vmatpush.bf16.msra.mxu0 %v5285
    %9209 = vmatpush.bf16.msra.mxu0 %v5277
    %9210 = vmatpush.bf16.msra.mxu0 %v5269
    %9211 = vmatpush.bf16.msra.mxu0 %v5261
    %9212 = vmatpush.bf16.msra.mxu0 %v5253
    %9213 = vmatpush.bf16.msra.mxu0 %v5245
    %9214 = vmatmul.bf16.gmra.mxu0 %v486
    %v9215 = vpop.f32.mrf.mxu0
    %v9216 = vadd.f32 %v9202, %v9215
    %v9217 = vpop.f32.mrf.mxu0
    %v9218 = vadd.f32 %v9204, %v9217
    %9219 = vdwg.mxu0
    %9220 = vmatpush.bf16.msra.mxu0 %v5365
    %9221 = vmatpush.bf16.msra.mxu0 %v5357
    %9222 = vmatpush.bf16.msra.mxu0 %v5349
    %9223 = vmatpush.bf16.msra.mxu0 %v5341
    %9224 = vmatpush.bf16.msra.mxu0 %v5333
    %9225 = vmatpush.bf16.msra.mxu0 %v5325
    %9226 = vmatpush.bf16.msra.mxu0 %v5317
    %9227 = vmatpush.bf16.msra.mxu0 %v5309
    %9228 = vmatmul.bf16.gmra.mxu0 %v487
    %v9229 = vpop.f32.mrf.mxu0
    %v9230 = vadd.f32 %v9216, %v9229
    %v9231 = vpop.f32.mrf.mxu0
    %v9232 = vadd.f32 %v9218, %v9231
    %9233 = vdwg.mxu0
    %9234 = vmatpush.bf16.msra.mxu0 %v5429
    %9235 = vmatpush.bf16.msra.mxu0 %v5421
    %9236 = vmatpush.bf16.msra.mxu0 %v5413
    %9237 = vmatpush.bf16.msra.mxu0 %v5405
    %9238 = vmatpush.bf16.msra.mxu0 %v5397
    %9239 = vmatpush.bf16.msra.mxu0 %v5389
    %9240 = vmatpush.bf16.msra.mxu0 %v5381
    %9241 = vmatpush.bf16.msra.mxu0 %v5373
    %9242 = vmatmul.bf16.gmra.mxu0 %v488
    %v9243 = vpop.f32.mrf.mxu0
    %v9244 = vadd.f32 %v9230, %v9243
    %v9245 = vpop.f32.mrf.mxu0
    %v9246 = vadd.f32 %v9232, %v9245
    %9247 = vdwg.mxu0
    %9248 = vmatpush.bf16.msra.mxu0 %v5493
    %9249 = vmatpush.bf16.msra.mxu0 %v5485
    %9250 = vmatpush.bf16.msra.mxu0 %v5477
    %9251 = vmatpush.bf16.msra.mxu0 %v5469
    %9252 = vmatpush.bf16.msra.mxu0 %v5461
    %9253 = vmatpush.bf16.msra.mxu0 %v5453
    %9254 = vmatpush.bf16.msra.mxu0 %v5445
    %9255 = vmatpush.bf16.msra.mxu0 %v5437
    %9256 = vmatmul.bf16.gmra.mxu0 %v489
    %v9257 = vpop.f32.mrf.mxu0
    %v9258 = vadd.f32 %v9244, %v9257
    %v9259 = vpop.f32.mrf.mxu0
    %v9260 = vadd.f32 %v9246, %v9259
    %9261 = vdwg.mxu0
    %9262 = vmatpush.bf16.msra.mxu0 %v5557
    %9263 = vmatpush.bf16.msra.mxu0 %v5549
    %9264 = vmatpush.bf16.msra.mxu0 %v5541
    %9265 = vmatpush.bf16.msra.mxu0 %v5533
    %9266 = vmatpush.bf16.msra.mxu0 %v5525
    %9267 = vmatpush.bf16.msra.mxu0 %v5517
    %9268 = vmatpush.bf16.msra.mxu0 %v5509
    %9269 = vmatpush.bf16.msra.mxu0 %v5501
    %9270 = vmatmul.bf16.gmra.mxu0 %v490
    %v9271 = vpop.f32.mrf.mxu0
    %v9272 = vadd.f32 %v9258, %v9271
    %v9273 = vpop.f32.mrf.mxu0
    %v9274 = vadd.f32 %v9260, %v9273
    %9275 = vdwg.mxu0
    %9276 = vmatpush.bf16.msra.mxu0 %v5621
    %9277 = vmatpush.bf16.msra.mxu0 %v5613
    %9278 = vmatpush.bf16.msra.mxu0 %v5605
    %9279 = vmatpush.bf16.msra.mxu0 %v5597
    %9280 = vmatpush.bf16.msra.mxu0 %v5589
    %9281 = vmatpush.bf16.msra.mxu0 %v5581
    %9282 = vmatpush.bf16.msra.mxu0 %v5573
    %9283 = vmatpush.bf16.msra.mxu0 %v5565
    %9284 = vmatmul.bf16.gmra.mxu0 %v491
    %v9285 = vpop.f32.mrf.mxu0
    %v9286 = vadd.f32 %v9272, %v9285
    %v9287 = vpop.f32.mrf.mxu0
    %v9288 = vadd.f32 %v9274, %v9287
    %9289 = vdwg.mxu0
    %9290 = vmatpush.bf16.msra.mxu0 %v5685
    %9291 = vmatpush.bf16.msra.mxu0 %v5677
    %9292 = vmatpush.bf16.msra.mxu0 %v5669
    %9293 = vmatpush.bf16.msra.mxu0 %v5661
    %9294 = vmatpush.bf16.msra.mxu0 %v5653
    %9295 = vmatpush.bf16.msra.mxu0 %v5645
    %9296 = vmatpush.bf16.msra.mxu0 %v5637
    %9297 = vmatpush.bf16.msra.mxu0 %v5629
    %9298 = vmatmul.bf16.gmra.mxu0 %v492
    %v9299 = vpop.f32.mrf.mxu0
    %v9300 = vadd.f32 %v9286, %v9299
    %v9301 = vpop.f32.mrf.mxu0
    %v9302 = vadd.f32 %v9288, %v9301
    %9303 = vdwg.mxu0
    %9304 = vmatpush.bf16.msra.mxu0 %v5749
    %9305 = vmatpush.bf16.msra.mxu0 %v5741
    %9306 = vmatpush.bf16.msra.mxu0 %v5733
    %9307 = vmatpush.bf16.msra.mxu0 %v5725
    %9308 = vmatpush.bf16.msra.mxu0 %v5717
    %9309 = vmatpush.bf16.msra.mxu0 %v5709
    %9310 = vmatpush.bf16.msra.mxu0 %v5701
    %9311 = vmatpush.bf16.msra.mxu0 %v5693
    %9312 = vmatmul.bf16.gmra.mxu0 %v493
    %v9313 = vpop.f32.mrf.mxu0
    %v9314 = vadd.f32 %v9300, %v9313
    %v9315 = vpop.f32.mrf.mxu0
    %v9316 = vadd.f32 %v9302, %v9315
    %9317 = vdwg.mxu0
    %9318 = vmatpush.bf16.msra.mxu0 %v5813
    %9319 = vmatpush.bf16.msra.mxu0 %v5805
    %9320 = vmatpush.bf16.msra.mxu0 %v5797
    %9321 = vmatpush.bf16.msra.mxu0 %v5789
    %9322 = vmatpush.bf16.msra.mxu0 %v5781
    %9323 = vmatpush.bf16.msra.mxu0 %v5773
    %9324 = vmatpush.bf16.msra.mxu0 %v5765
    %9325 = vmatpush.bf16.msra.mxu0 %v5757
    %9326 = vmatmul.bf16.gmra.mxu0 %v494
    %v9327 = vpop.f32.mrf.mxu0
    %v9328 = vadd.f32 %v9314, %v9327
    %v9329 = vpop.f32.mrf.mxu0
    %v9330 = vadd.f32 %v9316, %v9329
    %9331 = vdwg.mxu0
    %9332 = vmatpush.bf16.msra.mxu0 %v5877
    %9333 = vmatpush.bf16.msra.mxu0 %v5869
    %9334 = vmatpush.bf16.msra.mxu0 %v5861
    %9335 = vmatpush.bf16.msra.mxu0 %v5853
    %9336 = vmatpush.bf16.msra.mxu0 %v5845
    %9337 = vmatpush.bf16.msra.mxu0 %v5837
    %9338 = vmatpush.bf16.msra.mxu0 %v5829
    %9339 = vmatpush.bf16.msra.mxu0 %v5821
    %9340 = vmatmul.bf16.gmra.mxu0 %v495
    %v9341 = vpop.f32.mrf.mxu0
    %v9342 = vadd.f32 %v9328, %v9341
    %v9343 = vpop.f32.mrf.mxu0
    %v9344 = vadd.f32 %v9330, %v9343
    %9345 = vdwg.mxu0
    %9346 = vmatpush.bf16.msra.mxu0 %v5941
    %9347 = vmatpush.bf16.msra.mxu0 %v5933
    %9348 = vmatpush.bf16.msra.mxu0 %v5925
    %9349 = vmatpush.bf16.msra.mxu0 %v5917
    %9350 = vmatpush.bf16.msra.mxu0 %v5909
    %9351 = vmatpush.bf16.msra.mxu0 %v5901
    %9352 = vmatpush.bf16.msra.mxu0 %v5893
    %9353 = vmatpush.bf16.msra.mxu0 %v5885
    %9354 = vmatmul.bf16.gmra.mxu0 %v496
    %v9355 = vpop.f32.mrf.mxu0
    %v9356 = vadd.f32 %v9342, %v9355
    %v9357 = vpop.f32.mrf.mxu0
    %v9358 = vadd.f32 %v9344, %v9357
    %9359 = vdwg.mxu0
    %9360 = vmatpush.bf16.msra.mxu0 %v6005
    %9361 = vmatpush.bf16.msra.mxu0 %v5997
    %9362 = vmatpush.bf16.msra.mxu0 %v5989
    %9363 = vmatpush.bf16.msra.mxu0 %v5981
    %9364 = vmatpush.bf16.msra.mxu0 %v5973
    %9365 = vmatpush.bf16.msra.mxu0 %v5965
    %9366 = vmatpush.bf16.msra.mxu0 %v5957
    %9367 = vmatpush.bf16.msra.mxu0 %v5949
    %9368 = vmatmul.bf16.gmra.mxu0 %v497
    %v9369 = vpop.f32.mrf.mxu0
    %v9370 = vadd.f32 %v9356, %v9369
    %v9371 = vpop.f32.mrf.mxu0
    %v9372 = vadd.f32 %v9358, %v9371
    %9373 = vdwg.mxu0
    %9374 = vmatpush.bf16.msra.mxu0 %v6069
    %9375 = vmatpush.bf16.msra.mxu0 %v6061
    %9376 = vmatpush.bf16.msra.mxu0 %v6053
    %9377 = vmatpush.bf16.msra.mxu0 %v6045
    %9378 = vmatpush.bf16.msra.mxu0 %v6037
    %9379 = vmatpush.bf16.msra.mxu0 %v6029
    %9380 = vmatpush.bf16.msra.mxu0 %v6021
    %9381 = vmatpush.bf16.msra.mxu0 %v6013
    %9382 = vmatmul.bf16.gmra.mxu0 %v498
    %v9383 = vpop.f32.mrf.mxu0
    %v9384 = vadd.f32 %v9370, %v9383
    %v9385 = vpop.f32.mrf.mxu0
    %v9386 = vadd.f32 %v9372, %v9385
    %9387 = vdwg.mxu0
    %9388 = vmatpush.bf16.msra.mxu0 %v6133
    %9389 = vmatpush.bf16.msra.mxu0 %v6125
    %9390 = vmatpush.bf16.msra.mxu0 %v6117
    %9391 = vmatpush.bf16.msra.mxu0 %v6109
    %9392 = vmatpush.bf16.msra.mxu0 %v6101
    %9393 = vmatpush.bf16.msra.mxu0 %v6093
    %9394 = vmatpush.bf16.msra.mxu0 %v6085
    %9395 = vmatpush.bf16.msra.mxu0 %v6077
    %9396 = vmatmul.bf16.gmra.mxu0 %v499
    %v9397 = vpop.f32.mrf.mxu0
    %v9398 = vadd.f32 %v9384, %v9397
    %v9399 = vpop.f32.mrf.mxu0
    %v9400 = vadd.f32 %v9386, %v9399
    %9401 = vdwg.mxu0
    %9402 = vmatpush.bf16.msra.mxu0 %v6197
    %9403 = vmatpush.bf16.msra.mxu0 %v6189
    %9404 = vmatpush.bf16.msra.mxu0 %v6181
    %9405 = vmatpush.bf16.msra.mxu0 %v6173
    %9406 = vmatpush.bf16.msra.mxu0 %v6165
    %9407 = vmatpush.bf16.msra.mxu0 %v6157
    %9408 = vmatpush.bf16.msra.mxu0 %v6149
    %9409 = vmatpush.bf16.msra.mxu0 %v6141
    %9410 = vmatmul.bf16.gmra.mxu0 %v500
    %v9411 = vpop.f32.mrf.mxu0
    %v9412 = vadd.f32 %v9398, %v9411
    %v9413 = vpop.f32.mrf.mxu0
    %v9414 = vadd.f32 %v9400, %v9413
    %9415 = vdwg.mxu0
    %9416 = vmatpush.bf16.msra.mxu0 %v6261
    %9417 = vmatpush.bf16.msra.mxu0 %v6253
    %9418 = vmatpush.bf16.msra.mxu0 %v6245
    %9419 = vmatpush.bf16.msra.mxu0 %v6237
    %9420 = vmatpush.bf16.msra.mxu0 %v6229
    %9421 = vmatpush.bf16.msra.mxu0 %v6221
    %9422 = vmatpush.bf16.msra.mxu0 %v6213
    %9423 = vmatpush.bf16.msra.mxu0 %v6205
    %9424 = vmatmul.bf16.gmra.mxu0 %v501
    %v9425 = vpop.f32.mrf.mxu0
    %v9426 = vadd.f32 %v9412, %v9425
    %v9427 = vpop.f32.mrf.mxu0
    %v9428 = vadd.f32 %v9414, %v9427
    %9429 = vdwg.mxu0
    %v9448 = vunpack.c.l.b16 %v394
    %v9449 = vunpack.c.h.b16 %v394
    %v9450 = vunpack.c.l.b16 %v395
    %v9451 = vunpack.c.h.b16 %v395
    %v9452 = vunpack.c.l.b16 %v396
    %v9453 = vunpack.c.h.b16 %v396
    %v9454 = vunpack.c.l.b16 %v397
    %v9455 = vunpack.c.h.b16 %v397
    %v9456 = vunpack.c.l.b16 %v398
    %v9457 = vunpack.c.h.b16 %v398
    %v9458 = vunpack.c.l.b16 %v399
    %v9459 = vunpack.c.h.b16 %v399
    %v9460 = vunpack.c.l.b16 %v400
    %v9461 = vunpack.c.h.b16 %v400
    %v9462 = vunpack.c.l.b16 %v401
    %v9463 = vunpack.c.h.b16 %v401
    %v9464 = vunpack.c.l.b16 %v402
    %v9465 = vunpack.c.h.b16 %v402
    %v9466 = vunpack.c.l.b16 %v403
    %v9467 = vunpack.c.h.b16 %v403
    %v9468 = vunpack.c.l.b16 %v404
    %v9469 = vunpack.c.h.b16 %v404
    %v9470 = vunpack.c.l.b16 %v405
    %v9471 = vunpack.c.h.b16 %v405
    %v9472 = vunpack.c.l.b16 %v406
    %v9473 = vunpack.c.h.b16 %v406
    %v9474 = vunpack.c.l.b16 %v407
    %v9475 = vunpack.c.h.b16 %v407
    %v9476 = vunpack.c.l.b16 %v408
    %v9477 = vunpack.c.h.b16 %v408
    %v9478 = vunpack.c.l.b16 %v409
    %v9479 = vunpack.c.h.b16 %v409
    %v9480 = vunpack.c.l.b16 %v410
    %v9481 = vunpack.c.h.b16 %v410
    %v9482 = vunpack.c.l.b16 %v411
    %v9483 = vunpack.c.h.b16 %v411
    %v9484 = vpack.c.b16 %v9466, %v9448
    %v9485 = vpack.c.b16 %v9467, %v9449
    %v9486 = vpack.c.b16 %v9468, %v9450
    %v9487 = vpack.c.b16 %v9469, %v9451
    %v9488 = vpack.c.b16 %v9470, %v9452
    %v9489 = vpack.c.b16 %v9471, %v9453
    %v9490 = vpack.c.b16 %v9472, %v9454
    %v9491 = vpack.c.b16 %v9473, %v9455
    %v9492 = vpack.c.b16 %v9474, %v9456
    %v9493 = vpack.c.b16 %v9475, %v9457
    %v9494 = vpack.c.b16 %v9476, %v9458
    %v9495 = vpack.c.b16 %v9477, %v9459
    %v9496 = vpack.c.b16 %v9478, %v9460
    %v9497 = vpack.c.b16 %v9479, %v9461
    %v9498 = vpack.c.b16 %v9480, %v9462
    %v9499 = vpack.c.b16 %v9481, %v9463
    %v9500 = vpack.c.b16 %v9482, %v9464
    %v9501 = vpack.c.b16 %v9483, %v9465
    %9520 = vmatpush.bf16.msra.mxu0 %v5166
    %9521 = vmatpush.bf16.msra.mxu0 %v5158
    %9522 = vmatpush.bf16.msra.mxu0 %v5150
    %9523 = vmatpush.bf16.msra.mxu0 %v5142
    %9524 = vmatpush.bf16.msra.mxu0 %v5134
    %9525 = vmatpush.bf16.msra.mxu0 %v5126
    %9526 = vmatpush.bf16.msra.mxu0 %v5118
    %9527 = vmatpush.bf16.msra.mxu0 %v5110
    %9528 = vmatmul.bf16.gmra.mxu0 %v9484
    %v9529 = vpop.f32.mrf.mxu0
    %v9530 = vadd.f32 %v7662, %v9529
    %v9531 = vpop.f32.mrf.mxu0
    %v9532 = vadd.f32 %v7664, %v9531
    %9533 = vdwg.mxu0
    %9534 = vmatpush.bf16.msra.mxu0 %v5230
    %9535 = vmatpush.bf16.msra.mxu0 %v5222
    %9536 = vmatpush.bf16.msra.mxu0 %v5214
    %9537 = vmatpush.bf16.msra.mxu0 %v5206
    %9538 = vmatpush.bf16.msra.mxu0 %v5198
    %9539 = vmatpush.bf16.msra.mxu0 %v5190
    %9540 = vmatpush.bf16.msra.mxu0 %v5182
    %9541 = vmatpush.bf16.msra.mxu0 %v5174
    %9542 = vmatmul.bf16.gmra.mxu0 %v9485
    %v9543 = vpop.f32.mrf.mxu0
    %v9544 = vadd.f32 %v9530, %v9543
    %v9545 = vpop.f32.mrf.mxu0
    %v9546 = vadd.f32 %v9532, %v9545
    %9547 = vdwg.mxu0
    %9548 = vmatpush.bf16.msra.mxu0 %v5294
    %9549 = vmatpush.bf16.msra.mxu0 %v5286
    %9550 = vmatpush.bf16.msra.mxu0 %v5278
    %9551 = vmatpush.bf16.msra.mxu0 %v5270
    %9552 = vmatpush.bf16.msra.mxu0 %v5262
    %9553 = vmatpush.bf16.msra.mxu0 %v5254
    %9554 = vmatpush.bf16.msra.mxu0 %v5246
    %9555 = vmatpush.bf16.msra.mxu0 %v5238
    %9556 = vmatmul.bf16.gmra.mxu0 %v9486
    %v9557 = vpop.f32.mrf.mxu0
    %v9558 = vadd.f32 %v9544, %v9557
    %v9559 = vpop.f32.mrf.mxu0
    %v9560 = vadd.f32 %v9546, %v9559
    %9561 = vdwg.mxu0
    %9562 = vmatpush.bf16.msra.mxu0 %v5358
    %9563 = vmatpush.bf16.msra.mxu0 %v5350
    %9564 = vmatpush.bf16.msra.mxu0 %v5342
    %9565 = vmatpush.bf16.msra.mxu0 %v5334
    %9566 = vmatpush.bf16.msra.mxu0 %v5326
    %9567 = vmatpush.bf16.msra.mxu0 %v5318
    %9568 = vmatpush.bf16.msra.mxu0 %v5310
    %9569 = vmatpush.bf16.msra.mxu0 %v5302
    %9570 = vmatmul.bf16.gmra.mxu0 %v9487
    %v9571 = vpop.f32.mrf.mxu0
    %v9572 = vadd.f32 %v9558, %v9571
    %v9573 = vpop.f32.mrf.mxu0
    %v9574 = vadd.f32 %v9560, %v9573
    %9575 = vdwg.mxu0
    %9576 = vmatpush.bf16.msra.mxu0 %v5422
    %9577 = vmatpush.bf16.msra.mxu0 %v5414
    %9578 = vmatpush.bf16.msra.mxu0 %v5406
    %9579 = vmatpush.bf16.msra.mxu0 %v5398
    %9580 = vmatpush.bf16.msra.mxu0 %v5390
    %9581 = vmatpush.bf16.msra.mxu0 %v5382
    %9582 = vmatpush.bf16.msra.mxu0 %v5374
    %9583 = vmatpush.bf16.msra.mxu0 %v5366
    %9584 = vmatmul.bf16.gmra.mxu0 %v9488
    %v9585 = vpop.f32.mrf.mxu0
    %v9586 = vadd.f32 %v9572, %v9585
    %v9587 = vpop.f32.mrf.mxu0
    %v9588 = vadd.f32 %v9574, %v9587
    %9589 = vdwg.mxu0
    %9590 = vmatpush.bf16.msra.mxu0 %v5486
    %9591 = vmatpush.bf16.msra.mxu0 %v5478
    %9592 = vmatpush.bf16.msra.mxu0 %v5470
    %9593 = vmatpush.bf16.msra.mxu0 %v5462
    %9594 = vmatpush.bf16.msra.mxu0 %v5454
    %9595 = vmatpush.bf16.msra.mxu0 %v5446
    %9596 = vmatpush.bf16.msra.mxu0 %v5438
    %9597 = vmatpush.bf16.msra.mxu0 %v5430
    %9598 = vmatmul.bf16.gmra.mxu0 %v9489
    %v9599 = vpop.f32.mrf.mxu0
    %v9600 = vadd.f32 %v9586, %v9599
    %v9601 = vpop.f32.mrf.mxu0
    %v9602 = vadd.f32 %v9588, %v9601
    %9603 = vdwg.mxu0
    %9604 = vmatpush.bf16.msra.mxu0 %v5550
    %9605 = vmatpush.bf16.msra.mxu0 %v5542
    %9606 = vmatpush.bf16.msra.mxu0 %v5534
    %9607 = vmatpush.bf16.msra.mxu0 %v5526
    %9608 = vmatpush.bf16.msra.mxu0 %v5518
    %9609 = vmatpush.bf16.msra.mxu0 %v5510
    %9610 = vmatpush.bf16.msra.mxu0 %v5502
    %9611 = vmatpush.bf16.msra.mxu0 %v5494
    %9612 = vmatmul.bf16.gmra.mxu0 %v9490
    %v9613 = vpop.f32.mrf.mxu0
    %v9614 = vadd.f32 %v9600, %v9613
    %v9615 = vpop.f32.mrf.mxu0
    %v9616 = vadd.f32 %v9602, %v9615
    %9617 = vdwg.mxu0
    %9618 = vmatpush.bf16.msra.mxu0 %v5614
    %9619 = vmatpush.bf16.msra.mxu0 %v5606
    %9620 = vmatpush.bf16.msra.mxu0 %v5598
    %9621 = vmatpush.bf16.msra.mxu0 %v5590
    %9622 = vmatpush.bf16.msra.mxu0 %v5582
    %9623 = vmatpush.bf16.msra.mxu0 %v5574
    %9624 = vmatpush.bf16.msra.mxu0 %v5566
    %9625 = vmatpush.bf16.msra.mxu0 %v5558
    %9626 = vmatmul.bf16.gmra.mxu0 %v9491
    %v9627 = vpop.f32.mrf.mxu0
    %v9628 = vadd.f32 %v9614, %v9627
    %v9629 = vpop.f32.mrf.mxu0
    %v9630 = vadd.f32 %v9616, %v9629
    %9631 = vdwg.mxu0
    %9632 = vmatpush.bf16.msra.mxu0 %v5678
    %9633 = vmatpush.bf16.msra.mxu0 %v5670
    %9634 = vmatpush.bf16.msra.mxu0 %v5662
    %9635 = vmatpush.bf16.msra.mxu0 %v5654
    %9636 = vmatpush.bf16.msra.mxu0 %v5646
    %9637 = vmatpush.bf16.msra.mxu0 %v5638
    %9638 = vmatpush.bf16.msra.mxu0 %v5630
    %9639 = vmatpush.bf16.msra.mxu0 %v5622
    %9640 = vmatmul.bf16.gmra.mxu0 %v9492
    %v9641 = vpop.f32.mrf.mxu0
    %v9642 = vadd.f32 %v9628, %v9641
    %v9643 = vpop.f32.mrf.mxu0
    %v9644 = vadd.f32 %v9630, %v9643
    %9645 = vdwg.mxu0
    %9646 = vmatpush.bf16.msra.mxu0 %v5742
    %9647 = vmatpush.bf16.msra.mxu0 %v5734
    %9648 = vmatpush.bf16.msra.mxu0 %v5726
    %9649 = vmatpush.bf16.msra.mxu0 %v5718
    %9650 = vmatpush.bf16.msra.mxu0 %v5710
    %9651 = vmatpush.bf16.msra.mxu0 %v5702
    %9652 = vmatpush.bf16.msra.mxu0 %v5694
    %9653 = vmatpush.bf16.msra.mxu0 %v5686
    %9654 = vmatmul.bf16.gmra.mxu0 %v9493
    %v9655 = vpop.f32.mrf.mxu0
    %v9656 = vadd.f32 %v9642, %v9655
    %v9657 = vpop.f32.mrf.mxu0
    %v9658 = vadd.f32 %v9644, %v9657
    %9659 = vdwg.mxu0
    %9660 = vmatpush.bf16.msra.mxu0 %v5806
    %9661 = vmatpush.bf16.msra.mxu0 %v5798
    %9662 = vmatpush.bf16.msra.mxu0 %v5790
    %9663 = vmatpush.bf16.msra.mxu0 %v5782
    %9664 = vmatpush.bf16.msra.mxu0 %v5774
    %9665 = vmatpush.bf16.msra.mxu0 %v5766
    %9666 = vmatpush.bf16.msra.mxu0 %v5758
    %9667 = vmatpush.bf16.msra.mxu0 %v5750
    %9668 = vmatmul.bf16.gmra.mxu0 %v9494
    %v9669 = vpop.f32.mrf.mxu0
    %v9670 = vadd.f32 %v9656, %v9669
    %v9671 = vpop.f32.mrf.mxu0
    %v9672 = vadd.f32 %v9658, %v9671
    %9673 = vdwg.mxu0
    %9674 = vmatpush.bf16.msra.mxu0 %v5870
    %9675 = vmatpush.bf16.msra.mxu0 %v5862
    %9676 = vmatpush.bf16.msra.mxu0 %v5854
    %9677 = vmatpush.bf16.msra.mxu0 %v5846
    %9678 = vmatpush.bf16.msra.mxu0 %v5838
    %9679 = vmatpush.bf16.msra.mxu0 %v5830
    %9680 = vmatpush.bf16.msra.mxu0 %v5822
    %9681 = vmatpush.bf16.msra.mxu0 %v5814
    %9682 = vmatmul.bf16.gmra.mxu0 %v9495
    %v9683 = vpop.f32.mrf.mxu0
    %v9684 = vadd.f32 %v9670, %v9683
    %v9685 = vpop.f32.mrf.mxu0
    %v9686 = vadd.f32 %v9672, %v9685
    %9687 = vdwg.mxu0
    %9688 = vmatpush.bf16.msra.mxu0 %v5934
    %9689 = vmatpush.bf16.msra.mxu0 %v5926
    %9690 = vmatpush.bf16.msra.mxu0 %v5918
    %9691 = vmatpush.bf16.msra.mxu0 %v5910
    %9692 = vmatpush.bf16.msra.mxu0 %v5902
    %9693 = vmatpush.bf16.msra.mxu0 %v5894
    %9694 = vmatpush.bf16.msra.mxu0 %v5886
    %9695 = vmatpush.bf16.msra.mxu0 %v5878
    %9696 = vmatmul.bf16.gmra.mxu0 %v9496
    %v9697 = vpop.f32.mrf.mxu0
    %v9698 = vadd.f32 %v9684, %v9697
    %v9699 = vpop.f32.mrf.mxu0
    %v9700 = vadd.f32 %v9686, %v9699
    %9701 = vdwg.mxu0
    %9702 = vmatpush.bf16.msra.mxu0 %v5998
    %9703 = vmatpush.bf16.msra.mxu0 %v5990
    %9704 = vmatpush.bf16.msra.mxu0 %v5982
    %9705 = vmatpush.bf16.msra.mxu0 %v5974
    %9706 = vmatpush.bf16.msra.mxu0 %v5966
    %9707 = vmatpush.bf16.msra.mxu0 %v5958
    %9708 = vmatpush.bf16.msra.mxu0 %v5950
    %9709 = vmatpush.bf16.msra.mxu0 %v5942
    %9710 = vmatmul.bf16.gmra.mxu0 %v9497
    %v9711 = vpop.f32.mrf.mxu0
    %v9712 = vadd.f32 %v9698, %v9711
    %v9713 = vpop.f32.mrf.mxu0
    %v9714 = vadd.f32 %v9700, %v9713
    %9715 = vdwg.mxu0
    %9716 = vmatpush.bf16.msra.mxu0 %v6062
    %9717 = vmatpush.bf16.msra.mxu0 %v6054
    %9718 = vmatpush.bf16.msra.mxu0 %v6046
    %9719 = vmatpush.bf16.msra.mxu0 %v6038
    %9720 = vmatpush.bf16.msra.mxu0 %v6030
    %9721 = vmatpush.bf16.msra.mxu0 %v6022
    %9722 = vmatpush.bf16.msra.mxu0 %v6014
    %9723 = vmatpush.bf16.msra.mxu0 %v6006
    %9724 = vmatmul.bf16.gmra.mxu0 %v9498
    %v9725 = vpop.f32.mrf.mxu0
    %v9726 = vadd.f32 %v9712, %v9725
    %v9727 = vpop.f32.mrf.mxu0
    %v9728 = vadd.f32 %v9714, %v9727
    %9729 = vdwg.mxu0
    %9730 = vmatpush.bf16.msra.mxu0 %v6126
    %9731 = vmatpush.bf16.msra.mxu0 %v6118
    %9732 = vmatpush.bf16.msra.mxu0 %v6110
    %9733 = vmatpush.bf16.msra.mxu0 %v6102
    %9734 = vmatpush.bf16.msra.mxu0 %v6094
    %9735 = vmatpush.bf16.msra.mxu0 %v6086
    %9736 = vmatpush.bf16.msra.mxu0 %v6078
    %9737 = vmatpush.bf16.msra.mxu0 %v6070
    %9738 = vmatmul.bf16.gmra.mxu0 %v9499
    %v9739 = vpop.f32.mrf.mxu0
    %v9740 = vadd.f32 %v9726, %v9739
    %v9741 = vpop.f32.mrf.mxu0
    %v9742 = vadd.f32 %v9728, %v9741
    %9743 = vdwg.mxu0
    %9744 = vmatpush.bf16.msra.mxu0 %v6190
    %9745 = vmatpush.bf16.msra.mxu0 %v6182
    %9746 = vmatpush.bf16.msra.mxu0 %v6174
    %9747 = vmatpush.bf16.msra.mxu0 %v6166
    %9748 = vmatpush.bf16.msra.mxu0 %v6158
    %9749 = vmatpush.bf16.msra.mxu0 %v6150
    %9750 = vmatpush.bf16.msra.mxu0 %v6142
    %9751 = vmatpush.bf16.msra.mxu0 %v6134
    %9752 = vmatmul.bf16.gmra.mxu0 %v9500
    %v9753 = vpop.f32.mrf.mxu0
    %v9754 = vadd.f32 %v9740, %v9753
    %v9755 = vpop.f32.mrf.mxu0
    %v9756 = vadd.f32 %v9742, %v9755
    %9757 = vdwg.mxu0
    %9758 = vmatpush.bf16.msra.mxu0 %v6254
    %9759 = vmatpush.bf16.msra.mxu0 %v6246
    %9760 = vmatpush.bf16.msra.mxu0 %v6238
    %9761 = vmatpush.bf16.msra.mxu0 %v6230
    %9762 = vmatpush.bf16.msra.mxu0 %v6222
    %9763 = vmatpush.bf16.msra.mxu0 %v6214
    %9764 = vmatpush.bf16.msra.mxu0 %v6206
    %9765 = vmatpush.bf16.msra.mxu0 %v6198
    %9766 = vmatmul.bf16.gmra.mxu0 %v9501
    %v9767 = vpop.f32.mrf.mxu0
    %v9768 = vadd.f32 %v9754, %v9767
    %v9769 = vpop.f32.mrf.mxu0
    %v9770 = vadd.f32 %v9756, %v9769
    %9771 = vdwg.mxu0
    %9772 = vmatpush.bf16.msra.mxu0 %v5167
    %9773 = vmatpush.bf16.msra.mxu0 %v5159
    %9774 = vmatpush.bf16.msra.mxu0 %v5151
    %9775 = vmatpush.bf16.msra.mxu0 %v5143
    %9776 = vmatpush.bf16.msra.mxu0 %v5135
    %9777 = vmatpush.bf16.msra.mxu0 %v5127
    %9778 = vmatpush.bf16.msra.mxu0 %v5119
    %9779 = vmatpush.bf16.msra.mxu0 %v5111
    %9780 = vmatmul.bf16.gmra.mxu0 %v9484
    %v9781 = vpop.f32.mrf.mxu0
    %v9782 = vadd.f32 %v7914, %v9781
    %v9783 = vpop.f32.mrf.mxu0
    %v9784 = vadd.f32 %v7916, %v9783
    %9785 = vdwg.mxu0
    %9786 = vmatpush.bf16.msra.mxu0 %v5231
    %9787 = vmatpush.bf16.msra.mxu0 %v5223
    %9788 = vmatpush.bf16.msra.mxu0 %v5215
    %9789 = vmatpush.bf16.msra.mxu0 %v5207
    %9790 = vmatpush.bf16.msra.mxu0 %v5199
    %9791 = vmatpush.bf16.msra.mxu0 %v5191
    %9792 = vmatpush.bf16.msra.mxu0 %v5183
    %9793 = vmatpush.bf16.msra.mxu0 %v5175
    %9794 = vmatmul.bf16.gmra.mxu0 %v9485
    %v9795 = vpop.f32.mrf.mxu0
    %v9796 = vadd.f32 %v9782, %v9795
    %v9797 = vpop.f32.mrf.mxu0
    %v9798 = vadd.f32 %v9784, %v9797
    %9799 = vdwg.mxu0
    %9800 = vmatpush.bf16.msra.mxu0 %v5295
    %9801 = vmatpush.bf16.msra.mxu0 %v5287
    %9802 = vmatpush.bf16.msra.mxu0 %v5279
    %9803 = vmatpush.bf16.msra.mxu0 %v5271
    %9804 = vmatpush.bf16.msra.mxu0 %v5263
    %9805 = vmatpush.bf16.msra.mxu0 %v5255
    %9806 = vmatpush.bf16.msra.mxu0 %v5247
    %9807 = vmatpush.bf16.msra.mxu0 %v5239
    %9808 = vmatmul.bf16.gmra.mxu0 %v9486
    %v9809 = vpop.f32.mrf.mxu0
    %v9810 = vadd.f32 %v9796, %v9809
    %v9811 = vpop.f32.mrf.mxu0
    %v9812 = vadd.f32 %v9798, %v9811
    %9813 = vdwg.mxu0
    %9814 = vmatpush.bf16.msra.mxu0 %v5359
    %9815 = vmatpush.bf16.msra.mxu0 %v5351
    %9816 = vmatpush.bf16.msra.mxu0 %v5343
    %9817 = vmatpush.bf16.msra.mxu0 %v5335
    %9818 = vmatpush.bf16.msra.mxu0 %v5327
    %9819 = vmatpush.bf16.msra.mxu0 %v5319
    %9820 = vmatpush.bf16.msra.mxu0 %v5311
    %9821 = vmatpush.bf16.msra.mxu0 %v5303
    %9822 = vmatmul.bf16.gmra.mxu0 %v9487
    %v9823 = vpop.f32.mrf.mxu0
    %v9824 = vadd.f32 %v9810, %v9823
    %v9825 = vpop.f32.mrf.mxu0
    %v9826 = vadd.f32 %v9812, %v9825
    %9827 = vdwg.mxu0
    %9828 = vmatpush.bf16.msra.mxu0 %v5423
    %9829 = vmatpush.bf16.msra.mxu0 %v5415
    %9830 = vmatpush.bf16.msra.mxu0 %v5407
    %9831 = vmatpush.bf16.msra.mxu0 %v5399
    %9832 = vmatpush.bf16.msra.mxu0 %v5391
    %9833 = vmatpush.bf16.msra.mxu0 %v5383
    %9834 = vmatpush.bf16.msra.mxu0 %v5375
    %9835 = vmatpush.bf16.msra.mxu0 %v5367
    %9836 = vmatmul.bf16.gmra.mxu0 %v9488
    %v9837 = vpop.f32.mrf.mxu0
    %v9838 = vadd.f32 %v9824, %v9837
    %v9839 = vpop.f32.mrf.mxu0
    %v9840 = vadd.f32 %v9826, %v9839
    %9841 = vdwg.mxu0
    %9842 = vmatpush.bf16.msra.mxu0 %v5487
    %9843 = vmatpush.bf16.msra.mxu0 %v5479
    %9844 = vmatpush.bf16.msra.mxu0 %v5471
    %9845 = vmatpush.bf16.msra.mxu0 %v5463
    %9846 = vmatpush.bf16.msra.mxu0 %v5455
    %9847 = vmatpush.bf16.msra.mxu0 %v5447
    %9848 = vmatpush.bf16.msra.mxu0 %v5439
    %9849 = vmatpush.bf16.msra.mxu0 %v5431
    %9850 = vmatmul.bf16.gmra.mxu0 %v9489
    %v9851 = vpop.f32.mrf.mxu0
    %v9852 = vadd.f32 %v9838, %v9851
    %v9853 = vpop.f32.mrf.mxu0
    %v9854 = vadd.f32 %v9840, %v9853
    %9855 = vdwg.mxu0
    %9856 = vmatpush.bf16.msra.mxu0 %v5551
    %9857 = vmatpush.bf16.msra.mxu0 %v5543
    %9858 = vmatpush.bf16.msra.mxu0 %v5535
    %9859 = vmatpush.bf16.msra.mxu0 %v5527
    %9860 = vmatpush.bf16.msra.mxu0 %v5519
    %9861 = vmatpush.bf16.msra.mxu0 %v5511
    %9862 = vmatpush.bf16.msra.mxu0 %v5503
    %9863 = vmatpush.bf16.msra.mxu0 %v5495
    %9864 = vmatmul.bf16.gmra.mxu0 %v9490
    %v9865 = vpop.f32.mrf.mxu0
    %v9866 = vadd.f32 %v9852, %v9865
    %v9867 = vpop.f32.mrf.mxu0
    %v9868 = vadd.f32 %v9854, %v9867
    %9869 = vdwg.mxu0
    %9870 = vmatpush.bf16.msra.mxu0 %v5615
    %9871 = vmatpush.bf16.msra.mxu0 %v5607
    %9872 = vmatpush.bf16.msra.mxu0 %v5599
    %9873 = vmatpush.bf16.msra.mxu0 %v5591
    %9874 = vmatpush.bf16.msra.mxu0 %v5583
    %9875 = vmatpush.bf16.msra.mxu0 %v5575
    %9876 = vmatpush.bf16.msra.mxu0 %v5567
    %9877 = vmatpush.bf16.msra.mxu0 %v5559
    %9878 = vmatmul.bf16.gmra.mxu0 %v9491
    %v9879 = vpop.f32.mrf.mxu0
    %v9880 = vadd.f32 %v9866, %v9879
    %v9881 = vpop.f32.mrf.mxu0
    %v9882 = vadd.f32 %v9868, %v9881
    %9883 = vdwg.mxu0
    %9884 = vmatpush.bf16.msra.mxu0 %v5679
    %9885 = vmatpush.bf16.msra.mxu0 %v5671
    %9886 = vmatpush.bf16.msra.mxu0 %v5663
    %9887 = vmatpush.bf16.msra.mxu0 %v5655
    %9888 = vmatpush.bf16.msra.mxu0 %v5647
    %9889 = vmatpush.bf16.msra.mxu0 %v5639
    %9890 = vmatpush.bf16.msra.mxu0 %v5631
    %9891 = vmatpush.bf16.msra.mxu0 %v5623
    %9892 = vmatmul.bf16.gmra.mxu0 %v9492
    %v9893 = vpop.f32.mrf.mxu0
    %v9894 = vadd.f32 %v9880, %v9893
    %v9895 = vpop.f32.mrf.mxu0
    %v9896 = vadd.f32 %v9882, %v9895
    %9897 = vdwg.mxu0
    %9898 = vmatpush.bf16.msra.mxu0 %v5743
    %9899 = vmatpush.bf16.msra.mxu0 %v5735
    %9900 = vmatpush.bf16.msra.mxu0 %v5727
    %9901 = vmatpush.bf16.msra.mxu0 %v5719
    %9902 = vmatpush.bf16.msra.mxu0 %v5711
    %9903 = vmatpush.bf16.msra.mxu0 %v5703
    %9904 = vmatpush.bf16.msra.mxu0 %v5695
    %9905 = vmatpush.bf16.msra.mxu0 %v5687
    %9906 = vmatmul.bf16.gmra.mxu0 %v9493
    %v9907 = vpop.f32.mrf.mxu0
    %v9908 = vadd.f32 %v9894, %v9907
    %v9909 = vpop.f32.mrf.mxu0
    %v9910 = vadd.f32 %v9896, %v9909
    %9911 = vdwg.mxu0
    %9912 = vmatpush.bf16.msra.mxu0 %v5807
    %9913 = vmatpush.bf16.msra.mxu0 %v5799
    %9914 = vmatpush.bf16.msra.mxu0 %v5791
    %9915 = vmatpush.bf16.msra.mxu0 %v5783
    %9916 = vmatpush.bf16.msra.mxu0 %v5775
    %9917 = vmatpush.bf16.msra.mxu0 %v5767
    %9918 = vmatpush.bf16.msra.mxu0 %v5759
    %9919 = vmatpush.bf16.msra.mxu0 %v5751
    %9920 = vmatmul.bf16.gmra.mxu0 %v9494
    %v9921 = vpop.f32.mrf.mxu0
    %v9922 = vadd.f32 %v9908, %v9921
    %v9923 = vpop.f32.mrf.mxu0
    %v9924 = vadd.f32 %v9910, %v9923
    %9925 = vdwg.mxu0
    %9926 = vmatpush.bf16.msra.mxu0 %v5871
    %9927 = vmatpush.bf16.msra.mxu0 %v5863
    %9928 = vmatpush.bf16.msra.mxu0 %v5855
    %9929 = vmatpush.bf16.msra.mxu0 %v5847
    %9930 = vmatpush.bf16.msra.mxu0 %v5839
    %9931 = vmatpush.bf16.msra.mxu0 %v5831
    %9932 = vmatpush.bf16.msra.mxu0 %v5823
    %9933 = vmatpush.bf16.msra.mxu0 %v5815
    %9934 = vmatmul.bf16.gmra.mxu0 %v9495
    %v9935 = vpop.f32.mrf.mxu0
    %v9936 = vadd.f32 %v9922, %v9935
    %v9937 = vpop.f32.mrf.mxu0
    %v9938 = vadd.f32 %v9924, %v9937
    %9939 = vdwg.mxu0
    %9940 = vmatpush.bf16.msra.mxu0 %v5935
    %9941 = vmatpush.bf16.msra.mxu0 %v5927
    %9942 = vmatpush.bf16.msra.mxu0 %v5919
    %9943 = vmatpush.bf16.msra.mxu0 %v5911
    %9944 = vmatpush.bf16.msra.mxu0 %v5903
    %9945 = vmatpush.bf16.msra.mxu0 %v5895
    %9946 = vmatpush.bf16.msra.mxu0 %v5887
    %9947 = vmatpush.bf16.msra.mxu0 %v5879
    %9948 = vmatmul.bf16.gmra.mxu0 %v9496
    %v9949 = vpop.f32.mrf.mxu0
    %v9950 = vadd.f32 %v9936, %v9949
    %v9951 = vpop.f32.mrf.mxu0
    %v9952 = vadd.f32 %v9938, %v9951
    %9953 = vdwg.mxu0
    %9954 = vmatpush.bf16.msra.mxu0 %v5999
    %9955 = vmatpush.bf16.msra.mxu0 %v5991
    %9956 = vmatpush.bf16.msra.mxu0 %v5983
    %9957 = vmatpush.bf16.msra.mxu0 %v5975
    %9958 = vmatpush.bf16.msra.mxu0 %v5967
    %9959 = vmatpush.bf16.msra.mxu0 %v5959
    %9960 = vmatpush.bf16.msra.mxu0 %v5951
    %9961 = vmatpush.bf16.msra.mxu0 %v5943
    %9962 = vmatmul.bf16.gmra.mxu0 %v9497
    %v9963 = vpop.f32.mrf.mxu0
    %v9964 = vadd.f32 %v9950, %v9963
    %v9965 = vpop.f32.mrf.mxu0
    %v9966 = vadd.f32 %v9952, %v9965
    %9967 = vdwg.mxu0
    %9968 = vmatpush.bf16.msra.mxu0 %v6063
    %9969 = vmatpush.bf16.msra.mxu0 %v6055
    %9970 = vmatpush.bf16.msra.mxu0 %v6047
    %9971 = vmatpush.bf16.msra.mxu0 %v6039
    %9972 = vmatpush.bf16.msra.mxu0 %v6031
    %9973 = vmatpush.bf16.msra.mxu0 %v6023
    %9974 = vmatpush.bf16.msra.mxu0 %v6015
    %9975 = vmatpush.bf16.msra.mxu0 %v6007
    %9976 = vmatmul.bf16.gmra.mxu0 %v9498
    %v9977 = vpop.f32.mrf.mxu0
    %v9978 = vadd.f32 %v9964, %v9977
    %v9979 = vpop.f32.mrf.mxu0
    %v9980 = vadd.f32 %v9966, %v9979
    %9981 = vdwg.mxu0
    %9982 = vmatpush.bf16.msra.mxu0 %v6127
    %9983 = vmatpush.bf16.msra.mxu0 %v6119
    %9984 = vmatpush.bf16.msra.mxu0 %v6111
    %9985 = vmatpush.bf16.msra.mxu0 %v6103
    %9986 = vmatpush.bf16.msra.mxu0 %v6095
    %9987 = vmatpush.bf16.msra.mxu0 %v6087
    %9988 = vmatpush.bf16.msra.mxu0 %v6079
    %9989 = vmatpush.bf16.msra.mxu0 %v6071
    %9990 = vmatmul.bf16.gmra.mxu0 %v9499
    %v9991 = vpop.f32.mrf.mxu0
    %v9992 = vadd.f32 %v9978, %v9991
    %v9993 = vpop.f32.mrf.mxu0
    %v9994 = vadd.f32 %v9980, %v9993
    %9995 = vdwg.mxu0
    %9996 = vmatpush.bf16.msra.mxu0 %v6191
    %9997 = vmatpush.bf16.msra.mxu0 %v6183
    %9998 = vmatpush.bf16.msra.mxu0 %v6175
    %9999 = vmatpush.bf16.msra.mxu0 %v6167
    %10000 = vmatpush.bf16.msra.mxu0 %v6159
    %10001 = vmatpush.bf16.msra.mxu0 %v6151
    %10002 = vmatpush.bf16.msra.mxu0 %v6143
    %10003 = vmatpush.bf16.msra.mxu0 %v6135
    %10004 = vmatmul.bf16.gmra.mxu0 %v9500
    %v10005 = vpop.f32.mrf.mxu0
    %v10006 = vadd.f32 %v9992, %v10005
    %v10007 = vpop.f32.mrf.mxu0
    %v10008 = vadd.f32 %v9994, %v10007
    %10009 = vdwg.mxu0
    %10010 = vmatpush.bf16.msra.mxu0 %v6255
    %10011 = vmatpush.bf16.msra.mxu0 %v6247
    %10012 = vmatpush.bf16.msra.mxu0 %v6239
    %10013 = vmatpush.bf16.msra.mxu0 %v6231
    %10014 = vmatpush.bf16.msra.mxu0 %v6223
    %10015 = vmatpush.bf16.msra.mxu0 %v6215
    %10016 = vmatpush.bf16.msra.mxu0 %v6207
    %10017 = vmatpush.bf16.msra.mxu0 %v6199
    %10018 = vmatmul.bf16.gmra.mxu0 %v9501
    %v10019 = vpop.f32.mrf.mxu0
    %v10020 = vadd.f32 %v10006, %v10019
    %v10021 = vpop.f32.mrf.mxu0
    %v10022 = vadd.f32 %v10008, %v10021
    %10023 = vdwg.mxu0
    %10024 = vmatpush.bf16.msra.mxu0 %v5168
    %10025 = vmatpush.bf16.msra.mxu0 %v5160
    %10026 = vmatpush.bf16.msra.mxu0 %v5152
    %10027 = vmatpush.bf16.msra.mxu0 %v5144
    %10028 = vmatpush.bf16.msra.mxu0 %v5136
    %10029 = vmatpush.bf16.msra.mxu0 %v5128
    %10030 = vmatpush.bf16.msra.mxu0 %v5120
    %10031 = vmatpush.bf16.msra.mxu0 %v5112
    %10032 = vmatmul.bf16.gmra.mxu0 %v9484
    %v10033 = vpop.f32.mrf.mxu0
    %v10034 = vadd.f32 %v8166, %v10033
    %v10035 = vpop.f32.mrf.mxu0
    %v10036 = vadd.f32 %v8168, %v10035
    %10037 = vdwg.mxu0
    %10038 = vmatpush.bf16.msra.mxu0 %v5232
    %10039 = vmatpush.bf16.msra.mxu0 %v5224
    %10040 = vmatpush.bf16.msra.mxu0 %v5216
    %10041 = vmatpush.bf16.msra.mxu0 %v5208
    %10042 = vmatpush.bf16.msra.mxu0 %v5200
    %10043 = vmatpush.bf16.msra.mxu0 %v5192
    %10044 = vmatpush.bf16.msra.mxu0 %v5184
    %10045 = vmatpush.bf16.msra.mxu0 %v5176
    %10046 = vmatmul.bf16.gmra.mxu0 %v9485
    %v10047 = vpop.f32.mrf.mxu0
    %v10048 = vadd.f32 %v10034, %v10047
    %v10049 = vpop.f32.mrf.mxu0
    %v10050 = vadd.f32 %v10036, %v10049
    %10051 = vdwg.mxu0
    %10052 = vmatpush.bf16.msra.mxu0 %v5296
    %10053 = vmatpush.bf16.msra.mxu0 %v5288
    %10054 = vmatpush.bf16.msra.mxu0 %v5280
    %10055 = vmatpush.bf16.msra.mxu0 %v5272
    %10056 = vmatpush.bf16.msra.mxu0 %v5264
    %10057 = vmatpush.bf16.msra.mxu0 %v5256
    %10058 = vmatpush.bf16.msra.mxu0 %v5248
    %10059 = vmatpush.bf16.msra.mxu0 %v5240
    %10060 = vmatmul.bf16.gmra.mxu0 %v9486
    %v10061 = vpop.f32.mrf.mxu0
    %v10062 = vadd.f32 %v10048, %v10061
    %v10063 = vpop.f32.mrf.mxu0
    %v10064 = vadd.f32 %v10050, %v10063
    %10065 = vdwg.mxu0
    %10066 = vmatpush.bf16.msra.mxu0 %v5360
    %10067 = vmatpush.bf16.msra.mxu0 %v5352
    %10068 = vmatpush.bf16.msra.mxu0 %v5344
    %10069 = vmatpush.bf16.msra.mxu0 %v5336
    %10070 = vmatpush.bf16.msra.mxu0 %v5328
    %10071 = vmatpush.bf16.msra.mxu0 %v5320
    %10072 = vmatpush.bf16.msra.mxu0 %v5312
    %10073 = vmatpush.bf16.msra.mxu0 %v5304
    %10074 = vmatmul.bf16.gmra.mxu0 %v9487
    %v10075 = vpop.f32.mrf.mxu0
    %v10076 = vadd.f32 %v10062, %v10075
    %v10077 = vpop.f32.mrf.mxu0
    %v10078 = vadd.f32 %v10064, %v10077
    %10079 = vdwg.mxu0
    %10080 = vmatpush.bf16.msra.mxu0 %v5424
    %10081 = vmatpush.bf16.msra.mxu0 %v5416
    %10082 = vmatpush.bf16.msra.mxu0 %v5408
    %10083 = vmatpush.bf16.msra.mxu0 %v5400
    %10084 = vmatpush.bf16.msra.mxu0 %v5392
    %10085 = vmatpush.bf16.msra.mxu0 %v5384
    %10086 = vmatpush.bf16.msra.mxu0 %v5376
    %10087 = vmatpush.bf16.msra.mxu0 %v5368
    %10088 = vmatmul.bf16.gmra.mxu0 %v9488
    %v10089 = vpop.f32.mrf.mxu0
    %v10090 = vadd.f32 %v10076, %v10089
    %v10091 = vpop.f32.mrf.mxu0
    %v10092 = vadd.f32 %v10078, %v10091
    %10093 = vdwg.mxu0
    %10094 = vmatpush.bf16.msra.mxu0 %v5488
    %10095 = vmatpush.bf16.msra.mxu0 %v5480
    %10096 = vmatpush.bf16.msra.mxu0 %v5472
    %10097 = vmatpush.bf16.msra.mxu0 %v5464
    %10098 = vmatpush.bf16.msra.mxu0 %v5456
    %10099 = vmatpush.bf16.msra.mxu0 %v5448
    %10100 = vmatpush.bf16.msra.mxu0 %v5440
    %10101 = vmatpush.bf16.msra.mxu0 %v5432
    %10102 = vmatmul.bf16.gmra.mxu0 %v9489
    %v10103 = vpop.f32.mrf.mxu0
    %v10104 = vadd.f32 %v10090, %v10103
    %v10105 = vpop.f32.mrf.mxu0
    %v10106 = vadd.f32 %v10092, %v10105
    %10107 = vdwg.mxu0
    %10108 = vmatpush.bf16.msra.mxu0 %v5552
    %10109 = vmatpush.bf16.msra.mxu0 %v5544
    %10110 = vmatpush.bf16.msra.mxu0 %v5536
    %10111 = vmatpush.bf16.msra.mxu0 %v5528
    %10112 = vmatpush.bf16.msra.mxu0 %v5520
    %10113 = vmatpush.bf16.msra.mxu0 %v5512
    %10114 = vmatpush.bf16.msra.mxu0 %v5504
    %10115 = vmatpush.bf16.msra.mxu0 %v5496
    %10116 = vmatmul.bf16.gmra.mxu0 %v9490
    %v10117 = vpop.f32.mrf.mxu0
    %v10118 = vadd.f32 %v10104, %v10117
    %v10119 = vpop.f32.mrf.mxu0
    %v10120 = vadd.f32 %v10106, %v10119
    %10121 = vdwg.mxu0
    %10122 = vmatpush.bf16.msra.mxu0 %v5616
    %10123 = vmatpush.bf16.msra.mxu0 %v5608
    %10124 = vmatpush.bf16.msra.mxu0 %v5600
    %10125 = vmatpush.bf16.msra.mxu0 %v5592
    %10126 = vmatpush.bf16.msra.mxu0 %v5584
    %10127 = vmatpush.bf16.msra.mxu0 %v5576
    %10128 = vmatpush.bf16.msra.mxu0 %v5568
    %10129 = vmatpush.bf16.msra.mxu0 %v5560
    %10130 = vmatmul.bf16.gmra.mxu0 %v9491
    %v10131 = vpop.f32.mrf.mxu0
    %v10132 = vadd.f32 %v10118, %v10131
    %v10133 = vpop.f32.mrf.mxu0
    %v10134 = vadd.f32 %v10120, %v10133
    %10135 = vdwg.mxu0
    %10136 = vmatpush.bf16.msra.mxu0 %v5680
    %10137 = vmatpush.bf16.msra.mxu0 %v5672
    %10138 = vmatpush.bf16.msra.mxu0 %v5664
    %10139 = vmatpush.bf16.msra.mxu0 %v5656
    %10140 = vmatpush.bf16.msra.mxu0 %v5648
    %10141 = vmatpush.bf16.msra.mxu0 %v5640
    %10142 = vmatpush.bf16.msra.mxu0 %v5632
    %10143 = vmatpush.bf16.msra.mxu0 %v5624
    %10144 = vmatmul.bf16.gmra.mxu0 %v9492
    %v10145 = vpop.f32.mrf.mxu0
    %v10146 = vadd.f32 %v10132, %v10145
    %v10147 = vpop.f32.mrf.mxu0
    %v10148 = vadd.f32 %v10134, %v10147
    %10149 = vdwg.mxu0
    %10150 = vmatpush.bf16.msra.mxu0 %v5744
    %10151 = vmatpush.bf16.msra.mxu0 %v5736
    %10152 = vmatpush.bf16.msra.mxu0 %v5728
    %10153 = vmatpush.bf16.msra.mxu0 %v5720
    %10154 = vmatpush.bf16.msra.mxu0 %v5712
    %10155 = vmatpush.bf16.msra.mxu0 %v5704
    %10156 = vmatpush.bf16.msra.mxu0 %v5696
    %10157 = vmatpush.bf16.msra.mxu0 %v5688
    %10158 = vmatmul.bf16.gmra.mxu0 %v9493
    %v10159 = vpop.f32.mrf.mxu0
    %v10160 = vadd.f32 %v10146, %v10159
    %v10161 = vpop.f32.mrf.mxu0
    %v10162 = vadd.f32 %v10148, %v10161
    %10163 = vdwg.mxu0
    %10164 = vmatpush.bf16.msra.mxu0 %v5808
    %10165 = vmatpush.bf16.msra.mxu0 %v5800
    %10166 = vmatpush.bf16.msra.mxu0 %v5792
    %10167 = vmatpush.bf16.msra.mxu0 %v5784
    %10168 = vmatpush.bf16.msra.mxu0 %v5776
    %10169 = vmatpush.bf16.msra.mxu0 %v5768
    %10170 = vmatpush.bf16.msra.mxu0 %v5760
    %10171 = vmatpush.bf16.msra.mxu0 %v5752
    %10172 = vmatmul.bf16.gmra.mxu0 %v9494
    %v10173 = vpop.f32.mrf.mxu0
    %v10174 = vadd.f32 %v10160, %v10173
    %v10175 = vpop.f32.mrf.mxu0
    %v10176 = vadd.f32 %v10162, %v10175
    %10177 = vdwg.mxu0
    %10178 = vmatpush.bf16.msra.mxu0 %v5872
    %10179 = vmatpush.bf16.msra.mxu0 %v5864
    %10180 = vmatpush.bf16.msra.mxu0 %v5856
    %10181 = vmatpush.bf16.msra.mxu0 %v5848
    %10182 = vmatpush.bf16.msra.mxu0 %v5840
    %10183 = vmatpush.bf16.msra.mxu0 %v5832
    %10184 = vmatpush.bf16.msra.mxu0 %v5824
    %10185 = vmatpush.bf16.msra.mxu0 %v5816
    %10186 = vmatmul.bf16.gmra.mxu0 %v9495
    %v10187 = vpop.f32.mrf.mxu0
    %v10188 = vadd.f32 %v10174, %v10187
    %v10189 = vpop.f32.mrf.mxu0
    %v10190 = vadd.f32 %v10176, %v10189
    %10191 = vdwg.mxu0
    %10192 = vmatpush.bf16.msra.mxu0 %v5936
    %10193 = vmatpush.bf16.msra.mxu0 %v5928
    %10194 = vmatpush.bf16.msra.mxu0 %v5920
    %10195 = vmatpush.bf16.msra.mxu0 %v5912
    %10196 = vmatpush.bf16.msra.mxu0 %v5904
    %10197 = vmatpush.bf16.msra.mxu0 %v5896
    %10198 = vmatpush.bf16.msra.mxu0 %v5888
    %10199 = vmatpush.bf16.msra.mxu0 %v5880
    %10200 = vmatmul.bf16.gmra.mxu0 %v9496
    %v10201 = vpop.f32.mrf.mxu0
    %v10202 = vadd.f32 %v10188, %v10201
    %v10203 = vpop.f32.mrf.mxu0
    %v10204 = vadd.f32 %v10190, %v10203
    %10205 = vdwg.mxu0
    %10206 = vmatpush.bf16.msra.mxu0 %v6000
    %10207 = vmatpush.bf16.msra.mxu0 %v5992
    %10208 = vmatpush.bf16.msra.mxu0 %v5984
    %10209 = vmatpush.bf16.msra.mxu0 %v5976
    %10210 = vmatpush.bf16.msra.mxu0 %v5968
    %10211 = vmatpush.bf16.msra.mxu0 %v5960
    %10212 = vmatpush.bf16.msra.mxu0 %v5952
    %10213 = vmatpush.bf16.msra.mxu0 %v5944
    %10214 = vmatmul.bf16.gmra.mxu0 %v9497
    %v10215 = vpop.f32.mrf.mxu0
    %v10216 = vadd.f32 %v10202, %v10215
    %v10217 = vpop.f32.mrf.mxu0
    %v10218 = vadd.f32 %v10204, %v10217
    %10219 = vdwg.mxu0
    %10220 = vmatpush.bf16.msra.mxu0 %v6064
    %10221 = vmatpush.bf16.msra.mxu0 %v6056
    %10222 = vmatpush.bf16.msra.mxu0 %v6048
    %10223 = vmatpush.bf16.msra.mxu0 %v6040
    %10224 = vmatpush.bf16.msra.mxu0 %v6032
    %10225 = vmatpush.bf16.msra.mxu0 %v6024
    %10226 = vmatpush.bf16.msra.mxu0 %v6016
    %10227 = vmatpush.bf16.msra.mxu0 %v6008
    %10228 = vmatmul.bf16.gmra.mxu0 %v9498
    %v10229 = vpop.f32.mrf.mxu0
    %v10230 = vadd.f32 %v10216, %v10229
    %v10231 = vpop.f32.mrf.mxu0
    %v10232 = vadd.f32 %v10218, %v10231
    %10233 = vdwg.mxu0
    %10234 = vmatpush.bf16.msra.mxu0 %v6128
    %10235 = vmatpush.bf16.msra.mxu0 %v6120
    %10236 = vmatpush.bf16.msra.mxu0 %v6112
    %10237 = vmatpush.bf16.msra.mxu0 %v6104
    %10238 = vmatpush.bf16.msra.mxu0 %v6096
    %10239 = vmatpush.bf16.msra.mxu0 %v6088
    %10240 = vmatpush.bf16.msra.mxu0 %v6080
    %10241 = vmatpush.bf16.msra.mxu0 %v6072
    %10242 = vmatmul.bf16.gmra.mxu0 %v9499
    %v10243 = vpop.f32.mrf.mxu0
    %v10244 = vadd.f32 %v10230, %v10243
    %v10245 = vpop.f32.mrf.mxu0
    %v10246 = vadd.f32 %v10232, %v10245
    %10247 = vdwg.mxu0
    %10248 = vmatpush.bf16.msra.mxu0 %v6192
    %10249 = vmatpush.bf16.msra.mxu0 %v6184
    %10250 = vmatpush.bf16.msra.mxu0 %v6176
    %10251 = vmatpush.bf16.msra.mxu0 %v6168
    %10252 = vmatpush.bf16.msra.mxu0 %v6160
    %10253 = vmatpush.bf16.msra.mxu0 %v6152
    %10254 = vmatpush.bf16.msra.mxu0 %v6144
    %10255 = vmatpush.bf16.msra.mxu0 %v6136
    %10256 = vmatmul.bf16.gmra.mxu0 %v9500
    %v10257 = vpop.f32.mrf.mxu0
    %v10258 = vadd.f32 %v10244, %v10257
    %v10259 = vpop.f32.mrf.mxu0
    %v10260 = vadd.f32 %v10246, %v10259
    %10261 = vdwg.mxu0
    %10262 = vmatpush.bf16.msra.mxu0 %v6256
    %10263 = vmatpush.bf16.msra.mxu0 %v6248
    %10264 = vmatpush.bf16.msra.mxu0 %v6240
    %10265 = vmatpush.bf16.msra.mxu0 %v6232
    %10266 = vmatpush.bf16.msra.mxu0 %v6224
    %10267 = vmatpush.bf16.msra.mxu0 %v6216
    %10268 = vmatpush.bf16.msra.mxu0 %v6208
    %10269 = vmatpush.bf16.msra.mxu0 %v6200
    %10270 = vmatmul.bf16.gmra.mxu0 %v9501
    %v10271 = vpop.f32.mrf.mxu0
    %v10272 = vadd.f32 %v10258, %v10271
    %v10273 = vpop.f32.mrf.mxu0
    %v10274 = vadd.f32 %v10260, %v10273
    %10275 = vdwg.mxu0
    %10276 = vmatpush.bf16.msra.mxu0 %v5169
    %10277 = vmatpush.bf16.msra.mxu0 %v5161
    %10278 = vmatpush.bf16.msra.mxu0 %v5153
    %10279 = vmatpush.bf16.msra.mxu0 %v5145
    %10280 = vmatpush.bf16.msra.mxu0 %v5137
    %10281 = vmatpush.bf16.msra.mxu0 %v5129
    %10282 = vmatpush.bf16.msra.mxu0 %v5121
    %10283 = vmatpush.bf16.msra.mxu0 %v5113
    %10284 = vmatmul.bf16.gmra.mxu0 %v9484
    %v10285 = vpop.f32.mrf.mxu0
    %v10286 = vadd.f32 %v8418, %v10285
    %v10287 = vpop.f32.mrf.mxu0
    %v10288 = vadd.f32 %v8420, %v10287
    %10289 = vdwg.mxu0
    %10290 = vmatpush.bf16.msra.mxu0 %v5233
    %10291 = vmatpush.bf16.msra.mxu0 %v5225
    %10292 = vmatpush.bf16.msra.mxu0 %v5217
    %10293 = vmatpush.bf16.msra.mxu0 %v5209
    %10294 = vmatpush.bf16.msra.mxu0 %v5201
    %10295 = vmatpush.bf16.msra.mxu0 %v5193
    %10296 = vmatpush.bf16.msra.mxu0 %v5185
    %10297 = vmatpush.bf16.msra.mxu0 %v5177
    %10298 = vmatmul.bf16.gmra.mxu0 %v9485
    %v10299 = vpop.f32.mrf.mxu0
    %v10300 = vadd.f32 %v10286, %v10299
    %v10301 = vpop.f32.mrf.mxu0
    %v10302 = vadd.f32 %v10288, %v10301
    %10303 = vdwg.mxu0
    %10304 = vmatpush.bf16.msra.mxu0 %v5297
    %10305 = vmatpush.bf16.msra.mxu0 %v5289
    %10306 = vmatpush.bf16.msra.mxu0 %v5281
    %10307 = vmatpush.bf16.msra.mxu0 %v5273
    %10308 = vmatpush.bf16.msra.mxu0 %v5265
    %10309 = vmatpush.bf16.msra.mxu0 %v5257
    %10310 = vmatpush.bf16.msra.mxu0 %v5249
    %10311 = vmatpush.bf16.msra.mxu0 %v5241
    %10312 = vmatmul.bf16.gmra.mxu0 %v9486
    %v10313 = vpop.f32.mrf.mxu0
    %v10314 = vadd.f32 %v10300, %v10313
    %v10315 = vpop.f32.mrf.mxu0
    %v10316 = vadd.f32 %v10302, %v10315
    %10317 = vdwg.mxu0
    %10318 = vmatpush.bf16.msra.mxu0 %v5361
    %10319 = vmatpush.bf16.msra.mxu0 %v5353
    %10320 = vmatpush.bf16.msra.mxu0 %v5345
    %10321 = vmatpush.bf16.msra.mxu0 %v5337
    %10322 = vmatpush.bf16.msra.mxu0 %v5329
    %10323 = vmatpush.bf16.msra.mxu0 %v5321
    %10324 = vmatpush.bf16.msra.mxu0 %v5313
    %10325 = vmatpush.bf16.msra.mxu0 %v5305
    %10326 = vmatmul.bf16.gmra.mxu0 %v9487
    %v10327 = vpop.f32.mrf.mxu0
    %v10328 = vadd.f32 %v10314, %v10327
    %v10329 = vpop.f32.mrf.mxu0
    %v10330 = vadd.f32 %v10316, %v10329
    %10331 = vdwg.mxu0
    %10332 = vmatpush.bf16.msra.mxu0 %v5425
    %10333 = vmatpush.bf16.msra.mxu0 %v5417
    %10334 = vmatpush.bf16.msra.mxu0 %v5409
    %10335 = vmatpush.bf16.msra.mxu0 %v5401
    %10336 = vmatpush.bf16.msra.mxu0 %v5393
    %10337 = vmatpush.bf16.msra.mxu0 %v5385
    %10338 = vmatpush.bf16.msra.mxu0 %v5377
    %10339 = vmatpush.bf16.msra.mxu0 %v5369
    %10340 = vmatmul.bf16.gmra.mxu0 %v9488
    %v10341 = vpop.f32.mrf.mxu0
    %v10342 = vadd.f32 %v10328, %v10341
    %v10343 = vpop.f32.mrf.mxu0
    %v10344 = vadd.f32 %v10330, %v10343
    %10345 = vdwg.mxu0
    %10346 = vmatpush.bf16.msra.mxu0 %v5489
    %10347 = vmatpush.bf16.msra.mxu0 %v5481
    %10348 = vmatpush.bf16.msra.mxu0 %v5473
    %10349 = vmatpush.bf16.msra.mxu0 %v5465
    %10350 = vmatpush.bf16.msra.mxu0 %v5457
    %10351 = vmatpush.bf16.msra.mxu0 %v5449
    %10352 = vmatpush.bf16.msra.mxu0 %v5441
    %10353 = vmatpush.bf16.msra.mxu0 %v5433
    %10354 = vmatmul.bf16.gmra.mxu0 %v9489
    %v10355 = vpop.f32.mrf.mxu0
    %v10356 = vadd.f32 %v10342, %v10355
    %v10357 = vpop.f32.mrf.mxu0
    %v10358 = vadd.f32 %v10344, %v10357
    %10359 = vdwg.mxu0
    %10360 = vmatpush.bf16.msra.mxu0 %v5553
    %10361 = vmatpush.bf16.msra.mxu0 %v5545
    %10362 = vmatpush.bf16.msra.mxu0 %v5537
    %10363 = vmatpush.bf16.msra.mxu0 %v5529
    %10364 = vmatpush.bf16.msra.mxu0 %v5521
    %10365 = vmatpush.bf16.msra.mxu0 %v5513
    %10366 = vmatpush.bf16.msra.mxu0 %v5505
    %10367 = vmatpush.bf16.msra.mxu0 %v5497
    %10368 = vmatmul.bf16.gmra.mxu0 %v9490
    %v10369 = vpop.f32.mrf.mxu0
    %v10370 = vadd.f32 %v10356, %v10369
    %v10371 = vpop.f32.mrf.mxu0
    %v10372 = vadd.f32 %v10358, %v10371
    %10373 = vdwg.mxu0
    %10374 = vmatpush.bf16.msra.mxu0 %v5617
    %10375 = vmatpush.bf16.msra.mxu0 %v5609
    %10376 = vmatpush.bf16.msra.mxu0 %v5601
    %10377 = vmatpush.bf16.msra.mxu0 %v5593
    %10378 = vmatpush.bf16.msra.mxu0 %v5585
    %10379 = vmatpush.bf16.msra.mxu0 %v5577
    %10380 = vmatpush.bf16.msra.mxu0 %v5569
    %10381 = vmatpush.bf16.msra.mxu0 %v5561
    %10382 = vmatmul.bf16.gmra.mxu0 %v9491
    %v10383 = vpop.f32.mrf.mxu0
    %v10384 = vadd.f32 %v10370, %v10383
    %v10385 = vpop.f32.mrf.mxu0
    %v10386 = vadd.f32 %v10372, %v10385
    %10387 = vdwg.mxu0
    %10388 = vmatpush.bf16.msra.mxu0 %v5681
    %10389 = vmatpush.bf16.msra.mxu0 %v5673
    %10390 = vmatpush.bf16.msra.mxu0 %v5665
    %10391 = vmatpush.bf16.msra.mxu0 %v5657
    %10392 = vmatpush.bf16.msra.mxu0 %v5649
    %10393 = vmatpush.bf16.msra.mxu0 %v5641
    %10394 = vmatpush.bf16.msra.mxu0 %v5633
    %10395 = vmatpush.bf16.msra.mxu0 %v5625
    %10396 = vmatmul.bf16.gmra.mxu0 %v9492
    %v10397 = vpop.f32.mrf.mxu0
    %v10398 = vadd.f32 %v10384, %v10397
    %v10399 = vpop.f32.mrf.mxu0
    %v10400 = vadd.f32 %v10386, %v10399
    %10401 = vdwg.mxu0
    %10402 = vmatpush.bf16.msra.mxu0 %v5745
    %10403 = vmatpush.bf16.msra.mxu0 %v5737
    %10404 = vmatpush.bf16.msra.mxu0 %v5729
    %10405 = vmatpush.bf16.msra.mxu0 %v5721
    %10406 = vmatpush.bf16.msra.mxu0 %v5713
    %10407 = vmatpush.bf16.msra.mxu0 %v5705
    %10408 = vmatpush.bf16.msra.mxu0 %v5697
    %10409 = vmatpush.bf16.msra.mxu0 %v5689
    %10410 = vmatmul.bf16.gmra.mxu0 %v9493
    %v10411 = vpop.f32.mrf.mxu0
    %v10412 = vadd.f32 %v10398, %v10411
    %v10413 = vpop.f32.mrf.mxu0
    %v10414 = vadd.f32 %v10400, %v10413
    %10415 = vdwg.mxu0
    %10416 = vmatpush.bf16.msra.mxu0 %v5809
    %10417 = vmatpush.bf16.msra.mxu0 %v5801
    %10418 = vmatpush.bf16.msra.mxu0 %v5793
    %10419 = vmatpush.bf16.msra.mxu0 %v5785
    %10420 = vmatpush.bf16.msra.mxu0 %v5777
    %10421 = vmatpush.bf16.msra.mxu0 %v5769
    %10422 = vmatpush.bf16.msra.mxu0 %v5761
    %10423 = vmatpush.bf16.msra.mxu0 %v5753
    %10424 = vmatmul.bf16.gmra.mxu0 %v9494
    %v10425 = vpop.f32.mrf.mxu0
    %v10426 = vadd.f32 %v10412, %v10425
    %v10427 = vpop.f32.mrf.mxu0
    %v10428 = vadd.f32 %v10414, %v10427
    %10429 = vdwg.mxu0
    %10430 = vmatpush.bf16.msra.mxu0 %v5873
    %10431 = vmatpush.bf16.msra.mxu0 %v5865
    %10432 = vmatpush.bf16.msra.mxu0 %v5857
    %10433 = vmatpush.bf16.msra.mxu0 %v5849
    %10434 = vmatpush.bf16.msra.mxu0 %v5841
    %10435 = vmatpush.bf16.msra.mxu0 %v5833
    %10436 = vmatpush.bf16.msra.mxu0 %v5825
    %10437 = vmatpush.bf16.msra.mxu0 %v5817
    %10438 = vmatmul.bf16.gmra.mxu0 %v9495
    %v10439 = vpop.f32.mrf.mxu0
    %v10440 = vadd.f32 %v10426, %v10439
    %v10441 = vpop.f32.mrf.mxu0
    %v10442 = vadd.f32 %v10428, %v10441
    %10443 = vdwg.mxu0
    %10444 = vmatpush.bf16.msra.mxu0 %v5937
    %10445 = vmatpush.bf16.msra.mxu0 %v5929
    %10446 = vmatpush.bf16.msra.mxu0 %v5921
    %10447 = vmatpush.bf16.msra.mxu0 %v5913
    %10448 = vmatpush.bf16.msra.mxu0 %v5905
    %10449 = vmatpush.bf16.msra.mxu0 %v5897
    %10450 = vmatpush.bf16.msra.mxu0 %v5889
    %10451 = vmatpush.bf16.msra.mxu0 %v5881
    %10452 = vmatmul.bf16.gmra.mxu0 %v9496
    %v10453 = vpop.f32.mrf.mxu0
    %v10454 = vadd.f32 %v10440, %v10453
    %v10455 = vpop.f32.mrf.mxu0
    %v10456 = vadd.f32 %v10442, %v10455
    %10457 = vdwg.mxu0
    %10458 = vmatpush.bf16.msra.mxu0 %v6001
    %10459 = vmatpush.bf16.msra.mxu0 %v5993
    %10460 = vmatpush.bf16.msra.mxu0 %v5985
    %10461 = vmatpush.bf16.msra.mxu0 %v5977
    %10462 = vmatpush.bf16.msra.mxu0 %v5969
    %10463 = vmatpush.bf16.msra.mxu0 %v5961
    %10464 = vmatpush.bf16.msra.mxu0 %v5953
    %10465 = vmatpush.bf16.msra.mxu0 %v5945
    %10466 = vmatmul.bf16.gmra.mxu0 %v9497
    %v10467 = vpop.f32.mrf.mxu0
    %v10468 = vadd.f32 %v10454, %v10467
    %v10469 = vpop.f32.mrf.mxu0
    %v10470 = vadd.f32 %v10456, %v10469
    %10471 = vdwg.mxu0
    %10472 = vmatpush.bf16.msra.mxu0 %v6065
    %10473 = vmatpush.bf16.msra.mxu0 %v6057
    %10474 = vmatpush.bf16.msra.mxu0 %v6049
    %10475 = vmatpush.bf16.msra.mxu0 %v6041
    %10476 = vmatpush.bf16.msra.mxu0 %v6033
    %10477 = vmatpush.bf16.msra.mxu0 %v6025
    %10478 = vmatpush.bf16.msra.mxu0 %v6017
    %10479 = vmatpush.bf16.msra.mxu0 %v6009
    %10480 = vmatmul.bf16.gmra.mxu0 %v9498
    %v10481 = vpop.f32.mrf.mxu0
    %v10482 = vadd.f32 %v10468, %v10481
    %v10483 = vpop.f32.mrf.mxu0
    %v10484 = vadd.f32 %v10470, %v10483
    %10485 = vdwg.mxu0
    %10486 = vmatpush.bf16.msra.mxu0 %v6129
    %10487 = vmatpush.bf16.msra.mxu0 %v6121
    %10488 = vmatpush.bf16.msra.mxu0 %v6113
    %10489 = vmatpush.bf16.msra.mxu0 %v6105
    %10490 = vmatpush.bf16.msra.mxu0 %v6097
    %10491 = vmatpush.bf16.msra.mxu0 %v6089
    %10492 = vmatpush.bf16.msra.mxu0 %v6081
    %10493 = vmatpush.bf16.msra.mxu0 %v6073
    %10494 = vmatmul.bf16.gmra.mxu0 %v9499
    %v10495 = vpop.f32.mrf.mxu0
    %v10496 = vadd.f32 %v10482, %v10495
    %v10497 = vpop.f32.mrf.mxu0
    %v10498 = vadd.f32 %v10484, %v10497
    %10499 = vdwg.mxu0
    %10500 = vmatpush.bf16.msra.mxu0 %v6193
    %10501 = vmatpush.bf16.msra.mxu0 %v6185
    %10502 = vmatpush.bf16.msra.mxu0 %v6177
    %10503 = vmatpush.bf16.msra.mxu0 %v6169
    %10504 = vmatpush.bf16.msra.mxu0 %v6161
    %10505 = vmatpush.bf16.msra.mxu0 %v6153
    %10506 = vmatpush.bf16.msra.mxu0 %v6145
    %10507 = vmatpush.bf16.msra.mxu0 %v6137
    %10508 = vmatmul.bf16.gmra.mxu0 %v9500
    %v10509 = vpop.f32.mrf.mxu0
    %v10510 = vadd.f32 %v10496, %v10509
    %v10511 = vpop.f32.mrf.mxu0
    %v10512 = vadd.f32 %v10498, %v10511
    %10513 = vdwg.mxu0
    %10514 = vmatpush.bf16.msra.mxu0 %v6257
    %10515 = vmatpush.bf16.msra.mxu0 %v6249
    %10516 = vmatpush.bf16.msra.mxu0 %v6241
    %10517 = vmatpush.bf16.msra.mxu0 %v6233
    %10518 = vmatpush.bf16.msra.mxu0 %v6225
    %10519 = vmatpush.bf16.msra.mxu0 %v6217
    %10520 = vmatpush.bf16.msra.mxu0 %v6209
    %10521 = vmatpush.bf16.msra.mxu0 %v6201
    %10522 = vmatmul.bf16.gmra.mxu0 %v9501
    %v10523 = vpop.f32.mrf.mxu0
    %v10524 = vadd.f32 %v10510, %v10523
    %v10525 = vpop.f32.mrf.mxu0
    %v10526 = vadd.f32 %v10512, %v10525
    %10527 = vdwg.mxu0
    %10528 = vmatpush.bf16.msra.mxu0 %v5170
    %10529 = vmatpush.bf16.msra.mxu0 %v5162
    %10530 = vmatpush.bf16.msra.mxu0 %v5154
    %10531 = vmatpush.bf16.msra.mxu0 %v5146
    %10532 = vmatpush.bf16.msra.mxu0 %v5138
    %10533 = vmatpush.bf16.msra.mxu0 %v5130
    %10534 = vmatpush.bf16.msra.mxu0 %v5122
    %10535 = vmatpush.bf16.msra.mxu0 %v5114
    %10536 = vmatmul.bf16.gmra.mxu0 %v9484
    %v10537 = vpop.f32.mrf.mxu0
    %v10538 = vadd.f32 %v8670, %v10537
    %v10539 = vpop.f32.mrf.mxu0
    %v10540 = vadd.f32 %v8672, %v10539
    %10541 = vdwg.mxu0
    %10542 = vmatpush.bf16.msra.mxu0 %v5234
    %10543 = vmatpush.bf16.msra.mxu0 %v5226
    %10544 = vmatpush.bf16.msra.mxu0 %v5218
    %10545 = vmatpush.bf16.msra.mxu0 %v5210
    %10546 = vmatpush.bf16.msra.mxu0 %v5202
    %10547 = vmatpush.bf16.msra.mxu0 %v5194
    %10548 = vmatpush.bf16.msra.mxu0 %v5186
    %10549 = vmatpush.bf16.msra.mxu0 %v5178
    %10550 = vmatmul.bf16.gmra.mxu0 %v9485
    %v10551 = vpop.f32.mrf.mxu0
    %v10552 = vadd.f32 %v10538, %v10551
    %v10553 = vpop.f32.mrf.mxu0
    %v10554 = vadd.f32 %v10540, %v10553
    %10555 = vdwg.mxu0
    %10556 = vmatpush.bf16.msra.mxu0 %v5298
    %10557 = vmatpush.bf16.msra.mxu0 %v5290
    %10558 = vmatpush.bf16.msra.mxu0 %v5282
    %10559 = vmatpush.bf16.msra.mxu0 %v5274
    %10560 = vmatpush.bf16.msra.mxu0 %v5266
    %10561 = vmatpush.bf16.msra.mxu0 %v5258
    %10562 = vmatpush.bf16.msra.mxu0 %v5250
    %10563 = vmatpush.bf16.msra.mxu0 %v5242
    %10564 = vmatmul.bf16.gmra.mxu0 %v9486
    %v10565 = vpop.f32.mrf.mxu0
    %v10566 = vadd.f32 %v10552, %v10565
    %v10567 = vpop.f32.mrf.mxu0
    %v10568 = vadd.f32 %v10554, %v10567
    %10569 = vdwg.mxu0
    %10570 = vmatpush.bf16.msra.mxu0 %v5362
    %10571 = vmatpush.bf16.msra.mxu0 %v5354
    %10572 = vmatpush.bf16.msra.mxu0 %v5346
    %10573 = vmatpush.bf16.msra.mxu0 %v5338
    %10574 = vmatpush.bf16.msra.mxu0 %v5330
    %10575 = vmatpush.bf16.msra.mxu0 %v5322
    %10576 = vmatpush.bf16.msra.mxu0 %v5314
    %10577 = vmatpush.bf16.msra.mxu0 %v5306
    %10578 = vmatmul.bf16.gmra.mxu0 %v9487
    %v10579 = vpop.f32.mrf.mxu0
    %v10580 = vadd.f32 %v10566, %v10579
    %v10581 = vpop.f32.mrf.mxu0
    %v10582 = vadd.f32 %v10568, %v10581
    %10583 = vdwg.mxu0
    %10584 = vmatpush.bf16.msra.mxu0 %v5426
    %10585 = vmatpush.bf16.msra.mxu0 %v5418
    %10586 = vmatpush.bf16.msra.mxu0 %v5410
    %10587 = vmatpush.bf16.msra.mxu0 %v5402
    %10588 = vmatpush.bf16.msra.mxu0 %v5394
    %10589 = vmatpush.bf16.msra.mxu0 %v5386
    %10590 = vmatpush.bf16.msra.mxu0 %v5378
    %10591 = vmatpush.bf16.msra.mxu0 %v5370
    %10592 = vmatmul.bf16.gmra.mxu0 %v9488
    %v10593 = vpop.f32.mrf.mxu0
    %v10594 = vadd.f32 %v10580, %v10593
    %v10595 = vpop.f32.mrf.mxu0
    %v10596 = vadd.f32 %v10582, %v10595
    %10597 = vdwg.mxu0
    %10598 = vmatpush.bf16.msra.mxu0 %v5490
    %10599 = vmatpush.bf16.msra.mxu0 %v5482
    %10600 = vmatpush.bf16.msra.mxu0 %v5474
    %10601 = vmatpush.bf16.msra.mxu0 %v5466
    %10602 = vmatpush.bf16.msra.mxu0 %v5458
    %10603 = vmatpush.bf16.msra.mxu0 %v5450
    %10604 = vmatpush.bf16.msra.mxu0 %v5442
    %10605 = vmatpush.bf16.msra.mxu0 %v5434
    %10606 = vmatmul.bf16.gmra.mxu0 %v9489
    %v10607 = vpop.f32.mrf.mxu0
    %v10608 = vadd.f32 %v10594, %v10607
    %v10609 = vpop.f32.mrf.mxu0
    %v10610 = vadd.f32 %v10596, %v10609
    %10611 = vdwg.mxu0
    %10612 = vmatpush.bf16.msra.mxu0 %v5554
    %10613 = vmatpush.bf16.msra.mxu0 %v5546
    %10614 = vmatpush.bf16.msra.mxu0 %v5538
    %10615 = vmatpush.bf16.msra.mxu0 %v5530
    %10616 = vmatpush.bf16.msra.mxu0 %v5522
    %10617 = vmatpush.bf16.msra.mxu0 %v5514
    %10618 = vmatpush.bf16.msra.mxu0 %v5506
    %10619 = vmatpush.bf16.msra.mxu0 %v5498
    %10620 = vmatmul.bf16.gmra.mxu0 %v9490
    %v10621 = vpop.f32.mrf.mxu0
    %v10622 = vadd.f32 %v10608, %v10621
    %v10623 = vpop.f32.mrf.mxu0
    %v10624 = vadd.f32 %v10610, %v10623
    %10625 = vdwg.mxu0
    %10626 = vmatpush.bf16.msra.mxu0 %v5618
    %10627 = vmatpush.bf16.msra.mxu0 %v5610
    %10628 = vmatpush.bf16.msra.mxu0 %v5602
    %10629 = vmatpush.bf16.msra.mxu0 %v5594
    %10630 = vmatpush.bf16.msra.mxu0 %v5586
    %10631 = vmatpush.bf16.msra.mxu0 %v5578
    %10632 = vmatpush.bf16.msra.mxu0 %v5570
    %10633 = vmatpush.bf16.msra.mxu0 %v5562
    %10634 = vmatmul.bf16.gmra.mxu0 %v9491
    %v10635 = vpop.f32.mrf.mxu0
    %v10636 = vadd.f32 %v10622, %v10635
    %v10637 = vpop.f32.mrf.mxu0
    %v10638 = vadd.f32 %v10624, %v10637
    %10639 = vdwg.mxu0
    %10640 = vmatpush.bf16.msra.mxu0 %v5682
    %10641 = vmatpush.bf16.msra.mxu0 %v5674
    %10642 = vmatpush.bf16.msra.mxu0 %v5666
    %10643 = vmatpush.bf16.msra.mxu0 %v5658
    %10644 = vmatpush.bf16.msra.mxu0 %v5650
    %10645 = vmatpush.bf16.msra.mxu0 %v5642
    %10646 = vmatpush.bf16.msra.mxu0 %v5634
    %10647 = vmatpush.bf16.msra.mxu0 %v5626
    %10648 = vmatmul.bf16.gmra.mxu0 %v9492
    %v10649 = vpop.f32.mrf.mxu0
    %v10650 = vadd.f32 %v10636, %v10649
    %v10651 = vpop.f32.mrf.mxu0
    %v10652 = vadd.f32 %v10638, %v10651
    %10653 = vdwg.mxu0
    %10654 = vmatpush.bf16.msra.mxu0 %v5746
    %10655 = vmatpush.bf16.msra.mxu0 %v5738
    %10656 = vmatpush.bf16.msra.mxu0 %v5730
    %10657 = vmatpush.bf16.msra.mxu0 %v5722
    %10658 = vmatpush.bf16.msra.mxu0 %v5714
    %10659 = vmatpush.bf16.msra.mxu0 %v5706
    %10660 = vmatpush.bf16.msra.mxu0 %v5698
    %10661 = vmatpush.bf16.msra.mxu0 %v5690
    %10662 = vmatmul.bf16.gmra.mxu0 %v9493
    %v10663 = vpop.f32.mrf.mxu0
    %v10664 = vadd.f32 %v10650, %v10663
    %v10665 = vpop.f32.mrf.mxu0
    %v10666 = vadd.f32 %v10652, %v10665
    %10667 = vdwg.mxu0
    %10668 = vmatpush.bf16.msra.mxu0 %v5810
    %10669 = vmatpush.bf16.msra.mxu0 %v5802
    %10670 = vmatpush.bf16.msra.mxu0 %v5794
    %10671 = vmatpush.bf16.msra.mxu0 %v5786
    %10672 = vmatpush.bf16.msra.mxu0 %v5778
    %10673 = vmatpush.bf16.msra.mxu0 %v5770
    %10674 = vmatpush.bf16.msra.mxu0 %v5762
    %10675 = vmatpush.bf16.msra.mxu0 %v5754
    %10676 = vmatmul.bf16.gmra.mxu0 %v9494
    %v10677 = vpop.f32.mrf.mxu0
    %v10678 = vadd.f32 %v10664, %v10677
    %v10679 = vpop.f32.mrf.mxu0
    %v10680 = vadd.f32 %v10666, %v10679
    %10681 = vdwg.mxu0
    %10682 = vmatpush.bf16.msra.mxu0 %v5874
    %10683 = vmatpush.bf16.msra.mxu0 %v5866
    %10684 = vmatpush.bf16.msra.mxu0 %v5858
    %10685 = vmatpush.bf16.msra.mxu0 %v5850
    %10686 = vmatpush.bf16.msra.mxu0 %v5842
    %10687 = vmatpush.bf16.msra.mxu0 %v5834
    %10688 = vmatpush.bf16.msra.mxu0 %v5826
    %10689 = vmatpush.bf16.msra.mxu0 %v5818
    %10690 = vmatmul.bf16.gmra.mxu0 %v9495
    %v10691 = vpop.f32.mrf.mxu0
    %v10692 = vadd.f32 %v10678, %v10691
    %v10693 = vpop.f32.mrf.mxu0
    %v10694 = vadd.f32 %v10680, %v10693
    %10695 = vdwg.mxu0
    %10696 = vmatpush.bf16.msra.mxu0 %v5938
    %10697 = vmatpush.bf16.msra.mxu0 %v5930
    %10698 = vmatpush.bf16.msra.mxu0 %v5922
    %10699 = vmatpush.bf16.msra.mxu0 %v5914
    %10700 = vmatpush.bf16.msra.mxu0 %v5906
    %10701 = vmatpush.bf16.msra.mxu0 %v5898
    %10702 = vmatpush.bf16.msra.mxu0 %v5890
    %10703 = vmatpush.bf16.msra.mxu0 %v5882
    %10704 = vmatmul.bf16.gmra.mxu0 %v9496
    %v10705 = vpop.f32.mrf.mxu0
    %v10706 = vadd.f32 %v10692, %v10705
    %v10707 = vpop.f32.mrf.mxu0
    %v10708 = vadd.f32 %v10694, %v10707
    %10709 = vdwg.mxu0
    %10710 = vmatpush.bf16.msra.mxu0 %v6002
    %10711 = vmatpush.bf16.msra.mxu0 %v5994
    %10712 = vmatpush.bf16.msra.mxu0 %v5986
    %10713 = vmatpush.bf16.msra.mxu0 %v5978
    %10714 = vmatpush.bf16.msra.mxu0 %v5970
    %10715 = vmatpush.bf16.msra.mxu0 %v5962
    %10716 = vmatpush.bf16.msra.mxu0 %v5954
    %10717 = vmatpush.bf16.msra.mxu0 %v5946
    %10718 = vmatmul.bf16.gmra.mxu0 %v9497
    %v10719 = vpop.f32.mrf.mxu0
    %v10720 = vadd.f32 %v10706, %v10719
    %v10721 = vpop.f32.mrf.mxu0
    %v10722 = vadd.f32 %v10708, %v10721
    %10723 = vdwg.mxu0
    %10724 = vmatpush.bf16.msra.mxu0 %v6066
    %10725 = vmatpush.bf16.msra.mxu0 %v6058
    %10726 = vmatpush.bf16.msra.mxu0 %v6050
    %10727 = vmatpush.bf16.msra.mxu0 %v6042
    %10728 = vmatpush.bf16.msra.mxu0 %v6034
    %10729 = vmatpush.bf16.msra.mxu0 %v6026
    %10730 = vmatpush.bf16.msra.mxu0 %v6018
    %10731 = vmatpush.bf16.msra.mxu0 %v6010
    %10732 = vmatmul.bf16.gmra.mxu0 %v9498
    %v10733 = vpop.f32.mrf.mxu0
    %v10734 = vadd.f32 %v10720, %v10733
    %v10735 = vpop.f32.mrf.mxu0
    %v10736 = vadd.f32 %v10722, %v10735
    %10737 = vdwg.mxu0
    %10738 = vmatpush.bf16.msra.mxu0 %v6130
    %10739 = vmatpush.bf16.msra.mxu0 %v6122
    %10740 = vmatpush.bf16.msra.mxu0 %v6114
    %10741 = vmatpush.bf16.msra.mxu0 %v6106
    %10742 = vmatpush.bf16.msra.mxu0 %v6098
    %10743 = vmatpush.bf16.msra.mxu0 %v6090
    %10744 = vmatpush.bf16.msra.mxu0 %v6082
    %10745 = vmatpush.bf16.msra.mxu0 %v6074
    %10746 = vmatmul.bf16.gmra.mxu0 %v9499
    %v10747 = vpop.f32.mrf.mxu0
    %v10748 = vadd.f32 %v10734, %v10747
    %v10749 = vpop.f32.mrf.mxu0
    %v10750 = vadd.f32 %v10736, %v10749
    %10751 = vdwg.mxu0
    %10752 = vmatpush.bf16.msra.mxu0 %v6194
    %10753 = vmatpush.bf16.msra.mxu0 %v6186
    %10754 = vmatpush.bf16.msra.mxu0 %v6178
    %10755 = vmatpush.bf16.msra.mxu0 %v6170
    %10756 = vmatpush.bf16.msra.mxu0 %v6162
    %10757 = vmatpush.bf16.msra.mxu0 %v6154
    %10758 = vmatpush.bf16.msra.mxu0 %v6146
    %10759 = vmatpush.bf16.msra.mxu0 %v6138
    %10760 = vmatmul.bf16.gmra.mxu0 %v9500
    %v10761 = vpop.f32.mrf.mxu0
    %v10762 = vadd.f32 %v10748, %v10761
    %v10763 = vpop.f32.mrf.mxu0
    %v10764 = vadd.f32 %v10750, %v10763
    %10765 = vdwg.mxu0
    %10766 = vmatpush.bf16.msra.mxu0 %v6258
    %10767 = vmatpush.bf16.msra.mxu0 %v6250
    %10768 = vmatpush.bf16.msra.mxu0 %v6242
    %10769 = vmatpush.bf16.msra.mxu0 %v6234
    %10770 = vmatpush.bf16.msra.mxu0 %v6226
    %10771 = vmatpush.bf16.msra.mxu0 %v6218
    %10772 = vmatpush.bf16.msra.mxu0 %v6210
    %10773 = vmatpush.bf16.msra.mxu0 %v6202
    %10774 = vmatmul.bf16.gmra.mxu0 %v9501
    %v10775 = vpop.f32.mrf.mxu0
    %v10776 = vadd.f32 %v10762, %v10775
    %v10777 = vpop.f32.mrf.mxu0
    %v10778 = vadd.f32 %v10764, %v10777
    %10779 = vdwg.mxu0
    %10780 = vmatpush.bf16.msra.mxu0 %v5171
    %10781 = vmatpush.bf16.msra.mxu0 %v5163
    %10782 = vmatpush.bf16.msra.mxu0 %v5155
    %10783 = vmatpush.bf16.msra.mxu0 %v5147
    %10784 = vmatpush.bf16.msra.mxu0 %v5139
    %10785 = vmatpush.bf16.msra.mxu0 %v5131
    %10786 = vmatpush.bf16.msra.mxu0 %v5123
    %10787 = vmatpush.bf16.msra.mxu0 %v5115
    %10788 = vmatmul.bf16.gmra.mxu0 %v9484
    %v10789 = vpop.f32.mrf.mxu0
    %v10790 = vadd.f32 %v8922, %v10789
    %v10791 = vpop.f32.mrf.mxu0
    %v10792 = vadd.f32 %v8924, %v10791
    %10793 = vdwg.mxu0
    %10794 = vmatpush.bf16.msra.mxu0 %v5235
    %10795 = vmatpush.bf16.msra.mxu0 %v5227
    %10796 = vmatpush.bf16.msra.mxu0 %v5219
    %10797 = vmatpush.bf16.msra.mxu0 %v5211
    %10798 = vmatpush.bf16.msra.mxu0 %v5203
    %10799 = vmatpush.bf16.msra.mxu0 %v5195
    %10800 = vmatpush.bf16.msra.mxu0 %v5187
    %10801 = vmatpush.bf16.msra.mxu0 %v5179
    %10802 = vmatmul.bf16.gmra.mxu0 %v9485
    %v10803 = vpop.f32.mrf.mxu0
    %v10804 = vadd.f32 %v10790, %v10803
    %v10805 = vpop.f32.mrf.mxu0
    %v10806 = vadd.f32 %v10792, %v10805
    %10807 = vdwg.mxu0
    %10808 = vmatpush.bf16.msra.mxu0 %v5299
    %10809 = vmatpush.bf16.msra.mxu0 %v5291
    %10810 = vmatpush.bf16.msra.mxu0 %v5283
    %10811 = vmatpush.bf16.msra.mxu0 %v5275
    %10812 = vmatpush.bf16.msra.mxu0 %v5267
    %10813 = vmatpush.bf16.msra.mxu0 %v5259
    %10814 = vmatpush.bf16.msra.mxu0 %v5251
    %10815 = vmatpush.bf16.msra.mxu0 %v5243
    %10816 = vmatmul.bf16.gmra.mxu0 %v9486
    %v10817 = vpop.f32.mrf.mxu0
    %v10818 = vadd.f32 %v10804, %v10817
    %v10819 = vpop.f32.mrf.mxu0
    %v10820 = vadd.f32 %v10806, %v10819
    %10821 = vdwg.mxu0
    %10822 = vmatpush.bf16.msra.mxu0 %v5363
    %10823 = vmatpush.bf16.msra.mxu0 %v5355
    %10824 = vmatpush.bf16.msra.mxu0 %v5347
    %10825 = vmatpush.bf16.msra.mxu0 %v5339
    %10826 = vmatpush.bf16.msra.mxu0 %v5331
    %10827 = vmatpush.bf16.msra.mxu0 %v5323
    %10828 = vmatpush.bf16.msra.mxu0 %v5315
    %10829 = vmatpush.bf16.msra.mxu0 %v5307
    %10830 = vmatmul.bf16.gmra.mxu0 %v9487
    %v10831 = vpop.f32.mrf.mxu0
    %v10832 = vadd.f32 %v10818, %v10831
    %v10833 = vpop.f32.mrf.mxu0
    %v10834 = vadd.f32 %v10820, %v10833
    %10835 = vdwg.mxu0
    %10836 = vmatpush.bf16.msra.mxu0 %v5427
    %10837 = vmatpush.bf16.msra.mxu0 %v5419
    %10838 = vmatpush.bf16.msra.mxu0 %v5411
    %10839 = vmatpush.bf16.msra.mxu0 %v5403
    %10840 = vmatpush.bf16.msra.mxu0 %v5395
    %10841 = vmatpush.bf16.msra.mxu0 %v5387
    %10842 = vmatpush.bf16.msra.mxu0 %v5379
    %10843 = vmatpush.bf16.msra.mxu0 %v5371
    %10844 = vmatmul.bf16.gmra.mxu0 %v9488
    %v10845 = vpop.f32.mrf.mxu0
    %v10846 = vadd.f32 %v10832, %v10845
    %v10847 = vpop.f32.mrf.mxu0
    %v10848 = vadd.f32 %v10834, %v10847
    %10849 = vdwg.mxu0
    %10850 = vmatpush.bf16.msra.mxu0 %v5491
    %10851 = vmatpush.bf16.msra.mxu0 %v5483
    %10852 = vmatpush.bf16.msra.mxu0 %v5475
    %10853 = vmatpush.bf16.msra.mxu0 %v5467
    %10854 = vmatpush.bf16.msra.mxu0 %v5459
    %10855 = vmatpush.bf16.msra.mxu0 %v5451
    %10856 = vmatpush.bf16.msra.mxu0 %v5443
    %10857 = vmatpush.bf16.msra.mxu0 %v5435
    %10858 = vmatmul.bf16.gmra.mxu0 %v9489
    %v10859 = vpop.f32.mrf.mxu0
    %v10860 = vadd.f32 %v10846, %v10859
    %v10861 = vpop.f32.mrf.mxu0
    %v10862 = vadd.f32 %v10848, %v10861
    %10863 = vdwg.mxu0
    %10864 = vmatpush.bf16.msra.mxu0 %v5555
    %10865 = vmatpush.bf16.msra.mxu0 %v5547
    %10866 = vmatpush.bf16.msra.mxu0 %v5539
    %10867 = vmatpush.bf16.msra.mxu0 %v5531
    %10868 = vmatpush.bf16.msra.mxu0 %v5523
    %10869 = vmatpush.bf16.msra.mxu0 %v5515
    %10870 = vmatpush.bf16.msra.mxu0 %v5507
    %10871 = vmatpush.bf16.msra.mxu0 %v5499
    %10872 = vmatmul.bf16.gmra.mxu0 %v9490
    %v10873 = vpop.f32.mrf.mxu0
    %v10874 = vadd.f32 %v10860, %v10873
    %v10875 = vpop.f32.mrf.mxu0
    %v10876 = vadd.f32 %v10862, %v10875
    %10877 = vdwg.mxu0
    %10878 = vmatpush.bf16.msra.mxu0 %v5619
    %10879 = vmatpush.bf16.msra.mxu0 %v5611
    %10880 = vmatpush.bf16.msra.mxu0 %v5603
    %10881 = vmatpush.bf16.msra.mxu0 %v5595
    %10882 = vmatpush.bf16.msra.mxu0 %v5587
    %10883 = vmatpush.bf16.msra.mxu0 %v5579
    %10884 = vmatpush.bf16.msra.mxu0 %v5571
    %10885 = vmatpush.bf16.msra.mxu0 %v5563
    %10886 = vmatmul.bf16.gmra.mxu0 %v9491
    %v10887 = vpop.f32.mrf.mxu0
    %v10888 = vadd.f32 %v10874, %v10887
    %v10889 = vpop.f32.mrf.mxu0
    %v10890 = vadd.f32 %v10876, %v10889
    %10891 = vdwg.mxu0
    %10892 = vmatpush.bf16.msra.mxu0 %v5683
    %10893 = vmatpush.bf16.msra.mxu0 %v5675
    %10894 = vmatpush.bf16.msra.mxu0 %v5667
    %10895 = vmatpush.bf16.msra.mxu0 %v5659
    %10896 = vmatpush.bf16.msra.mxu0 %v5651
    %10897 = vmatpush.bf16.msra.mxu0 %v5643
    %10898 = vmatpush.bf16.msra.mxu0 %v5635
    %10899 = vmatpush.bf16.msra.mxu0 %v5627
    %10900 = vmatmul.bf16.gmra.mxu0 %v9492
    %v10901 = vpop.f32.mrf.mxu0
    %v10902 = vadd.f32 %v10888, %v10901
    %v10903 = vpop.f32.mrf.mxu0
    %v10904 = vadd.f32 %v10890, %v10903
    %10905 = vdwg.mxu0
    %10906 = vmatpush.bf16.msra.mxu0 %v5747
    %10907 = vmatpush.bf16.msra.mxu0 %v5739
    %10908 = vmatpush.bf16.msra.mxu0 %v5731
    %10909 = vmatpush.bf16.msra.mxu0 %v5723
    %10910 = vmatpush.bf16.msra.mxu0 %v5715
    %10911 = vmatpush.bf16.msra.mxu0 %v5707
    %10912 = vmatpush.bf16.msra.mxu0 %v5699
    %10913 = vmatpush.bf16.msra.mxu0 %v5691
    %10914 = vmatmul.bf16.gmra.mxu0 %v9493
    %v10915 = vpop.f32.mrf.mxu0
    %v10916 = vadd.f32 %v10902, %v10915
    %v10917 = vpop.f32.mrf.mxu0
    %v10918 = vadd.f32 %v10904, %v10917
    %10919 = vdwg.mxu0
    %10920 = vmatpush.bf16.msra.mxu0 %v5811
    %10921 = vmatpush.bf16.msra.mxu0 %v5803
    %10922 = vmatpush.bf16.msra.mxu0 %v5795
    %10923 = vmatpush.bf16.msra.mxu0 %v5787
    %10924 = vmatpush.bf16.msra.mxu0 %v5779
    %10925 = vmatpush.bf16.msra.mxu0 %v5771
    %10926 = vmatpush.bf16.msra.mxu0 %v5763
    %10927 = vmatpush.bf16.msra.mxu0 %v5755
    %10928 = vmatmul.bf16.gmra.mxu0 %v9494
    %v10929 = vpop.f32.mrf.mxu0
    %v10930 = vadd.f32 %v10916, %v10929
    %v10931 = vpop.f32.mrf.mxu0
    %v10932 = vadd.f32 %v10918, %v10931
    %10933 = vdwg.mxu0
    %10934 = vmatpush.bf16.msra.mxu0 %v5875
    %10935 = vmatpush.bf16.msra.mxu0 %v5867
    %10936 = vmatpush.bf16.msra.mxu0 %v5859
    %10937 = vmatpush.bf16.msra.mxu0 %v5851
    %10938 = vmatpush.bf16.msra.mxu0 %v5843
    %10939 = vmatpush.bf16.msra.mxu0 %v5835
    %10940 = vmatpush.bf16.msra.mxu0 %v5827
    %10941 = vmatpush.bf16.msra.mxu0 %v5819
    %10942 = vmatmul.bf16.gmra.mxu0 %v9495
    %v10943 = vpop.f32.mrf.mxu0
    %v10944 = vadd.f32 %v10930, %v10943
    %v10945 = vpop.f32.mrf.mxu0
    %v10946 = vadd.f32 %v10932, %v10945
    %10947 = vdwg.mxu0
    %10948 = vmatpush.bf16.msra.mxu0 %v5939
    %10949 = vmatpush.bf16.msra.mxu0 %v5931
    %10950 = vmatpush.bf16.msra.mxu0 %v5923
    %10951 = vmatpush.bf16.msra.mxu0 %v5915
    %10952 = vmatpush.bf16.msra.mxu0 %v5907
    %10953 = vmatpush.bf16.msra.mxu0 %v5899
    %10954 = vmatpush.bf16.msra.mxu0 %v5891
    %10955 = vmatpush.bf16.msra.mxu0 %v5883
    %10956 = vmatmul.bf16.gmra.mxu0 %v9496
    %v10957 = vpop.f32.mrf.mxu0
    %v10958 = vadd.f32 %v10944, %v10957
    %v10959 = vpop.f32.mrf.mxu0
    %v10960 = vadd.f32 %v10946, %v10959
    %10961 = vdwg.mxu0
    %10962 = vmatpush.bf16.msra.mxu0 %v6003
    %10963 = vmatpush.bf16.msra.mxu0 %v5995
    %10964 = vmatpush.bf16.msra.mxu0 %v5987
    %10965 = vmatpush.bf16.msra.mxu0 %v5979
    %10966 = vmatpush.bf16.msra.mxu0 %v5971
    %10967 = vmatpush.bf16.msra.mxu0 %v5963
    %10968 = vmatpush.bf16.msra.mxu0 %v5955
    %10969 = vmatpush.bf16.msra.mxu0 %v5947
    %10970 = vmatmul.bf16.gmra.mxu0 %v9497
    %v10971 = vpop.f32.mrf.mxu0
    %v10972 = vadd.f32 %v10958, %v10971
    %v10973 = vpop.f32.mrf.mxu0
    %v10974 = vadd.f32 %v10960, %v10973
    %10975 = vdwg.mxu0
    %10976 = vmatpush.bf16.msra.mxu0 %v6067
    %10977 = vmatpush.bf16.msra.mxu0 %v6059
    %10978 = vmatpush.bf16.msra.mxu0 %v6051
    %10979 = vmatpush.bf16.msra.mxu0 %v6043
    %10980 = vmatpush.bf16.msra.mxu0 %v6035
    %10981 = vmatpush.bf16.msra.mxu0 %v6027
    %10982 = vmatpush.bf16.msra.mxu0 %v6019
    %10983 = vmatpush.bf16.msra.mxu0 %v6011
    %10984 = vmatmul.bf16.gmra.mxu0 %v9498
    %v10985 = vpop.f32.mrf.mxu0
    %v10986 = vadd.f32 %v10972, %v10985
    %v10987 = vpop.f32.mrf.mxu0
    %v10988 = vadd.f32 %v10974, %v10987
    %10989 = vdwg.mxu0
    %10990 = vmatpush.bf16.msra.mxu0 %v6131
    %10991 = vmatpush.bf16.msra.mxu0 %v6123
    %10992 = vmatpush.bf16.msra.mxu0 %v6115
    %10993 = vmatpush.bf16.msra.mxu0 %v6107
    %10994 = vmatpush.bf16.msra.mxu0 %v6099
    %10995 = vmatpush.bf16.msra.mxu0 %v6091
    %10996 = vmatpush.bf16.msra.mxu0 %v6083
    %10997 = vmatpush.bf16.msra.mxu0 %v6075
    %10998 = vmatmul.bf16.gmra.mxu0 %v9499
    %v10999 = vpop.f32.mrf.mxu0
    %v11000 = vadd.f32 %v10986, %v10999
    %v11001 = vpop.f32.mrf.mxu0
    %v11002 = vadd.f32 %v10988, %v11001
    %11003 = vdwg.mxu0
    %11004 = vmatpush.bf16.msra.mxu0 %v6195
    %11005 = vmatpush.bf16.msra.mxu0 %v6187
    %11006 = vmatpush.bf16.msra.mxu0 %v6179
    %11007 = vmatpush.bf16.msra.mxu0 %v6171
    %11008 = vmatpush.bf16.msra.mxu0 %v6163
    %11009 = vmatpush.bf16.msra.mxu0 %v6155
    %11010 = vmatpush.bf16.msra.mxu0 %v6147
    %11011 = vmatpush.bf16.msra.mxu0 %v6139
    %11012 = vmatmul.bf16.gmra.mxu0 %v9500
    %v11013 = vpop.f32.mrf.mxu0
    %v11014 = vadd.f32 %v11000, %v11013
    %v11015 = vpop.f32.mrf.mxu0
    %v11016 = vadd.f32 %v11002, %v11015
    %11017 = vdwg.mxu0
    %11018 = vmatpush.bf16.msra.mxu0 %v6259
    %11019 = vmatpush.bf16.msra.mxu0 %v6251
    %11020 = vmatpush.bf16.msra.mxu0 %v6243
    %11021 = vmatpush.bf16.msra.mxu0 %v6235
    %11022 = vmatpush.bf16.msra.mxu0 %v6227
    %11023 = vmatpush.bf16.msra.mxu0 %v6219
    %11024 = vmatpush.bf16.msra.mxu0 %v6211
    %11025 = vmatpush.bf16.msra.mxu0 %v6203
    %11026 = vmatmul.bf16.gmra.mxu0 %v9501
    %v11027 = vpop.f32.mrf.mxu0
    %v11028 = vadd.f32 %v11014, %v11027
    %v11029 = vpop.f32.mrf.mxu0
    %v11030 = vadd.f32 %v11016, %v11029
    %11031 = vdwg.mxu0
    %11032 = vmatpush.bf16.msra.mxu0 %v5172
    %11033 = vmatpush.bf16.msra.mxu0 %v5164
    %11034 = vmatpush.bf16.msra.mxu0 %v5156
    %11035 = vmatpush.bf16.msra.mxu0 %v5148
    %11036 = vmatpush.bf16.msra.mxu0 %v5140
    %11037 = vmatpush.bf16.msra.mxu0 %v5132
    %11038 = vmatpush.bf16.msra.mxu0 %v5124
    %11039 = vmatpush.bf16.msra.mxu0 %v5116
    %11040 = vmatmul.bf16.gmra.mxu0 %v9484
    %v11041 = vpop.f32.mrf.mxu0
    %v11042 = vadd.f32 %v9174, %v11041
    %v11043 = vpop.f32.mrf.mxu0
    %v11044 = vadd.f32 %v9176, %v11043
    %11045 = vdwg.mxu0
    %11046 = vmatpush.bf16.msra.mxu0 %v5236
    %11047 = vmatpush.bf16.msra.mxu0 %v5228
    %11048 = vmatpush.bf16.msra.mxu0 %v5220
    %11049 = vmatpush.bf16.msra.mxu0 %v5212
    %11050 = vmatpush.bf16.msra.mxu0 %v5204
    %11051 = vmatpush.bf16.msra.mxu0 %v5196
    %11052 = vmatpush.bf16.msra.mxu0 %v5188
    %11053 = vmatpush.bf16.msra.mxu0 %v5180
    %11054 = vmatmul.bf16.gmra.mxu0 %v9485
    %v11055 = vpop.f32.mrf.mxu0
    %v11056 = vadd.f32 %v11042, %v11055
    %v11057 = vpop.f32.mrf.mxu0
    %v11058 = vadd.f32 %v11044, %v11057
    %11059 = vdwg.mxu0
    %11060 = vmatpush.bf16.msra.mxu0 %v5300
    %11061 = vmatpush.bf16.msra.mxu0 %v5292
    %11062 = vmatpush.bf16.msra.mxu0 %v5284
    %11063 = vmatpush.bf16.msra.mxu0 %v5276
    %11064 = vmatpush.bf16.msra.mxu0 %v5268
    %11065 = vmatpush.bf16.msra.mxu0 %v5260
    %11066 = vmatpush.bf16.msra.mxu0 %v5252
    %11067 = vmatpush.bf16.msra.mxu0 %v5244
    %11068 = vmatmul.bf16.gmra.mxu0 %v9486
    %v11069 = vpop.f32.mrf.mxu0
    %v11070 = vadd.f32 %v11056, %v11069
    %v11071 = vpop.f32.mrf.mxu0
    %v11072 = vadd.f32 %v11058, %v11071
    %11073 = vdwg.mxu0
    %11074 = vmatpush.bf16.msra.mxu0 %v5364
    %11075 = vmatpush.bf16.msra.mxu0 %v5356
    %11076 = vmatpush.bf16.msra.mxu0 %v5348
    %11077 = vmatpush.bf16.msra.mxu0 %v5340
    %11078 = vmatpush.bf16.msra.mxu0 %v5332
    %11079 = vmatpush.bf16.msra.mxu0 %v5324
    %11080 = vmatpush.bf16.msra.mxu0 %v5316
    %11081 = vmatpush.bf16.msra.mxu0 %v5308
    %11082 = vmatmul.bf16.gmra.mxu0 %v9487
    %v11083 = vpop.f32.mrf.mxu0
    %v11084 = vadd.f32 %v11070, %v11083
    %v11085 = vpop.f32.mrf.mxu0
    %v11086 = vadd.f32 %v11072, %v11085
    %11087 = vdwg.mxu0
    %11088 = vmatpush.bf16.msra.mxu0 %v5428
    %11089 = vmatpush.bf16.msra.mxu0 %v5420
    %11090 = vmatpush.bf16.msra.mxu0 %v5412
    %11091 = vmatpush.bf16.msra.mxu0 %v5404
    %11092 = vmatpush.bf16.msra.mxu0 %v5396
    %11093 = vmatpush.bf16.msra.mxu0 %v5388
    %11094 = vmatpush.bf16.msra.mxu0 %v5380
    %11095 = vmatpush.bf16.msra.mxu0 %v5372
    %11096 = vmatmul.bf16.gmra.mxu0 %v9488
    %v11097 = vpop.f32.mrf.mxu0
    %v11098 = vadd.f32 %v11084, %v11097
    %v11099 = vpop.f32.mrf.mxu0
    %v11100 = vadd.f32 %v11086, %v11099
    %11101 = vdwg.mxu0
    %11102 = vmatpush.bf16.msra.mxu0 %v5492
    %11103 = vmatpush.bf16.msra.mxu0 %v5484
    %11104 = vmatpush.bf16.msra.mxu0 %v5476
    %11105 = vmatpush.bf16.msra.mxu0 %v5468
    %11106 = vmatpush.bf16.msra.mxu0 %v5460
    %11107 = vmatpush.bf16.msra.mxu0 %v5452
    %11108 = vmatpush.bf16.msra.mxu0 %v5444
    %11109 = vmatpush.bf16.msra.mxu0 %v5436
    %11110 = vmatmul.bf16.gmra.mxu0 %v9489
    %v11111 = vpop.f32.mrf.mxu0
    %v11112 = vadd.f32 %v11098, %v11111
    %v11113 = vpop.f32.mrf.mxu0
    %v11114 = vadd.f32 %v11100, %v11113
    %11115 = vdwg.mxu0
    %11116 = vmatpush.bf16.msra.mxu0 %v5556
    %11117 = vmatpush.bf16.msra.mxu0 %v5548
    %11118 = vmatpush.bf16.msra.mxu0 %v5540
    %11119 = vmatpush.bf16.msra.mxu0 %v5532
    %11120 = vmatpush.bf16.msra.mxu0 %v5524
    %11121 = vmatpush.bf16.msra.mxu0 %v5516
    %11122 = vmatpush.bf16.msra.mxu0 %v5508
    %11123 = vmatpush.bf16.msra.mxu0 %v5500
    %11124 = vmatmul.bf16.gmra.mxu0 %v9490
    %v11125 = vpop.f32.mrf.mxu0
    %v11126 = vadd.f32 %v11112, %v11125
    %v11127 = vpop.f32.mrf.mxu0
    %v11128 = vadd.f32 %v11114, %v11127
    %11129 = vdwg.mxu0
    %11130 = vmatpush.bf16.msra.mxu0 %v5620
    %11131 = vmatpush.bf16.msra.mxu0 %v5612
    %11132 = vmatpush.bf16.msra.mxu0 %v5604
    %11133 = vmatpush.bf16.msra.mxu0 %v5596
    %11134 = vmatpush.bf16.msra.mxu0 %v5588
    %11135 = vmatpush.bf16.msra.mxu0 %v5580
    %11136 = vmatpush.bf16.msra.mxu0 %v5572
    %11137 = vmatpush.bf16.msra.mxu0 %v5564
    %11138 = vmatmul.bf16.gmra.mxu0 %v9491
    %v11139 = vpop.f32.mrf.mxu0
    %v11140 = vadd.f32 %v11126, %v11139
    %v11141 = vpop.f32.mrf.mxu0
    %v11142 = vadd.f32 %v11128, %v11141
    %11143 = vdwg.mxu0
    %11144 = vmatpush.bf16.msra.mxu0 %v5684
    %11145 = vmatpush.bf16.msra.mxu0 %v5676
    %11146 = vmatpush.bf16.msra.mxu0 %v5668
    %11147 = vmatpush.bf16.msra.mxu0 %v5660
    %11148 = vmatpush.bf16.msra.mxu0 %v5652
    %11149 = vmatpush.bf16.msra.mxu0 %v5644
    %11150 = vmatpush.bf16.msra.mxu0 %v5636
    %11151 = vmatpush.bf16.msra.mxu0 %v5628
    %11152 = vmatmul.bf16.gmra.mxu0 %v9492
    %v11153 = vpop.f32.mrf.mxu0
    %v11154 = vadd.f32 %v11140, %v11153
    %v11155 = vpop.f32.mrf.mxu0
    %v11156 = vadd.f32 %v11142, %v11155
    %11157 = vdwg.mxu0
    %11158 = vmatpush.bf16.msra.mxu0 %v5748
    %11159 = vmatpush.bf16.msra.mxu0 %v5740
    %11160 = vmatpush.bf16.msra.mxu0 %v5732
    %11161 = vmatpush.bf16.msra.mxu0 %v5724
    %11162 = vmatpush.bf16.msra.mxu0 %v5716
    %11163 = vmatpush.bf16.msra.mxu0 %v5708
    %11164 = vmatpush.bf16.msra.mxu0 %v5700
    %11165 = vmatpush.bf16.msra.mxu0 %v5692
    %11166 = vmatmul.bf16.gmra.mxu0 %v9493
    %v11167 = vpop.f32.mrf.mxu0
    %v11168 = vadd.f32 %v11154, %v11167
    %v11169 = vpop.f32.mrf.mxu0
    %v11170 = vadd.f32 %v11156, %v11169
    %11171 = vdwg.mxu0
    %11172 = vmatpush.bf16.msra.mxu0 %v5812
    %11173 = vmatpush.bf16.msra.mxu0 %v5804
    %11174 = vmatpush.bf16.msra.mxu0 %v5796
    %11175 = vmatpush.bf16.msra.mxu0 %v5788
    %11176 = vmatpush.bf16.msra.mxu0 %v5780
    %11177 = vmatpush.bf16.msra.mxu0 %v5772
    %11178 = vmatpush.bf16.msra.mxu0 %v5764
    %11179 = vmatpush.bf16.msra.mxu0 %v5756
    %11180 = vmatmul.bf16.gmra.mxu0 %v9494
    %v11181 = vpop.f32.mrf.mxu0
    %v11182 = vadd.f32 %v11168, %v11181
    %v11183 = vpop.f32.mrf.mxu0
    %v11184 = vadd.f32 %v11170, %v11183
    %11185 = vdwg.mxu0
    %11186 = vmatpush.bf16.msra.mxu0 %v5876
    %11187 = vmatpush.bf16.msra.mxu0 %v5868
    %11188 = vmatpush.bf16.msra.mxu0 %v5860
    %11189 = vmatpush.bf16.msra.mxu0 %v5852
    %11190 = vmatpush.bf16.msra.mxu0 %v5844
    %11191 = vmatpush.bf16.msra.mxu0 %v5836
    %11192 = vmatpush.bf16.msra.mxu0 %v5828
    %11193 = vmatpush.bf16.msra.mxu0 %v5820
    %11194 = vmatmul.bf16.gmra.mxu0 %v9495
    %v11195 = vpop.f32.mrf.mxu0
    %v11196 = vadd.f32 %v11182, %v11195
    %v11197 = vpop.f32.mrf.mxu0
    %v11198 = vadd.f32 %v11184, %v11197
    %11199 = vdwg.mxu0
    %11200 = vmatpush.bf16.msra.mxu0 %v5940
    %11201 = vmatpush.bf16.msra.mxu0 %v5932
    %11202 = vmatpush.bf16.msra.mxu0 %v5924
    %11203 = vmatpush.bf16.msra.mxu0 %v5916
    %11204 = vmatpush.bf16.msra.mxu0 %v5908
    %11205 = vmatpush.bf16.msra.mxu0 %v5900
    %11206 = vmatpush.bf16.msra.mxu0 %v5892
    %11207 = vmatpush.bf16.msra.mxu0 %v5884
    %11208 = vmatmul.bf16.gmra.mxu0 %v9496
    %v11209 = vpop.f32.mrf.mxu0
    %v11210 = vadd.f32 %v11196, %v11209
    %v11211 = vpop.f32.mrf.mxu0
    %v11212 = vadd.f32 %v11198, %v11211
    %11213 = vdwg.mxu0
    %11214 = vmatpush.bf16.msra.mxu0 %v6004
    %11215 = vmatpush.bf16.msra.mxu0 %v5996
    %11216 = vmatpush.bf16.msra.mxu0 %v5988
    %11217 = vmatpush.bf16.msra.mxu0 %v5980
    %11218 = vmatpush.bf16.msra.mxu0 %v5972
    %11219 = vmatpush.bf16.msra.mxu0 %v5964
    %11220 = vmatpush.bf16.msra.mxu0 %v5956
    %11221 = vmatpush.bf16.msra.mxu0 %v5948
    %11222 = vmatmul.bf16.gmra.mxu0 %v9497
    %v11223 = vpop.f32.mrf.mxu0
    %v11224 = vadd.f32 %v11210, %v11223
    %v11225 = vpop.f32.mrf.mxu0
    %v11226 = vadd.f32 %v11212, %v11225
    %11227 = vdwg.mxu0
    %11228 = vmatpush.bf16.msra.mxu0 %v6068
    %11229 = vmatpush.bf16.msra.mxu0 %v6060
    %11230 = vmatpush.bf16.msra.mxu0 %v6052
    %11231 = vmatpush.bf16.msra.mxu0 %v6044
    %11232 = vmatpush.bf16.msra.mxu0 %v6036
    %11233 = vmatpush.bf16.msra.mxu0 %v6028
    %11234 = vmatpush.bf16.msra.mxu0 %v6020
    %11235 = vmatpush.bf16.msra.mxu0 %v6012
    %11236 = vmatmul.bf16.gmra.mxu0 %v9498
    %v11237 = vpop.f32.mrf.mxu0
    %v11238 = vadd.f32 %v11224, %v11237
    %v11239 = vpop.f32.mrf.mxu0
    %v11240 = vadd.f32 %v11226, %v11239
    %11241 = vdwg.mxu0
    %11242 = vmatpush.bf16.msra.mxu0 %v6132
    %11243 = vmatpush.bf16.msra.mxu0 %v6124
    %11244 = vmatpush.bf16.msra.mxu0 %v6116
    %11245 = vmatpush.bf16.msra.mxu0 %v6108
    %11246 = vmatpush.bf16.msra.mxu0 %v6100
    %11247 = vmatpush.bf16.msra.mxu0 %v6092
    %11248 = vmatpush.bf16.msra.mxu0 %v6084
    %11249 = vmatpush.bf16.msra.mxu0 %v6076
    %11250 = vmatmul.bf16.gmra.mxu0 %v9499
    %v11251 = vpop.f32.mrf.mxu0
    %v11252 = vadd.f32 %v11238, %v11251
    %v11253 = vpop.f32.mrf.mxu0
    %v11254 = vadd.f32 %v11240, %v11253
    %11255 = vdwg.mxu0
    %11256 = vmatpush.bf16.msra.mxu0 %v6196
    %11257 = vmatpush.bf16.msra.mxu0 %v6188
    %11258 = vmatpush.bf16.msra.mxu0 %v6180
    %11259 = vmatpush.bf16.msra.mxu0 %v6172
    %11260 = vmatpush.bf16.msra.mxu0 %v6164
    %11261 = vmatpush.bf16.msra.mxu0 %v6156
    %11262 = vmatpush.bf16.msra.mxu0 %v6148
    %11263 = vmatpush.bf16.msra.mxu0 %v6140
    %11264 = vmatmul.bf16.gmra.mxu0 %v9500
    %v11265 = vpop.f32.mrf.mxu0
    %v11266 = vadd.f32 %v11252, %v11265
    %v11267 = vpop.f32.mrf.mxu0
    %v11268 = vadd.f32 %v11254, %v11267
    %11269 = vdwg.mxu0
    %11270 = vmatpush.bf16.msra.mxu0 %v6260
    %11271 = vmatpush.bf16.msra.mxu0 %v6252
    %11272 = vmatpush.bf16.msra.mxu0 %v6244
    %11273 = vmatpush.bf16.msra.mxu0 %v6236
    %11274 = vmatpush.bf16.msra.mxu0 %v6228
    %11275 = vmatpush.bf16.msra.mxu0 %v6220
    %11276 = vmatpush.bf16.msra.mxu0 %v6212
    %11277 = vmatpush.bf16.msra.mxu0 %v6204
    %11278 = vmatmul.bf16.gmra.mxu0 %v9501
    %v11279 = vpop.f32.mrf.mxu0
    %v11280 = vadd.f32 %v11266, %v11279
    %v11281 = vpop.f32.mrf.mxu0
    %v11282 = vadd.f32 %v11268, %v11281
    %11283 = vdwg.mxu0
    %11284 = vmatpush.bf16.msra.mxu0 %v5173
    %11285 = vmatpush.bf16.msra.mxu0 %v5165
    %11286 = vmatpush.bf16.msra.mxu0 %v5157
    %11287 = vmatpush.bf16.msra.mxu0 %v5149
    %11288 = vmatpush.bf16.msra.mxu0 %v5141
    %11289 = vmatpush.bf16.msra.mxu0 %v5133
    %11290 = vmatpush.bf16.msra.mxu0 %v5125
    %11291 = vmatpush.bf16.msra.mxu0 %v5117
    %11292 = vmatmul.bf16.gmra.mxu0 %v9484
    %v11293 = vpop.f32.mrf.mxu0
    %v11294 = vadd.f32 %v9426, %v11293
    %v11295 = vpop.f32.mrf.mxu0
    %v11296 = vadd.f32 %v9428, %v11295
    %11297 = vdwg.mxu0
    %11298 = vmatpush.bf16.msra.mxu0 %v5237
    %11299 = vmatpush.bf16.msra.mxu0 %v5229
    %11300 = vmatpush.bf16.msra.mxu0 %v5221
    %11301 = vmatpush.bf16.msra.mxu0 %v5213
    %11302 = vmatpush.bf16.msra.mxu0 %v5205
    %11303 = vmatpush.bf16.msra.mxu0 %v5197
    %11304 = vmatpush.bf16.msra.mxu0 %v5189
    %11305 = vmatpush.bf16.msra.mxu0 %v5181
    %11306 = vmatmul.bf16.gmra.mxu0 %v9485
    %v11307 = vpop.f32.mrf.mxu0
    %v11308 = vadd.f32 %v11294, %v11307
    %v11309 = vpop.f32.mrf.mxu0
    %v11310 = vadd.f32 %v11296, %v11309
    %11311 = vdwg.mxu0
    %11312 = vmatpush.bf16.msra.mxu0 %v5301
    %11313 = vmatpush.bf16.msra.mxu0 %v5293
    %11314 = vmatpush.bf16.msra.mxu0 %v5285
    %11315 = vmatpush.bf16.msra.mxu0 %v5277
    %11316 = vmatpush.bf16.msra.mxu0 %v5269
    %11317 = vmatpush.bf16.msra.mxu0 %v5261
    %11318 = vmatpush.bf16.msra.mxu0 %v5253
    %11319 = vmatpush.bf16.msra.mxu0 %v5245
    %11320 = vmatmul.bf16.gmra.mxu0 %v9486
    %v11321 = vpop.f32.mrf.mxu0
    %v11322 = vadd.f32 %v11308, %v11321
    %v11323 = vpop.f32.mrf.mxu0
    %v11324 = vadd.f32 %v11310, %v11323
    %11325 = vdwg.mxu0
    %11326 = vmatpush.bf16.msra.mxu0 %v5365
    %11327 = vmatpush.bf16.msra.mxu0 %v5357
    %11328 = vmatpush.bf16.msra.mxu0 %v5349
    %11329 = vmatpush.bf16.msra.mxu0 %v5341
    %11330 = vmatpush.bf16.msra.mxu0 %v5333
    %11331 = vmatpush.bf16.msra.mxu0 %v5325
    %11332 = vmatpush.bf16.msra.mxu0 %v5317
    %11333 = vmatpush.bf16.msra.mxu0 %v5309
    %11334 = vmatmul.bf16.gmra.mxu0 %v9487
    %v11335 = vpop.f32.mrf.mxu0
    %v11336 = vadd.f32 %v11322, %v11335
    %v11337 = vpop.f32.mrf.mxu0
    %v11338 = vadd.f32 %v11324, %v11337
    %11339 = vdwg.mxu0
    %11340 = vmatpush.bf16.msra.mxu0 %v5429
    %11341 = vmatpush.bf16.msra.mxu0 %v5421
    %11342 = vmatpush.bf16.msra.mxu0 %v5413
    %11343 = vmatpush.bf16.msra.mxu0 %v5405
    %11344 = vmatpush.bf16.msra.mxu0 %v5397
    %11345 = vmatpush.bf16.msra.mxu0 %v5389
    %11346 = vmatpush.bf16.msra.mxu0 %v5381
    %11347 = vmatpush.bf16.msra.mxu0 %v5373
    %11348 = vmatmul.bf16.gmra.mxu0 %v9488
    %v11349 = vpop.f32.mrf.mxu0
    %v11350 = vadd.f32 %v11336, %v11349
    %v11351 = vpop.f32.mrf.mxu0
    %v11352 = vadd.f32 %v11338, %v11351
    %11353 = vdwg.mxu0
    %11354 = vmatpush.bf16.msra.mxu0 %v5493
    %11355 = vmatpush.bf16.msra.mxu0 %v5485
    %11356 = vmatpush.bf16.msra.mxu0 %v5477
    %11357 = vmatpush.bf16.msra.mxu0 %v5469
    %11358 = vmatpush.bf16.msra.mxu0 %v5461
    %11359 = vmatpush.bf16.msra.mxu0 %v5453
    %11360 = vmatpush.bf16.msra.mxu0 %v5445
    %11361 = vmatpush.bf16.msra.mxu0 %v5437
    %11362 = vmatmul.bf16.gmra.mxu0 %v9489
    %v11363 = vpop.f32.mrf.mxu0
    %v11364 = vadd.f32 %v11350, %v11363
    %v11365 = vpop.f32.mrf.mxu0
    %v11366 = vadd.f32 %v11352, %v11365
    %11367 = vdwg.mxu0
    %11368 = vmatpush.bf16.msra.mxu0 %v5557
    %11369 = vmatpush.bf16.msra.mxu0 %v5549
    %11370 = vmatpush.bf16.msra.mxu0 %v5541
    %11371 = vmatpush.bf16.msra.mxu0 %v5533
    %11372 = vmatpush.bf16.msra.mxu0 %v5525
    %11373 = vmatpush.bf16.msra.mxu0 %v5517
    %11374 = vmatpush.bf16.msra.mxu0 %v5509
    %11375 = vmatpush.bf16.msra.mxu0 %v5501
    %11376 = vmatmul.bf16.gmra.mxu0 %v9490
    %v11377 = vpop.f32.mrf.mxu0
    %v11378 = vadd.f32 %v11364, %v11377
    %v11379 = vpop.f32.mrf.mxu0
    %v11380 = vadd.f32 %v11366, %v11379
    %11381 = vdwg.mxu0
    %11382 = vmatpush.bf16.msra.mxu0 %v5621
    %11383 = vmatpush.bf16.msra.mxu0 %v5613
    %11384 = vmatpush.bf16.msra.mxu0 %v5605
    %11385 = vmatpush.bf16.msra.mxu0 %v5597
    %11386 = vmatpush.bf16.msra.mxu0 %v5589
    %11387 = vmatpush.bf16.msra.mxu0 %v5581
    %11388 = vmatpush.bf16.msra.mxu0 %v5573
    %11389 = vmatpush.bf16.msra.mxu0 %v5565
    %11390 = vmatmul.bf16.gmra.mxu0 %v9491
    %v11391 = vpop.f32.mrf.mxu0
    %v11392 = vadd.f32 %v11378, %v11391
    %v11393 = vpop.f32.mrf.mxu0
    %v11394 = vadd.f32 %v11380, %v11393
    %11395 = vdwg.mxu0
    %11396 = vmatpush.bf16.msra.mxu0 %v5685
    %11397 = vmatpush.bf16.msra.mxu0 %v5677
    %11398 = vmatpush.bf16.msra.mxu0 %v5669
    %11399 = vmatpush.bf16.msra.mxu0 %v5661
    %11400 = vmatpush.bf16.msra.mxu0 %v5653
    %11401 = vmatpush.bf16.msra.mxu0 %v5645
    %11402 = vmatpush.bf16.msra.mxu0 %v5637
    %11403 = vmatpush.bf16.msra.mxu0 %v5629
    %11404 = vmatmul.bf16.gmra.mxu0 %v9492
    %v11405 = vpop.f32.mrf.mxu0
    %v11406 = vadd.f32 %v11392, %v11405
    %v11407 = vpop.f32.mrf.mxu0
    %v11408 = vadd.f32 %v11394, %v11407
    %11409 = vdwg.mxu0
    %11410 = vmatpush.bf16.msra.mxu0 %v5749
    %11411 = vmatpush.bf16.msra.mxu0 %v5741
    %11412 = vmatpush.bf16.msra.mxu0 %v5733
    %11413 = vmatpush.bf16.msra.mxu0 %v5725
    %11414 = vmatpush.bf16.msra.mxu0 %v5717
    %11415 = vmatpush.bf16.msra.mxu0 %v5709
    %11416 = vmatpush.bf16.msra.mxu0 %v5701
    %11417 = vmatpush.bf16.msra.mxu0 %v5693
    %11418 = vmatmul.bf16.gmra.mxu0 %v9493
    %v11419 = vpop.f32.mrf.mxu0
    %v11420 = vadd.f32 %v11406, %v11419
    %v11421 = vpop.f32.mrf.mxu0
    %v11422 = vadd.f32 %v11408, %v11421
    %11423 = vdwg.mxu0
    %11424 = vmatpush.bf16.msra.mxu0 %v5813
    %11425 = vmatpush.bf16.msra.mxu0 %v5805
    %11426 = vmatpush.bf16.msra.mxu0 %v5797
    %11427 = vmatpush.bf16.msra.mxu0 %v5789
    %11428 = vmatpush.bf16.msra.mxu0 %v5781
    %11429 = vmatpush.bf16.msra.mxu0 %v5773
    %11430 = vmatpush.bf16.msra.mxu0 %v5765
    %11431 = vmatpush.bf16.msra.mxu0 %v5757
    %11432 = vmatmul.bf16.gmra.mxu0 %v9494
    %v11433 = vpop.f32.mrf.mxu0
    %v11434 = vadd.f32 %v11420, %v11433
    %v11435 = vpop.f32.mrf.mxu0
    %v11436 = vadd.f32 %v11422, %v11435
    %11437 = vdwg.mxu0
    %11438 = vmatpush.bf16.msra.mxu0 %v5877
    %11439 = vmatpush.bf16.msra.mxu0 %v5869
    %11440 = vmatpush.bf16.msra.mxu0 %v5861
    %11441 = vmatpush.bf16.msra.mxu0 %v5853
    %11442 = vmatpush.bf16.msra.mxu0 %v5845
    %11443 = vmatpush.bf16.msra.mxu0 %v5837
    %11444 = vmatpush.bf16.msra.mxu0 %v5829
    %11445 = vmatpush.bf16.msra.mxu0 %v5821
    %11446 = vmatmul.bf16.gmra.mxu0 %v9495
    %v11447 = vpop.f32.mrf.mxu0
    %v11448 = vadd.f32 %v11434, %v11447
    %v11449 = vpop.f32.mrf.mxu0
    %v11450 = vadd.f32 %v11436, %v11449
    %11451 = vdwg.mxu0
    %11452 = vmatpush.bf16.msra.mxu0 %v5941
    %11453 = vmatpush.bf16.msra.mxu0 %v5933
    %11454 = vmatpush.bf16.msra.mxu0 %v5925
    %11455 = vmatpush.bf16.msra.mxu0 %v5917
    %11456 = vmatpush.bf16.msra.mxu0 %v5909
    %11457 = vmatpush.bf16.msra.mxu0 %v5901
    %11458 = vmatpush.bf16.msra.mxu0 %v5893
    %11459 = vmatpush.bf16.msra.mxu0 %v5885
    %11460 = vmatmul.bf16.gmra.mxu0 %v9496
    %v11461 = vpop.f32.mrf.mxu0
    %v11462 = vadd.f32 %v11448, %v11461
    %v11463 = vpop.f32.mrf.mxu0
    %v11464 = vadd.f32 %v11450, %v11463
    %11465 = vdwg.mxu0
    %11466 = vmatpush.bf16.msra.mxu0 %v6005
    %11467 = vmatpush.bf16.msra.mxu0 %v5997
    %11468 = vmatpush.bf16.msra.mxu0 %v5989
    %11469 = vmatpush.bf16.msra.mxu0 %v5981
    %11470 = vmatpush.bf16.msra.mxu0 %v5973
    %11471 = vmatpush.bf16.msra.mxu0 %v5965
    %11472 = vmatpush.bf16.msra.mxu0 %v5957
    %11473 = vmatpush.bf16.msra.mxu0 %v5949
    %11474 = vmatmul.bf16.gmra.mxu0 %v9497
    %v11475 = vpop.f32.mrf.mxu0
    %v11476 = vadd.f32 %v11462, %v11475
    %v11477 = vpop.f32.mrf.mxu0
    %v11478 = vadd.f32 %v11464, %v11477
    %11479 = vdwg.mxu0
    %11480 = vmatpush.bf16.msra.mxu0 %v6069
    %11481 = vmatpush.bf16.msra.mxu0 %v6061
    %11482 = vmatpush.bf16.msra.mxu0 %v6053
    %11483 = vmatpush.bf16.msra.mxu0 %v6045
    %11484 = vmatpush.bf16.msra.mxu0 %v6037
    %11485 = vmatpush.bf16.msra.mxu0 %v6029
    %11486 = vmatpush.bf16.msra.mxu0 %v6021
    %11487 = vmatpush.bf16.msra.mxu0 %v6013
    %11488 = vmatmul.bf16.gmra.mxu0 %v9498
    %v11489 = vpop.f32.mrf.mxu0
    %v11490 = vadd.f32 %v11476, %v11489
    %v11491 = vpop.f32.mrf.mxu0
    %v11492 = vadd.f32 %v11478, %v11491
    %11493 = vdwg.mxu0
    %11494 = vmatpush.bf16.msra.mxu0 %v6133
    %11495 = vmatpush.bf16.msra.mxu0 %v6125
    %11496 = vmatpush.bf16.msra.mxu0 %v6117
    %11497 = vmatpush.bf16.msra.mxu0 %v6109
    %11498 = vmatpush.bf16.msra.mxu0 %v6101
    %11499 = vmatpush.bf16.msra.mxu0 %v6093
    %11500 = vmatpush.bf16.msra.mxu0 %v6085
    %11501 = vmatpush.bf16.msra.mxu0 %v6077
    %11502 = vmatmul.bf16.gmra.mxu0 %v9499
    %v11503 = vpop.f32.mrf.mxu0
    %v11504 = vadd.f32 %v11490, %v11503
    %v11505 = vpop.f32.mrf.mxu0
    %v11506 = vadd.f32 %v11492, %v11505
    %11507 = vdwg.mxu0
    %11508 = vmatpush.bf16.msra.mxu0 %v6197
    %11509 = vmatpush.bf16.msra.mxu0 %v6189
    %11510 = vmatpush.bf16.msra.mxu0 %v6181
    %11511 = vmatpush.bf16.msra.mxu0 %v6173
    %11512 = vmatpush.bf16.msra.mxu0 %v6165
    %11513 = vmatpush.bf16.msra.mxu0 %v6157
    %11514 = vmatpush.bf16.msra.mxu0 %v6149
    %11515 = vmatpush.bf16.msra.mxu0 %v6141
    %11516 = vmatmul.bf16.gmra.mxu0 %v9500
    %v11517 = vpop.f32.mrf.mxu0
    %v11518 = vadd.f32 %v11504, %v11517
    %v11519 = vpop.f32.mrf.mxu0
    %v11520 = vadd.f32 %v11506, %v11519
    %11521 = vdwg.mxu0
    %11522 = vmatpush.bf16.msra.mxu0 %v6261
    %11523 = vmatpush.bf16.msra.mxu0 %v6253
    %11524 = vmatpush.bf16.msra.mxu0 %v6245
    %11525 = vmatpush.bf16.msra.mxu0 %v6237
    %11526 = vmatpush.bf16.msra.mxu0 %v6229
    %11527 = vmatpush.bf16.msra.mxu0 %v6221
    %11528 = vmatpush.bf16.msra.mxu0 %v6213
    %11529 = vmatpush.bf16.msra.mxu0 %v6205
    %11530 = vmatmul.bf16.gmra.mxu0 %v9501
    %v11531 = vpop.f32.mrf.mxu0
    %v11532 = vadd.f32 %v11518, %v11531
    %v11533 = vpop.f32.mrf.mxu0
    %v11534 = vadd.f32 %v11520, %v11533
    %11535 = vdwg.mxu0
    %v11536 = vld [vmem:[%s3] sm:$0xff]
    %v11537 = vld [vmem:[%s3 + $0x8] sm:$0xff]
    %11539 = vset.pattern.permute.xlu0 0
    %11540 = vperm.xlu0 %11539, %v11536
    %v11541 = vpop.permute.xlu0 %11540
    %11544 = vset.pattern.permute.xlu0 0
    %11545 = vperm.xlu0 %11544, %v11537
    %v11546 = vpop.permute.xlu0 %11545
    %v11548 = vmul.f32 %v9768, %v11541
    %v11549 = vmul.f32 %v10020, %v11541
    %v11550 = vmul.f32 %v10272, %v11541
    %v11551 = vmul.f32 %v10524, %v11541
    %v11552 = vmul.f32 %v10776, %v11541
    %v11553 = vmul.f32 %v11028, %v11541
    %v11554 = vmul.f32 %v11280, %v11541
    %v11555 = vmul.f32 %v11532, %v11541
    %v11556 = vmul.f32 %v9770, %v11546
    %v11557 = vmul.f32 %v10022, %v11546
    %v11558 = vmul.f32 %v10274, %v11546
    %v11559 = vmul.f32 %v10526, %v11546
    %v11560 = vmul.f32 %v10778, %v11546
    %v11561 = vmul.f32 %v11030, %v11546
    %v11562 = vmul.f32 %v11282, %v11546
    %v11563 = vmul.f32 %v11534, %v11546
    %v11564 = vld [vmem:[%s4] sm:$0xff]
    %v11565 = vld [vmem:[%s4 + $0x8] sm:$0xff]
    %11567 = vset.pattern.permute.xlu0 0
    %11568 = vperm.xlu0 %11567, %v11564
    %v11569 = vpop.permute.xlu0 %11568
    %11572 = vset.pattern.permute.xlu0 0
    %11573 = vperm.xlu0 %11572, %v11565
    %v11574 = vpop.permute.xlu0 %11573
    %v11576 = vadd.f32 %v11548, %v11569
    %v11577 = vadd.f32 %v11549, %v11569
    %v11578 = vadd.f32 %v11550, %v11569
    %v11579 = vadd.f32 %v11551, %v11569
    %v11580 = vadd.f32 %v11552, %v11569
    %v11581 = vadd.f32 %v11553, %v11569
    %v11582 = vadd.f32 %v11554, %v11569
    %v11583 = vadd.f32 %v11555, %v11569
    %v11584 = vadd.f32 %v11556, %v11574
    %v11585 = vadd.f32 %v11557, %v11574
    %v11586 = vadd.f32 %v11558, %v11574
    %v11587 = vadd.f32 %v11559, %v11574
    %v11588 = vadd.f32 %v11560, %v11574
    %v11589 = vadd.f32 %v11561, %v11574
    %v11590 = vadd.f32 %v11562, %v11574
    %v11591 = vadd.f32 %v11563, %v11574
    %v11592 = vmax.f32 %v11576, 0.0
    %v11593 = vmax.f32 %v11577, 0.0
    %v11594 = vmax.f32 %v11578, 0.0
    %v11595 = vmax.f32 %v11579, 0.0
    %v11596 = vmax.f32 %v11580, 0.0
    %v11597 = vmax.f32 %v11581, 0.0
    %v11598 = vmax.f32 %v11582, 0.0
    %v11599 = vmax.f32 %v11583, 0.0
    %v11600 = vmax.f32 %v11584, 0.0
    %v11601 = vmax.f32 %v11585, 0.0
    %v11602 = vmax.f32 %v11586, 0.0
    %v11603 = vmax.f32 %v11587, 0.0
    %v11604 = vmax.f32 %v11588, 0.0
    %v11605 = vmax.f32 %v11589, 0.0
    %v11606 = vmax.f32 %v11590, 0.0
    %v11607 = vmax.f32 %v11591, 0.0
    %11608 = vst [vmem:[#allocation8] sm:$0xff] %v11592
    %11609 = vst [vmem:[#allocation8 + $0x8] sm:$0xff] %v11593
    %11610 = vst [vmem:[#allocation8 + $0x10] sm:$0xff] %v11594
    %11611 = vst [vmem:[#allocation8 + $0x18] sm:$0xff] %v11595
    %11612 = vst [vmem:[#allocation8 + $0x20] sm:$0xff] %v11596
    %11613 = vst [vmem:[#allocation8 + $0x28] sm:$0xff] %v11597
    %11614 = vst [vmem:[#allocation8 + $0x30] sm:$0xff] %v11598
    %11615 = vst [vmem:[#allocation8 + $0x38] sm:$0xff] %v11599
    %11616 = vst [vmem:[#allocation8 + $0x40] sm:$0xff] %v11600
    %11617 = vst [vmem:[#allocation8 + $0x48] sm:$0xff] %v11601
    %11618 = vst [vmem:[#allocation8 + $0x50] sm:$0xff] %v11602
    %11619 = vst [vmem:[#allocation8 + $0x58] sm:$0xff] %v11603
    %11620 = vst [vmem:[#allocation8 + $0x60] sm:$0xff] %v11604
    %11621 = vst [vmem:[#allocation8 + $0x68] sm:$0xff] %v11605
    %11622 = vst [vmem:[#allocation8 + $0x70] sm:$0xff] %v11606
    %11623 = vst [vmem:[#allocation8 + $0x78] sm:$0xff] %v11607
    // Predicated region
    $region30: #{tpu_custom_call.1} parent=1 // pred_check
      _
    $region31: #{tpu_custom_call.1} parent=1 // pred_check_branch
      %11625 = sbr.rel (0) target = $region33
    $region32: #{tpu_custom_call.1} parent=1 // pred_region
      %11627 = vsyncadd [#allocation5], 0
      %s11628 = sshll.u32 [#allocation8], 4
      %s11629 = int_to_ptr.vmem [resolvable:$true] %s11628
      %s11630 = sshll.u32 %s5, 4
      %s11631 = int_to_ptr.hbm [resolvable:$true] %s11630
      %11636 = dma.vmem_to_hbm [thread:$0]  %s11629, 2048, %s11631, [#allocation5], 1024, 1024, 64
    $region33: #{tpu_custom_call.1} parent=1 // pred_fallthru
      _
    // Predicated region
    $region34: #{tpu_custom_call.1} parent=1 // pred_check
      _
    $region35: #{tpu_custom_call.1} parent=1 // pred_check_branch
      %11638 = sbr.rel (0) target = $region37
    $region36: #{tpu_custom_call.1} parent=1 // pred_region
      %11640 = dma.done [#allocation5], 2048
    $region37: #{tpu_custom_call.1} parent=1 // pred_fallthru
      _
    %11641 = vsyncpa [#allocation4], 1
    %11642 = vsyncpa [#allocation7], 1
    %11643 = vsyncpa [#allocation5], 1

</llo_original>
